<compile_context>
chip_gen: v7x
topology: tpu7x:2x2x1
jax: 0.10.0
libtpu: 0.0.40
codegen_flags: <defaults>
</compile_context>

<pallas_src>
import jax
import jax.numpy as jnp
from jax.experimental import pallas as pl
from jax.experimental.pallas import tpu as pltpu


_PARAM_ORDER = (
    "wcn1", "bcn1", "wcn2", "bcn2", "wcn3", "bcn3",
    "wrs1", "brs1", "wrs2", "brs2", "wrs3", "brs3",
    "wij1", "bij1", "wij2", "bij2",
    "wl1", "bl1", "wl2", "bl2",
)


def _round_up(v, m):
    return (v + m - 1) // m * m


def _mlp3(h, w1, b1, w2, b2, w3, b3):
    # Linear -> ReLU -> Linear -> ReLU -> Linear  (dropout = identity in eval)
    h = jnp.maximum(jnp.dot(h, w1, preferred_element_type=jnp.float32) + b1, 0.0)
    h = jnp.maximum(jnp.dot(h, w2, preferred_element_type=jnp.float32) + b2, 0.0)
    return jnp.dot(h, w3, preferred_element_type=jnp.float32) + b3


# ----------------------------- Pallas kernel -------------------------------- #

def _make_kernel(x_resident, tn):
    def kernel(ai_ref, aj_ref, x_ref, xij_ref, beta_ref,
               wcn1, bcn1, wcn2, bcn2, wcn3, bcn3,
               wrs1, brs1, wrs2, brs2, wrs3, brs3,
               wij1, bij1, wij2, bij2,
               wl1, bl1, wl2, bl2,
               out_ref, acc_cn_ref, acc_sum_ref):
        k = pl.program_id(1)

        @pl.when(k == 0)
        def _():
            acc_cn_ref[...] = jnp.zeros_like(acc_cn_ref)
            acc_sum_ref[...] = jnp.zeros_like(acc_sum_ref)

        # int8 adjacency rows (values strictly 0/1, exact); build masks in f32
        # on the VPU (v5e has no bf16 VALU; cast is filler under the HBM bound).
        ai = ai_ref[...].astype(jnp.float32)          # (TE, TN)
        aj = aj_ref[...].astype(jnp.float32)          # (TE, TN)

        if x_resident:
            start = pl.multiple_of(k * tn, tn)
            xblk = x_ref[pl.ds(start, tn), :]          # (TN, D_in) slice of resident x
        else:
            xblk = x_ref[...]                          # streamed (TN, D_in) block

        # Two M=TE MXU calls straight into the accumulators — no concat temp.
        acc_cn_ref[...] += jnp.dot(ai * aj, xblk,
                                   preferred_element_type=jnp.float32)
        acc_sum_ref[...] += jnp.dot(ai + aj, xblk,
                                    preferred_element_type=jnp.float32)

        @pl.when(k == pl.num_programs(1) - 1)
        def _():
            xcn = acc_cn_ref[...]                      # (Ai*Aj) @ x
            xres = acc_sum_ref[...] - 2.0 * xcn        # (Ai+Aj-2*Ai*Aj) @ x

            # xcnlin / xcnreslin : 3-layer MLPs
            xcn_o = _mlp3(xcn, wcn1[...], bcn1[...], wcn2[...], bcn2[...],
                          wcn3[...], bcn3[...])
            xres_o = _mlp3(xres, wrs1[...], brs1[...], wrs2[...], brs2[...],
                           wrs3[...], brs3[...])

            # xijlin(xi * xj) : Linear -> ReLU -> Linear
            hij = jnp.maximum(
                jnp.dot(xij_ref[...], wij1[...],
                        preferred_element_type=jnp.float32) + bij1[...], 0.0)
            xij_o = jnp.dot(hij, wij2[...],
                            preferred_element_type=jnp.float32) + bij2[...]

            # combine with learnable beta (SMEM scalar), lin: Linear->ReLU->Linear
            z = xcn_o * beta_ref[0] + xres_o + xij_o
            h = jnp.maximum(
                jnp.dot(z, wl1[...], preferred_element_type=jnp.float32)
                + bl1[...], 0.0)
            out_ref[...] = (jnp.dot(h, wl2[...],
                                    preferred_element_type=jnp.float32)
                            + bl2[...]).astype(out_ref.dtype)

    return kernel


# ------------------------------- wrapper ------------------------------------- #

def cn_res_link_predictor(x, adj_dense, tar_ei, params, *, te=256, tn=1024):
    """Gather glue (single-touch int8 adjacency rows) + one tiled Pallas call."""
    N, d_in = x.shape
    E = tar_ei.shape[1]
    hid = params["wl1"].shape[0]
    out_ch = params["wl2"].shape[1]

    # --- tile sizes, clamped to the (padded) problem size -------------------- #
    te = max(32, min(te, _round_up(E, 32)))
    te = _round_up(te, 32)                       # int8 sublane tile is 32
    e_pad = _round_up(E, te)

    tn = max(128, min(tn, _round_up(N, 128)))
    tn = _round_up(tn, 128)
    n_pad = _round_up(N, tn)

    # --- adjacency: int8, columns padded once, gathered directly padded ------ #
    # (no jnp.pad round-trip on the gathered (E, N) rows; padded edge indices use
    #  index 0 as a harmless sentinel — those output rows are sliced off below)
    adj_i8 = jnp.pad(adj_dense.astype(jnp.int8), ((0, 0), (0, n_pad - N)))
    ei = jnp.pad(tar_ei, ((0, 0), (0, e_pad - E)))          # pads with index 0
    src, dst = ei[0], ei[1]
    ai = adj_i8[src]                                        # (e_pad, n_pad) int8
    aj = adj_i8[dst]                                        # (e_pad, n_pad) int8
    xij = x[src] * x[dst]                                   # (e_pad, d_in) f32

    x_p = jnp.pad(x, ((0, n_pad - N), (0, 0)))              # (n_pad, d_in) f32

    # --- lane-dense output: pad the final Linear to a multiple of 128 lanes -- #
    out_lanes = _round_up(max(out_ch, 128), 128)
    wl2_p = jnp.pad(params["wl2"], ((0, 0), (0, out_lanes - out_ch)))
    bl2_p = jnp.pad(params["bl2"], ((0, 0), (0, out_lanes - out_ch)))
    p2 = dict(params)
    p2["wl2"], p2["bl2"] = wl2_p, bl2_p
    param_arrays = tuple(p2[name] for name in _PARAM_ORDER)

    # --- keep x fully VMEM-resident when small (removes per-e-tile re-stream) - #
    x_resident = (n_pad * d_in * 4) <= (4 * 1024 * 1024)
    if x_resident:
        x_spec = pl.BlockSpec((n_pad, d_in), lambda e, k: (0, 0))
    else:
        x_spec = pl.BlockSpec((tn, d_in), lambda e, k: (k, 0))

    grid = (e_pad // te, n_pad // tn)

    param_specs = [pl.BlockSpec(a.shape, lambda e, k: (0, 0))
                   for a in param_arrays]
    in_specs = [
        pl.BlockSpec((te, tn), lambda e, k: (e, k)),               # ai (int8)
        pl.BlockSpec((te, tn), lambda e, k: (e, k)),               # aj (int8)
        x_spec,                                                    # x
        pl.BlockSpec((te, d_in), lambda e, k: (e, 0)),             # xij
        pl.BlockSpec(memory_space=pltpu.MemorySpace.SMEM),         # beta scalar
    ] + param_specs
    out_specs = pl.BlockSpec((te, out_lanes), lambda e, k: (e, 0))

    inputs = (ai, aj, x_p, xij, params["beta"]) + param_arrays

    out = pl.pallas_call(
        _make_kernel(x_resident, tn),
        out_shape=jax.ShapeDtypeStruct((e_pad, out_lanes), jnp.float32),
        grid_spec=pltpu.PrefetchScalarGridSpec(
            num_scalar_prefetch=0,
            grid=grid,
            in_specs=in_specs,
            out_specs=out_specs,
            scratch_shapes=[pltpu.VMEM((te, d_in), jnp.float32),   # xcn acc
                            pltpu.VMEM((te, d_in), jnp.float32)],  # xsum acc
        ),
        compiler_params=pltpu.CompilerParams(
            dimension_semantics=("parallel", "arbitrary"),
            vmem_limit_bytes=40 * 1024 * 1024),
    )(*inputs)

    return out[:E, :out_ch]


# --------------------------- pure-JAX reference ------------------------------ #

def ref_forward(x, adj_dense, tar_ei, p):
    ai = adj_dense[tar_ei[0]].astype(jnp.float32)
    aj = adj_dense[tar_ei[1]].astype(jnp.float32)
    cn = ai * aj
    res = ai + aj - 2.0 * cn
    xcn = cn @ x
    xres = res @ x
    xij_in = x[tar_ei[0]] * x[tar_ei[1]]

    def mlp3(h, w1, b1, w2, b2, w3, b3):
        h = jnp.maximum(h @ w1 + b1, 0.0)
        h = jnp.maximum(h @ w2 + b2, 0.0)
        return h @ w3 + b3

    xcn_o = mlp3(xcn, p["wcn1"], p["bcn1"], p["wcn2"], p["bcn2"], p["wcn3"], p["bcn3"])
    xres_o = mlp3(xres, p["wrs1"], p["brs1"], p["wrs2"], p["brs2"], p["wrs3"], p["brs3"])
    hij = jnp.maximum(xij_in @ p["wij1"] + p["bij1"], 0.0)
    xij_o = hij @ p["wij2"] + p["bij2"]
    z = xcn_o * p["beta"][0] + xres_o + xij_o
    h = jnp.maximum(z @ p["wl1"] + p["bl1"], 0.0)
    return h @ p["wl2"] + p["bl2"]


# ------------------------------ param init ----------------------------------- #

def init_params(key, in_channels, hidden_channels, out_channels, beta=1.0):
    specs = {
        "wcn1": (in_channels, hidden_channels), "bcn1": (1, hidden_channels),
        "wcn2": (hidden_channels, hidden_channels), "bcn2": (1, hidden_channels),
        "wcn3": (hidden_channels, hidden_channels), "bcn3": (1, hidden_channels),
        "wrs1": (in_channels, hidden_channels), "brs1": (1, hidden_channels),
        "wrs2": (hidden_channels, hidden_channels), "brs2": (1, hidden_channels),
        "wrs3": (hidden_channels, hidden_channels), "brs3": (1, hidden_channels),
        "wij1": (in_channels, hidden_channels), "bij1": (1, hidden_channels),
        "wij2": (hidden_channels, hidden_channels), "bij2": (1, hidden_channels),
        "wl1": (hidden_channels, hidden_channels), "bl1": (1, hidden_channels),
        "wl2": (hidden_channels, out_channels), "bl2": (1, out_channels),
    }
    keys = jax.random.split(key, len(specs))
    params = {
        name: 0.1 * jax.random.normal(k, shape, dtype=jnp.float32)
        for (name, shape), k in zip(specs.items(), keys)
    }
    params["beta"] = jnp.full((1,), beta, dtype=jnp.float32)  # nn.Parameter(beta*ones(1))
    return params


# --------------------------------- main -------------------------------------- #

if __name__ == "__main__":
    # MXU/lane-friendly but still small demo shapes.
    N_NODES = 512       # number of graph nodes
    IN_CH = 128         # in_channels
    HID = 128           # hidden_channels
    OUT_CH = 8          # out_channels
    E = 512             # number of target edges (tar_ei columns) -> 2 E-tiles

    key = jax.random.PRNGKey(0)
    k_x, k_adj, k_ei, k_p = jax.random.split(key, 4)

    x = jax.random.normal(k_x, (N_NODES, IN_CH), dtype=jnp.float32)

    # random symmetric 0/1 adjacency, no self loops
    a = (jax.random.uniform(k_adj, (N_NODES, N_NODES)) < 0.3).astype(jnp.float32)
    adj_dense = jnp.maximum(a, a.T) * (1.0 - jnp.eye(N_NODES, dtype=jnp.float32))

    tar_ei = jax.random.randint(k_ei, (2, E), 0, N_NODES, dtype=jnp.int32)

    params = init_params(k_p, IN_CH, HID, OUT_CH, beta=1.0)

    out = cn_res_link_predictor(x, adj_dense, tar_ei, params, te=256, tn=1024)
    out = jax.block_until_ready(out)

    ref = ref_forward(x, adj_dense, tar_ei, params)
    assert out.shape == (E, OUT_CH)
    assert jnp.allclose(out, ref, atol=1e-3, rtol=1e-3), "mismatch vs pure-JAX reference"

    # TODO(synk): DropAdj / dropout layers are training-only stochastic ops; eval-mode
    # (identity) semantics are implemented here.
    print("KERNEL_OK")
</pallas_src>

<mosaic_0001>
module attributes {stable_mosaic.version = 11 : i64} {
  func.func @kernel(%arg0: i32, %arg1: i32, %arg2: memref<256x512xi8, #tpu.memory_space<vmem>>, %arg3: memref<256x512xi8, #tpu.memory_space<vmem>>, %arg4: memref<512x128xf32, #tpu.memory_space<vmem>>, %arg5: memref<256x128xf32, #tpu.memory_space<vmem>>, %arg6: memref<1xf32, #tpu.memory_space<smem>>, %arg7: memref<128x128xf32, #tpu.memory_space<vmem>>, %arg8: memref<1x128xf32, #tpu.memory_space<vmem>>, %arg9: memref<128x128xf32, #tpu.memory_space<vmem>>, %arg10: memref<1x128xf32, #tpu.memory_space<vmem>>, %arg11: memref<128x128xf32, #tpu.memory_space<vmem>>, %arg12: memref<1x128xf32, #tpu.memory_space<vmem>>, %arg13: memref<128x128xf32, #tpu.memory_space<vmem>>, %arg14: memref<1x128xf32, #tpu.memory_space<vmem>>, %arg15: memref<128x128xf32, #tpu.memory_space<vmem>>, %arg16: memref<1x128xf32, #tpu.memory_space<vmem>>, %arg17: memref<128x128xf32, #tpu.memory_space<vmem>>, %arg18: memref<1x128xf32, #tpu.memory_space<vmem>>, %arg19: memref<128x128xf32, #tpu.memory_space<vmem>>, %arg20: memref<1x128xf32, #tpu.memory_space<vmem>>, %arg21: memref<128x128xf32, #tpu.memory_space<vmem>>, %arg22: memref<1x128xf32, #tpu.memory_space<vmem>>, %arg23: memref<128x128xf32, #tpu.memory_space<vmem>>, %arg24: memref<1x128xf32, #tpu.memory_space<vmem>>, %arg25: memref<128x128xf32, #tpu.memory_space<vmem>>, %arg26: memref<1x128xf32, #tpu.memory_space<vmem>>, %arg27: memref<256x128xf32, #tpu.memory_space<vmem>>, %arg28: memref<256x128xf32, #tpu.memory_space<vmem>>, %arg29: memref<256x128xf32, #tpu.memory_space<vmem>>) attributes {dimension_semantics = [#tpu.dimension_semantics<parallel>, #tpu.dimension_semantics<arbitrary>], iteration_bounds = array<i64: 2, 1>, scalar_prefetch = 0 : i64, scratch_operands = 2 : i64, tpu.core_type = #tpu.core_type<tc>, window_params = [{transform_indices = @transform_0, window_bounds = array<i64: 256, 512>}, {transform_indices = @transform_1, window_bounds = array<i64: 256, 512>}, {pipeline_mode = #tpu.pipeline_mode<synchronous>, transform_indices = @transform_2, window_bounds = array<i64: 512, 128>}, {transform_indices = @transform_3, window_bounds = array<i64: 256, 128>}, {transform_indices = @transform_4, window_bounds = array<i64: 1>}, {pipeline_mode = #tpu.pipeline_mode<synchronous>, transform_indices = @transform_5, window_bounds = array<i64: 128, 128>}, {pipeline_mode = #tpu.pipeline_mode<synchronous>, transform_indices = @transform_6, window_bounds = array<i64: 1, 128>}, {pipeline_mode = #tpu.pipeline_mode<synchronous>, transform_indices = @transform_7, window_bounds = array<i64: 128, 128>}, {pipeline_mode = #tpu.pipeline_mode<synchronous>, transform_indices = @transform_8, window_bounds = array<i64: 1, 128>}, {pipeline_mode = #tpu.pipeline_mode<synchronous>, transform_indices = @transform_9, window_bounds = array<i64: 128, 128>}, {pipeline_mode = #tpu.pipeline_mode<synchronous>, transform_indices = @transform_10, window_bounds = array<i64: 1, 128>}, {pipeline_mode = #tpu.pipeline_mode<synchronous>, transform_indices = @transform_11, window_bounds = array<i64: 128, 128>}, {pipeline_mode = #tpu.pipeline_mode<synchronous>, transform_indices = @transform_12, window_bounds = array<i64: 1, 128>}, {pipeline_mode = #tpu.pipeline_mode<synchronous>, transform_indices = @transform_13, window_bounds = array<i64: 128, 128>}, {pipeline_mode = #tpu.pipeline_mode<synchronous>, transform_indices = @transform_14, window_bounds = array<i64: 1, 128>}, {pipeline_mode = #tpu.pipeline_mode<synchronous>, transform_indices = @transform_15, window_bounds = array<i64: 128, 128>}, {pipeline_mode = #tpu.pipeline_mode<synchronous>, transform_indices = @transform_16, window_bounds = array<i64: 1, 128>}, {pipeline_mode = #tpu.pipeline_mode<synchronous>, transform_indices = @transform_17, window_bounds = array<i64: 128, 128>}, {pipeline_mode = #tpu.pipeline_mode<synchronous>, transform_indices = @transform_18, window_bounds = array<i64: 1, 128>}, {pipeline_mode = #tpu.pipeline_mode<synchronous>, transform_indices = @transform_19, window_bounds = array<i64: 128, 128>}, {pipeline_mode = #tpu.pipeline_mode<synchronous>, transform_indices = @transform_20, window_bounds = array<i64: 1, 128>}, {pipeline_mode = #tpu.pipeline_mode<synchronous>, transform_indices = @transform_21, window_bounds = array<i64: 128, 128>}, {pipeline_mode = #tpu.pipeline_mode<synchronous>, transform_indices = @transform_22, window_bounds = array<i64: 1, 128>}, {pipeline_mode = #tpu.pipeline_mode<synchronous>, transform_indices = @transform_23, window_bounds = array<i64: 128, 128>}, {pipeline_mode = #tpu.pipeline_mode<synchronous>, transform_indices = @transform_24, window_bounds = array<i64: 1, 128>}, {transform_indices = @transform_25, window_bounds = array<i64: 256, 128>}]} {
    %c0_i32 = arith.constant 0 : i32
    %0 = arith.cmpi eq, %arg1, %c0_i32 : i32
    %1 = arith.extui %0 : i1 to i32
    %c0_i32_0 = arith.constant 0 : i32
    %2 = arith.cmpi ne, %1, %c0_i32_0 : i32
    scf.if %2 {
      %cst_16 = arith.constant 0.000000e+00 : f32
      %24 = vector.broadcast %cst_16 : f32 to vector<256x128xf32>
      %c0_17 = arith.constant 0 : index
      %c0_18 = arith.constant 0 : index
      %25 = vector.load %arg28[%c0_17, %c0_18] : memref<256x128xf32, #tpu.memory_space<vmem>>, vector<256x128xf32>
      tpu.vector_store %arg28[%c0_17, %c0_18], %24 {strides = array<i32>} : memref<256x128xf32, #tpu.memory_space<vmem>>, vector<256x128xf32>,
      %cst_19 = arith.constant 0.000000e+00 : f32
      %26 = vector.broadcast %cst_19 : f32 to vector<256x128xf32>
      %c0_20 = arith.constant 0 : index
      %c0_21 = arith.constant 0 : index
      %27 = vector.load %arg29[%c0_20, %c0_21] : memref<256x128xf32, #tpu.memory_space<vmem>>, vector<256x128xf32>
      tpu.vector_store %arg29[%c0_20, %c0_21], %26 {strides = array<i32>} : memref<256x128xf32, #tpu.memory_space<vmem>>, vector<256x128xf32>,
    } else {
    }
    %c0 = arith.constant 0 : index
    %c0_1 = arith.constant 0 : index
    %3 = vector.load %arg2[%c0, %c0_1] : memref<256x512xi8, #tpu.memory_space<vmem>>, vector<256x512xi8>
    %4 = arith.sitofp %3 : vector<256x512xi8> to vector<256x512xf32>
    %c0_2 = arith.constant 0 : index
    %c0_3 = arith.constant 0 : index
    %5 = vector.load %arg3[%c0_2, %c0_3] : memref<256x512xi8, #tpu.memory_space<vmem>>, vector<256x512xi8>
    %6 = arith.sitofp %5 : vector<256x512xi8> to vector<256x512xf32>
    %c512_i32 = arith.constant 512 : i32
    %7 = arith.muli %arg1, %c512_i32 : i32
    %8 = tpu.assume_multiple %7, 512 : i32
    %9 = arith.index_cast %8 : i32 to index
    %c0_4 = arith.constant 0 : index
    %10 = vector.load %arg4[%9, %c0_4] : memref<512x128xf32, #tpu.memory_space<vmem>>, vector<512x128xf32>
    %c0_5 = arith.constant 0 : index
    %c0_6 = arith.constant 0 : index
    %11 = vector.load %arg28[%c0_5, %c0_6] : memref<256x128xf32, #tpu.memory_space<vmem>>, vector<256x128xf32>
    %12 = arith.mulf %4, %6 : vector<256x512xf32>
    %cst = arith.constant dense<0.000000e+00> : vector<256x128xf32>
    %13 = tpu.matmul %12, %10, %cst {dimension_numbers = #tpu.dot_dimension_numbers<[1], [0], [0], [1], [0, 0, 1, 1], [], []>} : vector<256x512xf32>, vector<512x128xf32>, vector<256x128xf32> -> vector<256x128xf32>
    %14 = arith.addf %11, %13 : vector<256x128xf32>
    %c0_7 = arith.constant 0 : index
    %c0_8 = arith.constant 0 : index
    %15 = vector.load %arg28[%c0_7, %c0_8] : memref<256x128xf32, #tpu.memory_space<vmem>>, vector<256x128xf32>
    tpu.vector_store %arg28[%c0_7, %c0_8], %14 {strides = array<i32>} : memref<256x128xf32, #tpu.memory_space<vmem>>, vector<256x128xf32>,
    %c0_9 = arith.constant 0 : index
    %c0_10 = arith.constant 0 : index
    %16 = vector.load %arg29[%c0_9, %c0_10] : memref<256x128xf32, #tpu.memory_space<vmem>>, vector<256x128xf32>
    %17 = arith.addf %4, %6 : vector<256x512xf32>
    %cst_11 = arith.constant dense<0.000000e+00> : vector<256x128xf32>
    %18 = tpu.matmul %17, %10, %cst_11 {dimension_numbers = #tpu.dot_dimension_numbers<[1], [0], [0], [1], [0, 0, 1, 1], [], []>} : vector<256x512xf32>, vector<512x128xf32>, vector<256x128xf32> -> vector<256x128xf32>
    %19 = arith.addf %16, %18 : vector<256x128xf32>
    %c0_12 = arith.constant 0 : index
    %c0_13 = arith.constant 0 : index
    %20 = vector.load %arg29[%c0_12, %c0_13] : memref<256x128xf32, #tpu.memory_space<vmem>>, vector<256x128xf32>
    tpu.vector_store %arg29[%c0_12, %c0_13], %19 {strides = array<i32>} : memref<256x128xf32, #tpu.memory_space<vmem>>, vector<256x128xf32>,
    %c0_i32_14 = arith.constant 0 : i32
    %21 = arith.cmpi eq, %arg1, %c0_i32_14 : i32
    %22 = arith.extui %21 : i1 to i32
    %c0_i32_15 = arith.constant 0 : i32
    %23 = arith.cmpi ne, %22, %c0_i32_15 : i32
    scf.if %23 {
      %c0_16 = arith.constant 0 : index
      %c0_17 = arith.constant 0 : index
      %24 = vector.load %arg28[%c0_16, %c0_17] : memref<256x128xf32, #tpu.memory_space<vmem>>, vector<256x128xf32>
      %c0_18 = arith.constant 0 : index
      %c0_19 = arith.constant 0 : index
      %25 = vector.load %arg29[%c0_18, %c0_19] : memref<256x128xf32, #tpu.memory_space<vmem>>, vector<256x128xf32>
      %cst_20 = arith.constant 2.000000e+00 : f32
      %26 = vector.broadcast %cst_20 : f32 to vector<256x128xf32>
      %27 = arith.mulf %26, %24 : vector<256x128xf32>
      %28 = arith.subf %25, %27 : vector<256x128xf32>
      %c0_21 = arith.constant 0 : index
      %c0_22 = arith.constant 0 : index
      %29 = vector.load %arg7[%c0_21, %c0_22] : memref<128x128xf32, #tpu.memory_space<vmem>>, vector<128x128xf32>
      %c0_23 = arith.constant 0 : index
      %c0_24 = arith.constant 0 : index
      %30 = vector.load %arg8[%c0_23, %c0_24] : memref<1x128xf32, #tpu.memory_space<vmem>>, vector<1x128xf32>
      %c0_25 = arith.constant 0 : index
      %c0_26 = arith.constant 0 : index
      %31 = vector.load %arg9[%c0_25, %c0_26] : memref<128x128xf32, #tpu.memory_space<vmem>>, vector<128x128xf32>
      %c0_27 = arith.constant 0 : index
      %c0_28 = arith.constant 0 : index
      %32 = vector.load %arg10[%c0_27, %c0_28] : memref<1x128xf32, #tpu.memory_space<vmem>>, vector<1x128xf32>
      %c0_29 = arith.constant 0 : index
      %c0_30 = arith.constant 0 : index
      %33 = vector.load %arg11[%c0_29, %c0_30] : memref<128x128xf32, #tpu.memory_space<vmem>>, vector<128x128xf32>
      %c0_31 = arith.constant 0 : index
      %c0_32 = arith.constant 0 : index
      %34 = vector.load %arg12[%c0_31, %c0_32] : memref<1x128xf32, #tpu.memory_space<vmem>>, vector<1x128xf32>
      %cst_33 = arith.constant dense<0.000000e+00> : vector<256x128xf32>
      %35 = tpu.matmul %24, %29, %cst_33 {dimension_numbers = #tpu.dot_dimension_numbers<[1], [0], [0], [1], [0, 0, 1, 1], [], []>} : vector<256x128xf32>, vector<128x128xf32>, vector<256x128xf32> -> vector<256x128xf32>
      %36 = vector.broadcast %30 : vector<1x128xf32> to vector<256x128xf32>
      %37 = arith.addf %35, %36 : vector<256x128xf32>
      %cst_34 = arith.constant 0.000000e+00 : f32
      %38 = vector.broadcast %cst_34 : f32 to vector<256x128xf32>
      %39 = arith.maximumf %37, %38 : vector<256x128xf32>
      %cst_35 = arith.constant dense<0.000000e+00> : vector<256x128xf32>
      %40 = tpu.matmul %39, %31, %cst_35 {dimension_numbers = #tpu.dot_dimension_numbers<[1], [0], [0], [1], [0, 0, 1, 1], [], []>} : vector<256x128xf32>, vector<128x128xf32>, vector<256x128xf32> -> vector<256x128xf32>
      %41 = vector.broadcast %32 : vector<1x128xf32> to vector<256x128xf32>
      %42 = arith.addf %40, %41 : vector<256x128xf32>
      %cst_36 = arith.constant 0.000000e+00 : f32
      %43 = vector.broadcast %cst_36 : f32 to vector<256x128xf32>
      %44 = arith.maximumf %42, %43 : vector<256x128xf32>
      %cst_37 = arith.constant dense<0.000000e+00> : vector<256x128xf32>
      %45 = tpu.matmul %44, %33, %cst_37 {dimension_numbers = #tpu.dot_dimension_numbers<[1], [0], [0], [1], [0, 0, 1, 1], [], []>} : vector<256x128xf32>, vector<128x128xf32>, vector<256x128xf32> -> vector<256x128xf32>
      %46 = vector.broadcast %34 : vector<1x128xf32> to vector<256x128xf32>
      %47 = arith.addf %45, %46 : vector<256x128xf32>
      %c0_38 = arith.constant 0 : index
      %c0_39 = arith.constant 0 : index
      %48 = vector.load %arg13[%c0_38, %c0_39] : memref<128x128xf32, #tpu.memory_space<vmem>>, vector<128x128xf32>
      %c0_40 = arith.constant 0 : index
      %c0_41 = arith.constant 0 : index
      %49 = vector.load %arg14[%c0_40, %c0_41] : memref<1x128xf32, #tpu.memory_space<vmem>>, vector<1x128xf32>
      %c0_42 = arith.constant 0 : index
      %c0_43 = arith.constant 0 : index
      %50 = vector.load %arg15[%c0_42, %c0_43] : memref<128x128xf32, #tpu.memory_space<vmem>>, vector<128x128xf32>
      %c0_44 = arith.constant 0 : index
      %c0_45 = arith.constant 0 : index
      %51 = vector.load %arg16[%c0_44, %c0_45] : memref<1x128xf32, #tpu.memory_space<vmem>>, vector<1x128xf32>
      %c0_46 = arith.constant 0 : index
      %c0_47 = arith.constant 0 : index
      %52 = vector.load %arg17[%c0_46, %c0_47] : memref<128x128xf32, #tpu.memory_space<vmem>>, vector<128x128xf32>
      %c0_48 = arith.constant 0 : index
      %c0_49 = arith.constant 0 : index
      %53 = vector.load %arg18[%c0_48, %c0_49] : memref<1x128xf32, #tpu.memory_space<vmem>>, vector<1x128xf32>
      %cst_50 = arith.constant dense<0.000000e+00> : vector<256x128xf32>
      %54 = tpu.matmul %28, %48, %cst_50 {dimension_numbers = #tpu.dot_dimension_numbers<[1], [0], [0], [1], [0, 0, 1, 1], [], []>} : vector<256x128xf32>, vector<128x128xf32>, vector<256x128xf32> -> vector<256x128xf32>
      %55 = vector.broadcast %49 : vector<1x128xf32> to vector<256x128xf32>
      %56 = arith.addf %54, %55 : vector<256x128xf32>
      %cst_51 = arith.constant 0.000000e+00 : f32
      %57 = vector.broadcast %cst_51 : f32 to vector<256x128xf32>
      %58 = arith.maximumf %56, %57 : vector<256x128xf32>
      %cst_52 = arith.constant dense<0.000000e+00> : vector<256x128xf32>
      %59 = tpu.matmul %58, %50, %cst_52 {dimension_numbers = #tpu.dot_dimension_numbers<[1], [0], [0], [1], [0, 0, 1, 1], [], []>} : vector<256x128xf32>, vector<128x128xf32>, vector<256x128xf32> -> vector<256x128xf32>
      %60 = vector.broadcast %51 : vector<1x128xf32> to vector<256x128xf32>
      %61 = arith.addf %59, %60 : vector<256x128xf32>
      %cst_53 = arith.constant 0.000000e+00 : f32
      %62 = vector.broadcast %cst_53 : f32 to vector<256x128xf32>
      %63 = arith.maximumf %61, %62 : vector<256x128xf32>
      %cst_54 = arith.constant dense<0.000000e+00> : vector<256x128xf32>
      %64 = tpu.matmul %63, %52, %cst_54 {dimension_numbers = #tpu.dot_dimension_numbers<[1], [0], [0], [1], [0, 0, 1, 1], [], []>} : vector<256x128xf32>, vector<128x128xf32>, vector<256x128xf32> -> vector<256x128xf32>
      %65 = vector.broadcast %53 : vector<1x128xf32> to vector<256x128xf32>
      %66 = arith.addf %64, %65 : vector<256x128xf32>
      %c0_55 = arith.constant 0 : index
      %c0_56 = arith.constant 0 : index
      %67 = vector.load %arg5[%c0_55, %c0_56] : memref<256x128xf32, #tpu.memory_space<vmem>>, vector<256x128xf32>
      %c0_57 = arith.constant 0 : index
      %c0_58 = arith.constant 0 : index
      %68 = vector.load %arg19[%c0_57, %c0_58] : memref<128x128xf32, #tpu.memory_space<vmem>>, vector<128x128xf32>
      %cst_59 = arith.constant dense<0.000000e+00> : vector<256x128xf32>
      %69 = tpu.matmul %67, %68, %cst_59 {dimension_numbers = #tpu.dot_dimension_numbers<[1], [0], [0], [1], [0, 0, 1, 1], [], []>} : vector<256x128xf32>, vector<128x128xf32>, vector<256x128xf32> -> vector<256x128xf32>
      %c0_60 = arith.constant 0 : index
      %c0_61 = arith.constant 0 : index
      %70 = vector.load %arg20[%c0_60, %c0_61] : memref<1x128xf32, #tpu.memory_space<vmem>>, vector<1x128xf32>
      %71 = vector.broadcast %70 : vector<1x128xf32> to vector<256x128xf32>
      %72 = arith.addf %69, %71 : vector<256x128xf32>
      %cst_62 = arith.constant 0.000000e+00 : f32
      %73 = vector.broadcast %cst_62 : f32 to vector<256x128xf32>
      %74 = arith.maximumf %72, %73 : vector<256x128xf32>
      %c0_63 = arith.constant 0 : index
      %c0_64 = arith.constant 0 : index
      %75 = vector.load %arg21[%c0_63, %c0_64] : memref<128x128xf32, #tpu.memory_space<vmem>>, vector<128x128xf32>
      %cst_65 = arith.constant dense<0.000000e+00> : vector<256x128xf32>
      %76 = tpu.matmul %74, %75, %cst_65 {dimension_numbers = #tpu.dot_dimension_numbers<[1], [0], [0], [1], [0, 0, 1, 1], [], []>} : vector<256x128xf32>, vector<128x128xf32>, vector<256x128xf32> -> vector<256x128xf32>
      %c0_66 = arith.constant 0 : index
      %c0_67 = arith.constant 0 : index
      %77 = vector.load %arg22[%c0_66, %c0_67] : memref<1x128xf32, #tpu.memory_space<vmem>>, vector<1x128xf32>
      %78 = vector.broadcast %77 : vector<1x128xf32> to vector<256x128xf32>
      %79 = arith.addf %76, %78 : vector<256x128xf32>
      %c0_68 = arith.constant 0 : index
      %80 = memref.load %arg6[%c0_68] : memref<1xf32, #tpu.memory_space<smem>>
      %81 = vector.broadcast %80 : f32 to vector<256x128xf32>
      %82 = arith.mulf %47, %81 : vector<256x128xf32>
      %83 = arith.addf %82, %66 : vector<256x128xf32>
      %84 = arith.addf %83, %79 : vector<256x128xf32>
      %c0_69 = arith.constant 0 : index
      %c0_70 = arith.constant 0 : index
      %85 = vector.load %arg23[%c0_69, %c0_70] : memref<128x128xf32, #tpu.memory_space<vmem>>, vector<128x128xf32>
      %cst_71 = arith.constant dense<0.000000e+00> : vector<256x128xf32>
      %86 = tpu.matmul %84, %85, %cst_71 {dimension_numbers = #tpu.dot_dimension_numbers<[1], [0], [0], [1], [0, 0, 1, 1], [], []>} : vector<256x128xf32>, vector<128x128xf32>, vector<256x128xf32> -> vector<256x128xf32>
      %c0_72 = arith.constant 0 : index
      %c0_73 = arith.constant 0 : index
      %87 = vector.load %arg24[%c0_72, %c0_73] : memref<1x128xf32, #tpu.memory_space<vmem>>, vector<1x128xf32>
      %88 = vector.broadcast %87 : vector<1x128xf32> to vector<256x128xf32>
      %89 = arith.addf %86, %88 : vector<256x128xf32>
      %cst_74 = arith.constant 0.000000e+00 : f32
      %90 = vector.broadcast %cst_74 : f32 to vector<256x128xf32>
      %91 = arith.maximumf %89, %90 : vector<256x128xf32>
      %c0_75 = arith.constant 0 : index
      %c0_76 = arith.constant 0 : index
      %92 = vector.load %arg25[%c0_75, %c0_76] : memref<128x128xf32, #tpu.memory_space<vmem>>, vector<128x128xf32>
      %cst_77 = arith.constant dense<0.000000e+00> : vector<256x128xf32>
      %93 = tpu.matmul %91, %92, %cst_77 {dimension_numbers = #tpu.dot_dimension_numbers<[1], [0], [0], [1], [0, 0, 1, 1], [], []>} : vector<256x128xf32>, vector<128x128xf32>, vector<256x128xf32> -> vector<256x128xf32>
      %c0_78 = arith.constant 0 : index
      %c0_79 = arith.constant 0 : index
      %94 = vector.load %arg26[%c0_78, %c0_79] : memref<1x128xf32, #tpu.memory_space<vmem>>, vector<1x128xf32>
      %95 = vector.broadcast %94 : vector<1x128xf32> to vector<256x128xf32>
      %96 = arith.addf %93, %95 : vector<256x128xf32>
      %c0_80 = arith.constant 0 : index
      %c0_81 = arith.constant 0 : index
      %97 = vector.load %arg27[%c0_80, %c0_81] : memref<256x128xf32, #tpu.memory_space<vmem>>, vector<256x128xf32>
      tpu.vector_store %arg27[%c0_80, %c0_81], %96 {strides = array<i32>} : memref<256x128xf32, #tpu.memory_space<vmem>>, vector<256x128xf32>,
    } else {
    }
    return
  }
  func.func @transform_0(%arg0: i32, %arg1: i32) -> (i32, i32) {
    %c0_i32 = arith.constant 0 : i32
    return %arg0, %arg1 : i32, i32
  }
  func.func @transform_1(%arg0: i32, %arg1: i32) -> (i32, i32) {
    %c0_i32 = arith.constant 0 : i32
    return %arg0, %arg1 : i32, i32
  }
  func.func @transform_2(%arg0: i32, %arg1: i32) -> (i32, i32) {
    %c0_i32 = arith.constant 0 : i32
    %c0_i32_0 = arith.constant 0 : i32
    %c0_i32_1 = arith.constant 0 : i32
    return %c0_i32, %c0_i32_0 : i32, i32
  }
  func.func @transform_3(%arg0: i32, %arg1: i32) -> (i32, i32) {
    %c0_i32 = arith.constant 0 : i32
    %c0_i32_0 = arith.constant 0 : i32
    return %arg0, %c0_i32 : i32, i32
  }
  func.func @transform_4(%arg0: i32, %arg1: i32) -> i32 {
    %c0_i32 = arith.constant 0 : i32
    %c0_i32_0 = arith.constant 0 : i32
    return %c0_i32 : i32
  }
  func.func @transform_5(%arg0: i32, %arg1: i32) -> (i32, i32) {
    %c0_i32 = arith.constant 0 : i32
    %c0_i32_0 = arith.constant 0 : i32
    %c0_i32_1 = arith.constant 0 : i32
    return %c0_i32, %c0_i32_0 : i32, i32
  }
  func.func @transform_6(%arg0: i32, %arg1: i32) -> (i32, i32) {
    %c0_i32 = arith.constant 0 : i32
    %c0_i32_0 = arith.constant 0 : i32
    %c0_i32_1 = arith.constant 0 : i32
    return %c0_i32, %c0_i32_0 : i32, i32
  }
  func.func @transform_7(%arg0: i32, %arg1: i32) -> (i32, i32) {
    %c0_i32 = arith.constant 0 : i32
    %c0_i32_0 = arith.constant 0 : i32
    %c0_i32_1 = arith.constant 0 : i32
    return %c0_i32, %c0_i32_0 : i32, i32
  }
  func.func @transform_8(%arg0: i32, %arg1: i32) -> (i32, i32) {
    %c0_i32 = arith.constant 0 : i32
    %c0_i32_0 = arith.constant 0 : i32
    %c0_i32_1 = arith.constant 0 : i32
    return %c0_i32, %c0_i32_0 : i32, i32
  }
  func.func @transform_9(%arg0: i32, %arg1: i32) -> (i32, i32) {
    %c0_i32 = arith.constant 0 : i32
    %c0_i32_0 = arith.constant 0 : i32
    %c0_i32_1 = arith.constant 0 : i32
    return %c0_i32, %c0_i32_0 : i32, i32
  }
  func.func @transform_10(%arg0: i32, %arg1: i32) -> (i32, i32) {
    %c0_i32 = arith.constant 0 : i32
    %c0_i32_0 = arith.constant 0 : i32
    %c0_i32_1 = arith.constant 0 : i32
    return %c0_i32, %c0_i32_0 : i32, i32
  }
  func.func @transform_11(%arg0: i32, %arg1: i32) -> (i32, i32) {
    %c0_i32 = arith.constant 0 : i32
    %c0_i32_0 = arith.constant 0 : i32
    %c0_i32_1 = arith.constant 0 : i32
    return %c0_i32, %c0_i32_0 : i32, i32
  }
  func.func @transform_12(%arg0: i32, %arg1: i32) -> (i32, i32) {
    %c0_i32 = arith.constant 0 : i32
    %c0_i32_0 = arith.constant 0 : i32
    %c0_i32_1 = arith.constant 0 : i32
    return %c0_i32, %c0_i32_0 : i32, i32
  }
  func.func @transform_13(%arg0: i32, %arg1: i32) -> (i32, i32) {
    %c0_i32 = arith.constant 0 : i32
    %c0_i32_0 = arith.constant 0 : i32
    %c0_i32_1 = arith.constant 0 : i32
    return %c0_i32, %c0_i32_0 : i32, i32
  }
  func.func @transform_14(%arg0: i32, %arg1: i32) -> (i32, i32) {
    %c0_i32 = arith.constant 0 : i32
    %c0_i32_0 = arith.constant 0 : i32
    %c0_i32_1 = arith.constant 0 : i32
    return %c0_i32, %c0_i32_0 : i32, i32
  }
  func.func @transform_15(%arg0: i32, %arg1: i32) -> (i32, i32) {
    %c0_i32 = arith.constant 0 : i32
    %c0_i32_0 = arith.constant 0 : i32
    %c0_i32_1 = arith.constant 0 : i32
    return %c0_i32, %c0_i32_0 : i32, i32
  }
  func.func @transform_16(%arg0: i32, %arg1: i32) -> (i32, i32) {
    %c0_i32 = arith.constant 0 : i32
    %c0_i32_0 = arith.constant 0 : i32
    %c0_i32_1 = arith.constant 0 : i32
    return %c0_i32, %c0_i32_0 : i32, i32
  }
  func.func @transform_17(%arg0: i32, %arg1: i32) -> (i32, i32) {
    %c0_i32 = arith.constant 0 : i32
    %c0_i32_0 = arith.constant 0 : i32
    %c0_i32_1 = arith.constant 0 : i32
    return %c0_i32, %c0_i32_0 : i32, i32
  }
  func.func @transform_18(%arg0: i32, %arg1: i32) -> (i32, i32) {
    %c0_i32 = arith.constant 0 : i32
    %c0_i32_0 = arith.constant 0 : i32
    %c0_i32_1 = arith.constant 0 : i32
    return %c0_i32, %c0_i32_0 : i32, i32
  }
  func.func @transform_19(%arg0: i32, %arg1: i32) -> (i32, i32) {
    %c0_i32 = arith.constant 0 : i32
    %c0_i32_0 = arith.constant 0 : i32
    %c0_i32_1 = arith.constant 0 : i32
    return %c0_i32, %c0_i32_0 : i32, i32
  }
  func.func @transform_20(%arg0: i32, %arg1: i32) -> (i32, i32) {
    %c0_i32 = arith.constant 0 : i32
    %c0_i32_0 = arith.constant 0 : i32
    %c0_i32_1 = arith.constant 0 : i32
    return %c0_i32, %c0_i32_0 : i32, i32
  }
  func.func @transform_21(%arg0: i32, %arg1: i32) -> (i32, i32) {
    %c0_i32 = arith.constant 0 : i32
    %c0_i32_0 = arith.constant 0 : i32
    %c0_i32_1 = arith.constant 0 : i32
    return %c0_i32, %c0_i32_0 : i32, i32
  }
  func.func @transform_22(%arg0: i32, %arg1: i32) -> (i32, i32) {
    %c0_i32 = arith.constant 0 : i32
    %c0_i32_0 = arith.constant 0 : i32
    %c0_i32_1 = arith.constant 0 : i32
    return %c0_i32, %c0_i32_0 : i32, i32
  }
  func.func @transform_23(%arg0: i32, %arg1: i32) -> (i32, i32) {
    %c0_i32 = arith.constant 0 : i32
    %c0_i32_0 = arith.constant 0 : i32
    %c0_i32_1 = arith.constant 0 : i32
    return %c0_i32, %c0_i32_0 : i32, i32
  }
  func.func @transform_24(%arg0: i32, %arg1: i32) -> (i32, i32) {
    %c0_i32 = arith.constant 0 : i32
    %c0_i32_0 = arith.constant 0 : i32
    %c0_i32_1 = arith.constant 0 : i32
    return %c0_i32, %c0_i32_0 : i32, i32
  }
  func.func @transform_25(%arg0: i32, %arg1: i32) -> (i32, i32) {
    %c0_i32 = arith.constant 0 : i32
    %c0_i32_0 = arith.constant 0 : i32
    return %arg0, %c0_i32 : i32, i32
  }
}

</mosaic_0001>

<llo_original>
// kernel: tpu_custom_call.1
$region0: #{tpu_custom_call.1}
  #allocation0 [shape = 'u32[]', space=smem, size = 0x4, offset = 0x4, fixed_abs, tag = 'smem constant byte address 0x4 - core index']
  #allocation1 [shape = 'u32[144,128]{1,0:T(1,128)}', space=vmem, size = 0x12000, scoped, tag = 'internal scratch']
  #allocation2 [shape = 'f32[256,128]{1,0:T(8,128)}', space=vmem, size = 0x20000, scoped, tag = 'scratch operand']
  #allocation3 [shape = 'f32[256,128]{1,0:T(8,128)}', space=vmem, size = 0x20000, scoped, tag = 'scratch operand']
  #allocation4 [shape = 'f32[1]{0:T(128)S(6)}', space=smem, size = 0x200, scoped, tag = 'scoped memory for tpu_custom_call.1']
  %s0 = inlined_call_operand.hbm [shape: s8[512,512], index: 0, kind: input, shape index: {}]
  %s1 = inlined_call_operand.hbm [shape: s8[512,512], index: 1, kind: input, shape index: {}]
  %s2 = inlined_call_operand.hbm [shape: f32[512,128], index: 2, kind: input, shape index: {}]
  %s3 = inlined_call_operand.hbm [shape: f32[512,128], index: 3, kind: input, shape index: {}]
  %s4 = inlined_call_operand.<no memory space> [shape: f32[1], index: 4, kind: input, shape index: {}]
  %s5 = inlined_call_operand.hbm [shape: f32[128,128], index: 5, kind: input, shape index: {}]
  %s6 = inlined_call_operand.vmem [shape: f32[1,128], index: 6, kind: input, shape index: {}]
  %s7 = inlined_call_operand.hbm [shape: f32[128,128], index: 7, kind: input, shape index: {}]
  %s8 = inlined_call_operand.vmem [shape: f32[1,128], index: 8, kind: input, shape index: {}]
  %s9 = inlined_call_operand.hbm [shape: f32[128,128], index: 9, kind: input, shape index: {}]
  %s10 = inlined_call_operand.vmem [shape: f32[1,128], index: 10, kind: input, shape index: {}]
  %s11 = inlined_call_operand.hbm [shape: f32[128,128], index: 11, kind: input, shape index: {}]
  %s12 = inlined_call_operand.vmem [shape: f32[1,128], index: 12, kind: input, shape index: {}]
  %s13 = inlined_call_operand.hbm [shape: f32[128,128], index: 13, kind: input, shape index: {}]
  %s14 = inlined_call_operand.vmem [shape: f32[1,128], index: 14, kind: input, shape index: {}]
  %s15 = inlined_call_operand.hbm [shape: f32[128,128], index: 15, kind: input, shape index: {}]
  %s16 = inlined_call_operand.vmem [shape: f32[1,128], index: 16, kind: input, shape index: {}]
  %s17 = inlined_call_operand.hbm [shape: f32[128,128], index: 17, kind: input, shape index: {}]
  %s18 = inlined_call_operand.vmem [shape: f32[1,128], index: 18, kind: input, shape index: {}]
  %s19 = inlined_call_operand.hbm [shape: f32[128,128], index: 19, kind: input, shape index: {}]
  %s20 = inlined_call_operand.vmem [shape: f32[1,128], index: 20, kind: input, shape index: {}]
  %s21 = inlined_call_operand.hbm [shape: f32[128,128], index: 21, kind: input, shape index: {}]
  %s22 = inlined_call_operand.vmem [shape: f32[1,128], index: 22, kind: input, shape index: {}]
  %s23 = inlined_call_operand.hbm [shape: f32[128,128], index: 23, kind: input, shape index: {}]
  %s24 = inlined_call_operand.vmem [shape: f32[1,128], index: 24, kind: input, shape index: {}]
  %s25 = inlined_call_operand.hbm [shape: f32[512,128], index: 25, kind: output, shape index: {}]
  %s26 = sld [smem:[#allocation0]]
  $region197: #{tpu_custom_call.1} parent=0
    _
  %s28 = ssub.s32 1, %s26
  %s29 = scalar_select 0, %s28, %s26
  %30 = sst [smem:[#allocation4]] %s4
  $region1: #{tpu_custom_call.1} parent=0
    #allocation5 [shape = 'u8[262144]{0}', space=vmem, size = 0x40000, scoped, tag = 'input window, operand 0']
    #allocation6 [shape = 's32[2]{0}', space=sflag, size = 0x8, scoped, tag = 'scoped memory for tpu_custom_call.1']
    #allocation7 [shape = 's32[2]{0}', space=sflag, size = 0x8, scoped, tag = 'scoped memory for tpu_custom_call.1']
    #allocation8 [shape = 'u8[262144]{0}', space=vmem, size = 0x40000, scoped, tag = 'input window, operand 1']
    #allocation9 [shape = 's32[2]{0}', space=sflag, size = 0x8, scoped, tag = 'scoped memory for tpu_custom_call.1']
    #allocation10 [shape = 'u8[262144]{0}', space=vmem, size = 0x40000, scoped, tag = 'input window, operand 2, single buffered']
    #allocation11 [shape = 'u8[262144]{0}', space=vmem, size = 0x40000, scoped, tag = 'input window, operand 3']
    #allocation12 [shape = 's32[2]{0}', space=sflag, size = 0x8, scoped, tag = 'scoped memory for tpu_custom_call.1']
    #allocation13 [shape = 'u8[65536]{0}', space=vmem, size = 0x10000, scoped, tag = 'input window, operand 5, single buffered']
    #allocation14 [shape = 'u8[65536]{0}', space=vmem, size = 0x10000, scoped, tag = 'input window, operand 7, single buffered']
    #allocation15 [shape = 's32[1]{0}', space=sflag, size = 0x4, scoped, tag = 'scoped memory for tpu_custom_call.1']
    #allocation16 [shape = 'u8[65536]{0}', space=vmem, size = 0x10000, scoped, tag = 'input window, operand 9, single buffered']
    #allocation17 [shape = 'u8[65536]{0}', space=vmem, size = 0x10000, scoped, tag = 'input window, operand 11, single buffered']
    #allocation18 [shape = 's32[1]{0}', space=sflag, size = 0x4, scoped, tag = 'scoped memory for tpu_custom_call.1']
    #allocation19 [shape = 'u8[65536]{0}', space=vmem, size = 0x10000, scoped, tag = 'input window, operand 13, single buffered']
    #allocation20 [shape = 'u8[65536]{0}', space=vmem, size = 0x10000, scoped, tag = 'input window, operand 15, single buffered']
    #allocation21 [shape = 's32[1]{0}', space=sflag, size = 0x4, scoped, tag = 'scoped memory for tpu_custom_call.1']
    #allocation22 [shape = 'u8[65536]{0}', space=vmem, size = 0x10000, scoped, tag = 'input window, operand 17, single buffered']
    #allocation23 [shape = 'u8[65536]{0}', space=vmem, size = 0x10000, scoped, tag = 'input window, operand 19, single buffered']
    #allocation24 [shape = 's32[1]{0}', space=sflag, size = 0x4, scoped, tag = 'scoped memory for tpu_custom_call.1']
    #allocation25 [shape = 'u8[65536]{0}', space=vmem, size = 0x10000, scoped, tag = 'input window, operand 21, single buffered']
    #allocation26 [shape = 'u8[65536]{0}', space=vmem, size = 0x10000, scoped, tag = 'input window, operand 23, single buffered']
    #allocation27 [shape = 's32[1]{0}', space=sflag, size = 0x4, scoped, tag = 'scoped memory for tpu_custom_call.1']
    #allocation28 [shape = 'u8[262144]{0}', space=vmem, size = 0x40000, scoped, tag = 'output window, operand 0']
    %31 = vsyncpa [#allocation6], 0
    %s32 = scalar_lea.sflag [#allocation6], 1
    %33 = vsyncpa %s32, 0
    %34 = vsyncpa [#allocation9], 0
    %s35 = scalar_lea.sflag [#allocation9], 1
    %36 = vsyncpa %s35, 0
    %37 = vsyncpa [#allocation12], 0
    %s38 = scalar_lea.sflag [#allocation12], 1
    %39 = vsyncpa %s38, 0
    %40 = vsyncpa [#allocation15], 0
    %41 = vsyncpa [#allocation18], 0
    %42 = vsyncpa [#allocation21], 0
    %43 = vsyncpa [#allocation24], 0
    %44 = vsyncpa [#allocation27], 0
    %45 = vsyncpa [#allocation7], 0
    %s46 = scalar_lea.sflag [#allocation7], 1
    %47 = vsyncpa %s46, 0
    loop: start=0, step=1, limit=4
    $region2: #{tpu_custom_call.1} parent=1 // loop_pre_header
      _
    $region3: #{tpu_custom_call.1} parent=1 // loop_header
      %s49 = sphi 0, %s53
      %p50 = scmp.ge.s32.totalorder %s49, 4
      %s56 = sphi 0, %s68
      %s57 = sphi 0, %s64
      %s58 = sphi 0, %s56
      %s59 = sphi 0, %s57
      %s60 = sphi 0, %s58
      %s61 = sphi 0, %s59
      %s73 = sphi 0, %s75
      %s76 = sphi 0, %s73
      %s77 = sphi 0, %s76
      %s93 = sphi 0, %s77
      %s101 = sphi 0, %s103
      %s104 = sphi 0, %s101
      %s105 = sphi 0, %s104
      %s121 = sphi 0, %s105
      %s125 = sphi 0, %s125
      %s127 = sphi 0, %s125
      %s128 = sphi 0, %s127
      %s142 = sphi 0, %s128
      %s148 = sphi 0, %s150
      %s151 = sphi 0, %s148
      %s152 = sphi 0, %s151
      %s168 = sphi 0, %s152
      %s172 = sphi 0, %s172
      %s174 = sphi 0, %s172
      %s175 = sphi 0, %s174
      %s189 = sphi 0, %s175
      %s193 = sphi 0, %s193
      %s195 = sphi 0, %s193
      %s196 = sphi 0, %s195
      %s210 = sphi 0, %s196
      %s214 = sphi 0, %s214
      %s216 = sphi 0, %s214
      %s217 = sphi 0, %s216
      %s231 = sphi 0, %s217
      %s235 = sphi 0, %s235
      %s237 = sphi 0, %s235
      %s238 = sphi 0, %s237
      %s252 = sphi 0, %s238
      %s256 = sphi 0, %s256
      %s258 = sphi 0, %s256
      %s259 = sphi 0, %s258
      %s273 = sphi 0, %s259
      %s277 = sphi 0, %s277
      %s279 = sphi 0, %s277
      %s280 = sphi 0, %s279
      %s294 = sphi 0, %s280
      %s298 = sphi 0, %s298
      %s300 = sphi 0, %s298
      %s301 = sphi 0, %s300
      %s315 = sphi 0, %s301
      %s319 = sphi 0, %s319
      %s321 = sphi 0, %s319
      %s322 = sphi 0, %s321
      %s336 = sphi 0, %s322
      %s340 = sphi 0, %s340
      %s342 = sphi 0, %s340
      %s343 = sphi 0, %s342
      %s357 = sphi 0, %s343
      %s361 = sphi 0, %s361
      %s363 = sphi 0, %s361
      %s364 = sphi 0, %s363
      %s378 = sphi 0, %s364
      %s382 = sphi 0, %s382
      %s384 = sphi 0, %s382
      %s385 = sphi 0, %s384
      %s399 = sphi 0, %s385
      %s403 = sphi 0, %s403
      %s405 = sphi 0, %s403
      %s406 = sphi 0, %s405
      %s420 = sphi 0, %s406
      %s424 = sphi 0, %s424
      %s426 = sphi 0, %s424
      %s427 = sphi 0, %s426
      %s441 = sphi 0, %s427
      %s445 = sphi 0, %s445
      %s447 = sphi 0, %s445
      %s448 = sphi 0, %s447
      %s462 = sphi 0, %s448
      %s466 = sphi 0, %s466
      %s468 = sphi 0, %s466
      %s469 = sphi 0, %s468
      %s483 = sphi 0, %s469
      %s487 = sphi 0, %s487
      %s489 = sphi 0, %s487
      %s490 = sphi 0, %s489
      %s504 = sphi 0, %s490
      %s508 = sphi 0, %s508
      %s510 = sphi 0, %s508
      %s511 = sphi 0, %s510
      %s525 = sphi 0, %s511
      %s529 = sphi 0, %s529
      %s531 = sphi 0, %s529
      %s532 = sphi 0, %s531
      %s546 = sphi 0, %s532
      %s550 = sphi 0, %s550
      %s552 = sphi 0, %s550
      %s553 = sphi 0, %s552
      %s567 = sphi 0, %s553
      %s571 = sphi 0, %s571
      %s573 = sphi 0, %s571
      %s574 = sphi 0, %s573
      %s588 = sphi 0, %s574
      %s592 = sphi 0, %s592
      %s594 = sphi 0, %s592
      %s595 = sphi 0, %s594
      %s609 = sphi 0, %s595
      %s615 = sphi 0, %s617
      %s618 = sphi 0, %s615
      %s619 = sphi 0, %s618
      %s635 = sphi 0, %s619
    $region4: #{tpu_custom_call.1} parent=1 // loop_header_branch
      %52 = sbr.rel (%p50) target = $region8
    $region5: #{tpu_custom_call.1} parent=1 // loop_body
      %s54 = ssub.s32 %s49, 1
      %s55 = ssub.s32 %s49, 2
      %s62 = sadd.s32 1, %s57
      %p63 = scmp.ge.s32.totalorder %s62, 1
      %s64 = scalar_select %p63, 0, %s62
      %s65 = sadd.s32 1, %s56
      %s66 = scalar_select %p63, %s65, %s56
      %p67 = scmp.ge.s32.totalorder %s66, 2
      %s68 = scalar_select %p67, 0, %s66
      %s69 = ssub.s32 %s56, %s68
      %s70 = ssub.s32 %s57, %s64
      %s71 = sor.u32 %s69, %s70
      %p72 = scmp.eq.s32.totalorder %s71, 0
      %s74 = sadd.s32 %s73, 1
      %s75 = scalar_select %p72, %s73, %s74
      %p78 = pneg %p72
      %p79 = scmp.eq.s32.totalorder %s49, 1
      %p80 = por %p78, %p79
      %p81 = scmp.ne.s32.totalorder %s73, %s76
      %p82 = scmp.eq.s32.totalorder %s49, 0
      %p83 = por %p81, %p82
      %p84 = scmp.ne.s32.totalorder %s73, %s76
      %p85 = scmp.eq.s32.totalorder %s54, 1
      %p86 = por %p84, %p85
      %p87 = scmp.ne.s32.totalorder %s76, %s77
      %p88 = scmp.eq.s32.totalorder %s54, 0
      %p89 = por %p87, %p88
      %p90 = scmp.ne.s32.totalorder %s76, %s77
      %p91 = scmp.eq.s32.totalorder %s55, 1
      %p92 = por %p90, %p91
      %p94 = scmp.ne.s32.totalorder %s77, %s93
      %p95 = scmp.eq.s32.totalorder %s55, 0
      %p96 = por %p94, %p95
      %s97 = ssub.s32 %s56, %s68
      %s98 = ssub.s32 %s57, %s64
      %s99 = sor.u32 %s97, %s98
      %p100 = scmp.eq.s32.totalorder %s99, 0
      %s102 = sadd.s32 %s101, 1
      %s103 = scalar_select %p100, %s101, %s102
      %p106 = pneg %p100
      %p107 = scmp.eq.s32.totalorder %s49, 1
      %p108 = por %p106, %p107
      %p109 = scmp.ne.s32.totalorder %s101, %s104
      %p110 = scmp.eq.s32.totalorder %s49, 0
      %p111 = por %p109, %p110
      %p112 = scmp.ne.s32.totalorder %s101, %s104
      %p113 = scmp.eq.s32.totalorder %s54, 1
      %p114 = por %p112, %p113
      %p115 = scmp.ne.s32.totalorder %s104, %s105
      %p116 = scmp.eq.s32.totalorder %s54, 0
      %p117 = por %p115, %p116
      %p118 = scmp.ne.s32.totalorder %s104, %s105
      %p119 = scmp.eq.s32.totalorder %s55, 1
      %p120 = por %p118, %p119
      %p122 = scmp.ne.s32.totalorder %s105, %s121
      %p123 = scmp.eq.s32.totalorder %s55, 0
      %p124 = por %p122, %p123
      %s126 = sadd.s32 %s125, 1
      %p129 = scmp.eq.s32.totalorder %s49, 1
      %p130 = scmp.ne.s32.totalorder %s125, %s127
      %p131 = scmp.eq.s32.totalorder %s49, 0
      %p132 = por %p130, %p131
      %p133 = scmp.ne.s32.totalorder %s125, %s127
      %p134 = scmp.eq.s32.totalorder %s54, 1
      %p135 = por %p133, %p134
      %p136 = scmp.ne.s32.totalorder %s127, %s128
      %p137 = scmp.eq.s32.totalorder %s54, 0
      %p138 = por %p136, %p137
      %p139 = scmp.ne.s32.totalorder %s127, %s128
      %p140 = scmp.eq.s32.totalorder %s55, 1
      %p141 = por %p139, %p140
      %p143 = scmp.ne.s32.totalorder %s128, %s142
      %p144 = scmp.eq.s32.totalorder %s55, 0
      %p145 = por %p143, %p144
      %s146 = ssub.s32 %s56, %s68
      %p147 = scmp.eq.s32.totalorder %s146, 0
      %s149 = sadd.s32 %s148, 1
      %s150 = scalar_select %p147, %s148, %s149
      %p153 = pneg %p147
      %p154 = scmp.eq.s32.totalorder %s49, 1
      %p155 = por %p153, %p154
      %p156 = scmp.ne.s32.totalorder %s148, %s151
      %p157 = scmp.eq.s32.totalorder %s49, 0
      %p158 = por %p156, %p157
      %p159 = scmp.ne.s32.totalorder %s148, %s151
      %p160 = scmp.eq.s32.totalorder %s54, 1
      %p161 = por %p159, %p160
      %p162 = scmp.ne.s32.totalorder %s151, %s152
      %p163 = scmp.eq.s32.totalorder %s54, 0
      %p164 = por %p162, %p163
      %p165 = scmp.ne.s32.totalorder %s151, %s152
      %p166 = scmp.eq.s32.totalorder %s55, 1
      %p167 = por %p165, %p166
      %p169 = scmp.ne.s32.totalorder %s152, %s168
      %p170 = scmp.eq.s32.totalorder %s55, 0
      %p171 = por %p169, %p170
      %s173 = sadd.s32 %s172, 1
      %p176 = scmp.eq.s32.totalorder %s49, 1
      %p177 = scmp.ne.s32.totalorder %s172, %s174
      %p178 = scmp.eq.s32.totalorder %s49, 0
      %p179 = por %p177, %p178
      %p180 = scmp.ne.s32.totalorder %s172, %s174
      %p181 = scmp.eq.s32.totalorder %s54, 1
      %p182 = por %p180, %p181
      %p183 = scmp.ne.s32.totalorder %s174, %s175
      %p184 = scmp.eq.s32.totalorder %s54, 0
      %p185 = por %p183, %p184
      %p186 = scmp.ne.s32.totalorder %s174, %s175
      %p187 = scmp.eq.s32.totalorder %s55, 1
      %p188 = por %p186, %p187
      %p190 = scmp.ne.s32.totalorder %s175, %s189
      %p191 = scmp.eq.s32.totalorder %s55, 0
      %p192 = por %p190, %p191
      %s194 = sadd.s32 %s193, 1
      %p197 = scmp.eq.s32.totalorder %s49, 1
      %p198 = scmp.ne.s32.totalorder %s193, %s195
      %p199 = scmp.eq.s32.totalorder %s49, 0
      %p200 = por %p198, %p199
      %p201 = scmp.ne.s32.totalorder %s193, %s195
      %p202 = scmp.eq.s32.totalorder %s54, 1
      %p203 = por %p201, %p202
      %p204 = scmp.ne.s32.totalorder %s195, %s196
      %p205 = scmp.eq.s32.totalorder %s54, 0
      %p206 = por %p204, %p205
      %p207 = scmp.ne.s32.totalorder %s195, %s196
      %p208 = scmp.eq.s32.totalorder %s55, 1
      %p209 = por %p207, %p208
      %p211 = scmp.ne.s32.totalorder %s196, %s210
      %p212 = scmp.eq.s32.totalorder %s55, 0
      %p213 = por %p211, %p212
      %s215 = sadd.s32 %s214, 1
      %p218 = scmp.eq.s32.totalorder %s49, 1
      %p219 = scmp.ne.s32.totalorder %s214, %s216
      %p220 = scmp.eq.s32.totalorder %s49, 0
      %p221 = por %p219, %p220
      %p222 = scmp.ne.s32.totalorder %s214, %s216
      %p223 = scmp.eq.s32.totalorder %s54, 1
      %p224 = por %p222, %p223
      %p225 = scmp.ne.s32.totalorder %s216, %s217
      %p226 = scmp.eq.s32.totalorder %s54, 0
      %p227 = por %p225, %p226
      %p228 = scmp.ne.s32.totalorder %s216, %s217
      %p229 = scmp.eq.s32.totalorder %s55, 1
      %p230 = por %p228, %p229
      %p232 = scmp.ne.s32.totalorder %s217, %s231
      %p233 = scmp.eq.s32.totalorder %s55, 0
      %p234 = por %p232, %p233
      %s236 = sadd.s32 %s235, 1
      %p239 = scmp.eq.s32.totalorder %s49, 1
      %p240 = scmp.ne.s32.totalorder %s235, %s237
      %p241 = scmp.eq.s32.totalorder %s49, 0
      %p242 = por %p240, %p241
      %p243 = scmp.ne.s32.totalorder %s235, %s237
      %p244 = scmp.eq.s32.totalorder %s54, 1
      %p245 = por %p243, %p244
      %p246 = scmp.ne.s32.totalorder %s237, %s238
      %p247 = scmp.eq.s32.totalorder %s54, 0
      %p248 = por %p246, %p247
      %p249 = scmp.ne.s32.totalorder %s237, %s238
      %p250 = scmp.eq.s32.totalorder %s55, 1
      %p251 = por %p249, %p250
      %p253 = scmp.ne.s32.totalorder %s238, %s252
      %p254 = scmp.eq.s32.totalorder %s55, 0
      %p255 = por %p253, %p254
      %s257 = sadd.s32 %s256, 1
      %p260 = scmp.eq.s32.totalorder %s49, 1
      %p261 = scmp.ne.s32.totalorder %s256, %s258
      %p262 = scmp.eq.s32.totalorder %s49, 0
      %p263 = por %p261, %p262
      %p264 = scmp.ne.s32.totalorder %s256, %s258
      %p265 = scmp.eq.s32.totalorder %s54, 1
      %p266 = por %p264, %p265
      %p267 = scmp.ne.s32.totalorder %s258, %s259
      %p268 = scmp.eq.s32.totalorder %s54, 0
      %p269 = por %p267, %p268
      %p270 = scmp.ne.s32.totalorder %s258, %s259
      %p271 = scmp.eq.s32.totalorder %s55, 1
      %p272 = por %p270, %p271
      %p274 = scmp.ne.s32.totalorder %s259, %s273
      %p275 = scmp.eq.s32.totalorder %s55, 0
      %p276 = por %p274, %p275
      %s278 = sadd.s32 %s277, 1
      %p281 = scmp.eq.s32.totalorder %s49, 1
      %p282 = scmp.ne.s32.totalorder %s277, %s279
      %p283 = scmp.eq.s32.totalorder %s49, 0
      %p284 = por %p282, %p283
      %p285 = scmp.ne.s32.totalorder %s277, %s279
      %p286 = scmp.eq.s32.totalorder %s54, 1
      %p287 = por %p285, %p286
      %p288 = scmp.ne.s32.totalorder %s279, %s280
      %p289 = scmp.eq.s32.totalorder %s54, 0
      %p290 = por %p288, %p289
      %p291 = scmp.ne.s32.totalorder %s279, %s280
      %p292 = scmp.eq.s32.totalorder %s55, 1
      %p293 = por %p291, %p292
      %p295 = scmp.ne.s32.totalorder %s280, %s294
      %p296 = scmp.eq.s32.totalorder %s55, 0
      %p297 = por %p295, %p296
      %s299 = sadd.s32 %s298, 1
      %p302 = scmp.eq.s32.totalorder %s49, 1
      %p303 = scmp.ne.s32.totalorder %s298, %s300
      %p304 = scmp.eq.s32.totalorder %s49, 0
      %p305 = por %p303, %p304
      %p306 = scmp.ne.s32.totalorder %s298, %s300
      %p307 = scmp.eq.s32.totalorder %s54, 1
      %p308 = por %p306, %p307
      %p309 = scmp.ne.s32.totalorder %s300, %s301
      %p310 = scmp.eq.s32.totalorder %s54, 0
      %p311 = por %p309, %p310
      %p312 = scmp.ne.s32.totalorder %s300, %s301
      %p313 = scmp.eq.s32.totalorder %s55, 1
      %p314 = por %p312, %p313
      %p316 = scmp.ne.s32.totalorder %s301, %s315
      %p317 = scmp.eq.s32.totalorder %s55, 0
      %p318 = por %p316, %p317
      %s320 = sadd.s32 %s319, 1
      %p323 = scmp.eq.s32.totalorder %s49, 1
      %p324 = scmp.ne.s32.totalorder %s319, %s321
      %p325 = scmp.eq.s32.totalorder %s49, 0
      %p326 = por %p324, %p325
      %p327 = scmp.ne.s32.totalorder %s319, %s321
      %p328 = scmp.eq.s32.totalorder %s54, 1
      %p329 = por %p327, %p328
      %p330 = scmp.ne.s32.totalorder %s321, %s322
      %p331 = scmp.eq.s32.totalorder %s54, 0
      %p332 = por %p330, %p331
      %p333 = scmp.ne.s32.totalorder %s321, %s322
      %p334 = scmp.eq.s32.totalorder %s55, 1
      %p335 = por %p333, %p334
      %p337 = scmp.ne.s32.totalorder %s322, %s336
      %p338 = scmp.eq.s32.totalorder %s55, 0
      %p339 = por %p337, %p338
      %s341 = sadd.s32 %s340, 1
      %p344 = scmp.eq.s32.totalorder %s49, 1
      %p345 = scmp.ne.s32.totalorder %s340, %s342
      %p346 = scmp.eq.s32.totalorder %s49, 0
      %p347 = por %p345, %p346
      %p348 = scmp.ne.s32.totalorder %s340, %s342
      %p349 = scmp.eq.s32.totalorder %s54, 1
      %p350 = por %p348, %p349
      %p351 = scmp.ne.s32.totalorder %s342, %s343
      %p352 = scmp.eq.s32.totalorder %s54, 0
      %p353 = por %p351, %p352
      %p354 = scmp.ne.s32.totalorder %s342, %s343
      %p355 = scmp.eq.s32.totalorder %s55, 1
      %p356 = por %p354, %p355
      %p358 = scmp.ne.s32.totalorder %s343, %s357
      %p359 = scmp.eq.s32.totalorder %s55, 0
      %p360 = por %p358, %p359
      %s362 = sadd.s32 %s361, 1
      %p365 = scmp.eq.s32.totalorder %s49, 1
      %p366 = scmp.ne.s32.totalorder %s361, %s363
      %p367 = scmp.eq.s32.totalorder %s49, 0
      %p368 = por %p366, %p367
      %p369 = scmp.ne.s32.totalorder %s361, %s363
      %p370 = scmp.eq.s32.totalorder %s54, 1
      %p371 = por %p369, %p370
      %p372 = scmp.ne.s32.totalorder %s363, %s364
      %p373 = scmp.eq.s32.totalorder %s54, 0
      %p374 = por %p372, %p373
      %p375 = scmp.ne.s32.totalorder %s363, %s364
      %p376 = scmp.eq.s32.totalorder %s55, 1
      %p377 = por %p375, %p376
      %p379 = scmp.ne.s32.totalorder %s364, %s378
      %p380 = scmp.eq.s32.totalorder %s55, 0
      %p381 = por %p379, %p380
      %s383 = sadd.s32 %s382, 1
      %p386 = scmp.eq.s32.totalorder %s49, 1
      %p387 = scmp.ne.s32.totalorder %s382, %s384
      %p388 = scmp.eq.s32.totalorder %s49, 0
      %p389 = por %p387, %p388
      %p390 = scmp.ne.s32.totalorder %s382, %s384
      %p391 = scmp.eq.s32.totalorder %s54, 1
      %p392 = por %p390, %p391
      %p393 = scmp.ne.s32.totalorder %s384, %s385
      %p394 = scmp.eq.s32.totalorder %s54, 0
      %p395 = por %p393, %p394
      %p396 = scmp.ne.s32.totalorder %s384, %s385
      %p397 = scmp.eq.s32.totalorder %s55, 1
      %p398 = por %p396, %p397
      %p400 = scmp.ne.s32.totalorder %s385, %s399
      %p401 = scmp.eq.s32.totalorder %s55, 0
      %p402 = por %p400, %p401
      %s404 = sadd.s32 %s403, 1
      %p407 = scmp.eq.s32.totalorder %s49, 1
      %p408 = scmp.ne.s32.totalorder %s403, %s405
      %p409 = scmp.eq.s32.totalorder %s49, 0
      %p410 = por %p408, %p409
      %p411 = scmp.ne.s32.totalorder %s403, %s405
      %p412 = scmp.eq.s32.totalorder %s54, 1
      %p413 = por %p411, %p412
      %p414 = scmp.ne.s32.totalorder %s405, %s406
      %p415 = scmp.eq.s32.totalorder %s54, 0
      %p416 = por %p414, %p415
      %p417 = scmp.ne.s32.totalorder %s405, %s406
      %p418 = scmp.eq.s32.totalorder %s55, 1
      %p419 = por %p417, %p418
      %p421 = scmp.ne.s32.totalorder %s406, %s420
      %p422 = scmp.eq.s32.totalorder %s55, 0
      %p423 = por %p421, %p422
      %s425 = sadd.s32 %s424, 1
      %p428 = scmp.eq.s32.totalorder %s49, 1
      %p429 = scmp.ne.s32.totalorder %s424, %s426
      %p430 = scmp.eq.s32.totalorder %s49, 0
      %p431 = por %p429, %p430
      %p432 = scmp.ne.s32.totalorder %s424, %s426
      %p433 = scmp.eq.s32.totalorder %s54, 1
      %p434 = por %p432, %p433
      %p435 = scmp.ne.s32.totalorder %s426, %s427
      %p436 = scmp.eq.s32.totalorder %s54, 0
      %p437 = por %p435, %p436
      %p438 = scmp.ne.s32.totalorder %s426, %s427
      %p439 = scmp.eq.s32.totalorder %s55, 1
      %p440 = por %p438, %p439
      %p442 = scmp.ne.s32.totalorder %s427, %s441
      %p443 = scmp.eq.s32.totalorder %s55, 0
      %p444 = por %p442, %p443
      %s446 = sadd.s32 %s445, 1
      %p449 = scmp.eq.s32.totalorder %s49, 1
      %p450 = scmp.ne.s32.totalorder %s445, %s447
      %p451 = scmp.eq.s32.totalorder %s49, 0
      %p452 = por %p450, %p451
      %p453 = scmp.ne.s32.totalorder %s445, %s447
      %p454 = scmp.eq.s32.totalorder %s54, 1
      %p455 = por %p453, %p454
      %p456 = scmp.ne.s32.totalorder %s447, %s448
      %p457 = scmp.eq.s32.totalorder %s54, 0
      %p458 = por %p456, %p457
      %p459 = scmp.ne.s32.totalorder %s447, %s448
      %p460 = scmp.eq.s32.totalorder %s55, 1
      %p461 = por %p459, %p460
      %p463 = scmp.ne.s32.totalorder %s448, %s462
      %p464 = scmp.eq.s32.totalorder %s55, 0
      %p465 = por %p463, %p464
      %s467 = sadd.s32 %s466, 1
      %p470 = scmp.eq.s32.totalorder %s49, 1
      %p471 = scmp.ne.s32.totalorder %s466, %s468
      %p472 = scmp.eq.s32.totalorder %s49, 0
      %p473 = por %p471, %p472
      %p474 = scmp.ne.s32.totalorder %s466, %s468
      %p475 = scmp.eq.s32.totalorder %s54, 1
      %p476 = por %p474, %p475
      %p477 = scmp.ne.s32.totalorder %s468, %s469
      %p478 = scmp.eq.s32.totalorder %s54, 0
      %p479 = por %p477, %p478
      %p480 = scmp.ne.s32.totalorder %s468, %s469
      %p481 = scmp.eq.s32.totalorder %s55, 1
      %p482 = por %p480, %p481
      %p484 = scmp.ne.s32.totalorder %s469, %s483
      %p485 = scmp.eq.s32.totalorder %s55, 0
      %p486 = por %p484, %p485
      %s488 = sadd.s32 %s487, 1
      %p491 = scmp.eq.s32.totalorder %s49, 1
      %p492 = scmp.ne.s32.totalorder %s487, %s489
      %p493 = scmp.eq.s32.totalorder %s49, 0
      %p494 = por %p492, %p493
      %p495 = scmp.ne.s32.totalorder %s487, %s489
      %p496 = scmp.eq.s32.totalorder %s54, 1
      %p497 = por %p495, %p496
      %p498 = scmp.ne.s32.totalorder %s489, %s490
      %p499 = scmp.eq.s32.totalorder %s54, 0
      %p500 = por %p498, %p499
      %p501 = scmp.ne.s32.totalorder %s489, %s490
      %p502 = scmp.eq.s32.totalorder %s55, 1
      %p503 = por %p501, %p502
      %p505 = scmp.ne.s32.totalorder %s490, %s504
      %p506 = scmp.eq.s32.totalorder %s55, 0
      %p507 = por %p505, %p506
      %s509 = sadd.s32 %s508, 1
      %p512 = scmp.eq.s32.totalorder %s49, 1
      %p513 = scmp.ne.s32.totalorder %s508, %s510
      %p514 = scmp.eq.s32.totalorder %s49, 0
      %p515 = por %p513, %p514
      %p516 = scmp.ne.s32.totalorder %s508, %s510
      %p517 = scmp.eq.s32.totalorder %s54, 1
      %p518 = por %p516, %p517
      %p519 = scmp.ne.s32.totalorder %s510, %s511
      %p520 = scmp.eq.s32.totalorder %s54, 0
      %p521 = por %p519, %p520
      %p522 = scmp.ne.s32.totalorder %s510, %s511
      %p523 = scmp.eq.s32.totalorder %s55, 1
      %p524 = por %p522, %p523
      %p526 = scmp.ne.s32.totalorder %s511, %s525
      %p527 = scmp.eq.s32.totalorder %s55, 0
      %p528 = por %p526, %p527
      %s530 = sadd.s32 %s529, 1
      %p533 = scmp.eq.s32.totalorder %s49, 1
      %p534 = scmp.ne.s32.totalorder %s529, %s531
      %p535 = scmp.eq.s32.totalorder %s49, 0
      %p536 = por %p534, %p535
      %p537 = scmp.ne.s32.totalorder %s529, %s531
      %p538 = scmp.eq.s32.totalorder %s54, 1
      %p539 = por %p537, %p538
      %p540 = scmp.ne.s32.totalorder %s531, %s532
      %p541 = scmp.eq.s32.totalorder %s54, 0
      %p542 = por %p540, %p541
      %p543 = scmp.ne.s32.totalorder %s531, %s532
      %p544 = scmp.eq.s32.totalorder %s55, 1
      %p545 = por %p543, %p544
      %p547 = scmp.ne.s32.totalorder %s532, %s546
      %p548 = scmp.eq.s32.totalorder %s55, 0
      %p549 = por %p547, %p548
      %s551 = sadd.s32 %s550, 1
      %p554 = scmp.eq.s32.totalorder %s49, 1
      %p555 = scmp.ne.s32.totalorder %s550, %s552
      %p556 = scmp.eq.s32.totalorder %s49, 0
      %p557 = por %p555, %p556
      %p558 = scmp.ne.s32.totalorder %s550, %s552
      %p559 = scmp.eq.s32.totalorder %s54, 1
      %p560 = por %p558, %p559
      %p561 = scmp.ne.s32.totalorder %s552, %s553
      %p562 = scmp.eq.s32.totalorder %s54, 0
      %p563 = por %p561, %p562
      %p564 = scmp.ne.s32.totalorder %s552, %s553
      %p565 = scmp.eq.s32.totalorder %s55, 1
      %p566 = por %p564, %p565
      %p568 = scmp.ne.s32.totalorder %s553, %s567
      %p569 = scmp.eq.s32.totalorder %s55, 0
      %p570 = por %p568, %p569
      %s572 = sadd.s32 %s571, 1
      %p575 = scmp.eq.s32.totalorder %s49, 1
      %p576 = scmp.ne.s32.totalorder %s571, %s573
      %p577 = scmp.eq.s32.totalorder %s49, 0
      %p578 = por %p576, %p577
      %p579 = scmp.ne.s32.totalorder %s571, %s573
      %p580 = scmp.eq.s32.totalorder %s54, 1
      %p581 = por %p579, %p580
      %p582 = scmp.ne.s32.totalorder %s573, %s574
      %p583 = scmp.eq.s32.totalorder %s54, 0
      %p584 = por %p582, %p583
      %p585 = scmp.ne.s32.totalorder %s573, %s574
      %p586 = scmp.eq.s32.totalorder %s55, 1
      %p587 = por %p585, %p586
      %p589 = scmp.ne.s32.totalorder %s574, %s588
      %p590 = scmp.eq.s32.totalorder %s55, 0
      %p591 = por %p589, %p590
      %s593 = sadd.s32 %s592, 1
      %p596 = scmp.eq.s32.totalorder %s49, 1
      %p597 = scmp.ne.s32.totalorder %s592, %s594
      %p598 = scmp.eq.s32.totalorder %s49, 0
      %p599 = por %p597, %p598
      %p600 = scmp.ne.s32.totalorder %s592, %s594
      %p601 = scmp.eq.s32.totalorder %s54, 1
      %p602 = por %p600, %p601
      %p603 = scmp.ne.s32.totalorder %s594, %s595
      %p604 = scmp.eq.s32.totalorder %s54, 0
      %p605 = por %p603, %p604
      %p606 = scmp.ne.s32.totalorder %s594, %s595
      %p607 = scmp.eq.s32.totalorder %s55, 1
      %p608 = por %p606, %p607
      %p610 = scmp.ne.s32.totalorder %s595, %s609
      %p611 = scmp.eq.s32.totalorder %s55, 0
      %p612 = por %p610, %p611
      %s613 = ssub.s32 %s56, %s68
      %p614 = scmp.eq.s32.totalorder %s613, 0
      %s616 = sadd.s32 %s615, 1
      %s617 = scalar_select %p614, %s615, %s616
      %p620 = pneg %p614
      %p621 = scmp.eq.s32.totalorder %s49, 1
      %p622 = por %p620, %p621
      %p623 = scmp.ne.s32.totalorder %s615, %s618
      %p624 = scmp.eq.s32.totalorder %s49, 0
      %p625 = por %p623, %p624
      %p626 = scmp.ne.s32.totalorder %s615, %s618
      %p627 = scmp.eq.s32.totalorder %s54, 1
      %p628 = por %p626, %p627
      %p629 = scmp.ne.s32.totalorder %s618, %s619
      %p630 = scmp.eq.s32.totalorder %s54, 0
      %p631 = por %p629, %p630
      %p632 = scmp.ne.s32.totalorder %s618, %s619
      %p633 = scmp.eq.s32.totalorder %s55, 1
      %p634 = por %p632, %p633
      %p636 = scmp.ne.s32.totalorder %s619, %s635
      %p637 = scmp.eq.s32.totalorder %s55, 0
      %p638 = por %p636, %p637
      %p639 = scmp.le.s32.totalorder 1, %s49
      %p640 = scmp.lt.s32.totalorder %s49, 3
      %p641 = pnand %p639, %p640
      %p642 = pneg %p641
      // Predicated region
      $region9: #{tpu_custom_call.1} parent=5 // pred_check
        _
      $region10: #{tpu_custom_call.1} parent=5 // pred_check_branch
        %644 = sbr.rel (%p641) target = $region12
      $region11: #{tpu_custom_call.1} parent=5 // pred_region
        %s645 = ssub.s32 %s49, 1
        // Predicated region
        $region13: #{tpu_custom_call.1} parent=11 // pred_check
          %p646 = pneg %p138
        $region14: #{tpu_custom_call.1} parent=11 // pred_check_branch
          %648 = sbr.rel (%p646) target = $region16
        $region15: #{tpu_custom_call.1} parent=11 // pred_region
          %s650 = ssub.s32 8192, 8192
          %651 = vsyncadd [#allocation9], %s650
          %s652 = sshll.u32 [#allocation10], 4
          %s653 = int_to_ptr.vmem [resolvable:$true] %s652
          %658 = dma.hbm_to_vmem [thread:$0]  %s2, 8192, %s653, [#allocation9], 128, 128, 8
        $region16: #{tpu_custom_call.1} parent=11 // pred_fallthru
          _
        // Predicated region
        $region17: #{tpu_custom_call.1} parent=11 // pred_check
          %p659 = pneg %p185
        $region18: #{tpu_custom_call.1} parent=11 // pred_check_branch
          %661 = sbr.rel (%p659) target = $region20
        $region19: #{tpu_custom_call.1} parent=11 // pred_region
          _
        $region20: #{tpu_custom_call.1} parent=11 // pred_fallthru
          _
        // Predicated region
        $region21: #{tpu_custom_call.1} parent=11 // pred_check
          %p662 = pneg %p206
        $region22: #{tpu_custom_call.1} parent=11 // pred_check_branch
          %664 = sbr.rel (%p662) target = $region24
        $region23: #{tpu_custom_call.1} parent=11 // pred_region
          %s666 = ssub.s32 2048, 2048
          %667 = vsyncadd [#allocation12], %s666
          %s668 = sshll.u32 [#allocation13], 4
          %s669 = int_to_ptr.vmem [resolvable:$true] %s668
          %674 = dma.hbm_to_vmem [thread:$0]  %s5, 2048, %s669, [#allocation12], 128, 128, 8
        $region24: #{tpu_custom_call.1} parent=11 // pred_fallthru
          _
        // Predicated region
        $region25: #{tpu_custom_call.1} parent=11 // pred_check
          %p675 = pneg %p227
        $region26: #{tpu_custom_call.1} parent=11 // pred_check_branch
          %677 = sbr.rel (%p675) target = $region28
        $region27: #{tpu_custom_call.1} parent=11 // pred_region
          _
        $region28: #{tpu_custom_call.1} parent=11 // pred_fallthru
          _
        // Predicated region
        $region29: #{tpu_custom_call.1} parent=11 // pred_check
          %p678 = pneg %p248
        $region30: #{tpu_custom_call.1} parent=11 // pred_check_branch
          %680 = sbr.rel (%p678) target = $region32
        $region31: #{tpu_custom_call.1} parent=11 // pred_region
          %s682 = ssub.s32 2048, 2048
          %683 = vsyncadd [#allocation15], %s682
          %s684 = sshll.u32 [#allocation14], 4
          %s685 = int_to_ptr.vmem [resolvable:$true] %s684
          %690 = dma.hbm_to_vmem [thread:$0]  %s7, 2048, %s685, [#allocation15], 128, 128, 8
        $region32: #{tpu_custom_call.1} parent=11 // pred_fallthru
          _
        // Predicated region
        $region33: #{tpu_custom_call.1} parent=11 // pred_check
          %p691 = pneg %p269
        $region34: #{tpu_custom_call.1} parent=11 // pred_check_branch
          %693 = sbr.rel (%p691) target = $region36
        $region35: #{tpu_custom_call.1} parent=11 // pred_region
          _
        $region36: #{tpu_custom_call.1} parent=11 // pred_fallthru
          _
        // Predicated region
        $region37: #{tpu_custom_call.1} parent=11 // pred_check
          %p694 = pneg %p290
        $region38: #{tpu_custom_call.1} parent=11 // pred_check_branch
          %696 = sbr.rel (%p694) target = $region40
        $region39: #{tpu_custom_call.1} parent=11 // pred_region
          %s698 = ssub.s32 2048, 2048
          %699 = vsyncadd [#allocation15], %s698
          %s700 = sshll.u32 [#allocation16], 4
          %s701 = int_to_ptr.vmem [resolvable:$true] %s700
          %706 = dma.hbm_to_vmem [thread:$0]  %s9, 2048, %s701, [#allocation15], 128, 128, 8
        $region40: #{tpu_custom_call.1} parent=11 // pred_fallthru
          _
        // Predicated region
        $region41: #{tpu_custom_call.1} parent=11 // pred_check
          %p707 = pneg %p311
        $region42: #{tpu_custom_call.1} parent=11 // pred_check_branch
          %709 = sbr.rel (%p707) target = $region44
        $region43: #{tpu_custom_call.1} parent=11 // pred_region
          _
        $region44: #{tpu_custom_call.1} parent=11 // pred_fallthru
          _
        // Predicated region
        $region45: #{tpu_custom_call.1} parent=11 // pred_check
          %p710 = pneg %p332
        $region46: #{tpu_custom_call.1} parent=11 // pred_check_branch
          %712 = sbr.rel (%p710) target = $region48
        $region47: #{tpu_custom_call.1} parent=11 // pred_region
          %s714 = ssub.s32 2048, 2048
          %715 = vsyncadd [#allocation18], %s714
          %s716 = sshll.u32 [#allocation17], 4
          %s717 = int_to_ptr.vmem [resolvable:$true] %s716
          %722 = dma.hbm_to_vmem [thread:$0]  %s11, 2048, %s717, [#allocation18], 128, 128, 8
        $region48: #{tpu_custom_call.1} parent=11 // pred_fallthru
          _
        // Predicated region
        $region49: #{tpu_custom_call.1} parent=11 // pred_check
          %p723 = pneg %p353
        $region50: #{tpu_custom_call.1} parent=11 // pred_check_branch
          %725 = sbr.rel (%p723) target = $region52
        $region51: #{tpu_custom_call.1} parent=11 // pred_region
          _
        $region52: #{tpu_custom_call.1} parent=11 // pred_fallthru
          _
        // Predicated region
        $region53: #{tpu_custom_call.1} parent=11 // pred_check
          %p726 = pneg %p374
        $region54: #{tpu_custom_call.1} parent=11 // pred_check_branch
          %728 = sbr.rel (%p726) target = $region56
        $region55: #{tpu_custom_call.1} parent=11 // pred_region
          %s730 = ssub.s32 2048, 2048
          %731 = vsyncadd [#allocation18], %s730
          %s732 = sshll.u32 [#allocation19], 4
          %s733 = int_to_ptr.vmem [resolvable:$true] %s732
          %738 = dma.hbm_to_vmem [thread:$0]  %s13, 2048, %s733, [#allocation18], 128, 128, 8
        $region56: #{tpu_custom_call.1} parent=11 // pred_fallthru
          _
        // Predicated region
        $region57: #{tpu_custom_call.1} parent=11 // pred_check
          %p739 = pneg %p395
        $region58: #{tpu_custom_call.1} parent=11 // pred_check_branch
          %741 = sbr.rel (%p739) target = $region60
        $region59: #{tpu_custom_call.1} parent=11 // pred_region
          _
        $region60: #{tpu_custom_call.1} parent=11 // pred_fallthru
          _
        // Predicated region
        $region61: #{tpu_custom_call.1} parent=11 // pred_check
          %p742 = pneg %p416
        $region62: #{tpu_custom_call.1} parent=11 // pred_check_branch
          %744 = sbr.rel (%p742) target = $region64
        $region63: #{tpu_custom_call.1} parent=11 // pred_region
          %s746 = ssub.s32 2048, 2048
          %747 = vsyncadd [#allocation21], %s746
          %s748 = sshll.u32 [#allocation20], 4
          %s749 = int_to_ptr.vmem [resolvable:$true] %s748
          %754 = dma.hbm_to_vmem [thread:$0]  %s15, 2048, %s749, [#allocation21], 128, 128, 8
        $region64: #{tpu_custom_call.1} parent=11 // pred_fallthru
          _
        // Predicated region
        $region65: #{tpu_custom_call.1} parent=11 // pred_check
          %p755 = pneg %p437
        $region66: #{tpu_custom_call.1} parent=11 // pred_check_branch
          %757 = sbr.rel (%p755) target = $region68
        $region67: #{tpu_custom_call.1} parent=11 // pred_region
          _
        $region68: #{tpu_custom_call.1} parent=11 // pred_fallthru
          _
        // Predicated region
        $region69: #{tpu_custom_call.1} parent=11 // pred_check
          %p758 = pneg %p458
        $region70: #{tpu_custom_call.1} parent=11 // pred_check_branch
          %760 = sbr.rel (%p758) target = $region72
        $region71: #{tpu_custom_call.1} parent=11 // pred_region
          %s762 = ssub.s32 2048, 2048
          %763 = vsyncadd [#allocation21], %s762
          %s764 = sshll.u32 [#allocation22], 4
          %s765 = int_to_ptr.vmem [resolvable:$true] %s764
          %770 = dma.hbm_to_vmem [thread:$0]  %s17, 2048, %s765, [#allocation21], 128, 128, 8
        $region72: #{tpu_custom_call.1} parent=11 // pred_fallthru
          _
        // Predicated region
        $region73: #{tpu_custom_call.1} parent=11 // pred_check
          %p771 = pneg %p479
        $region74: #{tpu_custom_call.1} parent=11 // pred_check_branch
          %773 = sbr.rel (%p771) target = $region76
        $region75: #{tpu_custom_call.1} parent=11 // pred_region
          _
        $region76: #{tpu_custom_call.1} parent=11 // pred_fallthru
          _
        // Predicated region
        $region77: #{tpu_custom_call.1} parent=11 // pred_check
          %p774 = pneg %p500
        $region78: #{tpu_custom_call.1} parent=11 // pred_check_branch
          %776 = sbr.rel (%p774) target = $region80
        $region79: #{tpu_custom_call.1} parent=11 // pred_region
          %s778 = ssub.s32 2048, 2048
          %779 = vsyncadd [#allocation24], %s778
          %s780 = sshll.u32 [#allocation23], 4
          %s781 = int_to_ptr.vmem [resolvable:$true] %s780
          %786 = dma.hbm_to_vmem [thread:$0]  %s19, 2048, %s781, [#allocation24], 128, 128, 8
        $region80: #{tpu_custom_call.1} parent=11 // pred_fallthru
          _
        // Predicated region
        $region81: #{tpu_custom_call.1} parent=11 // pred_check
          %p787 = pneg %p521
        $region82: #{tpu_custom_call.1} parent=11 // pred_check_branch
          %789 = sbr.rel (%p787) target = $region84
        $region83: #{tpu_custom_call.1} parent=11 // pred_region
          _
        $region84: #{tpu_custom_call.1} parent=11 // pred_fallthru
          _
        // Predicated region
        $region85: #{tpu_custom_call.1} parent=11 // pred_check
          %p790 = pneg %p542
        $region86: #{tpu_custom_call.1} parent=11 // pred_check_branch
          %792 = sbr.rel (%p790) target = $region88
        $region87: #{tpu_custom_call.1} parent=11 // pred_region
          %s794 = ssub.s32 2048, 2048
          %795 = vsyncadd [#allocation24], %s794
          %s796 = sshll.u32 [#allocation25], 4
          %s797 = int_to_ptr.vmem [resolvable:$true] %s796
          %802 = dma.hbm_to_vmem [thread:$0]  %s21, 2048, %s797, [#allocation24], 128, 128, 8
        $region88: #{tpu_custom_call.1} parent=11 // pred_fallthru
          _
        // Predicated region
        $region89: #{tpu_custom_call.1} parent=11 // pred_check
          %p803 = pneg %p563
        $region90: #{tpu_custom_call.1} parent=11 // pred_check_branch
          %805 = sbr.rel (%p803) target = $region92
        $region91: #{tpu_custom_call.1} parent=11 // pred_region
          _
        $region92: #{tpu_custom_call.1} parent=11 // pred_fallthru
          _
        // Predicated region
        $region93: #{tpu_custom_call.1} parent=11 // pred_check
          %p806 = pneg %p584
        $region94: #{tpu_custom_call.1} parent=11 // pred_check_branch
          %808 = sbr.rel (%p806) target = $region96
        $region95: #{tpu_custom_call.1} parent=11 // pred_region
          %s810 = ssub.s32 2048, 2048
          %811 = vsyncadd [#allocation27], %s810
          %s812 = sshll.u32 [#allocation26], 4
          %s813 = int_to_ptr.vmem [resolvable:$true] %s812
          %818 = dma.hbm_to_vmem [thread:$0]  %s23, 2048, %s813, [#allocation27], 128, 128, 8
        $region96: #{tpu_custom_call.1} parent=11 // pred_fallthru
          _
        // Predicated region
        $region97: #{tpu_custom_call.1} parent=11 // pred_check
          %p819 = pneg %p605
        $region98: #{tpu_custom_call.1} parent=11 // pred_check_branch
          %821 = sbr.rel (%p819) target = $region100
        $region99: #{tpu_custom_call.1} parent=11 // pred_region
          _
        $region100: #{tpu_custom_call.1} parent=11 // pred_fallthru
          _
      $region12: #{tpu_custom_call.1} parent=5 // pred_fallthru
        _
      %p822 = scmp.lt.s32.totalorder %s49, 2
      // Predicated region
      $region101: #{tpu_custom_call.1} parent=5 // pred_check
        %p823 = pneg %p822
      $region102: #{tpu_custom_call.1} parent=5 // pred_check_branch
        %825 = sbr.rel (%p823) target = $region104
      $region103: #{tpu_custom_call.1} parent=5 // pred_region
        // Predicated region
        $region105: #{tpu_custom_call.1} parent=103 // pred_check
          %p826 = pneg %p83
        $region106: #{tpu_custom_call.1} parent=103 // pred_check_branch
          %828 = sbr.rel (%p826) target = $region108
        $region107: #{tpu_custom_call.1} parent=103 // pred_region
          %s829 = sand.u32 %s73, 1
          %s830 = scalar_lea.sflag [#allocation6], %s829
          %s831 = sand.u32 %s73, 1
          %s832 = smul.addr %s831, 256
          %s833 = scalar_lea.vmem [#allocation5], %s832
          %s834 = smul.u32 8, %s56
          %s835 = smul.u32 4, %s57
          %s837 = ssub.s32 4096, 4096
          %838 = vsyncadd %s830, %s837
          %s839 = smul.addr %s834, 4
          %s840 = sadd.s32 %s835, %s839
          %s841 = smul.addr %s840, 128
          %s842 = scalar_lea.hbm %s0, %s841
          %s843 = sshll.u32 %s833, 4
          %s844 = int_to_ptr.vmem [resolvable:$true] %s843
          %849 = dma.hbm_to_vmem [thread:$0]  %s842, 4096, %s844, %s830, 512, 512, 32
        $region108: #{tpu_custom_call.1} parent=103 // pred_fallthru
          _
        // Predicated region
        $region109: #{tpu_custom_call.1} parent=103 // pred_check
          %p850 = pneg %p111
        $region110: #{tpu_custom_call.1} parent=103 // pred_check_branch
          %852 = sbr.rel (%p850) target = $region112
        $region111: #{tpu_custom_call.1} parent=103 // pred_region
          %s853 = sand.u32 %s49, 1
          %s854 = scalar_lea.sflag [#allocation9], %s853
          %s855 = sand.u32 %s101, 1
          %s856 = smul.addr %s855, 256
          %s857 = scalar_lea.vmem [#allocation8], %s856
          %s858 = smul.u32 8, %s56
          %s859 = smul.u32 4, %s57
          %s861 = ssub.s32 4096, 4096
          %862 = vsyncadd %s854, %s861
          %s863 = smul.addr %s858, 4
          %s864 = sadd.s32 %s859, %s863
          %s865 = smul.addr %s864, 128
          %s866 = scalar_lea.hbm %s1, %s865
          %s867 = sshll.u32 %s857, 4
          %s868 = int_to_ptr.vmem [resolvable:$true] %s867
          %873 = dma.hbm_to_vmem [thread:$0]  %s866, 4096, %s868, %s854, 512, 512, 32
        $region112: #{tpu_custom_call.1} parent=103 // pred_fallthru
          _
        // Predicated region
        $region113: #{tpu_custom_call.1} parent=103 // pred_check
          %p874 = pneg %p158
        $region114: #{tpu_custom_call.1} parent=103 // pred_check_branch
          %876 = sbr.rel (%p874) target = $region116
        $region115: #{tpu_custom_call.1} parent=103 // pred_region
          %s877 = sand.u32 %s49, 1
          %s878 = scalar_lea.sflag [#allocation12], %s877
          %s879 = sand.u32 %s148, 1
          %s880 = smul.addr %s879, 256
          %s881 = scalar_lea.vmem [#allocation11], %s880
          %s882 = smul.u32 32, %s56
          %s884 = ssub.s32 4096, 4096
          %885 = vsyncadd %s878, %s884
          %s886 = smul.addr %s882, 128
          %s887 = scalar_lea.hbm %s3, %s886
          %s888 = sshll.u32 %s881, 4
          %s889 = int_to_ptr.vmem [resolvable:$true] %s888
          %894 = dma.hbm_to_vmem [thread:$0]  %s887, 4096, %s889, %s878, 128, 128, 8
        $region116: #{tpu_custom_call.1} parent=103 // pred_fallthru
          _
      $region104: #{tpu_custom_call.1} parent=5 // pred_fallthru
        _
      %p895 = scmp.le.s32.totalorder 1, %s49
      %p896 = scmp.lt.s32.totalorder %s49, 3
      %p897 = pnand %p895, %p896
      %p898 = pneg %p897
      // Predicated region
      $region117: #{tpu_custom_call.1} parent=5 // pred_check
        _
      $region118: #{tpu_custom_call.1} parent=5 // pred_check_branch
        %900 = sbr.rel (%p897) target = $region120
      $region119: #{tpu_custom_call.1} parent=5 // pred_region
        %s901 = ssub.s32 %s49, 1
        %s902 = sand.u32 %s76, 1
        %s903 = scalar_lea.sflag [#allocation6], %s902
        %s904 = sand.u32 %s76, 1
        %s905 = smul.addr %s904, 256
        %s906 = scalar_lea.vmem [#allocation5], %s905
        // Predicated region
        $region121: #{tpu_custom_call.1} parent=119 // pred_check
          %p907 = pneg %p89
        $region122: #{tpu_custom_call.1} parent=119 // pred_check_branch
          %909 = sbr.rel (%p907) target = $region124
        $region123: #{tpu_custom_call.1} parent=119 // pred_region
          %910 = dma.done %s903, 4096
        $region124: #{tpu_custom_call.1} parent=119 // pred_fallthru
          _
        %s911 = sand.u32 %s54, 1
        %s912 = scalar_lea.sflag [#allocation9], %s911
        %s913 = sand.u32 %s104, 1
        %s914 = smul.addr %s913, 256
        %s915 = scalar_lea.vmem [#allocation8], %s914
        // Predicated region
        $region125: #{tpu_custom_call.1} parent=119 // pred_check
          %p916 = pneg %p117
        $region126: #{tpu_custom_call.1} parent=119 // pred_check_branch
          %918 = sbr.rel (%p916) target = $region128
        $region127: #{tpu_custom_call.1} parent=119 // pred_region
          %919 = dma.done %s912, 4096
        $region128: #{tpu_custom_call.1} parent=119 // pred_fallthru
          _
        // Predicated region
        $region129: #{tpu_custom_call.1} parent=119 // pred_check
          %p920 = pneg %p138
        $region130: #{tpu_custom_call.1} parent=119 // pred_check_branch
          %922 = sbr.rel (%p920) target = $region132
        $region131: #{tpu_custom_call.1} parent=119 // pred_region
          %923 = dma.done [#allocation9], 8192
        $region132: #{tpu_custom_call.1} parent=119 // pred_fallthru
          _
        %s924 = sand.u32 %s54, 1
        %s925 = scalar_lea.sflag [#allocation12], %s924
        %s926 = sand.u32 %s151, 1
        %s927 = smul.addr %s926, 256
        %s928 = scalar_lea.vmem [#allocation11], %s927
        // Predicated region
        $region133: #{tpu_custom_call.1} parent=119 // pred_check
          %p929 = pneg %p164
        $region134: #{tpu_custom_call.1} parent=119 // pred_check_branch
          %931 = sbr.rel (%p929) target = $region136
        $region135: #{tpu_custom_call.1} parent=119 // pred_region
          %932 = dma.done %s925, 4096
        $region136: #{tpu_custom_call.1} parent=119 // pred_fallthru
          _
        // Predicated region
        $region137: #{tpu_custom_call.1} parent=119 // pred_check
          %p933 = pneg %p206
        $region138: #{tpu_custom_call.1} parent=119 // pred_check_branch
          %935 = sbr.rel (%p933) target = $region140
        $region139: #{tpu_custom_call.1} parent=119 // pred_region
          %936 = dma.done [#allocation12], 2048
        $region140: #{tpu_custom_call.1} parent=119 // pred_fallthru
          _
        // Predicated region
        $region141: #{tpu_custom_call.1} parent=119 // pred_check
          %p937 = pneg %p248
        $region142: #{tpu_custom_call.1} parent=119 // pred_check_branch
          %939 = sbr.rel (%p937) target = $region144
        $region143: #{tpu_custom_call.1} parent=119 // pred_region
          %940 = dma.done [#allocation15], 2048
        $region144: #{tpu_custom_call.1} parent=119 // pred_fallthru
          _
        // Predicated region
        $region145: #{tpu_custom_call.1} parent=119 // pred_check
          %p941 = pneg %p290
        $region146: #{tpu_custom_call.1} parent=119 // pred_check_branch
          %943 = sbr.rel (%p941) target = $region148
        $region147: #{tpu_custom_call.1} parent=119 // pred_region
          %944 = dma.done [#allocation15], 2048
        $region148: #{tpu_custom_call.1} parent=119 // pred_fallthru
          _
        // Predicated region
        $region149: #{tpu_custom_call.1} parent=119 // pred_check
          %p945 = pneg %p332
        $region150: #{tpu_custom_call.1} parent=119 // pred_check_branch
          %947 = sbr.rel (%p945) target = $region152
        $region151: #{tpu_custom_call.1} parent=119 // pred_region
          %948 = dma.done [#allocation18], 2048
        $region152: #{tpu_custom_call.1} parent=119 // pred_fallthru
          _
        // Predicated region
        $region153: #{tpu_custom_call.1} parent=119 // pred_check
          %p949 = pneg %p374
        $region154: #{tpu_custom_call.1} parent=119 // pred_check_branch
          %951 = sbr.rel (%p949) target = $region156
        $region155: #{tpu_custom_call.1} parent=119 // pred_region
          %952 = dma.done [#allocation18], 2048
        $region156: #{tpu_custom_call.1} parent=119 // pred_fallthru
          _
        // Predicated region
        $region157: #{tpu_custom_call.1} parent=119 // pred_check
          %p953 = pneg %p416
        $region158: #{tpu_custom_call.1} parent=119 // pred_check_branch
          %955 = sbr.rel (%p953) target = $region160
        $region159: #{tpu_custom_call.1} parent=119 // pred_region
          %956 = dma.done [#allocation21], 2048
        $region160: #{tpu_custom_call.1} parent=119 // pred_fallthru
          _
        // Predicated region
        $region161: #{tpu_custom_call.1} parent=119 // pred_check
          %p957 = pneg %p458
        $region162: #{tpu_custom_call.1} parent=119 // pred_check_branch
          %959 = sbr.rel (%p957) target = $region164
        $region163: #{tpu_custom_call.1} parent=119 // pred_region
          %960 = dma.done [#allocation21], 2048
        $region164: #{tpu_custom_call.1} parent=119 // pred_fallthru
          _
        // Predicated region
        $region165: #{tpu_custom_call.1} parent=119 // pred_check
          %p961 = pneg %p500
        $region166: #{tpu_custom_call.1} parent=119 // pred_check_branch
          %963 = sbr.rel (%p961) target = $region168
        $region167: #{tpu_custom_call.1} parent=119 // pred_region
          %964 = dma.done [#allocation24], 2048
        $region168: #{tpu_custom_call.1} parent=119 // pred_fallthru
          _
        // Predicated region
        $region169: #{tpu_custom_call.1} parent=119 // pred_check
          %p965 = pneg %p542
        $region170: #{tpu_custom_call.1} parent=119 // pred_check_branch
          %967 = sbr.rel (%p965) target = $region172
        $region171: #{tpu_custom_call.1} parent=119 // pred_region
          %968 = dma.done [#allocation24], 2048
        $region172: #{tpu_custom_call.1} parent=119 // pred_fallthru
          _
        // Predicated region
        $region173: #{tpu_custom_call.1} parent=119 // pred_check
          %p969 = pneg %p584
        $region174: #{tpu_custom_call.1} parent=119 // pred_check_branch
          %971 = sbr.rel (%p969) target = $region176
        $region175: #{tpu_custom_call.1} parent=119 // pred_region
          %972 = dma.done [#allocation27], 2048
        $region176: #{tpu_custom_call.1} parent=119 // pred_fallthru
          _
        %s973 = sand.u32 %s76, 1
        %s974 = scalar_lea.sflag [#allocation6], %s973
        %s975 = sand.u32 %s76, 1
        %s976 = smul.addr %s975, 256
        %s977 = scalar_lea.vmem [#allocation5], %s976
        %p978 = pneg %p89
        %p979 = pneg %p86
        %s980 = sand.u32 %s54, 1
        %s981 = scalar_lea.sflag [#allocation9], %s980
        %s982 = sand.u32 %s104, 1
        %s983 = smul.addr %s982, 256
        %s984 = scalar_lea.vmem [#allocation8], %s983
        %p985 = pneg %p117
        %p986 = pneg %p114
        %p987 = pneg %p138
        %p988 = pneg %p135
        %s989 = sand.u32 %s54, 1
        %s990 = scalar_lea.sflag [#allocation12], %s989
        %s991 = sand.u32 %s151, 1
        %s992 = smul.addr %s991, 256
        %s993 = scalar_lea.vmem [#allocation11], %s992
        %p994 = pneg %p164
        %p995 = pneg %p161
        %p996 = pneg %p185
        %p997 = pneg %p182
        %p998 = pneg %p206
        %p999 = pneg %p203
        %p1000 = pneg %p227
        %p1001 = pneg %p224
        %p1002 = pneg %p248
        %p1003 = pneg %p245
        %p1004 = pneg %p269
        %p1005 = pneg %p266
        %p1006 = pneg %p290
        %p1007 = pneg %p287
        %p1008 = pneg %p311
        %p1009 = pneg %p308
        %p1010 = pneg %p332
        %p1011 = pneg %p329
        %p1012 = pneg %p353
        %p1013 = pneg %p350
        %p1014 = pneg %p374
        %p1015 = pneg %p371
        %p1016 = pneg %p395
        %p1017 = pneg %p392
        %p1018 = pneg %p416
        %p1019 = pneg %p413
        %p1020 = pneg %p437
        %p1021 = pneg %p434
        %p1022 = pneg %p458
        %p1023 = pneg %p455
        %p1024 = pneg %p479
        %p1025 = pneg %p476
        %p1026 = pneg %p500
        %p1027 = pneg %p497
        %p1028 = pneg %p521
        %p1029 = pneg %p518
        %p1030 = pneg %p542
        %p1031 = pneg %p539
        %p1032 = pneg %p563
        %p1033 = pneg %p560
        %p1034 = pneg %p584
        %p1035 = pneg %p581
        %p1036 = pneg %p605
        %p1037 = pneg %p602
        %p1038 = pneg %p631
        %p1039 = pneg %p628
        %s1040 = sand.u32 %s618, 1
        %s1041 = scalar_lea.sflag [#allocation7], %s1040
        %s1042 = sand.u32 %s618, 1
        %s1043 = smul.addr %s1042, 256
        %s1044 = scalar_lea.vmem [#allocation28], %s1043
        %s1045 = smul.u32 8, %s58
        %s1046 = smul.u32 4, %s59
        %s1047 = smul.u32 8, %s58
        %s1048 = smul.u32 4, %s59
        %s1049 = smul.u32 32, %s58
        %s1050 = smul.u32 32, %s58
        %p1051 = scmp.eq.s32.totalorder %s59, 0
        // Predicated region
        $region177: #{tpu_custom_call.1} parent=119 // pred_check
          %p1052 = pneg %p1051
        $region178: #{tpu_custom_call.1} parent=119 // pred_check_branch
          %1054 = sbr.rel (%p1052) target = $region180
        $region179: #{tpu_custom_call.1} parent=119 // pred_region
          %1055 = vst [vmem:[#allocation2] sm:$0xff] 0.0
          %1056 = vst [vmem:[#allocation2 + $0x8] sm:$0xff] 0.0
          %1057 = vst [vmem:[#allocation2 + $0x10] sm:$0xff] 0.0
          %1058 = vst [vmem:[#allocation2 + $0x18] sm:$0xff] 0.0
          %1059 = vst [vmem:[#allocation2 + $0x20] sm:$0xff] 0.0
          %1060 = vst [vmem:[#allocation2 + $0x28] sm:$0xff] 0.0
          %1061 = vst [vmem:[#allocation2 + $0x30] sm:$0xff] 0.0
          %1062 = vst [vmem:[#allocation2 + $0x38] sm:$0xff] 0.0
          %1063 = vst [vmem:[#allocation2 + $0x40] sm:$0xff] 0.0
          %1064 = vst [vmem:[#allocation2 + $0x48] sm:$0xff] 0.0
          %1065 = vst [vmem:[#allocation2 + $0x50] sm:$0xff] 0.0
          %1066 = vst [vmem:[#allocation2 + $0x58] sm:$0xff] 0.0
          %1067 = vst [vmem:[#allocation2 + $0x60] sm:$0xff] 0.0
          %1068 = vst [vmem:[#allocation2 + $0x68] sm:$0xff] 0.0
          %1069 = vst [vmem:[#allocation2 + $0x70] sm:$0xff] 0.0
          %1070 = vst [vmem:[#allocation2 + $0x78] sm:$0xff] 0.0
          %1071 = vst [vmem:[#allocation2 + $0x80] sm:$0xff] 0.0
          %1072 = vst [vmem:[#allocation2 + $0x88] sm:$0xff] 0.0
          %1073 = vst [vmem:[#allocation2 + $0x90] sm:$0xff] 0.0
          %1074 = vst [vmem:[#allocation2 + $0x98] sm:$0xff] 0.0
          %1075 = vst [vmem:[#allocation2 + $0xa0] sm:$0xff] 0.0
          %1076 = vst [vmem:[#allocation2 + $0xa8] sm:$0xff] 0.0
          %1077 = vst [vmem:[#allocation2 + $0xb0] sm:$0xff] 0.0
          %1078 = vst [vmem:[#allocation2 + $0xb8] sm:$0xff] 0.0
          %1079 = vst [vmem:[#allocation2 + $0xc0] sm:$0xff] 0.0
          %1080 = vst [vmem:[#allocation2 + $0xc8] sm:$0xff] 0.0
          %1081 = vst [vmem:[#allocation2 + $0xd0] sm:$0xff] 0.0
          %1082 = vst [vmem:[#allocation2 + $0xd8] sm:$0xff] 0.0
          %1083 = vst [vmem:[#allocation2 + $0xe0] sm:$0xff] 0.0
          %1084 = vst [vmem:[#allocation2 + $0xe8] sm:$0xff] 0.0
          %1085 = vst [vmem:[#allocation2 + $0xf0] sm:$0xff] 0.0
          %1086 = vst [vmem:[#allocation2 + $0xf8] sm:$0xff] 0.0
          %1087 = vst [vmem:[#allocation3] sm:$0xff] 0.0
          %1088 = vst [vmem:[#allocation3 + $0x8] sm:$0xff] 0.0
          %1089 = vst [vmem:[#allocation3 + $0x10] sm:$0xff] 0.0
          %1090 = vst [vmem:[#allocation3 + $0x18] sm:$0xff] 0.0
          %1091 = vst [vmem:[#allocation3 + $0x20] sm:$0xff] 0.0
          %1092 = vst [vmem:[#allocation3 + $0x28] sm:$0xff] 0.0
          %1093 = vst [vmem:[#allocation3 + $0x30] sm:$0xff] 0.0
          %1094 = vst [vmem:[#allocation3 + $0x38] sm:$0xff] 0.0
          %1095 = vst [vmem:[#allocation3 + $0x40] sm:$0xff] 0.0
          %1096 = vst [vmem:[#allocation3 + $0x48] sm:$0xff] 0.0
          %1097 = vst [vmem:[#allocation3 + $0x50] sm:$0xff] 0.0
          %1098 = vst [vmem:[#allocation3 + $0x58] sm:$0xff] 0.0
          %1099 = vst [vmem:[#allocation3 + $0x60] sm:$0xff] 0.0
          %1100 = vst [vmem:[#allocation3 + $0x68] sm:$0xff] 0.0
          %1101 = vst [vmem:[#allocation3 + $0x70] sm:$0xff] 0.0
          %1102 = vst [vmem:[#allocation3 + $0x78] sm:$0xff] 0.0
          %1103 = vst [vmem:[#allocation3 + $0x80] sm:$0xff] 0.0
          %1104 = vst [vmem:[#allocation3 + $0x88] sm:$0xff] 0.0
          %1105 = vst [vmem:[#allocation3 + $0x90] sm:$0xff] 0.0
          %1106 = vst [vmem:[#allocation3 + $0x98] sm:$0xff] 0.0
          %1107 = vst [vmem:[#allocation3 + $0xa0] sm:$0xff] 0.0
          %1108 = vst [vmem:[#allocation3 + $0xa8] sm:$0xff] 0.0
          %1109 = vst [vmem:[#allocation3 + $0xb0] sm:$0xff] 0.0
          %1110 = vst [vmem:[#allocation3 + $0xb8] sm:$0xff] 0.0
          %1111 = vst [vmem:[#allocation3 + $0xc0] sm:$0xff] 0.0
          %1112 = vst [vmem:[#allocation3 + $0xc8] sm:$0xff] 0.0
          %1113 = vst [vmem:[#allocation3 + $0xd0] sm:$0xff] 0.0
          %1114 = vst [vmem:[#allocation3 + $0xd8] sm:$0xff] 0.0
          %1115 = vst [vmem:[#allocation3 + $0xe0] sm:$0xff] 0.0
          %1116 = vst [vmem:[#allocation3 + $0xe8] sm:$0xff] 0.0
          %1117 = vst [vmem:[#allocation3 + $0xf0] sm:$0xff] 0.0
          %1118 = vst [vmem:[#allocation3 + $0xf8] sm:$0xff] 0.0
        $region180: #{tpu_custom_call.1} parent=119 // pred_fallthru
          _
        %v1119 = vld [vmem:[%s906] sm:$0xff]
        %v1120 = vld [vmem:[%s906 + $0x8] sm:$0xff]
        %v1121 = vld [vmem:[%s906 + $0x10] sm:$0xff]
        %v1122 = vld [vmem:[%s906 + $0x18] sm:$0xff]
        %v1123 = vld [vmem:[%s906 + $0x20] sm:$0xff]
        %v1124 = vld [vmem:[%s906 + $0x28] sm:$0xff]
        %v1125 = vld [vmem:[%s906 + $0x30] sm:$0xff]
        %v1126 = vld [vmem:[%s906 + $0x38] sm:$0xff]
        %v1127 = vld [vmem:[%s906 + $0x40] sm:$0xff]
        %v1128 = vld [vmem:[%s906 + $0x48] sm:$0xff]
        %v1129 = vld [vmem:[%s906 + $0x50] sm:$0xff]
        %v1130 = vld [vmem:[%s906 + $0x58] sm:$0xff]
        %v1131 = vld [vmem:[%s906 + $0x60] sm:$0xff]
        %v1132 = vld [vmem:[%s906 + $0x68] sm:$0xff]
        %v1133 = vld [vmem:[%s906 + $0x70] sm:$0xff]
        %v1134 = vld [vmem:[%s906 + $0x78] sm:$0xff]
        %v1135 = vld [vmem:[%s906 + $0x80] sm:$0xff]
        %v1136 = vld [vmem:[%s906 + $0x88] sm:$0xff]
        %v1137 = vld [vmem:[%s906 + $0x90] sm:$0xff]
        %v1138 = vld [vmem:[%s906 + $0x98] sm:$0xff]
        %v1139 = vld [vmem:[%s906 + $0xa0] sm:$0xff]
        %v1140 = vld [vmem:[%s906 + $0xa8] sm:$0xff]
        %v1141 = vld [vmem:[%s906 + $0xb0] sm:$0xff]
        %v1142 = vld [vmem:[%s906 + $0xb8] sm:$0xff]
        %v1143 = vld [vmem:[%s906 + $0xc0] sm:$0xff]
        %v1144 = vld [vmem:[%s906 + $0xc8] sm:$0xff]
        %v1145 = vld [vmem:[%s906 + $0xd0] sm:$0xff]
        %v1146 = vld [vmem:[%s906 + $0xd8] sm:$0xff]
        %v1147 = vld [vmem:[%s906 + $0xe0] sm:$0xff]
        %v1148 = vld [vmem:[%s906 + $0xe8] sm:$0xff]
        %v1149 = vld [vmem:[%s906 + $0xf0] sm:$0xff]
        %v1150 = vld [vmem:[%s906 + $0xf8] sm:$0xff]
        %v1151 = vunpack.c.0.s8 %v1119
        %v1152 = vunpack.c.0.s8 %v1120
        %v1153 = vunpack.c.0.s8 %v1121
        %v1154 = vunpack.c.0.s8 %v1122
        %v1155 = vunpack.c.1.s8 %v1119
        %v1156 = vunpack.c.1.s8 %v1120
        %v1157 = vunpack.c.1.s8 %v1121
        %v1158 = vunpack.c.1.s8 %v1122
        %v1159 = vunpack.c.2.s8 %v1119
        %v1160 = vunpack.c.2.s8 %v1120
        %v1161 = vunpack.c.2.s8 %v1121
        %v1162 = vunpack.c.2.s8 %v1122
        %v1163 = vunpack.c.3.s8 %v1119
        %v1164 = vunpack.c.3.s8 %v1120
        %v1165 = vunpack.c.3.s8 %v1121
        %v1166 = vunpack.c.3.s8 %v1122
        %v1167 = vunpack.c.0.s8 %v1123
        %v1168 = vunpack.c.0.s8 %v1124
        %v1169 = vunpack.c.0.s8 %v1125
        %v1170 = vunpack.c.0.s8 %v1126
        %v1171 = vunpack.c.1.s8 %v1123
        %v1172 = vunpack.c.1.s8 %v1124
        %v1173 = vunpack.c.1.s8 %v1125
        %v1174 = vunpack.c.1.s8 %v1126
        %v1175 = vunpack.c.2.s8 %v1123
        %v1176 = vunpack.c.2.s8 %v1124
        %v1177 = vunpack.c.2.s8 %v1125
        %v1178 = vunpack.c.2.s8 %v1126
        %v1179 = vunpack.c.3.s8 %v1123
        %v1180 = vunpack.c.3.s8 %v1124
        %v1181 = vunpack.c.3.s8 %v1125
        %v1182 = vunpack.c.3.s8 %v1126
        %v1183 = vunpack.c.0.s8 %v1127
        %v1184 = vunpack.c.0.s8 %v1128
        %v1185 = vunpack.c.0.s8 %v1129
        %v1186 = vunpack.c.0.s8 %v1130
        %v1187 = vunpack.c.1.s8 %v1127
        %v1188 = vunpack.c.1.s8 %v1128
        %v1189 = vunpack.c.1.s8 %v1129
        %v1190 = vunpack.c.1.s8 %v1130
        %v1191 = vunpack.c.2.s8 %v1127
        %v1192 = vunpack.c.2.s8 %v1128
        %v1193 = vunpack.c.2.s8 %v1129
        %v1194 = vunpack.c.2.s8 %v1130
        %v1195 = vunpack.c.3.s8 %v1127
        %v1196 = vunpack.c.3.s8 %v1128
        %v1197 = vunpack.c.3.s8 %v1129
        %v1198 = vunpack.c.3.s8 %v1130
        %v1199 = vunpack.c.0.s8 %v1131
        %v1200 = vunpack.c.0.s8 %v1132
        %v1201 = vunpack.c.0.s8 %v1133
        %v1202 = vunpack.c.0.s8 %v1134
        %v1203 = vunpack.c.1.s8 %v1131
        %v1204 = vunpack.c.1.s8 %v1132
        %v1205 = vunpack.c.1.s8 %v1133
        %v1206 = vunpack.c.1.s8 %v1134
        %v1207 = vunpack.c.2.s8 %v1131
        %v1208 = vunpack.c.2.s8 %v1132
        %v1209 = vunpack.c.2.s8 %v1133
        %v1210 = vunpack.c.2.s8 %v1134
        %v1211 = vunpack.c.3.s8 %v1131
        %v1212 = vunpack.c.3.s8 %v1132
        %v1213 = vunpack.c.3.s8 %v1133
        %v1214 = vunpack.c.3.s8 %v1134
        %v1215 = vunpack.c.0.s8 %v1135
        %v1216 = vunpack.c.0.s8 %v1136
        %v1217 = vunpack.c.0.s8 %v1137
        %v1218 = vunpack.c.0.s8 %v1138
        %v1219 = vunpack.c.1.s8 %v1135
        %v1220 = vunpack.c.1.s8 %v1136
        %v1221 = vunpack.c.1.s8 %v1137
        %v1222 = vunpack.c.1.s8 %v1138
        %v1223 = vunpack.c.2.s8 %v1135
        %v1224 = vunpack.c.2.s8 %v1136
        %v1225 = vunpack.c.2.s8 %v1137
        %v1226 = vunpack.c.2.s8 %v1138
        %v1227 = vunpack.c.3.s8 %v1135
        %v1228 = vunpack.c.3.s8 %v1136
        %v1229 = vunpack.c.3.s8 %v1137
        %v1230 = vunpack.c.3.s8 %v1138
        %v1231 = vunpack.c.0.s8 %v1139
        %v1232 = vunpack.c.0.s8 %v1140
        %v1233 = vunpack.c.0.s8 %v1141
        %v1234 = vunpack.c.0.s8 %v1142
        %v1235 = vunpack.c.1.s8 %v1139
        %v1236 = vunpack.c.1.s8 %v1140
        %v1237 = vunpack.c.1.s8 %v1141
        %v1238 = vunpack.c.1.s8 %v1142
        %v1239 = vunpack.c.2.s8 %v1139
        %v1240 = vunpack.c.2.s8 %v1140
        %v1241 = vunpack.c.2.s8 %v1141
        %v1242 = vunpack.c.2.s8 %v1142
        %v1243 = vunpack.c.3.s8 %v1139
        %v1244 = vunpack.c.3.s8 %v1140
        %v1245 = vunpack.c.3.s8 %v1141
        %v1246 = vunpack.c.3.s8 %v1142
        %v1247 = vunpack.c.0.s8 %v1143
        %v1248 = vunpack.c.0.s8 %v1144
        %v1249 = vunpack.c.0.s8 %v1145
        %v1250 = vunpack.c.0.s8 %v1146
        %v1251 = vunpack.c.1.s8 %v1143
        %v1252 = vunpack.c.1.s8 %v1144
        %v1253 = vunpack.c.1.s8 %v1145
        %v1254 = vunpack.c.1.s8 %v1146
        %v1255 = vunpack.c.2.s8 %v1143
        %v1256 = vunpack.c.2.s8 %v1144
        %v1257 = vunpack.c.2.s8 %v1145
        %v1258 = vunpack.c.2.s8 %v1146
        %v1259 = vunpack.c.3.s8 %v1143
        %v1260 = vunpack.c.3.s8 %v1144
        %v1261 = vunpack.c.3.s8 %v1145
        %v1262 = vunpack.c.3.s8 %v1146
        %v1263 = vunpack.c.0.s8 %v1147
        %v1264 = vunpack.c.0.s8 %v1148
        %v1265 = vunpack.c.0.s8 %v1149
        %v1266 = vunpack.c.0.s8 %v1150
        %v1267 = vunpack.c.1.s8 %v1147
        %v1268 = vunpack.c.1.s8 %v1148
        %v1269 = vunpack.c.1.s8 %v1149
        %v1270 = vunpack.c.1.s8 %v1150
        %v1271 = vunpack.c.2.s8 %v1147
        %v1272 = vunpack.c.2.s8 %v1148
        %v1273 = vunpack.c.2.s8 %v1149
        %v1274 = vunpack.c.2.s8 %v1150
        %v1275 = vunpack.c.3.s8 %v1147
        %v1276 = vunpack.c.3.s8 %v1148
        %v1277 = vunpack.c.3.s8 %v1149
        %v1278 = vunpack.c.3.s8 %v1150
        %v1279 = vcvt.s32.f32 %v1151
        %v1280 = vcvt.s32.f32 %v1152
        %v1281 = vcvt.s32.f32 %v1153
        %v1282 = vcvt.s32.f32 %v1154
        %v1283 = vcvt.s32.f32 %v1155
        %v1284 = vcvt.s32.f32 %v1156
        %v1285 = vcvt.s32.f32 %v1157
        %v1286 = vcvt.s32.f32 %v1158
        %v1287 = vcvt.s32.f32 %v1159
        %v1288 = vcvt.s32.f32 %v1160
        %v1289 = vcvt.s32.f32 %v1161
        %v1290 = vcvt.s32.f32 %v1162
        %v1291 = vcvt.s32.f32 %v1163
        %v1292 = vcvt.s32.f32 %v1164
        %v1293 = vcvt.s32.f32 %v1165
        %v1294 = vcvt.s32.f32 %v1166
        %v1295 = vcvt.s32.f32 %v1167
        %v1296 = vcvt.s32.f32 %v1168
        %v1297 = vcvt.s32.f32 %v1169
        %v1298 = vcvt.s32.f32 %v1170
        %v1299 = vcvt.s32.f32 %v1171
        %v1300 = vcvt.s32.f32 %v1172
        %v1301 = vcvt.s32.f32 %v1173
        %v1302 = vcvt.s32.f32 %v1174
        %v1303 = vcvt.s32.f32 %v1175
        %v1304 = vcvt.s32.f32 %v1176
        %v1305 = vcvt.s32.f32 %v1177
        %v1306 = vcvt.s32.f32 %v1178
        %v1307 = vcvt.s32.f32 %v1179
        %v1308 = vcvt.s32.f32 %v1180
        %v1309 = vcvt.s32.f32 %v1181
        %v1310 = vcvt.s32.f32 %v1182
        %v1311 = vcvt.s32.f32 %v1183
        %v1312 = vcvt.s32.f32 %v1184
        %v1313 = vcvt.s32.f32 %v1185
        %v1314 = vcvt.s32.f32 %v1186
        %v1315 = vcvt.s32.f32 %v1187
        %v1316 = vcvt.s32.f32 %v1188
        %v1317 = vcvt.s32.f32 %v1189
        %v1318 = vcvt.s32.f32 %v1190
        %v1319 = vcvt.s32.f32 %v1191
        %v1320 = vcvt.s32.f32 %v1192
        %v1321 = vcvt.s32.f32 %v1193
        %v1322 = vcvt.s32.f32 %v1194
        %v1323 = vcvt.s32.f32 %v1195
        %v1324 = vcvt.s32.f32 %v1196
        %v1325 = vcvt.s32.f32 %v1197
        %v1326 = vcvt.s32.f32 %v1198
        %v1327 = vcvt.s32.f32 %v1199
        %v1328 = vcvt.s32.f32 %v1200
        %v1329 = vcvt.s32.f32 %v1201
        %v1330 = vcvt.s32.f32 %v1202
        %v1331 = vcvt.s32.f32 %v1203
        %v1332 = vcvt.s32.f32 %v1204
        %v1333 = vcvt.s32.f32 %v1205
        %v1334 = vcvt.s32.f32 %v1206
        %v1335 = vcvt.s32.f32 %v1207
        %v1336 = vcvt.s32.f32 %v1208
        %v1337 = vcvt.s32.f32 %v1209
        %v1338 = vcvt.s32.f32 %v1210
        %v1339 = vcvt.s32.f32 %v1211
        %v1340 = vcvt.s32.f32 %v1212
        %v1341 = vcvt.s32.f32 %v1213
        %v1342 = vcvt.s32.f32 %v1214
        %v1343 = vcvt.s32.f32 %v1215
        %v1344 = vcvt.s32.f32 %v1216
        %v1345 = vcvt.s32.f32 %v1217
        %v1346 = vcvt.s32.f32 %v1218
        %v1347 = vcvt.s32.f32 %v1219
        %v1348 = vcvt.s32.f32 %v1220
        %v1349 = vcvt.s32.f32 %v1221
        %v1350 = vcvt.s32.f32 %v1222
        %v1351 = vcvt.s32.f32 %v1223
        %v1352 = vcvt.s32.f32 %v1224
        %v1353 = vcvt.s32.f32 %v1225
        %v1354 = vcvt.s32.f32 %v1226
        %v1355 = vcvt.s32.f32 %v1227
        %v1356 = vcvt.s32.f32 %v1228
        %v1357 = vcvt.s32.f32 %v1229
        %v1358 = vcvt.s32.f32 %v1230
        %v1359 = vcvt.s32.f32 %v1231
        %v1360 = vcvt.s32.f32 %v1232
        %v1361 = vcvt.s32.f32 %v1233
        %v1362 = vcvt.s32.f32 %v1234
        %v1363 = vcvt.s32.f32 %v1235
        %v1364 = vcvt.s32.f32 %v1236
        %v1365 = vcvt.s32.f32 %v1237
        %v1366 = vcvt.s32.f32 %v1238
        %v1367 = vcvt.s32.f32 %v1239
        %v1368 = vcvt.s32.f32 %v1240
        %v1369 = vcvt.s32.f32 %v1241
        %v1370 = vcvt.s32.f32 %v1242
        %v1371 = vcvt.s32.f32 %v1243
        %v1372 = vcvt.s32.f32 %v1244
        %v1373 = vcvt.s32.f32 %v1245
        %v1374 = vcvt.s32.f32 %v1246
        %v1375 = vcvt.s32.f32 %v1247
        %v1376 = vcvt.s32.f32 %v1248
        %v1377 = vcvt.s32.f32 %v1249
        %v1378 = vcvt.s32.f32 %v1250
        %v1379 = vcvt.s32.f32 %v1251
        %v1380 = vcvt.s32.f32 %v1252
        %v1381 = vcvt.s32.f32 %v1253
        %v1382 = vcvt.s32.f32 %v1254
        %v1383 = vcvt.s32.f32 %v1255
        %v1384 = vcvt.s32.f32 %v1256
        %v1385 = vcvt.s32.f32 %v1257
        %v1386 = vcvt.s32.f32 %v1258
        %v1387 = vcvt.s32.f32 %v1259
        %v1388 = vcvt.s32.f32 %v1260
        %v1389 = vcvt.s32.f32 %v1261
        %v1390 = vcvt.s32.f32 %v1262
        %v1391 = vcvt.s32.f32 %v1263
        %v1392 = vcvt.s32.f32 %v1264
        %v1393 = vcvt.s32.f32 %v1265
        %v1394 = vcvt.s32.f32 %v1266
        %v1395 = vcvt.s32.f32 %v1267
        %v1396 = vcvt.s32.f32 %v1268
        %v1397 = vcvt.s32.f32 %v1269
        %v1398 = vcvt.s32.f32 %v1270
        %v1399 = vcvt.s32.f32 %v1271
        %v1400 = vcvt.s32.f32 %v1272
        %v1401 = vcvt.s32.f32 %v1273
        %v1402 = vcvt.s32.f32 %v1274
        %v1403 = vcvt.s32.f32 %v1275
        %v1404 = vcvt.s32.f32 %v1276
        %v1405 = vcvt.s32.f32 %v1277
        %v1406 = vcvt.s32.f32 %v1278
        %v1407 = vld [vmem:[%s915] sm:$0xff]
        %v1408 = vld [vmem:[%s915 + $0x8] sm:$0xff]
        %v1409 = vld [vmem:[%s915 + $0x10] sm:$0xff]
        %v1410 = vld [vmem:[%s915 + $0x18] sm:$0xff]
        %v1411 = vld [vmem:[%s915 + $0x20] sm:$0xff]
        %v1412 = vld [vmem:[%s915 + $0x28] sm:$0xff]
        %v1413 = vld [vmem:[%s915 + $0x30] sm:$0xff]
        %v1414 = vld [vmem:[%s915 + $0x38] sm:$0xff]
        %v1415 = vld [vmem:[%s915 + $0x40] sm:$0xff]
        %v1416 = vld [vmem:[%s915 + $0x48] sm:$0xff]
        %v1417 = vld [vmem:[%s915 + $0x50] sm:$0xff]
        %v1418 = vld [vmem:[%s915 + $0x58] sm:$0xff]
        %v1419 = vld [vmem:[%s915 + $0x60] sm:$0xff]
        %v1420 = vld [vmem:[%s915 + $0x68] sm:$0xff]
        %v1421 = vld [vmem:[%s915 + $0x70] sm:$0xff]
        %v1422 = vld [vmem:[%s915 + $0x78] sm:$0xff]
        %v1423 = vld [vmem:[%s915 + $0x80] sm:$0xff]
        %v1424 = vld [vmem:[%s915 + $0x88] sm:$0xff]
        %v1425 = vld [vmem:[%s915 + $0x90] sm:$0xff]
        %v1426 = vld [vmem:[%s915 + $0x98] sm:$0xff]
        %v1427 = vld [vmem:[%s915 + $0xa0] sm:$0xff]
        %v1428 = vld [vmem:[%s915 + $0xa8] sm:$0xff]
        %v1429 = vld [vmem:[%s915 + $0xb0] sm:$0xff]
        %v1430 = vld [vmem:[%s915 + $0xb8] sm:$0xff]
        %v1431 = vld [vmem:[%s915 + $0xc0] sm:$0xff]
        %v1432 = vld [vmem:[%s915 + $0xc8] sm:$0xff]
        %v1433 = vld [vmem:[%s915 + $0xd0] sm:$0xff]
        %v1434 = vld [vmem:[%s915 + $0xd8] sm:$0xff]
        %v1435 = vld [vmem:[%s915 + $0xe0] sm:$0xff]
        %v1436 = vld [vmem:[%s915 + $0xe8] sm:$0xff]
        %v1437 = vld [vmem:[%s915 + $0xf0] sm:$0xff]
        %v1438 = vld [vmem:[%s915 + $0xf8] sm:$0xff]
        %v1439 = vunpack.c.0.s8 %v1407
        %v1440 = vunpack.c.0.s8 %v1408
        %v1441 = vunpack.c.0.s8 %v1409
        %v1442 = vunpack.c.0.s8 %v1410
        %v1443 = vunpack.c.1.s8 %v1407
        %v1444 = vunpack.c.1.s8 %v1408
        %v1445 = vunpack.c.1.s8 %v1409
        %v1446 = vunpack.c.1.s8 %v1410
        %v1447 = vunpack.c.2.s8 %v1407
        %v1448 = vunpack.c.2.s8 %v1408
        %v1449 = vunpack.c.2.s8 %v1409
        %v1450 = vunpack.c.2.s8 %v1410
        %v1451 = vunpack.c.3.s8 %v1407
        %v1452 = vunpack.c.3.s8 %v1408
        %v1453 = vunpack.c.3.s8 %v1409
        %v1454 = vunpack.c.3.s8 %v1410
        %v1455 = vunpack.c.0.s8 %v1411
        %v1456 = vunpack.c.0.s8 %v1412
        %v1457 = vunpack.c.0.s8 %v1413
        %v1458 = vunpack.c.0.s8 %v1414
        %v1459 = vunpack.c.1.s8 %v1411
        %v1460 = vunpack.c.1.s8 %v1412
        %v1461 = vunpack.c.1.s8 %v1413
        %v1462 = vunpack.c.1.s8 %v1414
        %v1463 = vunpack.c.2.s8 %v1411
        %v1464 = vunpack.c.2.s8 %v1412
        %v1465 = vunpack.c.2.s8 %v1413
        %v1466 = vunpack.c.2.s8 %v1414
        %v1467 = vunpack.c.3.s8 %v1411
        %v1468 = vunpack.c.3.s8 %v1412
        %v1469 = vunpack.c.3.s8 %v1413
        %v1470 = vunpack.c.3.s8 %v1414
        %v1471 = vunpack.c.0.s8 %v1415
        %v1472 = vunpack.c.0.s8 %v1416
        %v1473 = vunpack.c.0.s8 %v1417
        %v1474 = vunpack.c.0.s8 %v1418
        %v1475 = vunpack.c.1.s8 %v1415
        %v1476 = vunpack.c.1.s8 %v1416
        %v1477 = vunpack.c.1.s8 %v1417
        %v1478 = vunpack.c.1.s8 %v1418
        %v1479 = vunpack.c.2.s8 %v1415
        %v1480 = vunpack.c.2.s8 %v1416
        %v1481 = vunpack.c.2.s8 %v1417
        %v1482 = vunpack.c.2.s8 %v1418
        %v1483 = vunpack.c.3.s8 %v1415
        %v1484 = vunpack.c.3.s8 %v1416
        %v1485 = vunpack.c.3.s8 %v1417
        %v1486 = vunpack.c.3.s8 %v1418
        %v1487 = vunpack.c.0.s8 %v1419
        %v1488 = vunpack.c.0.s8 %v1420
        %v1489 = vunpack.c.0.s8 %v1421
        %v1490 = vunpack.c.0.s8 %v1422
        %v1491 = vunpack.c.1.s8 %v1419
        %v1492 = vunpack.c.1.s8 %v1420
        %v1493 = vunpack.c.1.s8 %v1421
        %v1494 = vunpack.c.1.s8 %v1422
        %v1495 = vunpack.c.2.s8 %v1419
        %v1496 = vunpack.c.2.s8 %v1420
        %v1497 = vunpack.c.2.s8 %v1421
        %v1498 = vunpack.c.2.s8 %v1422
        %v1499 = vunpack.c.3.s8 %v1419
        %v1500 = vunpack.c.3.s8 %v1420
        %v1501 = vunpack.c.3.s8 %v1421
        %v1502 = vunpack.c.3.s8 %v1422
        %v1503 = vunpack.c.0.s8 %v1423
        %v1504 = vunpack.c.0.s8 %v1424
        %v1505 = vunpack.c.0.s8 %v1425
        %v1506 = vunpack.c.0.s8 %v1426
        %v1507 = vunpack.c.1.s8 %v1423
        %v1508 = vunpack.c.1.s8 %v1424
        %v1509 = vunpack.c.1.s8 %v1425
        %v1510 = vunpack.c.1.s8 %v1426
        %v1511 = vunpack.c.2.s8 %v1423
        %v1512 = vunpack.c.2.s8 %v1424
        %v1513 = vunpack.c.2.s8 %v1425
        %v1514 = vunpack.c.2.s8 %v1426
        %v1515 = vunpack.c.3.s8 %v1423
        %v1516 = vunpack.c.3.s8 %v1424
        %v1517 = vunpack.c.3.s8 %v1425
        %v1518 = vunpack.c.3.s8 %v1426
        %v1519 = vunpack.c.0.s8 %v1427
        %v1520 = vunpack.c.0.s8 %v1428
        %v1521 = vunpack.c.0.s8 %v1429
        %v1522 = vunpack.c.0.s8 %v1430
        %v1523 = vunpack.c.1.s8 %v1427
        %v1524 = vunpack.c.1.s8 %v1428
        %v1525 = vunpack.c.1.s8 %v1429
        %v1526 = vunpack.c.1.s8 %v1430
        %v1527 = vunpack.c.2.s8 %v1427
        %v1528 = vunpack.c.2.s8 %v1428
        %v1529 = vunpack.c.2.s8 %v1429
        %v1530 = vunpack.c.2.s8 %v1430
        %v1531 = vunpack.c.3.s8 %v1427
        %v1532 = vunpack.c.3.s8 %v1428
        %v1533 = vunpack.c.3.s8 %v1429
        %v1534 = vunpack.c.3.s8 %v1430
        %v1535 = vunpack.c.0.s8 %v1431
        %v1536 = vunpack.c.0.s8 %v1432
        %v1537 = vunpack.c.0.s8 %v1433
        %v1538 = vunpack.c.0.s8 %v1434
        %v1539 = vunpack.c.1.s8 %v1431
        %v1540 = vunpack.c.1.s8 %v1432
        %v1541 = vunpack.c.1.s8 %v1433
        %v1542 = vunpack.c.1.s8 %v1434
        %v1543 = vunpack.c.2.s8 %v1431
        %v1544 = vunpack.c.2.s8 %v1432
        %v1545 = vunpack.c.2.s8 %v1433
        %v1546 = vunpack.c.2.s8 %v1434
        %v1547 = vunpack.c.3.s8 %v1431
        %v1548 = vunpack.c.3.s8 %v1432
        %v1549 = vunpack.c.3.s8 %v1433
        %v1550 = vunpack.c.3.s8 %v1434
        %v1551 = vunpack.c.0.s8 %v1435
        %v1552 = vunpack.c.0.s8 %v1436
        %v1553 = vunpack.c.0.s8 %v1437
        %v1554 = vunpack.c.0.s8 %v1438
        %v1555 = vunpack.c.1.s8 %v1435
        %v1556 = vunpack.c.1.s8 %v1436
        %v1557 = vunpack.c.1.s8 %v1437
        %v1558 = vunpack.c.1.s8 %v1438
        %v1559 = vunpack.c.2.s8 %v1435
        %v1560 = vunpack.c.2.s8 %v1436
        %v1561 = vunpack.c.2.s8 %v1437
        %v1562 = vunpack.c.2.s8 %v1438
        %v1563 = vunpack.c.3.s8 %v1435
        %v1564 = vunpack.c.3.s8 %v1436
        %v1565 = vunpack.c.3.s8 %v1437
        %v1566 = vunpack.c.3.s8 %v1438
        %v1567 = vcvt.s32.f32 %v1439
        %v1568 = vcvt.s32.f32 %v1440
        %v1569 = vcvt.s32.f32 %v1441
        %v1570 = vcvt.s32.f32 %v1442
        %v1571 = vcvt.s32.f32 %v1443
        %v1572 = vcvt.s32.f32 %v1444
        %v1573 = vcvt.s32.f32 %v1445
        %v1574 = vcvt.s32.f32 %v1446
        %v1575 = vcvt.s32.f32 %v1447
        %v1576 = vcvt.s32.f32 %v1448
        %v1577 = vcvt.s32.f32 %v1449
        %v1578 = vcvt.s32.f32 %v1450
        %v1579 = vcvt.s32.f32 %v1451
        %v1580 = vcvt.s32.f32 %v1452
        %v1581 = vcvt.s32.f32 %v1453
        %v1582 = vcvt.s32.f32 %v1454
        %v1583 = vcvt.s32.f32 %v1455
        %v1584 = vcvt.s32.f32 %v1456
        %v1585 = vcvt.s32.f32 %v1457
        %v1586 = vcvt.s32.f32 %v1458
        %v1587 = vcvt.s32.f32 %v1459
        %v1588 = vcvt.s32.f32 %v1460
        %v1589 = vcvt.s32.f32 %v1461
        %v1590 = vcvt.s32.f32 %v1462
        %v1591 = vcvt.s32.f32 %v1463
        %v1592 = vcvt.s32.f32 %v1464
        %v1593 = vcvt.s32.f32 %v1465
        %v1594 = vcvt.s32.f32 %v1466
        %v1595 = vcvt.s32.f32 %v1467
        %v1596 = vcvt.s32.f32 %v1468
        %v1597 = vcvt.s32.f32 %v1469
        %v1598 = vcvt.s32.f32 %v1470
        %v1599 = vcvt.s32.f32 %v1471
        %v1600 = vcvt.s32.f32 %v1472
        %v1601 = vcvt.s32.f32 %v1473
        %v1602 = vcvt.s32.f32 %v1474
        %v1603 = vcvt.s32.f32 %v1475
        %v1604 = vcvt.s32.f32 %v1476
        %v1605 = vcvt.s32.f32 %v1477
        %v1606 = vcvt.s32.f32 %v1478
        %v1607 = vcvt.s32.f32 %v1479
        %v1608 = vcvt.s32.f32 %v1480
        %v1609 = vcvt.s32.f32 %v1481
        %v1610 = vcvt.s32.f32 %v1482
        %v1611 = vcvt.s32.f32 %v1483
        %v1612 = vcvt.s32.f32 %v1484
        %v1613 = vcvt.s32.f32 %v1485
        %v1614 = vcvt.s32.f32 %v1486
        %v1615 = vcvt.s32.f32 %v1487
        %v1616 = vcvt.s32.f32 %v1488
        %v1617 = vcvt.s32.f32 %v1489
        %v1618 = vcvt.s32.f32 %v1490
        %v1619 = vcvt.s32.f32 %v1491
        %v1620 = vcvt.s32.f32 %v1492
        %v1621 = vcvt.s32.f32 %v1493
        %v1622 = vcvt.s32.f32 %v1494
        %v1623 = vcvt.s32.f32 %v1495
        %v1624 = vcvt.s32.f32 %v1496
        %v1625 = vcvt.s32.f32 %v1497
        %v1626 = vcvt.s32.f32 %v1498
        %v1627 = vcvt.s32.f32 %v1499
        %v1628 = vcvt.s32.f32 %v1500
        %v1629 = vcvt.s32.f32 %v1501
        %v1630 = vcvt.s32.f32 %v1502
        %v1631 = vcvt.s32.f32 %v1503
        %v1632 = vcvt.s32.f32 %v1504
        %v1633 = vcvt.s32.f32 %v1505
        %v1634 = vcvt.s32.f32 %v1506
        %v1635 = vcvt.s32.f32 %v1507
        %v1636 = vcvt.s32.f32 %v1508
        %v1637 = vcvt.s32.f32 %v1509
        %v1638 = vcvt.s32.f32 %v1510
        %v1639 = vcvt.s32.f32 %v1511
        %v1640 = vcvt.s32.f32 %v1512
        %v1641 = vcvt.s32.f32 %v1513
        %v1642 = vcvt.s32.f32 %v1514
        %v1643 = vcvt.s32.f32 %v1515
        %v1644 = vcvt.s32.f32 %v1516
        %v1645 = vcvt.s32.f32 %v1517
        %v1646 = vcvt.s32.f32 %v1518
        %v1647 = vcvt.s32.f32 %v1519
        %v1648 = vcvt.s32.f32 %v1520
        %v1649 = vcvt.s32.f32 %v1521
        %v1650 = vcvt.s32.f32 %v1522
        %v1651 = vcvt.s32.f32 %v1523
        %v1652 = vcvt.s32.f32 %v1524
        %v1653 = vcvt.s32.f32 %v1525
        %v1654 = vcvt.s32.f32 %v1526
        %v1655 = vcvt.s32.f32 %v1527
        %v1656 = vcvt.s32.f32 %v1528
        %v1657 = vcvt.s32.f32 %v1529
        %v1658 = vcvt.s32.f32 %v1530
        %v1659 = vcvt.s32.f32 %v1531
        %v1660 = vcvt.s32.f32 %v1532
        %v1661 = vcvt.s32.f32 %v1533
        %v1662 = vcvt.s32.f32 %v1534
        %v1663 = vcvt.s32.f32 %v1535
        %v1664 = vcvt.s32.f32 %v1536
        %v1665 = vcvt.s32.f32 %v1537
        %v1666 = vcvt.s32.f32 %v1538
        %v1667 = vcvt.s32.f32 %v1539
        %v1668 = vcvt.s32.f32 %v1540
        %v1669 = vcvt.s32.f32 %v1541
        %v1670 = vcvt.s32.f32 %v1542
        %v1671 = vcvt.s32.f32 %v1543
        %v1672 = vcvt.s32.f32 %v1544
        %v1673 = vcvt.s32.f32 %v1545
        %v1674 = vcvt.s32.f32 %v1546
        %v1675 = vcvt.s32.f32 %v1547
        %v1676 = vcvt.s32.f32 %v1548
        %v1677 = vcvt.s32.f32 %v1549
        %v1678 = vcvt.s32.f32 %v1550
        %v1679 = vcvt.s32.f32 %v1551
        %v1680 = vcvt.s32.f32 %v1552
        %v1681 = vcvt.s32.f32 %v1553
        %v1682 = vcvt.s32.f32 %v1554
        %v1683 = vcvt.s32.f32 %v1555
        %v1684 = vcvt.s32.f32 %v1556
        %v1685 = vcvt.s32.f32 %v1557
        %v1686 = vcvt.s32.f32 %v1558
        %v1687 = vcvt.s32.f32 %v1559
        %v1688 = vcvt.s32.f32 %v1560
        %v1689 = vcvt.s32.f32 %v1561
        %v1690 = vcvt.s32.f32 %v1562
        %v1691 = vcvt.s32.f32 %v1563
        %v1692 = vcvt.s32.f32 %v1564
        %v1693 = vcvt.s32.f32 %v1565
        %v1694 = vcvt.s32.f32 %v1566
        %s1695 = smul.u32 %s59, 512
        %s1696 = scalar_lea.vmem [#allocation10], %s1695
        %v1697 = vld [vmem:[%s1696] sm:$0xff]
        %v1698 = vld [vmem:[%s1696 + $0x8] sm:$0xff]
        %v1699 = vld [vmem:[%s1696 + $0x10] sm:$0xff]
        %v1700 = vld [vmem:[%s1696 + $0x18] sm:$0xff]
        %v1701 = vld [vmem:[%s1696 + $0x20] sm:$0xff]
        %v1702 = vld [vmem:[%s1696 + $0x28] sm:$0xff]
        %v1703 = vld [vmem:[%s1696 + $0x30] sm:$0xff]
        %v1704 = vld [vmem:[%s1696 + $0x38] sm:$0xff]
        %v1705 = vld [vmem:[%s1696 + $0x40] sm:$0xff]
        %v1706 = vld [vmem:[%s1696 + $0x48] sm:$0xff]
        %v1707 = vld [vmem:[%s1696 + $0x50] sm:$0xff]
        %v1708 = vld [vmem:[%s1696 + $0x58] sm:$0xff]
        %v1709 = vld [vmem:[%s1696 + $0x60] sm:$0xff]
        %v1710 = vld [vmem:[%s1696 + $0x68] sm:$0xff]
        %v1711 = vld [vmem:[%s1696 + $0x70] sm:$0xff]
        %v1712 = vld [vmem:[%s1696 + $0x78] sm:$0xff]
        %v1713 = vld [vmem:[%s1696 + $0x80] sm:$0xff]
        %v1714 = vld [vmem:[%s1696 + $0x88] sm:$0xff]
        %v1715 = vld [vmem:[%s1696 + $0x90] sm:$0xff]
        %v1716 = vld [vmem:[%s1696 + $0x98] sm:$0xff]
        %v1717 = vld [vmem:[%s1696 + $0xa0] sm:$0xff]
        %v1718 = vld [vmem:[%s1696 + $0xa8] sm:$0xff]
        %v1719 = vld [vmem:[%s1696 + $0xb0] sm:$0xff]
        %v1720 = vld [vmem:[%s1696 + $0xb8] sm:$0xff]
        %v1721 = vld [vmem:[%s1696 + $0xc0] sm:$0xff]
        %v1722 = vld [vmem:[%s1696 + $0xc8] sm:$0xff]
        %v1723 = vld [vmem:[%s1696 + $0xd0] sm:$0xff]
        %v1724 = vld [vmem:[%s1696 + $0xd8] sm:$0xff]
        %v1725 = vld [vmem:[%s1696 + $0xe0] sm:$0xff]
        %v1726 = vld [vmem:[%s1696 + $0xe8] sm:$0xff]
        %v1727 = vld [vmem:[%s1696 + $0xf0] sm:$0xff]
        %v1728 = vld [vmem:[%s1696 + $0xf8] sm:$0xff]
        %v1729 = vld [vmem:[%s1696 + $0x100] sm:$0xff]
        %v1730 = vld [vmem:[%s1696 + $0x108] sm:$0xff]
        %v1731 = vld [vmem:[%s1696 + $0x110] sm:$0xff]
        %v1732 = vld [vmem:[%s1696 + $0x118] sm:$0xff]
        %v1733 = vld [vmem:[%s1696 + $0x120] sm:$0xff]
        %v1734 = vld [vmem:[%s1696 + $0x128] sm:$0xff]
        %v1735 = vld [vmem:[%s1696 + $0x130] sm:$0xff]
        %v1736 = vld [vmem:[%s1696 + $0x138] sm:$0xff]
        %v1737 = vld [vmem:[%s1696 + $0x140] sm:$0xff]
        %v1738 = vld [vmem:[%s1696 + $0x148] sm:$0xff]
        %v1739 = vld [vmem:[%s1696 + $0x150] sm:$0xff]
        %v1740 = vld [vmem:[%s1696 + $0x158] sm:$0xff]
        %v1741 = vld [vmem:[%s1696 + $0x160] sm:$0xff]
        %v1742 = vld [vmem:[%s1696 + $0x168] sm:$0xff]
        %v1743 = vld [vmem:[%s1696 + $0x170] sm:$0xff]
        %v1744 = vld [vmem:[%s1696 + $0x178] sm:$0xff]
        %v1745 = vld [vmem:[%s1696 + $0x180] sm:$0xff]
        %v1746 = vld [vmem:[%s1696 + $0x188] sm:$0xff]
        %v1747 = vld [vmem:[%s1696 + $0x190] sm:$0xff]
        %v1748 = vld [vmem:[%s1696 + $0x198] sm:$0xff]
        %v1749 = vld [vmem:[%s1696 + $0x1a0] sm:$0xff]
        %v1750 = vld [vmem:[%s1696 + $0x1a8] sm:$0xff]
        %v1751 = vld [vmem:[%s1696 + $0x1b0] sm:$0xff]
        %v1752 = vld [vmem:[%s1696 + $0x1b8] sm:$0xff]
        %v1753 = vld [vmem:[%s1696 + $0x1c0] sm:$0xff]
        %v1754 = vld [vmem:[%s1696 + $0x1c8] sm:$0xff]
        %v1755 = vld [vmem:[%s1696 + $0x1d0] sm:$0xff]
        %v1756 = vld [vmem:[%s1696 + $0x1d8] sm:$0xff]
        %v1757 = vld [vmem:[%s1696 + $0x1e0] sm:$0xff]
        %v1758 = vld [vmem:[%s1696 + $0x1e8] sm:$0xff]
        %v1759 = vld [vmem:[%s1696 + $0x1f0] sm:$0xff]
        %v1760 = vld [vmem:[%s1696 + $0x1f8] sm:$0xff]
        %v1761 = vld [vmem:[#allocation2] sm:$0xff]
        %v1762 = vld [vmem:[#allocation2 + $0x8] sm:$0xff]
        %v1763 = vld [vmem:[#allocation2 + $0x10] sm:$0xff]
        %v1764 = vld [vmem:[#allocation2 + $0x18] sm:$0xff]
        %v1765 = vld [vmem:[#allocation2 + $0x20] sm:$0xff]
        %v1766 = vld [vmem:[#allocation2 + $0x28] sm:$0xff]
        %v1767 = vld [vmem:[#allocation2 + $0x30] sm:$0xff]
        %v1768 = vld [vmem:[#allocation2 + $0x38] sm:$0xff]
        %v1769 = vld [vmem:[#allocation2 + $0x40] sm:$0xff]
        %v1770 = vld [vmem:[#allocation2 + $0x48] sm:$0xff]
        %v1771 = vld [vmem:[#allocation2 + $0x50] sm:$0xff]
        %v1772 = vld [vmem:[#allocation2 + $0x58] sm:$0xff]
        %v1773 = vld [vmem:[#allocation2 + $0x60] sm:$0xff]
        %v1774 = vld [vmem:[#allocation2 + $0x68] sm:$0xff]
        %v1775 = vld [vmem:[#allocation2 + $0x70] sm:$0xff]
        %v1776 = vld [vmem:[#allocation2 + $0x78] sm:$0xff]
        %v1777 = vld [vmem:[#allocation2 + $0x80] sm:$0xff]
        %v1778 = vld [vmem:[#allocation2 + $0x88] sm:$0xff]
        %v1779 = vld [vmem:[#allocation2 + $0x90] sm:$0xff]
        %v1780 = vld [vmem:[#allocation2 + $0x98] sm:$0xff]
        %v1781 = vld [vmem:[#allocation2 + $0xa0] sm:$0xff]
        %v1782 = vld [vmem:[#allocation2 + $0xa8] sm:$0xff]
        %v1783 = vld [vmem:[#allocation2 + $0xb0] sm:$0xff]
        %v1784 = vld [vmem:[#allocation2 + $0xb8] sm:$0xff]
        %v1785 = vld [vmem:[#allocation2 + $0xc0] sm:$0xff]
        %v1786 = vld [vmem:[#allocation2 + $0xc8] sm:$0xff]
        %v1787 = vld [vmem:[#allocation2 + $0xd0] sm:$0xff]
        %v1788 = vld [vmem:[#allocation2 + $0xd8] sm:$0xff]
        %v1789 = vld [vmem:[#allocation2 + $0xe0] sm:$0xff]
        %v1790 = vld [vmem:[#allocation2 + $0xe8] sm:$0xff]
        %v1791 = vld [vmem:[#allocation2 + $0xf0] sm:$0xff]
        %v1792 = vld [vmem:[#allocation2 + $0xf8] sm:$0xff]
        %v1793 = vmul.f32 %v1279, %v1567
        %v1794 = vmul.f32 %v1280, %v1568
        %v1795 = vmul.f32 %v1281, %v1569
        %v1796 = vmul.f32 %v1282, %v1570
        %v1797 = vmul.f32 %v1283, %v1571
        %v1798 = vmul.f32 %v1284, %v1572
        %v1799 = vmul.f32 %v1285, %v1573
        %v1800 = vmul.f32 %v1286, %v1574
        %v1801 = vmul.f32 %v1287, %v1575
        %v1802 = vmul.f32 %v1288, %v1576
        %v1803 = vmul.f32 %v1289, %v1577
        %v1804 = vmul.f32 %v1290, %v1578
        %v1805 = vmul.f32 %v1291, %v1579
        %v1806 = vmul.f32 %v1292, %v1580
        %v1807 = vmul.f32 %v1293, %v1581
        %v1808 = vmul.f32 %v1294, %v1582
        %v1809 = vmul.f32 %v1295, %v1583
        %v1810 = vmul.f32 %v1296, %v1584
        %v1811 = vmul.f32 %v1297, %v1585
        %v1812 = vmul.f32 %v1298, %v1586
        %v1813 = vmul.f32 %v1299, %v1587
        %v1814 = vmul.f32 %v1300, %v1588
        %v1815 = vmul.f32 %v1301, %v1589
        %v1816 = vmul.f32 %v1302, %v1590
        %v1817 = vmul.f32 %v1303, %v1591
        %v1818 = vmul.f32 %v1304, %v1592
        %v1819 = vmul.f32 %v1305, %v1593
        %v1820 = vmul.f32 %v1306, %v1594
        %v1821 = vmul.f32 %v1307, %v1595
        %v1822 = vmul.f32 %v1308, %v1596
        %v1823 = vmul.f32 %v1309, %v1597
        %v1824 = vmul.f32 %v1310, %v1598
        %v1825 = vmul.f32 %v1311, %v1599
        %v1826 = vmul.f32 %v1312, %v1600
        %v1827 = vmul.f32 %v1313, %v1601
        %v1828 = vmul.f32 %v1314, %v1602
        %v1829 = vmul.f32 %v1315, %v1603
        %v1830 = vmul.f32 %v1316, %v1604
        %v1831 = vmul.f32 %v1317, %v1605
        %v1832 = vmul.f32 %v1318, %v1606
        %v1833 = vmul.f32 %v1319, %v1607
        %v1834 = vmul.f32 %v1320, %v1608
        %v1835 = vmul.f32 %v1321, %v1609
        %v1836 = vmul.f32 %v1322, %v1610
        %v1837 = vmul.f32 %v1323, %v1611
        %v1838 = vmul.f32 %v1324, %v1612
        %v1839 = vmul.f32 %v1325, %v1613
        %v1840 = vmul.f32 %v1326, %v1614
        %v1841 = vmul.f32 %v1327, %v1615
        %v1842 = vmul.f32 %v1328, %v1616
        %v1843 = vmul.f32 %v1329, %v1617
        %v1844 = vmul.f32 %v1330, %v1618
        %v1845 = vmul.f32 %v1331, %v1619
        %v1846 = vmul.f32 %v1332, %v1620
        %v1847 = vmul.f32 %v1333, %v1621
        %v1848 = vmul.f32 %v1334, %v1622
        %v1849 = vmul.f32 %v1335, %v1623
        %v1850 = vmul.f32 %v1336, %v1624
        %v1851 = vmul.f32 %v1337, %v1625
        %v1852 = vmul.f32 %v1338, %v1626
        %v1853 = vmul.f32 %v1339, %v1627
        %v1854 = vmul.f32 %v1340, %v1628
        %v1855 = vmul.f32 %v1341, %v1629
        %v1856 = vmul.f32 %v1342, %v1630
        %v1857 = vmul.f32 %v1343, %v1631
        %v1858 = vmul.f32 %v1344, %v1632
        %v1859 = vmul.f32 %v1345, %v1633
        %v1860 = vmul.f32 %v1346, %v1634
        %v1861 = vmul.f32 %v1347, %v1635
        %v1862 = vmul.f32 %v1348, %v1636
        %v1863 = vmul.f32 %v1349, %v1637
        %v1864 = vmul.f32 %v1350, %v1638
        %v1865 = vmul.f32 %v1351, %v1639
        %v1866 = vmul.f32 %v1352, %v1640
        %v1867 = vmul.f32 %v1353, %v1641
        %v1868 = vmul.f32 %v1354, %v1642
        %v1869 = vmul.f32 %v1355, %v1643
        %v1870 = vmul.f32 %v1356, %v1644
        %v1871 = vmul.f32 %v1357, %v1645
        %v1872 = vmul.f32 %v1358, %v1646
        %v1873 = vmul.f32 %v1359, %v1647
        %v1874 = vmul.f32 %v1360, %v1648
        %v1875 = vmul.f32 %v1361, %v1649
        %v1876 = vmul.f32 %v1362, %v1650
        %v1877 = vmul.f32 %v1363, %v1651
        %v1878 = vmul.f32 %v1364, %v1652
        %v1879 = vmul.f32 %v1365, %v1653
        %v1880 = vmul.f32 %v1366, %v1654
        %v1881 = vmul.f32 %v1367, %v1655
        %v1882 = vmul.f32 %v1368, %v1656
        %v1883 = vmul.f32 %v1369, %v1657
        %v1884 = vmul.f32 %v1370, %v1658
        %v1885 = vmul.f32 %v1371, %v1659
        %v1886 = vmul.f32 %v1372, %v1660
        %v1887 = vmul.f32 %v1373, %v1661
        %v1888 = vmul.f32 %v1374, %v1662
        %v1889 = vmul.f32 %v1375, %v1663
        %v1890 = vmul.f32 %v1376, %v1664
        %v1891 = vmul.f32 %v1377, %v1665
        %v1892 = vmul.f32 %v1378, %v1666
        %v1893 = vmul.f32 %v1379, %v1667
        %v1894 = vmul.f32 %v1380, %v1668
        %v1895 = vmul.f32 %v1381, %v1669
        %v1896 = vmul.f32 %v1382, %v1670
        %v1897 = vmul.f32 %v1383, %v1671
        %v1898 = vmul.f32 %v1384, %v1672
        %v1899 = vmul.f32 %v1385, %v1673
        %v1900 = vmul.f32 %v1386, %v1674
        %v1901 = vmul.f32 %v1387, %v1675
        %v1902 = vmul.f32 %v1388, %v1676
        %v1903 = vmul.f32 %v1389, %v1677
        %v1904 = vmul.f32 %v1390, %v1678
        %v1905 = vmul.f32 %v1391, %v1679
        %v1906 = vmul.f32 %v1392, %v1680
        %v1907 = vmul.f32 %v1393, %v1681
        %v1908 = vmul.f32 %v1394, %v1682
        %v1909 = vmul.f32 %v1395, %v1683
        %v1910 = vmul.f32 %v1396, %v1684
        %v1911 = vmul.f32 %v1397, %v1685
        %v1912 = vmul.f32 %v1398, %v1686
        %v1913 = vmul.f32 %v1399, %v1687
        %v1914 = vmul.f32 %v1400, %v1688
        %v1915 = vmul.f32 %v1401, %v1689
        %v1916 = vmul.f32 %v1402, %v1690
        %v1917 = vmul.f32 %v1403, %v1691
        %v1918 = vmul.f32 %v1404, %v1692
        %v1919 = vmul.f32 %v1405, %v1693
        %v1920 = vmul.f32 %v1406, %v1694
        %1921 = vmatprep.subr.mxu0 0.0
        %1922 = vmatpush1.msra.mxu0 %v1697
        %1923 = vmatprep.subr.mxu0 0.0
        %1924 = vmatpush1.msra.mxu0 %v1698
        %1925 = vmatprep.subr.mxu0 0.0
        %1926 = vmatpush1.msra.mxu0 %v1699
        %1927 = vmatprep.subr.mxu0 0.0
        %1928 = vmatpush1.msra.mxu0 %v1700
        %1929 = vmatprep.subr.mxu0 0.0
        %1930 = vmatpush1.msra.mxu0 %v1701
        %1931 = vmatprep.subr.mxu0 0.0
        %1932 = vmatpush1.msra.mxu0 %v1702
        %1933 = vmatprep.subr.mxu0 0.0
        %1934 = vmatpush1.msra.mxu0 %v1703
        %1935 = vmatprep.subr.mxu0 0.0
        %1936 = vmatpush1.msra.mxu0 %v1704
        %1937 = vmatprep.subr.mxu0 0.0
        %1938 = vmatpush1.msra.mxu0 %v1705
        %1939 = vmatprep.subr.mxu0 0.0
        %1940 = vmatpush1.msra.mxu0 %v1706
        %1941 = vmatprep.subr.mxu0 0.0
        %1942 = vmatpush1.msra.mxu0 %v1707
        %1943 = vmatprep.subr.mxu0 0.0
        %1944 = vmatpush1.msra.mxu0 %v1708
        %1945 = vmatprep.subr.mxu0 0.0
        %1946 = vmatpush1.msra.mxu0 %v1709
        %1947 = vmatprep.subr.mxu0 0.0
        %1948 = vmatpush1.msra.mxu0 %v1710
        %1949 = vmatprep.subr.mxu0 0.0
        %1950 = vmatpush1.msra.mxu0 %v1711
        %1951 = vmatprep.subr.mxu0 0.0
        %1952 = vmatpush1.msra.mxu0 %v1712
        %1953 = vmatprep.subr.mxu0 0.0
        %1954 = vmatpush1.msra.mxu0 %v1713
        %1955 = vmatprep.subr.mxu0 0.0
        %1956 = vmatpush1.msra.mxu0 %v1714
        %1957 = vmatprep.subr.mxu0 0.0
        %1958 = vmatpush1.msra.mxu0 %v1715
        %1959 = vmatprep.subr.mxu0 0.0
        %1960 = vmatpush1.msra.mxu0 %v1716
        %1961 = vmatprep.subr.mxu0 0.0
        %1962 = vmatpush1.msra.mxu0 %v1717
        %1963 = vmatprep.subr.mxu0 0.0
        %1964 = vmatpush1.msra.mxu0 %v1718
        %1965 = vmatprep.subr.mxu0 0.0
        %1966 = vmatpush1.msra.mxu0 %v1719
        %1967 = vmatprep.subr.mxu0 0.0
        %1968 = vmatpush1.msra.mxu0 %v1720
        %1969 = vmatprep.subr.mxu0 0.0
        %1970 = vmatpush1.msra.mxu0 %v1721
        %1971 = vmatprep.subr.mxu0 0.0
        %1972 = vmatpush1.msra.mxu0 %v1722
        %1973 = vmatprep.subr.mxu0 0.0
        %1974 = vmatpush1.msra.mxu0 %v1723
        %1975 = vmatprep.subr.mxu0 0.0
        %1976 = vmatpush1.msra.mxu0 %v1724
        %1977 = vmatprep.subr.mxu0 0.0
        %1978 = vmatpush1.msra.mxu0 %v1725
        %1979 = vmatprep.subr.mxu0 0.0
        %1980 = vmatpush1.msra.mxu0 %v1726
        %1981 = vmatprep.subr.mxu0 0.0
        %1982 = vmatpush1.msra.mxu0 %v1727
        %1983 = vmatprep.subr.mxu0 0.0
        %1984 = vmatpush1.msra.mxu0 %v1728
        %1985 = vmatprep.mubr.f32.mxu0 %v1794
        %1986 = vmatmul.mubr.f32.gmra.mrb[0].mxu0 %v1793
        %v1987 = vpop.f32.mrb[0].mxu0
        %v1988 = vadd.f32 0.0, %v1987
        %v1989 = vpop.f32.mrb[0].mxu0
        %1990 = vmatprep.mubr.f32.mxu0 %v1798
        %1991 = vmatmul.mubr.f32.gmra.mrb[0].mxu0 %v1797
        %v1992 = vpop.f32.mrb[0].mxu0
        %v1993 = vadd.f32 0.0, %v1992
        %v1994 = vpop.f32.mrb[0].mxu0
        %1995 = vmatprep.mubr.f32.mxu0 %v1802
        %1996 = vmatmul.mubr.f32.gmra.mrb[0].mxu0 %v1801
        %v1997 = vpop.f32.mrb[0].mxu0
        %v1998 = vadd.f32 0.0, %v1997
        %v1999 = vpop.f32.mrb[0].mxu0
        %2000 = vmatprep.mubr.f32.mxu0 %v1806
        %2001 = vmatmul.mubr.f32.gmra.mrb[0].mxu0 %v1805
        %v2002 = vpop.f32.mrb[0].mxu0
        %v2003 = vadd.f32 0.0, %v2002
        %v2004 = vpop.f32.mrb[0].mxu0
        %2005 = vmatprep.mubr.f32.mxu0 %v1810
        %2006 = vmatmul.mubr.f32.gmra.mrb[0].mxu0 %v1809
        %v2007 = vpop.f32.mrb[0].mxu0
        %v2008 = vadd.f32 0.0, %v2007
        %v2009 = vpop.f32.mrb[0].mxu0
        %2010 = vmatprep.mubr.f32.mxu0 %v1814
        %2011 = vmatmul.mubr.f32.gmra.mrb[0].mxu0 %v1813
        %v2012 = vpop.f32.mrb[0].mxu0
        %v2013 = vadd.f32 0.0, %v2012
        %v2014 = vpop.f32.mrb[0].mxu0
        %2015 = vmatprep.mubr.f32.mxu0 %v1818
        %2016 = vmatmul.mubr.f32.gmra.mrb[0].mxu0 %v1817
        %v2017 = vpop.f32.mrb[0].mxu0
        %v2018 = vadd.f32 0.0, %v2017
        %v2019 = vpop.f32.mrb[0].mxu0
        %2020 = vmatprep.mubr.f32.mxu0 %v1822
        %2021 = vmatmul.mubr.f32.gmra.mrb[0].mxu0 %v1821
        %v2022 = vpop.f32.mrb[0].mxu0
        %v2023 = vadd.f32 0.0, %v2022
        %v2024 = vpop.f32.mrb[0].mxu0
        %2025 = vmatprep.mubr.f32.mxu0 %v1826
        %2026 = vmatmul.mubr.f32.gmra.mrb[0].mxu0 %v1825
        %v2027 = vpop.f32.mrb[0].mxu0
        %v2028 = vadd.f32 0.0, %v2027
        %v2029 = vpop.f32.mrb[0].mxu0
        %2030 = vmatprep.mubr.f32.mxu0 %v1830
        %2031 = vmatmul.mubr.f32.gmra.mrb[0].mxu0 %v1829
        %v2032 = vpop.f32.mrb[0].mxu0
        %v2033 = vadd.f32 0.0, %v2032
        %v2034 = vpop.f32.mrb[0].mxu0
        %2035 = vmatprep.mubr.f32.mxu0 %v1834
        %2036 = vmatmul.mubr.f32.gmra.mrb[0].mxu0 %v1833
        %v2037 = vpop.f32.mrb[0].mxu0
        %v2038 = vadd.f32 0.0, %v2037
        %v2039 = vpop.f32.mrb[0].mxu0
        %2040 = vmatprep.mubr.f32.mxu0 %v1838
        %2041 = vmatmul.mubr.f32.gmra.mrb[0].mxu0 %v1837
        %v2042 = vpop.f32.mrb[0].mxu0
        %v2043 = vadd.f32 0.0, %v2042
        %v2044 = vpop.f32.mrb[0].mxu0
        %2045 = vmatprep.mubr.f32.mxu0 %v1842
        %2046 = vmatmul.mubr.f32.gmra.mrb[0].mxu0 %v1841
        %v2047 = vpop.f32.mrb[0].mxu0
        %v2048 = vadd.f32 0.0, %v2047
        %v2049 = vpop.f32.mrb[0].mxu0
        %2050 = vmatprep.mubr.f32.mxu0 %v1846
        %2051 = vmatmul.mubr.f32.gmra.mrb[0].mxu0 %v1845
        %v2052 = vpop.f32.mrb[0].mxu0
        %v2053 = vadd.f32 0.0, %v2052
        %v2054 = vpop.f32.mrb[0].mxu0
        %2055 = vmatprep.mubr.f32.mxu0 %v1850
        %2056 = vmatmul.mubr.f32.gmra.mrb[0].mxu0 %v1849
        %v2057 = vpop.f32.mrb[0].mxu0
        %v2058 = vadd.f32 0.0, %v2057
        %v2059 = vpop.f32.mrb[0].mxu0
        %2060 = vmatprep.mubr.f32.mxu0 %v1854
        %2061 = vmatmul.mubr.f32.gmra.mrb[0].mxu0 %v1853
        %v2062 = vpop.f32.mrb[0].mxu0
        %v2063 = vadd.f32 0.0, %v2062
        %v2064 = vpop.f32.mrb[0].mxu0
        %2065 = vmatprep.mubr.f32.mxu0 %v1858
        %2066 = vmatmul.mubr.f32.gmra.mrb[0].mxu0 %v1857
        %v2067 = vpop.f32.mrb[0].mxu0
        %v2068 = vadd.f32 0.0, %v2067
        %v2069 = vpop.f32.mrb[0].mxu0
        %2070 = vmatprep.mubr.f32.mxu0 %v1862
        %2071 = vmatmul.mubr.f32.gmra.mrb[0].mxu0 %v1861
        %v2072 = vpop.f32.mrb[0].mxu0
        %v2073 = vadd.f32 0.0, %v2072
        %v2074 = vpop.f32.mrb[0].mxu0
        %2075 = vmatprep.mubr.f32.mxu0 %v1866
        %2076 = vmatmul.mubr.f32.gmra.mrb[0].mxu0 %v1865
        %v2077 = vpop.f32.mrb[0].mxu0
        %v2078 = vadd.f32 0.0, %v2077
        %v2079 = vpop.f32.mrb[0].mxu0
        %2080 = vmatprep.mubr.f32.mxu0 %v1870
        %2081 = vmatmul.mubr.f32.gmra.mrb[0].mxu0 %v1869
        %v2082 = vpop.f32.mrb[0].mxu0
        %v2083 = vadd.f32 0.0, %v2082
        %v2084 = vpop.f32.mrb[0].mxu0
        %2085 = vmatprep.mubr.f32.mxu0 %v1874
        %2086 = vmatmul.mubr.f32.gmra.mrb[0].mxu0 %v1873
        %v2087 = vpop.f32.mrb[0].mxu0
        %v2088 = vadd.f32 0.0, %v2087
        %v2089 = vpop.f32.mrb[0].mxu0
        %2090 = vmatprep.mubr.f32.mxu0 %v1878
        %2091 = vmatmul.mubr.f32.gmra.mrb[0].mxu0 %v1877
        %v2092 = vpop.f32.mrb[0].mxu0
        %v2093 = vadd.f32 0.0, %v2092
        %v2094 = vpop.f32.mrb[0].mxu0
        %2095 = vmatprep.mubr.f32.mxu0 %v1882
        %2096 = vmatmul.mubr.f32.gmra.mrb[0].mxu0 %v1881
        %v2097 = vpop.f32.mrb[0].mxu0
        %v2098 = vadd.f32 0.0, %v2097
        %v2099 = vpop.f32.mrb[0].mxu0
        %2100 = vmatprep.mubr.f32.mxu0 %v1886
        %2101 = vmatmul.mubr.f32.gmra.mrb[0].mxu0 %v1885
        %v2102 = vpop.f32.mrb[0].mxu0
        %v2103 = vadd.f32 0.0, %v2102
        %v2104 = vpop.f32.mrb[0].mxu0
        %2105 = vmatprep.mubr.f32.mxu0 %v1890
        %2106 = vmatmul.mubr.f32.gmra.mrb[0].mxu0 %v1889
        %v2107 = vpop.f32.mrb[0].mxu0
        %v2108 = vadd.f32 0.0, %v2107
        %v2109 = vpop.f32.mrb[0].mxu0
        %2110 = vmatprep.mubr.f32.mxu0 %v1894
        %2111 = vmatmul.mubr.f32.gmra.mrb[0].mxu0 %v1893
        %v2112 = vpop.f32.mrb[0].mxu0
        %v2113 = vadd.f32 0.0, %v2112
        %v2114 = vpop.f32.mrb[0].mxu0
        %2115 = vmatprep.mubr.f32.mxu0 %v1898
        %2116 = vmatmul.mubr.f32.gmra.mrb[0].mxu0 %v1897
        %v2117 = vpop.f32.mrb[0].mxu0
        %v2118 = vadd.f32 0.0, %v2117
        %v2119 = vpop.f32.mrb[0].mxu0
        %2120 = vmatprep.mubr.f32.mxu0 %v1902
        %2121 = vmatmul.mubr.f32.gmra.mrb[0].mxu0 %v1901
        %v2122 = vpop.f32.mrb[0].mxu0
        %v2123 = vadd.f32 0.0, %v2122
        %v2124 = vpop.f32.mrb[0].mxu0
        %2125 = vmatprep.mubr.f32.mxu0 %v1906
        %2126 = vmatmul.mubr.f32.gmra.mrb[0].mxu0 %v1905
        %v2127 = vpop.f32.mrb[0].mxu0
        %v2128 = vadd.f32 0.0, %v2127
        %v2129 = vpop.f32.mrb[0].mxu0
        %2130 = vmatprep.mubr.f32.mxu0 %v1910
        %2131 = vmatmul.mubr.f32.gmra.mrb[0].mxu0 %v1909
        %v2132 = vpop.f32.mrb[0].mxu0
        %v2133 = vadd.f32 0.0, %v2132
        %v2134 = vpop.f32.mrb[0].mxu0
        %2135 = vmatprep.mubr.f32.mxu0 %v1914
        %2136 = vmatmul.mubr.f32.gmra.mrb[0].mxu0 %v1913
        %v2137 = vpop.f32.mrb[0].mxu0
        %v2138 = vadd.f32 0.0, %v2137
        %v2139 = vpop.f32.mrb[0].mxu0
        %2140 = vmatprep.mubr.f32.mxu0 %v1918
        %2141 = vmatmul.mubr.f32.gmra.mrb[0].mxu0 %v1917
        %v2142 = vpop.f32.mrb[0].mxu0
        %v2143 = vadd.f32 0.0, %v2142
        %v2144 = vpop.f32.mrb[0].mxu0
        %2145 = vdwg.mxu0
        %2146 = vmatprep.subr.mxu0 0.0
        %2147 = vmatpush1.msra.mxu0 %v1729
        %2148 = vmatprep.subr.mxu0 0.0
        %2149 = vmatpush1.msra.mxu0 %v1730
        %2150 = vmatprep.subr.mxu0 0.0
        %2151 = vmatpush1.msra.mxu0 %v1731
        %2152 = vmatprep.subr.mxu0 0.0
        %2153 = vmatpush1.msra.mxu0 %v1732
        %2154 = vmatprep.subr.mxu0 0.0
        %2155 = vmatpush1.msra.mxu0 %v1733
        %2156 = vmatprep.subr.mxu0 0.0
        %2157 = vmatpush1.msra.mxu0 %v1734
        %2158 = vmatprep.subr.mxu0 0.0
        %2159 = vmatpush1.msra.mxu0 %v1735
        %2160 = vmatprep.subr.mxu0 0.0
        %2161 = vmatpush1.msra.mxu0 %v1736
        %2162 = vmatprep.subr.mxu0 0.0
        %2163 = vmatpush1.msra.mxu0 %v1737
        %2164 = vmatprep.subr.mxu0 0.0
        %2165 = vmatpush1.msra.mxu0 %v1738
        %2166 = vmatprep.subr.mxu0 0.0
        %2167 = vmatpush1.msra.mxu0 %v1739
        %2168 = vmatprep.subr.mxu0 0.0
        %2169 = vmatpush1.msra.mxu0 %v1740
        %2170 = vmatprep.subr.mxu0 0.0
        %2171 = vmatpush1.msra.mxu0 %v1741
        %2172 = vmatprep.subr.mxu0 0.0
        %2173 = vmatpush1.msra.mxu0 %v1742
        %2174 = vmatprep.subr.mxu0 0.0
        %2175 = vmatpush1.msra.mxu0 %v1743
        %2176 = vmatprep.subr.mxu0 0.0
        %2177 = vmatpush1.msra.mxu0 %v1744
        %2178 = vmatprep.subr.mxu0 0.0
        %2179 = vmatpush1.msra.mxu0 %v1745
        %2180 = vmatprep.subr.mxu0 0.0
        %2181 = vmatpush1.msra.mxu0 %v1746
        %2182 = vmatprep.subr.mxu0 0.0
        %2183 = vmatpush1.msra.mxu0 %v1747
        %2184 = vmatprep.subr.mxu0 0.0
        %2185 = vmatpush1.msra.mxu0 %v1748
        %2186 = vmatprep.subr.mxu0 0.0
        %2187 = vmatpush1.msra.mxu0 %v1749
        %2188 = vmatprep.subr.mxu0 0.0
        %2189 = vmatpush1.msra.mxu0 %v1750
        %2190 = vmatprep.subr.mxu0 0.0
        %2191 = vmatpush1.msra.mxu0 %v1751
        %2192 = vmatprep.subr.mxu0 0.0
        %2193 = vmatpush1.msra.mxu0 %v1752
        %2194 = vmatprep.subr.mxu0 0.0
        %2195 = vmatpush1.msra.mxu0 %v1753
        %2196 = vmatprep.subr.mxu0 0.0
        %2197 = vmatpush1.msra.mxu0 %v1754
        %2198 = vmatprep.subr.mxu0 0.0
        %2199 = vmatpush1.msra.mxu0 %v1755
        %2200 = vmatprep.subr.mxu0 0.0
        %2201 = vmatpush1.msra.mxu0 %v1756
        %2202 = vmatprep.subr.mxu0 0.0
        %2203 = vmatpush1.msra.mxu0 %v1757
        %2204 = vmatprep.subr.mxu0 0.0
        %2205 = vmatpush1.msra.mxu0 %v1758
        %2206 = vmatprep.subr.mxu0 0.0
        %2207 = vmatpush1.msra.mxu0 %v1759
        %2208 = vmatprep.subr.mxu0 0.0
        %2209 = vmatpush1.msra.mxu0 %v1760
        %2210 = vmatprep.mubr.f32.mxu0 %v1796
        %2211 = vmatmul.mubr.f32.gmra.mrb[0].mxu0 %v1795
        %v2212 = vpop.f32.mrb[0].mxu0
        %v2213 = vadd.f32 %v1988, %v2212
        %v2214 = vpop.f32.mrb[0].mxu0
        %2215 = vmatprep.mubr.f32.mxu0 %v1800
        %2216 = vmatmul.mubr.f32.gmra.mrb[0].mxu0 %v1799
        %v2217 = vpop.f32.mrb[0].mxu0
        %v2218 = vadd.f32 %v1993, %v2217
        %v2219 = vpop.f32.mrb[0].mxu0
        %2220 = vmatprep.mubr.f32.mxu0 %v1804
        %2221 = vmatmul.mubr.f32.gmra.mrb[0].mxu0 %v1803
        %v2222 = vpop.f32.mrb[0].mxu0
        %v2223 = vadd.f32 %v1998, %v2222
        %v2224 = vpop.f32.mrb[0].mxu0
        %2225 = vmatprep.mubr.f32.mxu0 %v1808
        %2226 = vmatmul.mubr.f32.gmra.mrb[0].mxu0 %v1807
        %v2227 = vpop.f32.mrb[0].mxu0
        %v2228 = vadd.f32 %v2003, %v2227
        %v2229 = vpop.f32.mrb[0].mxu0
        %2230 = vmatprep.mubr.f32.mxu0 %v1812
        %2231 = vmatmul.mubr.f32.gmra.mrb[0].mxu0 %v1811
        %v2232 = vpop.f32.mrb[0].mxu0
        %v2233 = vadd.f32 %v2008, %v2232
        %v2234 = vpop.f32.mrb[0].mxu0
        %2235 = vmatprep.mubr.f32.mxu0 %v1816
        %2236 = vmatmul.mubr.f32.gmra.mrb[0].mxu0 %v1815
        %v2237 = vpop.f32.mrb[0].mxu0
        %v2238 = vadd.f32 %v2013, %v2237
        %v2239 = vpop.f32.mrb[0].mxu0
        %2240 = vmatprep.mubr.f32.mxu0 %v1820
        %2241 = vmatmul.mubr.f32.gmra.mrb[0].mxu0 %v1819
        %v2242 = vpop.f32.mrb[0].mxu0
        %v2243 = vadd.f32 %v2018, %v2242
        %v2244 = vpop.f32.mrb[0].mxu0
        %2245 = vmatprep.mubr.f32.mxu0 %v1824
        %2246 = vmatmul.mubr.f32.gmra.mrb[0].mxu0 %v1823
        %v2247 = vpop.f32.mrb[0].mxu0
        %v2248 = vadd.f32 %v2023, %v2247
        %v2249 = vpop.f32.mrb[0].mxu0
        %2250 = vmatprep.mubr.f32.mxu0 %v1828
        %2251 = vmatmul.mubr.f32.gmra.mrb[0].mxu0 %v1827
        %v2252 = vpop.f32.mrb[0].mxu0
        %v2253 = vadd.f32 %v2028, %v2252
        %v2254 = vpop.f32.mrb[0].mxu0
        %2255 = vmatprep.mubr.f32.mxu0 %v1832
        %2256 = vmatmul.mubr.f32.gmra.mrb[0].mxu0 %v1831
        %v2257 = vpop.f32.mrb[0].mxu0
        %v2258 = vadd.f32 %v2033, %v2257
        %v2259 = vpop.f32.mrb[0].mxu0
        %2260 = vmatprep.mubr.f32.mxu0 %v1836
        %2261 = vmatmul.mubr.f32.gmra.mrb[0].mxu0 %v1835
        %v2262 = vpop.f32.mrb[0].mxu0
        %v2263 = vadd.f32 %v2038, %v2262
        %v2264 = vpop.f32.mrb[0].mxu0
        %2265 = vmatprep.mubr.f32.mxu0 %v1840
        %2266 = vmatmul.mubr.f32.gmra.mrb[0].mxu0 %v1839
        %v2267 = vpop.f32.mrb[0].mxu0
        %v2268 = vadd.f32 %v2043, %v2267
        %v2269 = vpop.f32.mrb[0].mxu0
        %2270 = vmatprep.mubr.f32.mxu0 %v1844
        %2271 = vmatmul.mubr.f32.gmra.mrb[0].mxu0 %v1843
        %v2272 = vpop.f32.mrb[0].mxu0
        %v2273 = vadd.f32 %v2048, %v2272
        %v2274 = vpop.f32.mrb[0].mxu0
        %2275 = vmatprep.mubr.f32.mxu0 %v1848
        %2276 = vmatmul.mubr.f32.gmra.mrb[0].mxu0 %v1847
        %v2277 = vpop.f32.mrb[0].mxu0
        %v2278 = vadd.f32 %v2053, %v2277
        %v2279 = vpop.f32.mrb[0].mxu0
        %2280 = vmatprep.mubr.f32.mxu0 %v1852
        %2281 = vmatmul.mubr.f32.gmra.mrb[0].mxu0 %v1851
        %v2282 = vpop.f32.mrb[0].mxu0
        %v2283 = vadd.f32 %v2058, %v2282
        %v2284 = vpop.f32.mrb[0].mxu0
        %2285 = vmatprep.mubr.f32.mxu0 %v1856
        %2286 = vmatmul.mubr.f32.gmra.mrb[0].mxu0 %v1855
        %v2287 = vpop.f32.mrb[0].mxu0
        %v2288 = vadd.f32 %v2063, %v2287
        %v2289 = vpop.f32.mrb[0].mxu0
        %2290 = vmatprep.mubr.f32.mxu0 %v1860
        %2291 = vmatmul.mubr.f32.gmra.mrb[0].mxu0 %v1859
        %v2292 = vpop.f32.mrb[0].mxu0
        %v2293 = vadd.f32 %v2068, %v2292
        %v2294 = vpop.f32.mrb[0].mxu0
        %2295 = vmatprep.mubr.f32.mxu0 %v1864
        %2296 = vmatmul.mubr.f32.gmra.mrb[0].mxu0 %v1863
        %v2297 = vpop.f32.mrb[0].mxu0
        %v2298 = vadd.f32 %v2073, %v2297
        %v2299 = vpop.f32.mrb[0].mxu0
        %2300 = vmatprep.mubr.f32.mxu0 %v1868
        %2301 = vmatmul.mubr.f32.gmra.mrb[0].mxu0 %v1867
        %v2302 = vpop.f32.mrb[0].mxu0
        %v2303 = vadd.f32 %v2078, %v2302
        %v2304 = vpop.f32.mrb[0].mxu0
        %2305 = vmatprep.mubr.f32.mxu0 %v1872
        %2306 = vmatmul.mubr.f32.gmra.mrb[0].mxu0 %v1871
        %v2307 = vpop.f32.mrb[0].mxu0
        %v2308 = vadd.f32 %v2083, %v2307
        %v2309 = vpop.f32.mrb[0].mxu0
        %2310 = vmatprep.mubr.f32.mxu0 %v1876
        %2311 = vmatmul.mubr.f32.gmra.mrb[0].mxu0 %v1875
        %v2312 = vpop.f32.mrb[0].mxu0
        %v2313 = vadd.f32 %v2088, %v2312
        %v2314 = vpop.f32.mrb[0].mxu0
        %2315 = vmatprep.mubr.f32.mxu0 %v1880
        %2316 = vmatmul.mubr.f32.gmra.mrb[0].mxu0 %v1879
        %v2317 = vpop.f32.mrb[0].mxu0
        %v2318 = vadd.f32 %v2093, %v2317
        %v2319 = vpop.f32.mrb[0].mxu0
        %2320 = vmatprep.mubr.f32.mxu0 %v1884
        %2321 = vmatmul.mubr.f32.gmra.mrb[0].mxu0 %v1883
        %v2322 = vpop.f32.mrb[0].mxu0
        %v2323 = vadd.f32 %v2098, %v2322
        %v2324 = vpop.f32.mrb[0].mxu0
        %2325 = vmatprep.mubr.f32.mxu0 %v1888
        %2326 = vmatmul.mubr.f32.gmra.mrb[0].mxu0 %v1887
        %v2327 = vpop.f32.mrb[0].mxu0
        %v2328 = vadd.f32 %v2103, %v2327
        %v2329 = vpop.f32.mrb[0].mxu0
        %2330 = vmatprep.mubr.f32.mxu0 %v1892
        %2331 = vmatmul.mubr.f32.gmra.mrb[0].mxu0 %v1891
        %v2332 = vpop.f32.mrb[0].mxu0
        %v2333 = vadd.f32 %v2108, %v2332
        %v2334 = vpop.f32.mrb[0].mxu0
        %2335 = vmatprep.mubr.f32.mxu0 %v1896
        %2336 = vmatmul.mubr.f32.gmra.mrb[0].mxu0 %v1895
        %v2337 = vpop.f32.mrb[0].mxu0
        %v2338 = vadd.f32 %v2113, %v2337
        %v2339 = vpop.f32.mrb[0].mxu0
        %2340 = vmatprep.mubr.f32.mxu0 %v1900
        %2341 = vmatmul.mubr.f32.gmra.mrb[0].mxu0 %v1899
        %v2342 = vpop.f32.mrb[0].mxu0
        %v2343 = vadd.f32 %v2118, %v2342
        %v2344 = vpop.f32.mrb[0].mxu0
        %2345 = vmatprep.mubr.f32.mxu0 %v1904
        %2346 = vmatmul.mubr.f32.gmra.mrb[0].mxu0 %v1903
        %v2347 = vpop.f32.mrb[0].mxu0
        %v2348 = vadd.f32 %v2123, %v2347
        %v2349 = vpop.f32.mrb[0].mxu0
        %2350 = vmatprep.mubr.f32.mxu0 %v1908
        %2351 = vmatmul.mubr.f32.gmra.mrb[0].mxu0 %v1907
        %v2352 = vpop.f32.mrb[0].mxu0
        %v2353 = vadd.f32 %v2128, %v2352
        %v2354 = vpop.f32.mrb[0].mxu0
        %2355 = vmatprep.mubr.f32.mxu0 %v1912
        %2356 = vmatmul.mubr.f32.gmra.mrb[0].mxu0 %v1911
        %v2357 = vpop.f32.mrb[0].mxu0
        %v2358 = vadd.f32 %v2133, %v2357
        %v2359 = vpop.f32.mrb[0].mxu0
        %2360 = vmatprep.mubr.f32.mxu0 %v1916
        %2361 = vmatmul.mubr.f32.gmra.mrb[0].mxu0 %v1915
        %v2362 = vpop.f32.mrb[0].mxu0
        %v2363 = vadd.f32 %v2138, %v2362
        %v2364 = vpop.f32.mrb[0].mxu0
        %2365 = vmatprep.mubr.f32.mxu0 %v1920
        %2366 = vmatmul.mubr.f32.gmra.mrb[0].mxu0 %v1919
        %v2367 = vpop.f32.mrb[0].mxu0
        %v2368 = vadd.f32 %v2143, %v2367
        %v2369 = vpop.f32.mrb[0].mxu0
        %2370 = vdwg.mxu0
        %v2371 = vadd.f32 %v1761, %v2213
        %v2372 = vadd.f32 %v1762, %v2218
        %v2373 = vadd.f32 %v1763, %v2223
        %v2374 = vadd.f32 %v1764, %v2228
        %v2375 = vadd.f32 %v1765, %v2233
        %v2376 = vadd.f32 %v1766, %v2238
        %v2377 = vadd.f32 %v1767, %v2243
        %v2378 = vadd.f32 %v1768, %v2248
        %v2379 = vadd.f32 %v1769, %v2253
        %v2380 = vadd.f32 %v1770, %v2258
        %v2381 = vadd.f32 %v1771, %v2263
        %v2382 = vadd.f32 %v1772, %v2268
        %v2383 = vadd.f32 %v1773, %v2273
        %v2384 = vadd.f32 %v1774, %v2278
        %v2385 = vadd.f32 %v1775, %v2283
        %v2386 = vadd.f32 %v1776, %v2288
        %v2387 = vadd.f32 %v1777, %v2293
        %v2388 = vadd.f32 %v1778, %v2298
        %v2389 = vadd.f32 %v1779, %v2303
        %v2390 = vadd.f32 %v1780, %v2308
        %v2391 = vadd.f32 %v1781, %v2313
        %v2392 = vadd.f32 %v1782, %v2318
        %v2393 = vadd.f32 %v1783, %v2323
        %v2394 = vadd.f32 %v1784, %v2328
        %v2395 = vadd.f32 %v1785, %v2333
        %v2396 = vadd.f32 %v1786, %v2338
        %v2397 = vadd.f32 %v1787, %v2343
        %v2398 = vadd.f32 %v1788, %v2348
        %v2399 = vadd.f32 %v1789, %v2353
        %v2400 = vadd.f32 %v1790, %v2358
        %v2401 = vadd.f32 %v1791, %v2363
        %v2402 = vadd.f32 %v1792, %v2368
        %2403 = vst [vmem:[#allocation2] sm:$0xff] %v2371
        %2404 = vst [vmem:[#allocation2 + $0x8] sm:$0xff] %v2372
        %2405 = vst [vmem:[#allocation2 + $0x10] sm:$0xff] %v2373
        %2406 = vst [vmem:[#allocation2 + $0x18] sm:$0xff] %v2374
        %2407 = vst [vmem:[#allocation2 + $0x20] sm:$0xff] %v2375
        %2408 = vst [vmem:[#allocation2 + $0x28] sm:$0xff] %v2376
        %2409 = vst [vmem:[#allocation2 + $0x30] sm:$0xff] %v2377
        %2410 = vst [vmem:[#allocation2 + $0x38] sm:$0xff] %v2378
        %2411 = vst [vmem:[#allocation2 + $0x40] sm:$0xff] %v2379
        %2412 = vst [vmem:[#allocation2 + $0x48] sm:$0xff] %v2380
        %2413 = vst [vmem:[#allocation2 + $0x50] sm:$0xff] %v2381
        %2414 = vst [vmem:[#allocation2 + $0x58] sm:$0xff] %v2382
        %2415 = vst [vmem:[#allocation2 + $0x60] sm:$0xff] %v2383
        %2416 = vst [vmem:[#allocation2 + $0x68] sm:$0xff] %v2384
        %2417 = vst [vmem:[#allocation2 + $0x70] sm:$0xff] %v2385
        %2418 = vst [vmem:[#allocation2 + $0x78] sm:$0xff] %v2386
        %2419 = vst [vmem:[#allocation2 + $0x80] sm:$0xff] %v2387
        %2420 = vst [vmem:[#allocation2 + $0x88] sm:$0xff] %v2388
        %2421 = vst [vmem:[#allocation2 + $0x90] sm:$0xff] %v2389
        %2422 = vst [vmem:[#allocation2 + $0x98] sm:$0xff] %v2390
        %2423 = vst [vmem:[#allocation2 + $0xa0] sm:$0xff] %v2391
        %2424 = vst [vmem:[#allocation2 + $0xa8] sm:$0xff] %v2392
        %2425 = vst [vmem:[#allocation2 + $0xb0] sm:$0xff] %v2393
        %2426 = vst [vmem:[#allocation2 + $0xb8] sm:$0xff] %v2394
        %2427 = vst [vmem:[#allocation2 + $0xc0] sm:$0xff] %v2395
        %2428 = vst [vmem:[#allocation2 + $0xc8] sm:$0xff] %v2396
        %2429 = vst [vmem:[#allocation2 + $0xd0] sm:$0xff] %v2397
        %2430 = vst [vmem:[#allocation2 + $0xd8] sm:$0xff] %v2398
        %2431 = vst [vmem:[#allocation2 + $0xe0] sm:$0xff] %v2399
        %2432 = vst [vmem:[#allocation2 + $0xe8] sm:$0xff] %v2400
        %2433 = vst [vmem:[#allocation2 + $0xf0] sm:$0xff] %v2401
        %2434 = vst [vmem:[#allocation2 + $0xf8] sm:$0xff] %v2402
        %v2435 = vld [vmem:[#allocation3] sm:$0xff]
        %v2436 = vld [vmem:[#allocation3 + $0x8] sm:$0xff]
        %v2437 = vld [vmem:[#allocation3 + $0x10] sm:$0xff]
        %v2438 = vld [vmem:[#allocation3 + $0x18] sm:$0xff]
        %v2439 = vld [vmem:[#allocation3 + $0x20] sm:$0xff]
        %v2440 = vld [vmem:[#allocation3 + $0x28] sm:$0xff]
        %v2441 = vld [vmem:[#allocation3 + $0x30] sm:$0xff]
        %v2442 = vld [vmem:[#allocation3 + $0x38] sm:$0xff]
        %v2443 = vld [vmem:[#allocation3 + $0x40] sm:$0xff]
        %v2444 = vld [vmem:[#allocation3 + $0x48] sm:$0xff]
        %v2445 = vld [vmem:[#allocation3 + $0x50] sm:$0xff]
        %v2446 = vld [vmem:[#allocation3 + $0x58] sm:$0xff]
        %v2447 = vld [vmem:[#allocation3 + $0x60] sm:$0xff]
        %v2448 = vld [vmem:[#allocation3 + $0x68] sm:$0xff]
        %v2449 = vld [vmem:[#allocation3 + $0x70] sm:$0xff]
        %v2450 = vld [vmem:[#allocation3 + $0x78] sm:$0xff]
        %v2451 = vld [vmem:[#allocation3 + $0x80] sm:$0xff]
        %v2452 = vld [vmem:[#allocation3 + $0x88] sm:$0xff]
        %v2453 = vld [vmem:[#allocation3 + $0x90] sm:$0xff]
        %v2454 = vld [vmem:[#allocation3 + $0x98] sm:$0xff]
        %v2455 = vld [vmem:[#allocation3 + $0xa0] sm:$0xff]
        %v2456 = vld [vmem:[#allocation3 + $0xa8] sm:$0xff]
        %v2457 = vld [vmem:[#allocation3 + $0xb0] sm:$0xff]
        %v2458 = vld [vmem:[#allocation3 + $0xb8] sm:$0xff]
        %v2459 = vld [vmem:[#allocation3 + $0xc0] sm:$0xff]
        %v2460 = vld [vmem:[#allocation3 + $0xc8] sm:$0xff]
        %v2461 = vld [vmem:[#allocation3 + $0xd0] sm:$0xff]
        %v2462 = vld [vmem:[#allocation3 + $0xd8] sm:$0xff]
        %v2463 = vld [vmem:[#allocation3 + $0xe0] sm:$0xff]
        %v2464 = vld [vmem:[#allocation3 + $0xe8] sm:$0xff]
        %v2465 = vld [vmem:[#allocation3 + $0xf0] sm:$0xff]
        %v2466 = vld [vmem:[#allocation3 + $0xf8] sm:$0xff]
        %v2467 = vadd.f32 %v1279, %v1567
        %v2468 = vadd.f32 %v1280, %v1568
        %v2469 = vadd.f32 %v1281, %v1569
        %v2470 = vadd.f32 %v1282, %v1570
        %v2471 = vadd.f32 %v1283, %v1571
        %v2472 = vadd.f32 %v1284, %v1572
        %v2473 = vadd.f32 %v1285, %v1573
        %v2474 = vadd.f32 %v1286, %v1574
        %v2475 = vadd.f32 %v1287, %v1575
        %v2476 = vadd.f32 %v1288, %v1576
        %v2477 = vadd.f32 %v1289, %v1577
        %v2478 = vadd.f32 %v1290, %v1578
        %v2479 = vadd.f32 %v1291, %v1579
        %v2480 = vadd.f32 %v1292, %v1580
        %v2481 = vadd.f32 %v1293, %v1581
        %v2482 = vadd.f32 %v1294, %v1582
        %v2483 = vadd.f32 %v1295, %v1583
        %v2484 = vadd.f32 %v1296, %v1584
        %v2485 = vadd.f32 %v1297, %v1585
        %v2486 = vadd.f32 %v1298, %v1586
        %v2487 = vadd.f32 %v1299, %v1587
        %v2488 = vadd.f32 %v1300, %v1588
        %v2489 = vadd.f32 %v1301, %v1589
        %v2490 = vadd.f32 %v1302, %v1590
        %v2491 = vadd.f32 %v1303, %v1591
        %v2492 = vadd.f32 %v1304, %v1592
        %v2493 = vadd.f32 %v1305, %v1593
        %v2494 = vadd.f32 %v1306, %v1594
        %v2495 = vadd.f32 %v1307, %v1595
        %v2496 = vadd.f32 %v1308, %v1596
        %v2497 = vadd.f32 %v1309, %v1597
        %v2498 = vadd.f32 %v1310, %v1598
        %v2499 = vadd.f32 %v1311, %v1599
        %v2500 = vadd.f32 %v1312, %v1600
        %v2501 = vadd.f32 %v1313, %v1601
        %v2502 = vadd.f32 %v1314, %v1602
        %v2503 = vadd.f32 %v1315, %v1603
        %v2504 = vadd.f32 %v1316, %v1604
        %v2505 = vadd.f32 %v1317, %v1605
        %v2506 = vadd.f32 %v1318, %v1606
        %v2507 = vadd.f32 %v1319, %v1607
        %v2508 = vadd.f32 %v1320, %v1608
        %v2509 = vadd.f32 %v1321, %v1609
        %v2510 = vadd.f32 %v1322, %v1610
        %v2511 = vadd.f32 %v1323, %v1611
        %v2512 = vadd.f32 %v1324, %v1612
        %v2513 = vadd.f32 %v1325, %v1613
        %v2514 = vadd.f32 %v1326, %v1614
        %v2515 = vadd.f32 %v1327, %v1615
        %v2516 = vadd.f32 %v1328, %v1616
        %v2517 = vadd.f32 %v1329, %v1617
        %v2518 = vadd.f32 %v1330, %v1618
        %v2519 = vadd.f32 %v1331, %v1619
        %v2520 = vadd.f32 %v1332, %v1620
        %v2521 = vadd.f32 %v1333, %v1621
        %v2522 = vadd.f32 %v1334, %v1622
        %v2523 = vadd.f32 %v1335, %v1623
        %v2524 = vadd.f32 %v1336, %v1624
        %v2525 = vadd.f32 %v1337, %v1625
        %v2526 = vadd.f32 %v1338, %v1626
        %v2527 = vadd.f32 %v1339, %v1627
        %v2528 = vadd.f32 %v1340, %v1628
        %v2529 = vadd.f32 %v1341, %v1629
        %v2530 = vadd.f32 %v1342, %v1630
        %v2531 = vadd.f32 %v1343, %v1631
        %v2532 = vadd.f32 %v1344, %v1632
        %v2533 = vadd.f32 %v1345, %v1633
        %v2534 = vadd.f32 %v1346, %v1634
        %v2535 = vadd.f32 %v1347, %v1635
        %v2536 = vadd.f32 %v1348, %v1636
        %v2537 = vadd.f32 %v1349, %v1637
        %v2538 = vadd.f32 %v1350, %v1638
        %v2539 = vadd.f32 %v1351, %v1639
        %v2540 = vadd.f32 %v1352, %v1640
        %v2541 = vadd.f32 %v1353, %v1641
        %v2542 = vadd.f32 %v1354, %v1642
        %v2543 = vadd.f32 %v1355, %v1643
        %v2544 = vadd.f32 %v1356, %v1644
        %v2545 = vadd.f32 %v1357, %v1645
        %v2546 = vadd.f32 %v1358, %v1646
        %v2547 = vadd.f32 %v1359, %v1647
        %v2548 = vadd.f32 %v1360, %v1648
        %v2549 = vadd.f32 %v1361, %v1649
        %v2550 = vadd.f32 %v1362, %v1650
        %v2551 = vadd.f32 %v1363, %v1651
        %v2552 = vadd.f32 %v1364, %v1652
        %v2553 = vadd.f32 %v1365, %v1653
        %v2554 = vadd.f32 %v1366, %v1654
        %v2555 = vadd.f32 %v1367, %v1655
        %v2556 = vadd.f32 %v1368, %v1656
        %v2557 = vadd.f32 %v1369, %v1657
        %v2558 = vadd.f32 %v1370, %v1658
        %v2559 = vadd.f32 %v1371, %v1659
        %v2560 = vadd.f32 %v1372, %v1660
        %v2561 = vadd.f32 %v1373, %v1661
        %v2562 = vadd.f32 %v1374, %v1662
        %v2563 = vadd.f32 %v1375, %v1663
        %v2564 = vadd.f32 %v1376, %v1664
        %v2565 = vadd.f32 %v1377, %v1665
        %v2566 = vadd.f32 %v1378, %v1666
        %v2567 = vadd.f32 %v1379, %v1667
        %v2568 = vadd.f32 %v1380, %v1668
        %v2569 = vadd.f32 %v1381, %v1669
        %v2570 = vadd.f32 %v1382, %v1670
        %v2571 = vadd.f32 %v1383, %v1671
        %v2572 = vadd.f32 %v1384, %v1672
        %v2573 = vadd.f32 %v1385, %v1673
        %v2574 = vadd.f32 %v1386, %v1674
        %v2575 = vadd.f32 %v1387, %v1675
        %v2576 = vadd.f32 %v1388, %v1676
        %v2577 = vadd.f32 %v1389, %v1677
        %v2578 = vadd.f32 %v1390, %v1678
        %v2579 = vadd.f32 %v1391, %v1679
        %v2580 = vadd.f32 %v1392, %v1680
        %v2581 = vadd.f32 %v1393, %v1681
        %v2582 = vadd.f32 %v1394, %v1682
        %v2583 = vadd.f32 %v1395, %v1683
        %v2584 = vadd.f32 %v1396, %v1684
        %v2585 = vadd.f32 %v1397, %v1685
        %v2586 = vadd.f32 %v1398, %v1686
        %v2587 = vadd.f32 %v1399, %v1687
        %v2588 = vadd.f32 %v1400, %v1688
        %v2589 = vadd.f32 %v1401, %v1689
        %v2590 = vadd.f32 %v1402, %v1690
        %v2591 = vadd.f32 %v1403, %v1691
        %v2592 = vadd.f32 %v1404, %v1692
        %v2593 = vadd.f32 %v1405, %v1693
        %v2594 = vadd.f32 %v1406, %v1694
        %2595 = vmatprep.subr.mxu0 0.0
        %2596 = vmatpush1.msra.mxu0 %v1697
        %2597 = vmatprep.subr.mxu0 0.0
        %2598 = vmatpush1.msra.mxu0 %v1698
        %2599 = vmatprep.subr.mxu0 0.0
        %2600 = vmatpush1.msra.mxu0 %v1699
        %2601 = vmatprep.subr.mxu0 0.0
        %2602 = vmatpush1.msra.mxu0 %v1700
        %2603 = vmatprep.subr.mxu0 0.0
        %2604 = vmatpush1.msra.mxu0 %v1701
        %2605 = vmatprep.subr.mxu0 0.0
        %2606 = vmatpush1.msra.mxu0 %v1702
        %2607 = vmatprep.subr.mxu0 0.0
        %2608 = vmatpush1.msra.mxu0 %v1703
        %2609 = vmatprep.subr.mxu0 0.0
        %2610 = vmatpush1.msra.mxu0 %v1704
        %2611 = vmatprep.subr.mxu0 0.0
        %2612 = vmatpush1.msra.mxu0 %v1705
        %2613 = vmatprep.subr.mxu0 0.0
        %2614 = vmatpush1.msra.mxu0 %v1706
        %2615 = vmatprep.subr.mxu0 0.0
        %2616 = vmatpush1.msra.mxu0 %v1707
        %2617 = vmatprep.subr.mxu0 0.0
        %2618 = vmatpush1.msra.mxu0 %v1708
        %2619 = vmatprep.subr.mxu0 0.0
        %2620 = vmatpush1.msra.mxu0 %v1709
        %2621 = vmatprep.subr.mxu0 0.0
        %2622 = vmatpush1.msra.mxu0 %v1710
        %2623 = vmatprep.subr.mxu0 0.0
        %2624 = vmatpush1.msra.mxu0 %v1711
        %2625 = vmatprep.subr.mxu0 0.0
        %2626 = vmatpush1.msra.mxu0 %v1712
        %2627 = vmatprep.subr.mxu0 0.0
        %2628 = vmatpush1.msra.mxu0 %v1713
        %2629 = vmatprep.subr.mxu0 0.0
        %2630 = vmatpush1.msra.mxu0 %v1714
        %2631 = vmatprep.subr.mxu0 0.0
        %2632 = vmatpush1.msra.mxu0 %v1715
        %2633 = vmatprep.subr.mxu0 0.0
        %2634 = vmatpush1.msra.mxu0 %v1716
        %2635 = vmatprep.subr.mxu0 0.0
        %2636 = vmatpush1.msra.mxu0 %v1717
        %2637 = vmatprep.subr.mxu0 0.0
        %2638 = vmatpush1.msra.mxu0 %v1718
        %2639 = vmatprep.subr.mxu0 0.0
        %2640 = vmatpush1.msra.mxu0 %v1719
        %2641 = vmatprep.subr.mxu0 0.0
        %2642 = vmatpush1.msra.mxu0 %v1720
        %2643 = vmatprep.subr.mxu0 0.0
        %2644 = vmatpush1.msra.mxu0 %v1721
        %2645 = vmatprep.subr.mxu0 0.0
        %2646 = vmatpush1.msra.mxu0 %v1722
        %2647 = vmatprep.subr.mxu0 0.0
        %2648 = vmatpush1.msra.mxu0 %v1723
        %2649 = vmatprep.subr.mxu0 0.0
        %2650 = vmatpush1.msra.mxu0 %v1724
        %2651 = vmatprep.subr.mxu0 0.0
        %2652 = vmatpush1.msra.mxu0 %v1725
        %2653 = vmatprep.subr.mxu0 0.0
        %2654 = vmatpush1.msra.mxu0 %v1726
        %2655 = vmatprep.subr.mxu0 0.0
        %2656 = vmatpush1.msra.mxu0 %v1727
        %2657 = vmatprep.subr.mxu0 0.0
        %2658 = vmatpush1.msra.mxu0 %v1728
        %2659 = vmatprep.mubr.f32.mxu0 %v2468
        %2660 = vmatmul.mubr.f32.gmra.mrb[0].mxu0 %v2467
        %v2661 = vpop.f32.mrb[0].mxu0
        %v2662 = vadd.f32 0.0, %v2661
        %v2663 = vpop.f32.mrb[0].mxu0
        %2664 = vmatprep.mubr.f32.mxu0 %v2472
        %2665 = vmatmul.mubr.f32.gmra.mrb[0].mxu0 %v2471
        %v2666 = vpop.f32.mrb[0].mxu0
        %v2667 = vadd.f32 0.0, %v2666
        %v2668 = vpop.f32.mrb[0].mxu0
        %2669 = vmatprep.mubr.f32.mxu0 %v2476
        %2670 = vmatmul.mubr.f32.gmra.mrb[0].mxu0 %v2475
        %v2671 = vpop.f32.mrb[0].mxu0
        %v2672 = vadd.f32 0.0, %v2671
        %v2673 = vpop.f32.mrb[0].mxu0
        %2674 = vmatprep.mubr.f32.mxu0 %v2480
        %2675 = vmatmul.mubr.f32.gmra.mrb[0].mxu0 %v2479
        %v2676 = vpop.f32.mrb[0].mxu0
        %v2677 = vadd.f32 0.0, %v2676
        %v2678 = vpop.f32.mrb[0].mxu0
        %2679 = vmatprep.mubr.f32.mxu0 %v2484
        %2680 = vmatmul.mubr.f32.gmra.mrb[0].mxu0 %v2483
        %v2681 = vpop.f32.mrb[0].mxu0
        %v2682 = vadd.f32 0.0, %v2681
        %v2683 = vpop.f32.mrb[0].mxu0
        %2684 = vmatprep.mubr.f32.mxu0 %v2488
        %2685 = vmatmul.mubr.f32.gmra.mrb[0].mxu0 %v2487
        %v2686 = vpop.f32.mrb[0].mxu0
        %v2687 = vadd.f32 0.0, %v2686
        %v2688 = vpop.f32.mrb[0].mxu0
        %2689 = vmatprep.mubr.f32.mxu0 %v2492
        %2690 = vmatmul.mubr.f32.gmra.mrb[0].mxu0 %v2491
        %v2691 = vpop.f32.mrb[0].mxu0
        %v2692 = vadd.f32 0.0, %v2691
        %v2693 = vpop.f32.mrb[0].mxu0
        %2694 = vmatprep.mubr.f32.mxu0 %v2496
        %2695 = vmatmul.mubr.f32.gmra.mrb[0].mxu0 %v2495
        %v2696 = vpop.f32.mrb[0].mxu0
        %v2697 = vadd.f32 0.0, %v2696
        %v2698 = vpop.f32.mrb[0].mxu0
        %2699 = vmatprep.mubr.f32.mxu0 %v2500
        %2700 = vmatmul.mubr.f32.gmra.mrb[0].mxu0 %v2499
        %v2701 = vpop.f32.mrb[0].mxu0
        %v2702 = vadd.f32 0.0, %v2701
        %v2703 = vpop.f32.mrb[0].mxu0
        %2704 = vmatprep.mubr.f32.mxu0 %v2504
        %2705 = vmatmul.mubr.f32.gmra.mrb[0].mxu0 %v2503
        %v2706 = vpop.f32.mrb[0].mxu0
        %v2707 = vadd.f32 0.0, %v2706
        %v2708 = vpop.f32.mrb[0].mxu0
        %2709 = vmatprep.mubr.f32.mxu0 %v2508
        %2710 = vmatmul.mubr.f32.gmra.mrb[0].mxu0 %v2507
        %v2711 = vpop.f32.mrb[0].mxu0
        %v2712 = vadd.f32 0.0, %v2711
        %v2713 = vpop.f32.mrb[0].mxu0
        %2714 = vmatprep.mubr.f32.mxu0 %v2512
        %2715 = vmatmul.mubr.f32.gmra.mrb[0].mxu0 %v2511
        %v2716 = vpop.f32.mrb[0].mxu0
        %v2717 = vadd.f32 0.0, %v2716
        %v2718 = vpop.f32.mrb[0].mxu0
        %2719 = vmatprep.mubr.f32.mxu0 %v2516
        %2720 = vmatmul.mubr.f32.gmra.mrb[0].mxu0 %v2515
        %v2721 = vpop.f32.mrb[0].mxu0
        %v2722 = vadd.f32 0.0, %v2721
        %v2723 = vpop.f32.mrb[0].mxu0
        %2724 = vmatprep.mubr.f32.mxu0 %v2520
        %2725 = vmatmul.mubr.f32.gmra.mrb[0].mxu0 %v2519
        %v2726 = vpop.f32.mrb[0].mxu0
        %v2727 = vadd.f32 0.0, %v2726
        %v2728 = vpop.f32.mrb[0].mxu0
        %2729 = vmatprep.mubr.f32.mxu0 %v2524
        %2730 = vmatmul.mubr.f32.gmra.mrb[0].mxu0 %v2523
        %v2731 = vpop.f32.mrb[0].mxu0
        %v2732 = vadd.f32 0.0, %v2731
        %v2733 = vpop.f32.mrb[0].mxu0
        %2734 = vmatprep.mubr.f32.mxu0 %v2528
        %2735 = vmatmul.mubr.f32.gmra.mrb[0].mxu0 %v2527
        %v2736 = vpop.f32.mrb[0].mxu0
        %v2737 = vadd.f32 0.0, %v2736
        %v2738 = vpop.f32.mrb[0].mxu0
        %2739 = vmatprep.mubr.f32.mxu0 %v2532
        %2740 = vmatmul.mubr.f32.gmra.mrb[0].mxu0 %v2531
        %v2741 = vpop.f32.mrb[0].mxu0
        %v2742 = vadd.f32 0.0, %v2741
        %v2743 = vpop.f32.mrb[0].mxu0
        %2744 = vmatprep.mubr.f32.mxu0 %v2536
        %2745 = vmatmul.mubr.f32.gmra.mrb[0].mxu0 %v2535
        %v2746 = vpop.f32.mrb[0].mxu0
        %v2747 = vadd.f32 0.0, %v2746
        %v2748 = vpop.f32.mrb[0].mxu0
        %2749 = vmatprep.mubr.f32.mxu0 %v2540
        %2750 = vmatmul.mubr.f32.gmra.mrb[0].mxu0 %v2539
        %v2751 = vpop.f32.mrb[0].mxu0
        %v2752 = vadd.f32 0.0, %v2751
        %v2753 = vpop.f32.mrb[0].mxu0
        %2754 = vmatprep.mubr.f32.mxu0 %v2544
        %2755 = vmatmul.mubr.f32.gmra.mrb[0].mxu0 %v2543
        %v2756 = vpop.f32.mrb[0].mxu0
        %v2757 = vadd.f32 0.0, %v2756
        %v2758 = vpop.f32.mrb[0].mxu0
        %2759 = vmatprep.mubr.f32.mxu0 %v2548
        %2760 = vmatmul.mubr.f32.gmra.mrb[0].mxu0 %v2547
        %v2761 = vpop.f32.mrb[0].mxu0
        %v2762 = vadd.f32 0.0, %v2761
        %v2763 = vpop.f32.mrb[0].mxu0
        %2764 = vmatprep.mubr.f32.mxu0 %v2552
        %2765 = vmatmul.mubr.f32.gmra.mrb[0].mxu0 %v2551
        %v2766 = vpop.f32.mrb[0].mxu0
        %v2767 = vadd.f32 0.0, %v2766
        %v2768 = vpop.f32.mrb[0].mxu0
        %2769 = vmatprep.mubr.f32.mxu0 %v2556
        %2770 = vmatmul.mubr.f32.gmra.mrb[0].mxu0 %v2555
        %v2771 = vpop.f32.mrb[0].mxu0
        %v2772 = vadd.f32 0.0, %v2771
        %v2773 = vpop.f32.mrb[0].mxu0
        %2774 = vmatprep.mubr.f32.mxu0 %v2560
        %2775 = vmatmul.mubr.f32.gmra.mrb[0].mxu0 %v2559
        %v2776 = vpop.f32.mrb[0].mxu0
        %v2777 = vadd.f32 0.0, %v2776
        %v2778 = vpop.f32.mrb[0].mxu0
        %2779 = vmatprep.mubr.f32.mxu0 %v2564
        %2780 = vmatmul.mubr.f32.gmra.mrb[0].mxu0 %v2563
        %v2781 = vpop.f32.mrb[0].mxu0
        %v2782 = vadd.f32 0.0, %v2781
        %v2783 = vpop.f32.mrb[0].mxu0
        %2784 = vmatprep.mubr.f32.mxu0 %v2568
        %2785 = vmatmul.mubr.f32.gmra.mrb[0].mxu0 %v2567
        %v2786 = vpop.f32.mrb[0].mxu0
        %v2787 = vadd.f32 0.0, %v2786
        %v2788 = vpop.f32.mrb[0].mxu0
        %2789 = vmatprep.mubr.f32.mxu0 %v2572
        %2790 = vmatmul.mubr.f32.gmra.mrb[0].mxu0 %v2571
        %v2791 = vpop.f32.mrb[0].mxu0
        %v2792 = vadd.f32 0.0, %v2791
        %v2793 = vpop.f32.mrb[0].mxu0
        %2794 = vmatprep.mubr.f32.mxu0 %v2576
        %2795 = vmatmul.mubr.f32.gmra.mrb[0].mxu0 %v2575
        %v2796 = vpop.f32.mrb[0].mxu0
        %v2797 = vadd.f32 0.0, %v2796
        %v2798 = vpop.f32.mrb[0].mxu0
        %2799 = vmatprep.mubr.f32.mxu0 %v2580
        %2800 = vmatmul.mubr.f32.gmra.mrb[0].mxu0 %v2579
        %v2801 = vpop.f32.mrb[0].mxu0
        %v2802 = vadd.f32 0.0, %v2801
        %v2803 = vpop.f32.mrb[0].mxu0
        %2804 = vmatprep.mubr.f32.mxu0 %v2584
        %2805 = vmatmul.mubr.f32.gmra.mrb[0].mxu0 %v2583
        %v2806 = vpop.f32.mrb[0].mxu0
        %v2807 = vadd.f32 0.0, %v2806
        %v2808 = vpop.f32.mrb[0].mxu0
        %2809 = vmatprep.mubr.f32.mxu0 %v2588
        %2810 = vmatmul.mubr.f32.gmra.mrb[0].mxu0 %v2587
        %v2811 = vpop.f32.mrb[0].mxu0
        %v2812 = vadd.f32 0.0, %v2811
        %v2813 = vpop.f32.mrb[0].mxu0
        %2814 = vmatprep.mubr.f32.mxu0 %v2592
        %2815 = vmatmul.mubr.f32.gmra.mrb[0].mxu0 %v2591
        %v2816 = vpop.f32.mrb[0].mxu0
        %v2817 = vadd.f32 0.0, %v2816
        %v2818 = vpop.f32.mrb[0].mxu0
        %2819 = vdwg.mxu0
        %2820 = vmatprep.subr.mxu0 0.0
        %2821 = vmatpush1.msra.mxu0 %v1729
        %2822 = vmatprep.subr.mxu0 0.0
        %2823 = vmatpush1.msra.mxu0 %v1730
        %2824 = vmatprep.subr.mxu0 0.0
        %2825 = vmatpush1.msra.mxu0 %v1731
        %2826 = vmatprep.subr.mxu0 0.0
        %2827 = vmatpush1.msra.mxu0 %v1732
        %2828 = vmatprep.subr.mxu0 0.0
        %2829 = vmatpush1.msra.mxu0 %v1733
        %2830 = vmatprep.subr.mxu0 0.0
        %2831 = vmatpush1.msra.mxu0 %v1734
        %2832 = vmatprep.subr.mxu0 0.0
        %2833 = vmatpush1.msra.mxu0 %v1735
        %2834 = vmatprep.subr.mxu0 0.0
        %2835 = vmatpush1.msra.mxu0 %v1736
        %2836 = vmatprep.subr.mxu0 0.0
        %2837 = vmatpush1.msra.mxu0 %v1737
        %2838 = vmatprep.subr.mxu0 0.0
        %2839 = vmatpush1.msra.mxu0 %v1738
        %2840 = vmatprep.subr.mxu0 0.0
        %2841 = vmatpush1.msra.mxu0 %v1739
        %2842 = vmatprep.subr.mxu0 0.0
        %2843 = vmatpush1.msra.mxu0 %v1740
        %2844 = vmatprep.subr.mxu0 0.0
        %2845 = vmatpush1.msra.mxu0 %v1741
        %2846 = vmatprep.subr.mxu0 0.0
        %2847 = vmatpush1.msra.mxu0 %v1742
        %2848 = vmatprep.subr.mxu0 0.0
        %2849 = vmatpush1.msra.mxu0 %v1743
        %2850 = vmatprep.subr.mxu0 0.0
        %2851 = vmatpush1.msra.mxu0 %v1744
        %2852 = vmatprep.subr.mxu0 0.0
        %2853 = vmatpush1.msra.mxu0 %v1745
        %2854 = vmatprep.subr.mxu0 0.0
        %2855 = vmatpush1.msra.mxu0 %v1746
        %2856 = vmatprep.subr.mxu0 0.0
        %2857 = vmatpush1.msra.mxu0 %v1747
        %2858 = vmatprep.subr.mxu0 0.0
        %2859 = vmatpush1.msra.mxu0 %v1748
        %2860 = vmatprep.subr.mxu0 0.0
        %2861 = vmatpush1.msra.mxu0 %v1749
        %2862 = vmatprep.subr.mxu0 0.0
        %2863 = vmatpush1.msra.mxu0 %v1750
        %2864 = vmatprep.subr.mxu0 0.0
        %2865 = vmatpush1.msra.mxu0 %v1751
        %2866 = vmatprep.subr.mxu0 0.0
        %2867 = vmatpush1.msra.mxu0 %v1752
        %2868 = vmatprep.subr.mxu0 0.0
        %2869 = vmatpush1.msra.mxu0 %v1753
        %2870 = vmatprep.subr.mxu0 0.0
        %2871 = vmatpush1.msra.mxu0 %v1754
        %2872 = vmatprep.subr.mxu0 0.0
        %2873 = vmatpush1.msra.mxu0 %v1755
        %2874 = vmatprep.subr.mxu0 0.0
        %2875 = vmatpush1.msra.mxu0 %v1756
        %2876 = vmatprep.subr.mxu0 0.0
        %2877 = vmatpush1.msra.mxu0 %v1757
        %2878 = vmatprep.subr.mxu0 0.0
        %2879 = vmatpush1.msra.mxu0 %v1758
        %2880 = vmatprep.subr.mxu0 0.0
        %2881 = vmatpush1.msra.mxu0 %v1759
        %2882 = vmatprep.subr.mxu0 0.0
        %2883 = vmatpush1.msra.mxu0 %v1760
        %2884 = vmatprep.mubr.f32.mxu0 %v2470
        %2885 = vmatmul.mubr.f32.gmra.mrb[0].mxu0 %v2469
        %v2886 = vpop.f32.mrb[0].mxu0
        %v2887 = vadd.f32 %v2662, %v2886
        %v2888 = vpop.f32.mrb[0].mxu0
        %2889 = vmatprep.mubr.f32.mxu0 %v2474
        %2890 = vmatmul.mubr.f32.gmra.mrb[0].mxu0 %v2473
        %v2891 = vpop.f32.mrb[0].mxu0
        %v2892 = vadd.f32 %v2667, %v2891
        %v2893 = vpop.f32.mrb[0].mxu0
        %2894 = vmatprep.mubr.f32.mxu0 %v2478
        %2895 = vmatmul.mubr.f32.gmra.mrb[0].mxu0 %v2477
        %v2896 = vpop.f32.mrb[0].mxu0
        %v2897 = vadd.f32 %v2672, %v2896
        %v2898 = vpop.f32.mrb[0].mxu0
        %2899 = vmatprep.mubr.f32.mxu0 %v2482
        %2900 = vmatmul.mubr.f32.gmra.mrb[0].mxu0 %v2481
        %v2901 = vpop.f32.mrb[0].mxu0
        %v2902 = vadd.f32 %v2677, %v2901
        %v2903 = vpop.f32.mrb[0].mxu0
        %2904 = vmatprep.mubr.f32.mxu0 %v2486
        %2905 = vmatmul.mubr.f32.gmra.mrb[0].mxu0 %v2485
        %v2906 = vpop.f32.mrb[0].mxu0
        %v2907 = vadd.f32 %v2682, %v2906
        %v2908 = vpop.f32.mrb[0].mxu0
        %2909 = vmatprep.mubr.f32.mxu0 %v2490
        %2910 = vmatmul.mubr.f32.gmra.mrb[0].mxu0 %v2489
        %v2911 = vpop.f32.mrb[0].mxu0
        %v2912 = vadd.f32 %v2687, %v2911
        %v2913 = vpop.f32.mrb[0].mxu0
        %2914 = vmatprep.mubr.f32.mxu0 %v2494
        %2915 = vmatmul.mubr.f32.gmra.mrb[0].mxu0 %v2493
        %v2916 = vpop.f32.mrb[0].mxu0
        %v2917 = vadd.f32 %v2692, %v2916
        %v2918 = vpop.f32.mrb[0].mxu0
        %2919 = vmatprep.mubr.f32.mxu0 %v2498
        %2920 = vmatmul.mubr.f32.gmra.mrb[0].mxu0 %v2497
        %v2921 = vpop.f32.mrb[0].mxu0
        %v2922 = vadd.f32 %v2697, %v2921
        %v2923 = vpop.f32.mrb[0].mxu0
        %2924 = vmatprep.mubr.f32.mxu0 %v2502
        %2925 = vmatmul.mubr.f32.gmra.mrb[0].mxu0 %v2501
        %v2926 = vpop.f32.mrb[0].mxu0
        %v2927 = vadd.f32 %v2702, %v2926
        %v2928 = vpop.f32.mrb[0].mxu0
        %2929 = vmatprep.mubr.f32.mxu0 %v2506
        %2930 = vmatmul.mubr.f32.gmra.mrb[0].mxu0 %v2505
        %v2931 = vpop.f32.mrb[0].mxu0
        %v2932 = vadd.f32 %v2707, %v2931
        %v2933 = vpop.f32.mrb[0].mxu0
        %2934 = vmatprep.mubr.f32.mxu0 %v2510
        %2935 = vmatmul.mubr.f32.gmra.mrb[0].mxu0 %v2509
        %v2936 = vpop.f32.mrb[0].mxu0
        %v2937 = vadd.f32 %v2712, %v2936
        %v2938 = vpop.f32.mrb[0].mxu0
        %2939 = vmatprep.mubr.f32.mxu0 %v2514
        %2940 = vmatmul.mubr.f32.gmra.mrb[0].mxu0 %v2513
        %v2941 = vpop.f32.mrb[0].mxu0
        %v2942 = vadd.f32 %v2717, %v2941
        %v2943 = vpop.f32.mrb[0].mxu0
        %2944 = vmatprep.mubr.f32.mxu0 %v2518
        %2945 = vmatmul.mubr.f32.gmra.mrb[0].mxu0 %v2517
        %v2946 = vpop.f32.mrb[0].mxu0
        %v2947 = vadd.f32 %v2722, %v2946
        %v2948 = vpop.f32.mrb[0].mxu0
        %2949 = vmatprep.mubr.f32.mxu0 %v2522
        %2950 = vmatmul.mubr.f32.gmra.mrb[0].mxu0 %v2521
        %v2951 = vpop.f32.mrb[0].mxu0
        %v2952 = vadd.f32 %v2727, %v2951
        %v2953 = vpop.f32.mrb[0].mxu0
        %2954 = vmatprep.mubr.f32.mxu0 %v2526
        %2955 = vmatmul.mubr.f32.gmra.mrb[0].mxu0 %v2525
        %v2956 = vpop.f32.mrb[0].mxu0
        %v2957 = vadd.f32 %v2732, %v2956
        %v2958 = vpop.f32.mrb[0].mxu0
        %2959 = vmatprep.mubr.f32.mxu0 %v2530
        %2960 = vmatmul.mubr.f32.gmra.mrb[0].mxu0 %v2529
        %v2961 = vpop.f32.mrb[0].mxu0
        %v2962 = vadd.f32 %v2737, %v2961
        %v2963 = vpop.f32.mrb[0].mxu0
        %2964 = vmatprep.mubr.f32.mxu0 %v2534
        %2965 = vmatmul.mubr.f32.gmra.mrb[0].mxu0 %v2533
        %v2966 = vpop.f32.mrb[0].mxu0
        %v2967 = vadd.f32 %v2742, %v2966
        %v2968 = vpop.f32.mrb[0].mxu0
        %2969 = vmatprep.mubr.f32.mxu0 %v2538
        %2970 = vmatmul.mubr.f32.gmra.mrb[0].mxu0 %v2537
        %v2971 = vpop.f32.mrb[0].mxu0
        %v2972 = vadd.f32 %v2747, %v2971
        %v2973 = vpop.f32.mrb[0].mxu0
        %2974 = vmatprep.mubr.f32.mxu0 %v2542
        %2975 = vmatmul.mubr.f32.gmra.mrb[0].mxu0 %v2541
        %v2976 = vpop.f32.mrb[0].mxu0
        %v2977 = vadd.f32 %v2752, %v2976
        %v2978 = vpop.f32.mrb[0].mxu0
        %2979 = vmatprep.mubr.f32.mxu0 %v2546
        %2980 = vmatmul.mubr.f32.gmra.mrb[0].mxu0 %v2545
        %v2981 = vpop.f32.mrb[0].mxu0
        %v2982 = vadd.f32 %v2757, %v2981
        %v2983 = vpop.f32.mrb[0].mxu0
        %2984 = vmatprep.mubr.f32.mxu0 %v2550
        %2985 = vmatmul.mubr.f32.gmra.mrb[0].mxu0 %v2549
        %v2986 = vpop.f32.mrb[0].mxu0
        %v2987 = vadd.f32 %v2762, %v2986
        %v2988 = vpop.f32.mrb[0].mxu0
        %2989 = vmatprep.mubr.f32.mxu0 %v2554
        %2990 = vmatmul.mubr.f32.gmra.mrb[0].mxu0 %v2553
        %v2991 = vpop.f32.mrb[0].mxu0
        %v2992 = vadd.f32 %v2767, %v2991
        %v2993 = vpop.f32.mrb[0].mxu0
        %2994 = vmatprep.mubr.f32.mxu0 %v2558
        %2995 = vmatmul.mubr.f32.gmra.mrb[0].mxu0 %v2557
        %v2996 = vpop.f32.mrb[0].mxu0
        %v2997 = vadd.f32 %v2772, %v2996
        %v2998 = vpop.f32.mrb[0].mxu0
        %2999 = vmatprep.mubr.f32.mxu0 %v2562
        %3000 = vmatmul.mubr.f32.gmra.mrb[0].mxu0 %v2561
        %v3001 = vpop.f32.mrb[0].mxu0
        %v3002 = vadd.f32 %v2777, %v3001
        %v3003 = vpop.f32.mrb[0].mxu0
        %3004 = vmatprep.mubr.f32.mxu0 %v2566
        %3005 = vmatmul.mubr.f32.gmra.mrb[0].mxu0 %v2565
        %v3006 = vpop.f32.mrb[0].mxu0
        %v3007 = vadd.f32 %v2782, %v3006
        %v3008 = vpop.f32.mrb[0].mxu0
        %3009 = vmatprep.mubr.f32.mxu0 %v2570
        %3010 = vmatmul.mubr.f32.gmra.mrb[0].mxu0 %v2569
        %v3011 = vpop.f32.mrb[0].mxu0
        %v3012 = vadd.f32 %v2787, %v3011
        %v3013 = vpop.f32.mrb[0].mxu0
        %3014 = vmatprep.mubr.f32.mxu0 %v2574
        %3015 = vmatmul.mubr.f32.gmra.mrb[0].mxu0 %v2573
        %v3016 = vpop.f32.mrb[0].mxu0
        %v3017 = vadd.f32 %v2792, %v3016
        %v3018 = vpop.f32.mrb[0].mxu0
        %3019 = vmatprep.mubr.f32.mxu0 %v2578
        %3020 = vmatmul.mubr.f32.gmra.mrb[0].mxu0 %v2577
        %v3021 = vpop.f32.mrb[0].mxu0
        %v3022 = vadd.f32 %v2797, %v3021
        %v3023 = vpop.f32.mrb[0].mxu0
        %3024 = vmatprep.mubr.f32.mxu0 %v2582
        %3025 = vmatmul.mubr.f32.gmra.mrb[0].mxu0 %v2581
        %v3026 = vpop.f32.mrb[0].mxu0
        %v3027 = vadd.f32 %v2802, %v3026
        %v3028 = vpop.f32.mrb[0].mxu0
        %3029 = vmatprep.mubr.f32.mxu0 %v2586
        %3030 = vmatmul.mubr.f32.gmra.mrb[0].mxu0 %v2585
        %v3031 = vpop.f32.mrb[0].mxu0
        %v3032 = vadd.f32 %v2807, %v3031
        %v3033 = vpop.f32.mrb[0].mxu0
        %3034 = vmatprep.mubr.f32.mxu0 %v2590
        %3035 = vmatmul.mubr.f32.gmra.mrb[0].mxu0 %v2589
        %v3036 = vpop.f32.mrb[0].mxu0
        %v3037 = vadd.f32 %v2812, %v3036
        %v3038 = vpop.f32.mrb[0].mxu0
        %3039 = vmatprep.mubr.f32.mxu0 %v2594
        %3040 = vmatmul.mubr.f32.gmra.mrb[0].mxu0 %v2593
        %v3041 = vpop.f32.mrb[0].mxu0
        %v3042 = vadd.f32 %v2817, %v3041
        %v3043 = vpop.f32.mrb[0].mxu0
        %3044 = vdwg.mxu0
        %v3045 = vadd.f32 %v2435, %v2887
        %v3046 = vadd.f32 %v2436, %v2892
        %v3047 = vadd.f32 %v2437, %v2897
        %v3048 = vadd.f32 %v2438, %v2902
        %v3049 = vadd.f32 %v2439, %v2907
        %v3050 = vadd.f32 %v2440, %v2912
        %v3051 = vadd.f32 %v2441, %v2917
        %v3052 = vadd.f32 %v2442, %v2922
        %v3053 = vadd.f32 %v2443, %v2927
        %v3054 = vadd.f32 %v2444, %v2932
        %v3055 = vadd.f32 %v2445, %v2937
        %v3056 = vadd.f32 %v2446, %v2942
        %v3057 = vadd.f32 %v2447, %v2947
        %v3058 = vadd.f32 %v2448, %v2952
        %v3059 = vadd.f32 %v2449, %v2957
        %v3060 = vadd.f32 %v2450, %v2962
        %v3061 = vadd.f32 %v2451, %v2967
        %v3062 = vadd.f32 %v2452, %v2972
        %v3063 = vadd.f32 %v2453, %v2977
        %v3064 = vadd.f32 %v2454, %v2982
        %v3065 = vadd.f32 %v2455, %v2987
        %v3066 = vadd.f32 %v2456, %v2992
        %v3067 = vadd.f32 %v2457, %v2997
        %v3068 = vadd.f32 %v2458, %v3002
        %v3069 = vadd.f32 %v2459, %v3007
        %v3070 = vadd.f32 %v2460, %v3012
        %v3071 = vadd.f32 %v2461, %v3017
        %v3072 = vadd.f32 %v2462, %v3022
        %v3073 = vadd.f32 %v2463, %v3027
        %v3074 = vadd.f32 %v2464, %v3032
        %v3075 = vadd.f32 %v2465, %v3037
        %v3076 = vadd.f32 %v2466, %v3042
        %3077 = vst [vmem:[#allocation3] sm:$0xff] %v3045
        %3078 = vst [vmem:[#allocation3 + $0x8] sm:$0xff] %v3046
        %3079 = vst [vmem:[#allocation3 + $0x10] sm:$0xff] %v3047
        %3080 = vst [vmem:[#allocation3 + $0x18] sm:$0xff] %v3048
        %3081 = vst [vmem:[#allocation3 + $0x20] sm:$0xff] %v3049
        %3082 = vst [vmem:[#allocation3 + $0x28] sm:$0xff] %v3050
        %3083 = vst [vmem:[#allocation3 + $0x30] sm:$0xff] %v3051
        %3084 = vst [vmem:[#allocation3 + $0x38] sm:$0xff] %v3052
        %3085 = vst [vmem:[#allocation3 + $0x40] sm:$0xff] %v3053
        %3086 = vst [vmem:[#allocation3 + $0x48] sm:$0xff] %v3054
        %3087 = vst [vmem:[#allocation3 + $0x50] sm:$0xff] %v3055
        %3088 = vst [vmem:[#allocation3 + $0x58] sm:$0xff] %v3056
        %3089 = vst [vmem:[#allocation3 + $0x60] sm:$0xff] %v3057
        %3090 = vst [vmem:[#allocation3 + $0x68] sm:$0xff] %v3058
        %3091 = vst [vmem:[#allocation3 + $0x70] sm:$0xff] %v3059
        %3092 = vst [vmem:[#allocation3 + $0x78] sm:$0xff] %v3060
        %3093 = vst [vmem:[#allocation3 + $0x80] sm:$0xff] %v3061
        %3094 = vst [vmem:[#allocation3 + $0x88] sm:$0xff] %v3062
        %3095 = vst [vmem:[#allocation3 + $0x90] sm:$0xff] %v3063
        %3096 = vst [vmem:[#allocation3 + $0x98] sm:$0xff] %v3064
        %3097 = vst [vmem:[#allocation3 + $0xa0] sm:$0xff] %v3065
        %3098 = vst [vmem:[#allocation3 + $0xa8] sm:$0xff] %v3066
        %3099 = vst [vmem:[#allocation3 + $0xb0] sm:$0xff] %v3067
        %3100 = vst [vmem:[#allocation3 + $0xb8] sm:$0xff] %v3068
        %3101 = vst [vmem:[#allocation3 + $0xc0] sm:$0xff] %v3069
        %3102 = vst [vmem:[#allocation3 + $0xc8] sm:$0xff] %v3070
        %3103 = vst [vmem:[#allocation3 + $0xd0] sm:$0xff] %v3071
        %3104 = vst [vmem:[#allocation3 + $0xd8] sm:$0xff] %v3072
        %3105 = vst [vmem:[#allocation3 + $0xe0] sm:$0xff] %v3073
        %3106 = vst [vmem:[#allocation3 + $0xe8] sm:$0xff] %v3074
        %3107 = vst [vmem:[#allocation3 + $0xf0] sm:$0xff] %v3075
        %3108 = vst [vmem:[#allocation3 + $0xf8] sm:$0xff] %v3076
        // Predicated region
        $region181: #{tpu_custom_call.1} parent=119 // pred_check
          %p3109 = pneg %p1051
        $region182: #{tpu_custom_call.1} parent=119 // pred_check_branch
          %3111 = sbr.rel (%p3109) target = $region184
        $region183: #{tpu_custom_call.1} parent=119 // pred_region
          %v3112 = vld [vmem:[#allocation2] sm:$0xff]
          %v3113 = vld [vmem:[#allocation2 + $0x8] sm:$0xff]
          %v3114 = vld [vmem:[#allocation2 + $0x10] sm:$0xff]
          %v3115 = vld [vmem:[#allocation2 + $0x18] sm:$0xff]
          %v3116 = vld [vmem:[#allocation2 + $0x20] sm:$0xff]
          %v3117 = vld [vmem:[#allocation2 + $0x28] sm:$0xff]
          %v3118 = vld [vmem:[#allocation2 + $0x30] sm:$0xff]
          %v3119 = vld [vmem:[#allocation2 + $0x38] sm:$0xff]
          %v3120 = vld [vmem:[#allocation2 + $0x40] sm:$0xff]
          %v3121 = vld [vmem:[#allocation2 + $0x48] sm:$0xff]
          %v3122 = vld [vmem:[#allocation2 + $0x50] sm:$0xff]
          %v3123 = vld [vmem:[#allocation2 + $0x58] sm:$0xff]
          %v3124 = vld [vmem:[#allocation2 + $0x60] sm:$0xff]
          %v3125 = vld [vmem:[#allocation2 + $0x68] sm:$0xff]
          %v3126 = vld [vmem:[#allocation2 + $0x70] sm:$0xff]
          %v3127 = vld [vmem:[#allocation2 + $0x78] sm:$0xff]
          %v3128 = vld [vmem:[#allocation2 + $0x80] sm:$0xff]
          %v3129 = vld [vmem:[#allocation2 + $0x88] sm:$0xff]
          %v3130 = vld [vmem:[#allocation2 + $0x90] sm:$0xff]
          %v3131 = vld [vmem:[#allocation2 + $0x98] sm:$0xff]
          %v3132 = vld [vmem:[#allocation2 + $0xa0] sm:$0xff]
          %v3133 = vld [vmem:[#allocation2 + $0xa8] sm:$0xff]
          %v3134 = vld [vmem:[#allocation2 + $0xb0] sm:$0xff]
          %v3135 = vld [vmem:[#allocation2 + $0xb8] sm:$0xff]
          %v3136 = vld [vmem:[#allocation2 + $0xc0] sm:$0xff]
          %v3137 = vld [vmem:[#allocation2 + $0xc8] sm:$0xff]
          %v3138 = vld [vmem:[#allocation2 + $0xd0] sm:$0xff]
          %v3139 = vld [vmem:[#allocation2 + $0xd8] sm:$0xff]
          %v3140 = vld [vmem:[#allocation2 + $0xe0] sm:$0xff]
          %v3141 = vld [vmem:[#allocation2 + $0xe8] sm:$0xff]
          %v3142 = vld [vmem:[#allocation2 + $0xf0] sm:$0xff]
          %v3143 = vld [vmem:[#allocation2 + $0xf8] sm:$0xff]
          %v3144 = vld [vmem:[#allocation3] sm:$0xff]
          %v3145 = vld [vmem:[#allocation3 + $0x8] sm:$0xff]
          %v3146 = vld [vmem:[#allocation3 + $0x10] sm:$0xff]
          %v3147 = vld [vmem:[#allocation3 + $0x18] sm:$0xff]
          %v3148 = vld [vmem:[#allocation3 + $0x20] sm:$0xff]
          %v3149 = vld [vmem:[#allocation3 + $0x28] sm:$0xff]
          %v3150 = vld [vmem:[#allocation3 + $0x30] sm:$0xff]
          %v3151 = vld [vmem:[#allocation3 + $0x38] sm:$0xff]
          %v3152 = vld [vmem:[#allocation3 + $0x40] sm:$0xff]
          %v3153 = vld [vmem:[#allocation3 + $0x48] sm:$0xff]
          %v3154 = vld [vmem:[#allocation3 + $0x50] sm:$0xff]
          %v3155 = vld [vmem:[#allocation3 + $0x58] sm:$0xff]
          %v3156 = vld [vmem:[#allocation3 + $0x60] sm:$0xff]
          %v3157 = vld [vmem:[#allocation3 + $0x68] sm:$0xff]
          %v3158 = vld [vmem:[#allocation3 + $0x70] sm:$0xff]
          %v3159 = vld [vmem:[#allocation3 + $0x78] sm:$0xff]
          %v3160 = vld [vmem:[#allocation3 + $0x80] sm:$0xff]
          %v3161 = vld [vmem:[#allocation3 + $0x88] sm:$0xff]
          %v3162 = vld [vmem:[#allocation3 + $0x90] sm:$0xff]
          %v3163 = vld [vmem:[#allocation3 + $0x98] sm:$0xff]
          %v3164 = vld [vmem:[#allocation3 + $0xa0] sm:$0xff]
          %v3165 = vld [vmem:[#allocation3 + $0xa8] sm:$0xff]
          %v3166 = vld [vmem:[#allocation3 + $0xb0] sm:$0xff]
          %v3167 = vld [vmem:[#allocation3 + $0xb8] sm:$0xff]
          %v3168 = vld [vmem:[#allocation3 + $0xc0] sm:$0xff]
          %v3169 = vld [vmem:[#allocation3 + $0xc8] sm:$0xff]
          %v3170 = vld [vmem:[#allocation3 + $0xd0] sm:$0xff]
          %v3171 = vld [vmem:[#allocation3 + $0xd8] sm:$0xff]
          %v3172 = vld [vmem:[#allocation3 + $0xe0] sm:$0xff]
          %v3173 = vld [vmem:[#allocation3 + $0xe8] sm:$0xff]
          %v3174 = vld [vmem:[#allocation3 + $0xf0] sm:$0xff]
          %v3175 = vld [vmem:[#allocation3 + $0xf8] sm:$0xff]
          %v3176 = vmul.f32 %v3112, 2.0
          %v3177 = vmul.f32 %v3113, 2.0
          %v3178 = vmul.f32 %v3114, 2.0
          %v3179 = vmul.f32 %v3115, 2.0
          %v3180 = vmul.f32 %v3116, 2.0
          %v3181 = vmul.f32 %v3117, 2.0
          %v3182 = vmul.f32 %v3118, 2.0
          %v3183 = vmul.f32 %v3119, 2.0
          %v3184 = vmul.f32 %v3120, 2.0
          %v3185 = vmul.f32 %v3121, 2.0
          %v3186 = vmul.f32 %v3122, 2.0
          %v3187 = vmul.f32 %v3123, 2.0
          %v3188 = vmul.f32 %v3124, 2.0
          %v3189 = vmul.f32 %v3125, 2.0
          %v3190 = vmul.f32 %v3126, 2.0
          %v3191 = vmul.f32 %v3127, 2.0
          %v3192 = vmul.f32 %v3128, 2.0
          %v3193 = vmul.f32 %v3129, 2.0
          %v3194 = vmul.f32 %v3130, 2.0
          %v3195 = vmul.f32 %v3131, 2.0
          %v3196 = vmul.f32 %v3132, 2.0
          %v3197 = vmul.f32 %v3133, 2.0
          %v3198 = vmul.f32 %v3134, 2.0
          %v3199 = vmul.f32 %v3135, 2.0
          %v3200 = vmul.f32 %v3136, 2.0
          %v3201 = vmul.f32 %v3137, 2.0
          %v3202 = vmul.f32 %v3138, 2.0
          %v3203 = vmul.f32 %v3139, 2.0
          %v3204 = vmul.f32 %v3140, 2.0
          %v3205 = vmul.f32 %v3141, 2.0
          %v3206 = vmul.f32 %v3142, 2.0
          %v3207 = vmul.f32 %v3143, 2.0
          %v3208 = vsub.f32 %v3144, %v3176
          %v3209 = vsub.f32 %v3145, %v3177
          %v3210 = vsub.f32 %v3146, %v3178
          %v3211 = vsub.f32 %v3147, %v3179
          %v3212 = vsub.f32 %v3148, %v3180
          %v3213 = vsub.f32 %v3149, %v3181
          %v3214 = vsub.f32 %v3150, %v3182
          %v3215 = vsub.f32 %v3151, %v3183
          %v3216 = vsub.f32 %v3152, %v3184
          %v3217 = vsub.f32 %v3153, %v3185
          %v3218 = vsub.f32 %v3154, %v3186
          %v3219 = vsub.f32 %v3155, %v3187
          %v3220 = vsub.f32 %v3156, %v3188
          %v3221 = vsub.f32 %v3157, %v3189
          %v3222 = vsub.f32 %v3158, %v3190
          %v3223 = vsub.f32 %v3159, %v3191
          %v3224 = vsub.f32 %v3160, %v3192
          %v3225 = vsub.f32 %v3161, %v3193
          %v3226 = vsub.f32 %v3162, %v3194
          %v3227 = vsub.f32 %v3163, %v3195
          %v3228 = vsub.f32 %v3164, %v3196
          %v3229 = vsub.f32 %v3165, %v3197
          %v3230 = vsub.f32 %v3166, %v3198
          %v3231 = vsub.f32 %v3167, %v3199
          %v3232 = vsub.f32 %v3168, %v3200
          %v3233 = vsub.f32 %v3169, %v3201
          %v3234 = vsub.f32 %v3170, %v3202
          %v3235 = vsub.f32 %v3171, %v3203
          %v3236 = vsub.f32 %v3172, %v3204
          %v3237 = vsub.f32 %v3173, %v3205
          %v3238 = vsub.f32 %v3174, %v3206
          %v3239 = vsub.f32 %v3175, %v3207
          %v3240 = vld [vmem:[#allocation13] sm:$0xff]
          %v3241 = vld [vmem:[#allocation13 + $0x8] sm:$0xff]
          %v3242 = vld [vmem:[#allocation13 + $0x10] sm:$0xff]
          %v3243 = vld [vmem:[#allocation13 + $0x18] sm:$0xff]
          %v3244 = vld [vmem:[#allocation13 + $0x20] sm:$0xff]
          %v3245 = vld [vmem:[#allocation13 + $0x28] sm:$0xff]
          %v3246 = vld [vmem:[#allocation13 + $0x30] sm:$0xff]
          %v3247 = vld [vmem:[#allocation13 + $0x38] sm:$0xff]
          %v3248 = vld [vmem:[#allocation13 + $0x40] sm:$0xff]
          %v3249 = vld [vmem:[#allocation13 + $0x48] sm:$0xff]
          %v3250 = vld [vmem:[#allocation13 + $0x50] sm:$0xff]
          %v3251 = vld [vmem:[#allocation13 + $0x58] sm:$0xff]
          %v3252 = vld [vmem:[#allocation13 + $0x60] sm:$0xff]
          %v3253 = vld [vmem:[#allocation13 + $0x68] sm:$0xff]
          %v3254 = vld [vmem:[#allocation13 + $0x70] sm:$0xff]
          %v3255 = vld [vmem:[#allocation13 + $0x78] sm:$0xff]
          %v3256 = vld [vmem:[%s6] sm:$0x1]
          %v3257 = vld [vmem:[#allocation14] sm:$0xff]
          %v3258 = vld [vmem:[#allocation14 + $0x8] sm:$0xff]
          %v3259 = vld [vmem:[#allocation14 + $0x10] sm:$0xff]
          %v3260 = vld [vmem:[#allocation14 + $0x18] sm:$0xff]
          %v3261 = vld [vmem:[#allocation14 + $0x20] sm:$0xff]
          %v3262 = vld [vmem:[#allocation14 + $0x28] sm:$0xff]
          %v3263 = vld [vmem:[#allocation14 + $0x30] sm:$0xff]
          %v3264 = vld [vmem:[#allocation14 + $0x38] sm:$0xff]
          %v3265 = vld [vmem:[#allocation14 + $0x40] sm:$0xff]
          %v3266 = vld [vmem:[#allocation14 + $0x48] sm:$0xff]
          %v3267 = vld [vmem:[#allocation14 + $0x50] sm:$0xff]
          %v3268 = vld [vmem:[#allocation14 + $0x58] sm:$0xff]
          %v3269 = vld [vmem:[#allocation14 + $0x60] sm:$0xff]
          %v3270 = vld [vmem:[#allocation14 + $0x68] sm:$0xff]
          %v3271 = vld [vmem:[#allocation14 + $0x70] sm:$0xff]
          %v3272 = vld [vmem:[#allocation14 + $0x78] sm:$0xff]
          %v3273 = vld [vmem:[%s8] sm:$0x1]
          %v3274 = vld [vmem:[#allocation16] sm:$0xff]
          %v3275 = vld [vmem:[#allocation16 + $0x8] sm:$0xff]
          %v3276 = vld [vmem:[#allocation16 + $0x10] sm:$0xff]
          %v3277 = vld [vmem:[#allocation16 + $0x18] sm:$0xff]
          %v3278 = vld [vmem:[#allocation16 + $0x20] sm:$0xff]
          %v3279 = vld [vmem:[#allocation16 + $0x28] sm:$0xff]
          %v3280 = vld [vmem:[#allocation16 + $0x30] sm:$0xff]
          %v3281 = vld [vmem:[#allocation16 + $0x38] sm:$0xff]
          %v3282 = vld [vmem:[#allocation16 + $0x40] sm:$0xff]
          %v3283 = vld [vmem:[#allocation16 + $0x48] sm:$0xff]
          %v3284 = vld [vmem:[#allocation16 + $0x50] sm:$0xff]
          %v3285 = vld [vmem:[#allocation16 + $0x58] sm:$0xff]
          %v3286 = vld [vmem:[#allocation16 + $0x60] sm:$0xff]
          %v3287 = vld [vmem:[#allocation16 + $0x68] sm:$0xff]
          %v3288 = vld [vmem:[#allocation16 + $0x70] sm:$0xff]
          %v3289 = vld [vmem:[#allocation16 + $0x78] sm:$0xff]
          %v3290 = vld [vmem:[%s10] sm:$0x1]
          %v3292 = vlaneseq
          %v3293 = vshrl.u32 %v3292, 7
          %v3294 = vsub.s32 0, %v3293
          %v3295 = vrot.slane %v3256, %v3294
          %3297 = vmatprep.subr.mxu0 0.0
          %3298 = vmatpush1.msra.mxu0 %v3240
          %3299 = vmatprep.subr.mxu0 0.0
          %3300 = vmatpush1.msra.mxu0 %v3241
          %3301 = vmatprep.subr.mxu0 0.0
          %3302 = vmatpush1.msra.mxu0 %v3242
          %3303 = vmatprep.subr.mxu0 0.0
          %3304 = vmatpush1.msra.mxu0 %v3243
          %3305 = vmatprep.subr.mxu0 0.0
          %3306 = vmatpush1.msra.mxu0 %v3244
          %3307 = vmatprep.subr.mxu0 0.0
          %3308 = vmatpush1.msra.mxu0 %v3245
          %3309 = vmatprep.subr.mxu0 0.0
          %3310 = vmatpush1.msra.mxu0 %v3246
          %3311 = vmatprep.subr.mxu0 0.0
          %3312 = vmatpush1.msra.mxu0 %v3247
          %3313 = vmatprep.subr.mxu0 0.0
          %3314 = vmatpush1.msra.mxu0 %v3248
          %3315 = vmatprep.subr.mxu0 0.0
          %3316 = vmatpush1.msra.mxu0 %v3249
          %3317 = vmatprep.subr.mxu0 0.0
          %3318 = vmatpush1.msra.mxu0 %v3250
          %3319 = vmatprep.subr.mxu0 0.0
          %3320 = vmatpush1.msra.mxu0 %v3251
          %3321 = vmatprep.subr.mxu0 0.0
          %3322 = vmatpush1.msra.mxu0 %v3252
          %3323 = vmatprep.subr.mxu0 0.0
          %3324 = vmatpush1.msra.mxu0 %v3253
          %3325 = vmatprep.subr.mxu0 0.0
          %3326 = vmatpush1.msra.mxu0 %v3254
          %3327 = vmatprep.subr.mxu0 0.0
          %3328 = vmatpush1.msra.mxu0 %v3255
          %3329 = vmatprep.subr.mxu0 0.0
          %3330 = vmatpush1.msra.mxu0 0.0
          %3331 = vmatprep.subr.mxu0 0.0
          %3332 = vmatpush1.msra.mxu0 0.0
          %3333 = vmatprep.subr.mxu0 0.0
          %3334 = vmatpush1.msra.mxu0 0.0
          %3335 = vmatprep.subr.mxu0 0.0
          %3336 = vmatpush1.msra.mxu0 0.0
          %3337 = vmatprep.subr.mxu0 0.0
          %3338 = vmatpush1.msra.mxu0 0.0
          %3339 = vmatprep.subr.mxu0 0.0
          %3340 = vmatpush1.msra.mxu0 0.0
          %3341 = vmatprep.subr.mxu0 0.0
          %3342 = vmatpush1.msra.mxu0 0.0
          %3343 = vmatprep.subr.mxu0 0.0
          %3344 = vmatpush1.msra.mxu0 0.0
          %3345 = vmatprep.subr.mxu0 0.0
          %3346 = vmatpush1.msra.mxu0 0.0
          %3347 = vmatprep.subr.mxu0 0.0
          %3348 = vmatpush1.msra.mxu0 0.0
          %3349 = vmatprep.subr.mxu0 0.0
          %3350 = vmatpush1.msra.mxu0 0.0
          %3351 = vmatprep.subr.mxu0 0.0
          %3352 = vmatpush1.msra.mxu0 0.0
          %3353 = vmatprep.subr.mxu0 0.0
          %3354 = vmatpush1.msra.mxu0 0.0
          %3355 = vmatprep.subr.mxu0 0.0
          %3356 = vmatpush1.msra.mxu0 0.0
          %3357 = vmatprep.subr.mxu0 0.0
          %3358 = vmatpush1.msra.mxu0 0.0
          %3359 = vmatprep.subr.mxu0 0.0
          %3360 = vmatpush1.msra.mxu0 0.0
          %3361 = vmatprep.mubr.f32.mxu0 0.0
          %3362 = vmatmul.mubr.f32.gmra.mrb[0].mxu0 %v3112
          %v3363 = vpop.f32.mrb[0].mxu0
          %v3364 = vadd.f32 %v3295, %v3363
          %v3365 = vpop.f32.mrb[0].mxu0
          %3366 = vmatprep.mubr.f32.mxu0 0.0
          %3367 = vmatmul.mubr.f32.gmra.mrb[0].mxu0 %v3113
          %v3368 = vpop.f32.mrb[0].mxu0
          %v3369 = vadd.f32 %v3295, %v3368
          %v3370 = vpop.f32.mrb[0].mxu0
          %3371 = vmatprep.mubr.f32.mxu0 0.0
          %3372 = vmatmul.mubr.f32.gmra.mrb[0].mxu0 %v3114
          %v3373 = vpop.f32.mrb[0].mxu0
          %v3374 = vadd.f32 %v3295, %v3373
          %v3375 = vpop.f32.mrb[0].mxu0
          %3376 = vmatprep.mubr.f32.mxu0 0.0
          %3377 = vmatmul.mubr.f32.gmra.mrb[0].mxu0 %v3115
          %v3378 = vpop.f32.mrb[0].mxu0
          %v3379 = vadd.f32 %v3295, %v3378
          %v3380 = vpop.f32.mrb[0].mxu0
          %3381 = vmatprep.mubr.f32.mxu0 0.0
          %3382 = vmatmul.mubr.f32.gmra.mrb[0].mxu0 %v3116
          %v3383 = vpop.f32.mrb[0].mxu0
          %v3384 = vadd.f32 %v3295, %v3383
          %v3385 = vpop.f32.mrb[0].mxu0
          %3386 = vmatprep.mubr.f32.mxu0 0.0
          %3387 = vmatmul.mubr.f32.gmra.mrb[0].mxu0 %v3117
          %v3388 = vpop.f32.mrb[0].mxu0
          %v3389 = vadd.f32 %v3295, %v3388
          %v3390 = vpop.f32.mrb[0].mxu0
          %3391 = vmatprep.mubr.f32.mxu0 0.0
          %3392 = vmatmul.mubr.f32.gmra.mrb[0].mxu0 %v3118
          %v3393 = vpop.f32.mrb[0].mxu0
          %v3394 = vadd.f32 %v3295, %v3393
          %v3395 = vpop.f32.mrb[0].mxu0
          %3396 = vmatprep.mubr.f32.mxu0 0.0
          %3397 = vmatmul.mubr.f32.gmra.mrb[0].mxu0 %v3119
          %v3398 = vpop.f32.mrb[0].mxu0
          %v3399 = vadd.f32 %v3295, %v3398
          %v3400 = vpop.f32.mrb[0].mxu0
          %3401 = vmatprep.mubr.f32.mxu0 0.0
          %3402 = vmatmul.mubr.f32.gmra.mrb[0].mxu0 %v3120
          %v3403 = vpop.f32.mrb[0].mxu0
          %v3404 = vadd.f32 %v3295, %v3403
          %v3405 = vpop.f32.mrb[0].mxu0
          %3406 = vmatprep.mubr.f32.mxu0 0.0
          %3407 = vmatmul.mubr.f32.gmra.mrb[0].mxu0 %v3121
          %v3408 = vpop.f32.mrb[0].mxu0
          %v3409 = vadd.f32 %v3295, %v3408
          %v3410 = vpop.f32.mrb[0].mxu0
          %3411 = vmatprep.mubr.f32.mxu0 0.0
          %3412 = vmatmul.mubr.f32.gmra.mrb[0].mxu0 %v3122
          %v3413 = vpop.f32.mrb[0].mxu0
          %v3414 = vadd.f32 %v3295, %v3413
          %v3415 = vpop.f32.mrb[0].mxu0
          %3416 = vmatprep.mubr.f32.mxu0 0.0
          %3417 = vmatmul.mubr.f32.gmra.mrb[0].mxu0 %v3123
          %v3418 = vpop.f32.mrb[0].mxu0
          %v3419 = vadd.f32 %v3295, %v3418
          %v3420 = vpop.f32.mrb[0].mxu0
          %3421 = vmatprep.mubr.f32.mxu0 0.0
          %3422 = vmatmul.mubr.f32.gmra.mrb[0].mxu0 %v3124
          %v3423 = vpop.f32.mrb[0].mxu0
          %v3424 = vadd.f32 %v3295, %v3423
          %v3425 = vpop.f32.mrb[0].mxu0
          %3426 = vmatprep.mubr.f32.mxu0 0.0
          %3427 = vmatmul.mubr.f32.gmra.mrb[0].mxu0 %v3125
          %v3428 = vpop.f32.mrb[0].mxu0
          %v3429 = vadd.f32 %v3295, %v3428
          %v3430 = vpop.f32.mrb[0].mxu0
          %3431 = vmatprep.mubr.f32.mxu0 0.0
          %3432 = vmatmul.mubr.f32.gmra.mrb[0].mxu0 %v3126
          %v3433 = vpop.f32.mrb[0].mxu0
          %v3434 = vadd.f32 %v3295, %v3433
          %v3435 = vpop.f32.mrb[0].mxu0
          %3436 = vmatprep.mubr.f32.mxu0 0.0
          %3437 = vmatmul.mubr.f32.gmra.mrb[0].mxu0 %v3127
          %v3438 = vpop.f32.mrb[0].mxu0
          %v3439 = vadd.f32 %v3295, %v3438
          %v3440 = vpop.f32.mrb[0].mxu0
          %3441 = vmatprep.mubr.f32.mxu0 0.0
          %3442 = vmatmul.mubr.f32.gmra.mrb[0].mxu0 %v3128
          %v3443 = vpop.f32.mrb[0].mxu0
          %v3444 = vadd.f32 %v3295, %v3443
          %v3445 = vpop.f32.mrb[0].mxu0
          %3446 = vmatprep.mubr.f32.mxu0 0.0
          %3447 = vmatmul.mubr.f32.gmra.mrb[0].mxu0 %v3129
          %v3448 = vpop.f32.mrb[0].mxu0
          %v3449 = vadd.f32 %v3295, %v3448
          %v3450 = vpop.f32.mrb[0].mxu0
          %3451 = vmatprep.mubr.f32.mxu0 0.0
          %3452 = vmatmul.mubr.f32.gmra.mrb[0].mxu0 %v3130
          %v3453 = vpop.f32.mrb[0].mxu0
          %v3454 = vadd.f32 %v3295, %v3453
          %v3455 = vpop.f32.mrb[0].mxu0
          %3456 = vmatprep.mubr.f32.mxu0 0.0
          %3457 = vmatmul.mubr.f32.gmra.mrb[0].mxu0 %v3131
          %v3458 = vpop.f32.mrb[0].mxu0
          %v3459 = vadd.f32 %v3295, %v3458
          %v3460 = vpop.f32.mrb[0].mxu0
          %3461 = vmatprep.mubr.f32.mxu0 0.0
          %3462 = vmatmul.mubr.f32.gmra.mrb[0].mxu0 %v3132
          %v3463 = vpop.f32.mrb[0].mxu0
          %v3464 = vadd.f32 %v3295, %v3463
          %v3465 = vpop.f32.mrb[0].mxu0
          %3466 = vmatprep.mubr.f32.mxu0 0.0
          %3467 = vmatmul.mubr.f32.gmra.mrb[0].mxu0 %v3133
          %v3468 = vpop.f32.mrb[0].mxu0
          %v3469 = vadd.f32 %v3295, %v3468
          %v3470 = vpop.f32.mrb[0].mxu0
          %3471 = vmatprep.mubr.f32.mxu0 0.0
          %3472 = vmatmul.mubr.f32.gmra.mrb[0].mxu0 %v3134
          %v3473 = vpop.f32.mrb[0].mxu0
          %v3474 = vadd.f32 %v3295, %v3473
          %v3475 = vpop.f32.mrb[0].mxu0
          %3476 = vmatprep.mubr.f32.mxu0 0.0
          %3477 = vmatmul.mubr.f32.gmra.mrb[0].mxu0 %v3135
          %v3478 = vpop.f32.mrb[0].mxu0
          %v3479 = vadd.f32 %v3295, %v3478
          %v3480 = vpop.f32.mrb[0].mxu0
          %3481 = vmatprep.mubr.f32.mxu0 0.0
          %3482 = vmatmul.mubr.f32.gmra.mrb[0].mxu0 %v3136
          %v3483 = vpop.f32.mrb[0].mxu0
          %v3484 = vadd.f32 %v3295, %v3483
          %v3485 = vpop.f32.mrb[0].mxu0
          %3486 = vmatprep.mubr.f32.mxu0 0.0
          %3487 = vmatmul.mubr.f32.gmra.mrb[0].mxu0 %v3137
          %v3488 = vpop.f32.mrb[0].mxu0
          %v3489 = vadd.f32 %v3295, %v3488
          %v3490 = vpop.f32.mrb[0].mxu0
          %3491 = vmatprep.mubr.f32.mxu0 0.0
          %3492 = vmatmul.mubr.f32.gmra.mrb[0].mxu0 %v3138
          %v3493 = vpop.f32.mrb[0].mxu0
          %v3494 = vadd.f32 %v3295, %v3493
          %v3495 = vpop.f32.mrb[0].mxu0
          %3496 = vmatprep.mubr.f32.mxu0 0.0
          %3497 = vmatmul.mubr.f32.gmra.mrb[0].mxu0 %v3139
          %v3498 = vpop.f32.mrb[0].mxu0
          %v3499 = vadd.f32 %v3295, %v3498
          %v3500 = vpop.f32.mrb[0].mxu0
          %3501 = vmatprep.mubr.f32.mxu0 0.0
          %3502 = vmatmul.mubr.f32.gmra.mrb[0].mxu0 %v3140
          %v3503 = vpop.f32.mrb[0].mxu0
          %v3504 = vadd.f32 %v3295, %v3503
          %v3505 = vpop.f32.mrb[0].mxu0
          %3506 = vmatprep.mubr.f32.mxu0 0.0
          %3507 = vmatmul.mubr.f32.gmra.mrb[0].mxu0 %v3141
          %v3508 = vpop.f32.mrb[0].mxu0
          %v3509 = vadd.f32 %v3295, %v3508
          %v3510 = vpop.f32.mrb[0].mxu0
          %3511 = vmatprep.mubr.f32.mxu0 0.0
          %3512 = vmatmul.mubr.f32.gmra.mrb[0].mxu0 %v3142
          %v3513 = vpop.f32.mrb[0].mxu0
          %v3514 = vadd.f32 %v3295, %v3513
          %v3515 = vpop.f32.mrb[0].mxu0
          %3516 = vmatprep.mubr.f32.mxu0 0.0
          %3517 = vmatmul.mubr.f32.gmra.mrb[0].mxu0 %v3143
          %v3518 = vpop.f32.mrb[0].mxu0
          %v3519 = vadd.f32 %v3295, %v3518
          %v3520 = vpop.f32.mrb[0].mxu0
          %3521 = vdwg.mxu0
          %v3522 = vmax.f32 %v3364, 0.0
          %v3523 = vmax.f32 %v3369, 0.0
          %v3524 = vmax.f32 %v3374, 0.0
          %v3525 = vmax.f32 %v3379, 0.0
          %v3526 = vmax.f32 %v3384, 0.0
          %v3527 = vmax.f32 %v3389, 0.0
          %v3528 = vmax.f32 %v3394, 0.0
          %v3529 = vmax.f32 %v3399, 0.0
          %v3530 = vmax.f32 %v3404, 0.0
          %v3531 = vmax.f32 %v3409, 0.0
          %v3532 = vmax.f32 %v3414, 0.0
          %v3533 = vmax.f32 %v3419, 0.0
          %v3534 = vmax.f32 %v3424, 0.0
          %v3535 = vmax.f32 %v3429, 0.0
          %v3536 = vmax.f32 %v3434, 0.0
          %v3537 = vmax.f32 %v3439, 0.0
          %v3538 = vmax.f32 %v3444, 0.0
          %v3539 = vmax.f32 %v3449, 0.0
          %v3540 = vmax.f32 %v3454, 0.0
          %v3541 = vmax.f32 %v3459, 0.0
          %v3542 = vmax.f32 %v3464, 0.0
          %v3543 = vmax.f32 %v3469, 0.0
          %v3544 = vmax.f32 %v3474, 0.0
          %v3545 = vmax.f32 %v3479, 0.0
          %v3546 = vmax.f32 %v3484, 0.0
          %v3547 = vmax.f32 %v3489, 0.0
          %v3548 = vmax.f32 %v3494, 0.0
          %v3549 = vmax.f32 %v3499, 0.0
          %v3550 = vmax.f32 %v3504, 0.0
          %v3551 = vmax.f32 %v3509, 0.0
          %v3552 = vmax.f32 %v3514, 0.0
          %v3553 = vmax.f32 %v3519, 0.0
          %v3555 = vlaneseq
          %v3556 = vshrl.u32 %v3555, 7
          %v3557 = vsub.s32 0, %v3556
          %v3558 = vrot.slane %v3273, %v3557
          %3560 = vmatprep.subr.mxu0 0.0
          %3561 = vmatpush1.msra.mxu0 %v3257
          %3562 = vmatprep.subr.mxu0 0.0
          %3563 = vmatpush1.msra.mxu0 %v3258
          %3564 = vmatprep.subr.mxu0 0.0
          %3565 = vmatpush1.msra.mxu0 %v3259
          %3566 = vmatprep.subr.mxu0 0.0
          %3567 = vmatpush1.msra.mxu0 %v3260
          %3568 = vmatprep.subr.mxu0 0.0
          %3569 = vmatpush1.msra.mxu0 %v3261
          %3570 = vmatprep.subr.mxu0 0.0
          %3571 = vmatpush1.msra.mxu0 %v3262
          %3572 = vmatprep.subr.mxu0 0.0
          %3573 = vmatpush1.msra.mxu0 %v3263
          %3574 = vmatprep.subr.mxu0 0.0
          %3575 = vmatpush1.msra.mxu0 %v3264
          %3576 = vmatprep.subr.mxu0 0.0
          %3577 = vmatpush1.msra.mxu0 %v3265
          %3578 = vmatprep.subr.mxu0 0.0
          %3579 = vmatpush1.msra.mxu0 %v3266
          %3580 = vmatprep.subr.mxu0 0.0
          %3581 = vmatpush1.msra.mxu0 %v3267
          %3582 = vmatprep.subr.mxu0 0.0
          %3583 = vmatpush1.msra.mxu0 %v3268
          %3584 = vmatprep.subr.mxu0 0.0
          %3585 = vmatpush1.msra.mxu0 %v3269
          %3586 = vmatprep.subr.mxu0 0.0
          %3587 = vmatpush1.msra.mxu0 %v3270
          %3588 = vmatprep.subr.mxu0 0.0
          %3589 = vmatpush1.msra.mxu0 %v3271
          %3590 = vmatprep.subr.mxu0 0.0
          %3591 = vmatpush1.msra.mxu0 %v3272
          %3592 = vmatprep.subr.mxu0 0.0
          %3593 = vmatpush1.msra.mxu0 0.0
          %3594 = vmatprep.subr.mxu0 0.0
          %3595 = vmatpush1.msra.mxu0 0.0
          %3596 = vmatprep.subr.mxu0 0.0
          %3597 = vmatpush1.msra.mxu0 0.0
          %3598 = vmatprep.subr.mxu0 0.0
          %3599 = vmatpush1.msra.mxu0 0.0
          %3600 = vmatprep.subr.mxu0 0.0
          %3601 = vmatpush1.msra.mxu0 0.0
          %3602 = vmatprep.subr.mxu0 0.0
          %3603 = vmatpush1.msra.mxu0 0.0
          %3604 = vmatprep.subr.mxu0 0.0
          %3605 = vmatpush1.msra.mxu0 0.0
          %3606 = vmatprep.subr.mxu0 0.0
          %3607 = vmatpush1.msra.mxu0 0.0
          %3608 = vmatprep.subr.mxu0 0.0
          %3609 = vmatpush1.msra.mxu0 0.0
          %3610 = vmatprep.subr.mxu0 0.0
          %3611 = vmatpush1.msra.mxu0 0.0
          %3612 = vmatprep.subr.mxu0 0.0
          %3613 = vmatpush1.msra.mxu0 0.0
          %3614 = vmatprep.subr.mxu0 0.0
          %3615 = vmatpush1.msra.mxu0 0.0
          %3616 = vmatprep.subr.mxu0 0.0
          %3617 = vmatpush1.msra.mxu0 0.0
          %3618 = vmatprep.subr.mxu0 0.0
          %3619 = vmatpush1.msra.mxu0 0.0
          %3620 = vmatprep.subr.mxu0 0.0
          %3621 = vmatpush1.msra.mxu0 0.0
          %3622 = vmatprep.subr.mxu0 0.0
          %3623 = vmatpush1.msra.mxu0 0.0
          %3624 = vmatprep.mubr.f32.mxu0 0.0
          %3625 = vmatmul.mubr.f32.gmra.mrb[0].mxu0 %v3522
          %v3626 = vpop.f32.mrb[0].mxu0
          %v3627 = vadd.f32 %v3558, %v3626
          %v3628 = vpop.f32.mrb[0].mxu0
          %3629 = vmatprep.mubr.f32.mxu0 0.0
          %3630 = vmatmul.mubr.f32.gmra.mrb[0].mxu0 %v3523
          %v3631 = vpop.f32.mrb[0].mxu0
          %v3632 = vadd.f32 %v3558, %v3631
          %v3633 = vpop.f32.mrb[0].mxu0
          %3634 = vmatprep.mubr.f32.mxu0 0.0
          %3635 = vmatmul.mubr.f32.gmra.mrb[0].mxu0 %v3524
          %v3636 = vpop.f32.mrb[0].mxu0
          %v3637 = vadd.f32 %v3558, %v3636
          %v3638 = vpop.f32.mrb[0].mxu0
          %3639 = vmatprep.mubr.f32.mxu0 0.0
          %3640 = vmatmul.mubr.f32.gmra.mrb[0].mxu0 %v3525
          %v3641 = vpop.f32.mrb[0].mxu0
          %v3642 = vadd.f32 %v3558, %v3641
          %v3643 = vpop.f32.mrb[0].mxu0
          %3644 = vmatprep.mubr.f32.mxu0 0.0
          %3645 = vmatmul.mubr.f32.gmra.mrb[0].mxu0 %v3526
          %v3646 = vpop.f32.mrb[0].mxu0
          %v3647 = vadd.f32 %v3558, %v3646
          %v3648 = vpop.f32.mrb[0].mxu0
          %3649 = vmatprep.mubr.f32.mxu0 0.0
          %3650 = vmatmul.mubr.f32.gmra.mrb[0].mxu0 %v3527
          %v3651 = vpop.f32.mrb[0].mxu0
          %v3652 = vadd.f32 %v3558, %v3651
          %v3653 = vpop.f32.mrb[0].mxu0
          %3654 = vmatprep.mubr.f32.mxu0 0.0
          %3655 = vmatmul.mubr.f32.gmra.mrb[0].mxu0 %v3528
          %v3656 = vpop.f32.mrb[0].mxu0
          %v3657 = vadd.f32 %v3558, %v3656
          %v3658 = vpop.f32.mrb[0].mxu0
          %3659 = vmatprep.mubr.f32.mxu0 0.0
          %3660 = vmatmul.mubr.f32.gmra.mrb[0].mxu0 %v3529
          %v3661 = vpop.f32.mrb[0].mxu0
          %v3662 = vadd.f32 %v3558, %v3661
          %v3663 = vpop.f32.mrb[0].mxu0
          %3664 = vmatprep.mubr.f32.mxu0 0.0
          %3665 = vmatmul.mubr.f32.gmra.mrb[0].mxu0 %v3530
          %v3666 = vpop.f32.mrb[0].mxu0
          %v3667 = vadd.f32 %v3558, %v3666
          %v3668 = vpop.f32.mrb[0].mxu0
          %3669 = vmatprep.mubr.f32.mxu0 0.0
          %3670 = vmatmul.mubr.f32.gmra.mrb[0].mxu0 %v3531
          %v3671 = vpop.f32.mrb[0].mxu0
          %v3672 = vadd.f32 %v3558, %v3671
          %v3673 = vpop.f32.mrb[0].mxu0
          %3674 = vmatprep.mubr.f32.mxu0 0.0
          %3675 = vmatmul.mubr.f32.gmra.mrb[0].mxu0 %v3532
          %v3676 = vpop.f32.mrb[0].mxu0
          %v3677 = vadd.f32 %v3558, %v3676
          %v3678 = vpop.f32.mrb[0].mxu0
          %3679 = vmatprep.mubr.f32.mxu0 0.0
          %3680 = vmatmul.mubr.f32.gmra.mrb[0].mxu0 %v3533
          %v3681 = vpop.f32.mrb[0].mxu0
          %v3682 = vadd.f32 %v3558, %v3681
          %v3683 = vpop.f32.mrb[0].mxu0
          %3684 = vmatprep.mubr.f32.mxu0 0.0
          %3685 = vmatmul.mubr.f32.gmra.mrb[0].mxu0 %v3534
          %v3686 = vpop.f32.mrb[0].mxu0
          %v3687 = vadd.f32 %v3558, %v3686
          %v3688 = vpop.f32.mrb[0].mxu0
          %3689 = vmatprep.mubr.f32.mxu0 0.0
          %3690 = vmatmul.mubr.f32.gmra.mrb[0].mxu0 %v3535
          %v3691 = vpop.f32.mrb[0].mxu0
          %v3692 = vadd.f32 %v3558, %v3691
          %v3693 = vpop.f32.mrb[0].mxu0
          %3694 = vmatprep.mubr.f32.mxu0 0.0
          %3695 = vmatmul.mubr.f32.gmra.mrb[0].mxu0 %v3536
          %v3696 = vpop.f32.mrb[0].mxu0
          %v3697 = vadd.f32 %v3558, %v3696
          %v3698 = vpop.f32.mrb[0].mxu0
          %3699 = vmatprep.mubr.f32.mxu0 0.0
          %3700 = vmatmul.mubr.f32.gmra.mrb[0].mxu0 %v3537
          %v3701 = vpop.f32.mrb[0].mxu0
          %v3702 = vadd.f32 %v3558, %v3701
          %v3703 = vpop.f32.mrb[0].mxu0
          %3704 = vmatprep.mubr.f32.mxu0 0.0
          %3705 = vmatmul.mubr.f32.gmra.mrb[0].mxu0 %v3538
          %v3706 = vpop.f32.mrb[0].mxu0
          %v3707 = vadd.f32 %v3558, %v3706
          %v3708 = vpop.f32.mrb[0].mxu0
          %3709 = vmatprep.mubr.f32.mxu0 0.0
          %3710 = vmatmul.mubr.f32.gmra.mrb[0].mxu0 %v3539
          %v3711 = vpop.f32.mrb[0].mxu0
          %v3712 = vadd.f32 %v3558, %v3711
          %v3713 = vpop.f32.mrb[0].mxu0
          %3714 = vmatprep.mubr.f32.mxu0 0.0
          %3715 = vmatmul.mubr.f32.gmra.mrb[0].mxu0 %v3540
          %v3716 = vpop.f32.mrb[0].mxu0
          %v3717 = vadd.f32 %v3558, %v3716
          %v3718 = vpop.f32.mrb[0].mxu0
          %3719 = vmatprep.mubr.f32.mxu0 0.0
          %3720 = vmatmul.mubr.f32.gmra.mrb[0].mxu0 %v3541
          %v3721 = vpop.f32.mrb[0].mxu0
          %v3722 = vadd.f32 %v3558, %v3721
          %v3723 = vpop.f32.mrb[0].mxu0
          %3724 = vmatprep.mubr.f32.mxu0 0.0
          %3725 = vmatmul.mubr.f32.gmra.mrb[0].mxu0 %v3542
          %v3726 = vpop.f32.mrb[0].mxu0
          %v3727 = vadd.f32 %v3558, %v3726
          %v3728 = vpop.f32.mrb[0].mxu0
          %3729 = vmatprep.mubr.f32.mxu0 0.0
          %3730 = vmatmul.mubr.f32.gmra.mrb[0].mxu0 %v3543
          %v3731 = vpop.f32.mrb[0].mxu0
          %v3732 = vadd.f32 %v3558, %v3731
          %v3733 = vpop.f32.mrb[0].mxu0
          %3734 = vmatprep.mubr.f32.mxu0 0.0
          %3735 = vmatmul.mubr.f32.gmra.mrb[0].mxu0 %v3544
          %v3736 = vpop.f32.mrb[0].mxu0
          %v3737 = vadd.f32 %v3558, %v3736
          %v3738 = vpop.f32.mrb[0].mxu0
          %3739 = vmatprep.mubr.f32.mxu0 0.0
          %3740 = vmatmul.mubr.f32.gmra.mrb[0].mxu0 %v3545
          %v3741 = vpop.f32.mrb[0].mxu0
          %v3742 = vadd.f32 %v3558, %v3741
          %v3743 = vpop.f32.mrb[0].mxu0
          %3744 = vmatprep.mubr.f32.mxu0 0.0
          %3745 = vmatmul.mubr.f32.gmra.mrb[0].mxu0 %v3546
          %v3746 = vpop.f32.mrb[0].mxu0
          %v3747 = vadd.f32 %v3558, %v3746
          %v3748 = vpop.f32.mrb[0].mxu0
          %3749 = vmatprep.mubr.f32.mxu0 0.0
          %3750 = vmatmul.mubr.f32.gmra.mrb[0].mxu0 %v3547
          %v3751 = vpop.f32.mrb[0].mxu0
          %v3752 = vadd.f32 %v3558, %v3751
          %v3753 = vpop.f32.mrb[0].mxu0
          %3754 = vmatprep.mubr.f32.mxu0 0.0
          %3755 = vmatmul.mubr.f32.gmra.mrb[0].mxu0 %v3548
          %v3756 = vpop.f32.mrb[0].mxu0
          %v3757 = vadd.f32 %v3558, %v3756
          %v3758 = vpop.f32.mrb[0].mxu0
          %3759 = vmatprep.mubr.f32.mxu0 0.0
          %3760 = vmatmul.mubr.f32.gmra.mrb[0].mxu0 %v3549
          %v3761 = vpop.f32.mrb[0].mxu0
          %v3762 = vadd.f32 %v3558, %v3761
          %v3763 = vpop.f32.mrb[0].mxu0
          %3764 = vmatprep.mubr.f32.mxu0 0.0
          %3765 = vmatmul.mubr.f32.gmra.mrb[0].mxu0 %v3550
          %v3766 = vpop.f32.mrb[0].mxu0
          %v3767 = vadd.f32 %v3558, %v3766
          %v3768 = vpop.f32.mrb[0].mxu0
          %3769 = vmatprep.mubr.f32.mxu0 0.0
          %3770 = vmatmul.mubr.f32.gmra.mrb[0].mxu0 %v3551
          %v3771 = vpop.f32.mrb[0].mxu0
          %v3772 = vadd.f32 %v3558, %v3771
          %v3773 = vpop.f32.mrb[0].mxu0
          %3774 = vmatprep.mubr.f32.mxu0 0.0
          %3775 = vmatmul.mubr.f32.gmra.mrb[0].mxu0 %v3552
          %v3776 = vpop.f32.mrb[0].mxu0
          %v3777 = vadd.f32 %v3558, %v3776
          %v3778 = vpop.f32.mrb[0].mxu0
          %3779 = vmatprep.mubr.f32.mxu0 0.0
          %3780 = vmatmul.mubr.f32.gmra.mrb[0].mxu0 %v3553
          %v3781 = vpop.f32.mrb[0].mxu0
          %v3782 = vadd.f32 %v3558, %v3781
          %v3783 = vpop.f32.mrb[0].mxu0
          %3784 = vdwg.mxu0
          %v3785 = vmax.f32 %v3627, 0.0
          %v3786 = vmax.f32 %v3632, 0.0
          %v3787 = vmax.f32 %v3637, 0.0
          %v3788 = vmax.f32 %v3642, 0.0
          %v3789 = vmax.f32 %v3647, 0.0
          %v3790 = vmax.f32 %v3652, 0.0
          %v3791 = vmax.f32 %v3657, 0.0
          %v3792 = vmax.f32 %v3662, 0.0
          %v3793 = vmax.f32 %v3667, 0.0
          %v3794 = vmax.f32 %v3672, 0.0
          %v3795 = vmax.f32 %v3677, 0.0
          %v3796 = vmax.f32 %v3682, 0.0
          %v3797 = vmax.f32 %v3687, 0.0
          %v3798 = vmax.f32 %v3692, 0.0
          %v3799 = vmax.f32 %v3697, 0.0
          %v3800 = vmax.f32 %v3702, 0.0
          %v3801 = vmax.f32 %v3707, 0.0
          %v3802 = vmax.f32 %v3712, 0.0
          %v3803 = vmax.f32 %v3717, 0.0
          %v3804 = vmax.f32 %v3722, 0.0
          %v3805 = vmax.f32 %v3727, 0.0
          %v3806 = vmax.f32 %v3732, 0.0
          %v3807 = vmax.f32 %v3737, 0.0
          %v3808 = vmax.f32 %v3742, 0.0
          %v3809 = vmax.f32 %v3747, 0.0
          %v3810 = vmax.f32 %v3752, 0.0
          %v3811 = vmax.f32 %v3757, 0.0
          %v3812 = vmax.f32 %v3762, 0.0
          %v3813 = vmax.f32 %v3767, 0.0
          %v3814 = vmax.f32 %v3772, 0.0
          %v3815 = vmax.f32 %v3777, 0.0
          %v3816 = vmax.f32 %v3782, 0.0
          %v3818 = vlaneseq
          %v3819 = vshrl.u32 %v3818, 7
          %v3820 = vsub.s32 0, %v3819
          %v3821 = vrot.slane %v3290, %v3820
          %3823 = vmatprep.subr.mxu0 0.0
          %3824 = vmatpush1.msra.mxu0 %v3274
          %3825 = vmatprep.subr.mxu0 0.0
          %3826 = vmatpush1.msra.mxu0 %v3275
          %3827 = vmatprep.subr.mxu0 0.0
          %3828 = vmatpush1.msra.mxu0 %v3276
          %3829 = vmatprep.subr.mxu0 0.0
          %3830 = vmatpush1.msra.mxu0 %v3277
          %3831 = vmatprep.subr.mxu0 0.0
          %3832 = vmatpush1.msra.mxu0 %v3278
          %3833 = vmatprep.subr.mxu0 0.0
          %3834 = vmatpush1.msra.mxu0 %v3279
          %3835 = vmatprep.subr.mxu0 0.0
          %3836 = vmatpush1.msra.mxu0 %v3280
          %3837 = vmatprep.subr.mxu0 0.0
          %3838 = vmatpush1.msra.mxu0 %v3281
          %3839 = vmatprep.subr.mxu0 0.0
          %3840 = vmatpush1.msra.mxu0 %v3282
          %3841 = vmatprep.subr.mxu0 0.0
          %3842 = vmatpush1.msra.mxu0 %v3283
          %3843 = vmatprep.subr.mxu0 0.0
          %3844 = vmatpush1.msra.mxu0 %v3284
          %3845 = vmatprep.subr.mxu0 0.0
          %3846 = vmatpush1.msra.mxu0 %v3285
          %3847 = vmatprep.subr.mxu0 0.0
          %3848 = vmatpush1.msra.mxu0 %v3286
          %3849 = vmatprep.subr.mxu0 0.0
          %3850 = vmatpush1.msra.mxu0 %v3287
          %3851 = vmatprep.subr.mxu0 0.0
          %3852 = vmatpush1.msra.mxu0 %v3288
          %3853 = vmatprep.subr.mxu0 0.0
          %3854 = vmatpush1.msra.mxu0 %v3289
          %3855 = vmatprep.subr.mxu0 0.0
          %3856 = vmatpush1.msra.mxu0 0.0
          %3857 = vmatprep.subr.mxu0 0.0
          %3858 = vmatpush1.msra.mxu0 0.0
          %3859 = vmatprep.subr.mxu0 0.0
          %3860 = vmatpush1.msra.mxu0 0.0
          %3861 = vmatprep.subr.mxu0 0.0
          %3862 = vmatpush1.msra.mxu0 0.0
          %3863 = vmatprep.subr.mxu0 0.0
          %3864 = vmatpush1.msra.mxu0 0.0
          %3865 = vmatprep.subr.mxu0 0.0
          %3866 = vmatpush1.msra.mxu0 0.0
          %3867 = vmatprep.subr.mxu0 0.0
          %3868 = vmatpush1.msra.mxu0 0.0
          %3869 = vmatprep.subr.mxu0 0.0
          %3870 = vmatpush1.msra.mxu0 0.0
          %3871 = vmatprep.subr.mxu0 0.0
          %3872 = vmatpush1.msra.mxu0 0.0
          %3873 = vmatprep.subr.mxu0 0.0
          %3874 = vmatpush1.msra.mxu0 0.0
          %3875 = vmatprep.subr.mxu0 0.0
          %3876 = vmatpush1.msra.mxu0 0.0
          %3877 = vmatprep.subr.mxu0 0.0
          %3878 = vmatpush1.msra.mxu0 0.0
          %3879 = vmatprep.subr.mxu0 0.0
          %3880 = vmatpush1.msra.mxu0 0.0
          %3881 = vmatprep.subr.mxu0 0.0
          %3882 = vmatpush1.msra.mxu0 0.0
          %3883 = vmatprep.subr.mxu0 0.0
          %3884 = vmatpush1.msra.mxu0 0.0
          %3885 = vmatprep.subr.mxu0 0.0
          %3886 = vmatpush1.msra.mxu0 0.0
          %3887 = vmatprep.mubr.f32.mxu0 0.0
          %3888 = vmatmul.mubr.f32.gmra.mrb[0].mxu0 %v3785
          %v3889 = vpop.f32.mrb[0].mxu0
          %v3890 = vadd.f32 %v3821, %v3889
          %v3891 = vpop.f32.mrb[0].mxu0
          %3892 = vmatprep.mubr.f32.mxu0 0.0
          %3893 = vmatmul.mubr.f32.gmra.mrb[0].mxu0 %v3786
          %v3894 = vpop.f32.mrb[0].mxu0
          %v3895 = vadd.f32 %v3821, %v3894
          %v3896 = vpop.f32.mrb[0].mxu0
          %3897 = vmatprep.mubr.f32.mxu0 0.0
          %3898 = vmatmul.mubr.f32.gmra.mrb[0].mxu0 %v3787
          %v3899 = vpop.f32.mrb[0].mxu0
          %v3900 = vadd.f32 %v3821, %v3899
          %v3901 = vpop.f32.mrb[0].mxu0
          %3902 = vmatprep.mubr.f32.mxu0 0.0
          %3903 = vmatmul.mubr.f32.gmra.mrb[0].mxu0 %v3788
          %v3904 = vpop.f32.mrb[0].mxu0
          %v3905 = vadd.f32 %v3821, %v3904
          %v3906 = vpop.f32.mrb[0].mxu0
          %3907 = vmatprep.mubr.f32.mxu0 0.0
          %3908 = vmatmul.mubr.f32.gmra.mrb[0].mxu0 %v3789
          %v3909 = vpop.f32.mrb[0].mxu0
          %v3910 = vadd.f32 %v3821, %v3909
          %v3911 = vpop.f32.mrb[0].mxu0
          %3912 = vmatprep.mubr.f32.mxu0 0.0
          %3913 = vmatmul.mubr.f32.gmra.mrb[0].mxu0 %v3790
          %v3914 = vpop.f32.mrb[0].mxu0
          %v3915 = vadd.f32 %v3821, %v3914
          %v3916 = vpop.f32.mrb[0].mxu0
          %3917 = vmatprep.mubr.f32.mxu0 0.0
          %3918 = vmatmul.mubr.f32.gmra.mrb[0].mxu0 %v3791
          %v3919 = vpop.f32.mrb[0].mxu0
          %v3920 = vadd.f32 %v3821, %v3919
          %v3921 = vpop.f32.mrb[0].mxu0
          %3922 = vmatprep.mubr.f32.mxu0 0.0
          %3923 = vmatmul.mubr.f32.gmra.mrb[0].mxu0 %v3792
          %v3924 = vpop.f32.mrb[0].mxu0
          %v3925 = vadd.f32 %v3821, %v3924
          %v3926 = vpop.f32.mrb[0].mxu0
          %3927 = vmatprep.mubr.f32.mxu0 0.0
          %3928 = vmatmul.mubr.f32.gmra.mrb[0].mxu0 %v3793
          %v3929 = vpop.f32.mrb[0].mxu0
          %v3930 = vadd.f32 %v3821, %v3929
          %v3931 = vpop.f32.mrb[0].mxu0
          %3932 = vmatprep.mubr.f32.mxu0 0.0
          %3933 = vmatmul.mubr.f32.gmra.mrb[0].mxu0 %v3794
          %v3934 = vpop.f32.mrb[0].mxu0
          %v3935 = vadd.f32 %v3821, %v3934
          %v3936 = vpop.f32.mrb[0].mxu0
          %3937 = vmatprep.mubr.f32.mxu0 0.0
          %3938 = vmatmul.mubr.f32.gmra.mrb[0].mxu0 %v3795
          %v3939 = vpop.f32.mrb[0].mxu0
          %v3940 = vadd.f32 %v3821, %v3939
          %v3941 = vpop.f32.mrb[0].mxu0
          %3942 = vmatprep.mubr.f32.mxu0 0.0
          %3943 = vmatmul.mubr.f32.gmra.mrb[0].mxu0 %v3796
          %v3944 = vpop.f32.mrb[0].mxu0
          %v3945 = vadd.f32 %v3821, %v3944
          %v3946 = vpop.f32.mrb[0].mxu0
          %3947 = vmatprep.mubr.f32.mxu0 0.0
          %3948 = vmatmul.mubr.f32.gmra.mrb[0].mxu0 %v3797
          %v3949 = vpop.f32.mrb[0].mxu0
          %v3950 = vadd.f32 %v3821, %v3949
          %v3951 = vpop.f32.mrb[0].mxu0
          %3952 = vmatprep.mubr.f32.mxu0 0.0
          %3953 = vmatmul.mubr.f32.gmra.mrb[0].mxu0 %v3798
          %v3954 = vpop.f32.mrb[0].mxu0
          %v3955 = vadd.f32 %v3821, %v3954
          %v3956 = vpop.f32.mrb[0].mxu0
          %3957 = vmatprep.mubr.f32.mxu0 0.0
          %3958 = vmatmul.mubr.f32.gmra.mrb[0].mxu0 %v3799
          %v3959 = vpop.f32.mrb[0].mxu0
          %v3960 = vadd.f32 %v3821, %v3959
          %v3961 = vpop.f32.mrb[0].mxu0
          %3962 = vmatprep.mubr.f32.mxu0 0.0
          %3963 = vmatmul.mubr.f32.gmra.mrb[0].mxu0 %v3800
          %v3964 = vpop.f32.mrb[0].mxu0
          %v3965 = vadd.f32 %v3821, %v3964
          %v3966 = vpop.f32.mrb[0].mxu0
          %3967 = vmatprep.mubr.f32.mxu0 0.0
          %3968 = vmatmul.mubr.f32.gmra.mrb[0].mxu0 %v3801
          %v3969 = vpop.f32.mrb[0].mxu0
          %v3970 = vadd.f32 %v3821, %v3969
          %v3971 = vpop.f32.mrb[0].mxu0
          %3972 = vmatprep.mubr.f32.mxu0 0.0
          %3973 = vmatmul.mubr.f32.gmra.mrb[0].mxu0 %v3802
          %v3974 = vpop.f32.mrb[0].mxu0
          %v3975 = vadd.f32 %v3821, %v3974
          %v3976 = vpop.f32.mrb[0].mxu0
          %3977 = vmatprep.mubr.f32.mxu0 0.0
          %3978 = vmatmul.mubr.f32.gmra.mrb[0].mxu0 %v3803
          %v3979 = vpop.f32.mrb[0].mxu0
          %v3980 = vadd.f32 %v3821, %v3979
          %v3981 = vpop.f32.mrb[0].mxu0
          %3982 = vmatprep.mubr.f32.mxu0 0.0
          %3983 = vmatmul.mubr.f32.gmra.mrb[0].mxu0 %v3804
          %v3984 = vpop.f32.mrb[0].mxu0
          %v3985 = vadd.f32 %v3821, %v3984
          %v3986 = vpop.f32.mrb[0].mxu0
          %3987 = vmatprep.mubr.f32.mxu0 0.0
          %3988 = vmatmul.mubr.f32.gmra.mrb[0].mxu0 %v3805
          %v3989 = vpop.f32.mrb[0].mxu0
          %v3990 = vadd.f32 %v3821, %v3989
          %v3991 = vpop.f32.mrb[0].mxu0
          %3992 = vmatprep.mubr.f32.mxu0 0.0
          %3993 = vmatmul.mubr.f32.gmra.mrb[0].mxu0 %v3806
          %v3994 = vpop.f32.mrb[0].mxu0
          %v3995 = vadd.f32 %v3821, %v3994
          %v3996 = vpop.f32.mrb[0].mxu0
          %3997 = vmatprep.mubr.f32.mxu0 0.0
          %3998 = vmatmul.mubr.f32.gmra.mrb[0].mxu0 %v3807
          %v3999 = vpop.f32.mrb[0].mxu0
          %v4000 = vadd.f32 %v3821, %v3999
          %v4001 = vpop.f32.mrb[0].mxu0
          %4002 = vmatprep.mubr.f32.mxu0 0.0
          %4003 = vmatmul.mubr.f32.gmra.mrb[0].mxu0 %v3808
          %v4004 = vpop.f32.mrb[0].mxu0
          %v4005 = vadd.f32 %v3821, %v4004
          %v4006 = vpop.f32.mrb[0].mxu0
          %4007 = vmatprep.mubr.f32.mxu0 0.0
          %4008 = vmatmul.mubr.f32.gmra.mrb[0].mxu0 %v3809
          %v4009 = vpop.f32.mrb[0].mxu0
          %v4010 = vadd.f32 %v3821, %v4009
          %v4011 = vpop.f32.mrb[0].mxu0
          %4012 = vmatprep.mubr.f32.mxu0 0.0
          %4013 = vmatmul.mubr.f32.gmra.mrb[0].mxu0 %v3810
          %v4014 = vpop.f32.mrb[0].mxu0
          %v4015 = vadd.f32 %v3821, %v4014
          %v4016 = vpop.f32.mrb[0].mxu0
          %4017 = vmatprep.mubr.f32.mxu0 0.0
          %4018 = vmatmul.mubr.f32.gmra.mrb[0].mxu0 %v3811
          %v4019 = vpop.f32.mrb[0].mxu0
          %v4020 = vadd.f32 %v3821, %v4019
          %v4021 = vpop.f32.mrb[0].mxu0
          %4022 = vmatprep.mubr.f32.mxu0 0.0
          %4023 = vmatmul.mubr.f32.gmra.mrb[0].mxu0 %v3812
          %v4024 = vpop.f32.mrb[0].mxu0
          %v4025 = vadd.f32 %v3821, %v4024
          %v4026 = vpop.f32.mrb[0].mxu0
          %4027 = vmatprep.mubr.f32.mxu0 0.0
          %4028 = vmatmul.mubr.f32.gmra.mrb[0].mxu0 %v3813
          %v4029 = vpop.f32.mrb[0].mxu0
          %v4030 = vadd.f32 %v3821, %v4029
          %v4031 = vpop.f32.mrb[0].mxu0
          %4032 = vmatprep.mubr.f32.mxu0 0.0
          %4033 = vmatmul.mubr.f32.gmra.mrb[0].mxu0 %v3814
          %v4034 = vpop.f32.mrb[0].mxu0
          %v4035 = vadd.f32 %v3821, %v4034
          %v4036 = vpop.f32.mrb[0].mxu0
          %4037 = vmatprep.mubr.f32.mxu0 0.0
          %4038 = vmatmul.mubr.f32.gmra.mrb[0].mxu0 %v3815
          %v4039 = vpop.f32.mrb[0].mxu0
          %v4040 = vadd.f32 %v3821, %v4039
          %v4041 = vpop.f32.mrb[0].mxu0
          %4042 = vmatprep.mubr.f32.mxu0 0.0
          %4043 = vmatmul.mubr.f32.gmra.mrb[0].mxu0 %v3816
          %v4044 = vpop.f32.mrb[0].mxu0
          %v4045 = vadd.f32 %v3821, %v4044
          %v4046 = vpop.f32.mrb[0].mxu0
          %4047 = vdwg.mxu0
          %v4048 = vld [vmem:[#allocation17] sm:$0xff]
          %v4049 = vld [vmem:[#allocation17 + $0x8] sm:$0xff]
          %v4050 = vld [vmem:[#allocation17 + $0x10] sm:$0xff]
          %v4051 = vld [vmem:[#allocation17 + $0x18] sm:$0xff]
          %v4052 = vld [vmem:[#allocation17 + $0x20] sm:$0xff]
          %v4053 = vld [vmem:[#allocation17 + $0x28] sm:$0xff]
          %v4054 = vld [vmem:[#allocation17 + $0x30] sm:$0xff]
          %v4055 = vld [vmem:[#allocation17 + $0x38] sm:$0xff]
          %v4056 = vld [vmem:[#allocation17 + $0x40] sm:$0xff]
          %v4057 = vld [vmem:[#allocation17 + $0x48] sm:$0xff]
          %v4058 = vld [vmem:[#allocation17 + $0x50] sm:$0xff]
          %v4059 = vld [vmem:[#allocation17 + $0x58] sm:$0xff]
          %v4060 = vld [vmem:[#allocation17 + $0x60] sm:$0xff]
          %v4061 = vld [vmem:[#allocation17 + $0x68] sm:$0xff]
          %v4062 = vld [vmem:[#allocation17 + $0x70] sm:$0xff]
          %v4063 = vld [vmem:[#allocation17 + $0x78] sm:$0xff]
          %v4064 = vld [vmem:[%s12] sm:$0x1]
          %v4065 = vld [vmem:[#allocation19] sm:$0xff]
          %v4066 = vld [vmem:[#allocation19 + $0x8] sm:$0xff]
          %v4067 = vld [vmem:[#allocation19 + $0x10] sm:$0xff]
          %v4068 = vld [vmem:[#allocation19 + $0x18] sm:$0xff]
          %v4069 = vld [vmem:[#allocation19 + $0x20] sm:$0xff]
          %v4070 = vld [vmem:[#allocation19 + $0x28] sm:$0xff]
          %v4071 = vld [vmem:[#allocation19 + $0x30] sm:$0xff]
          %v4072 = vld [vmem:[#allocation19 + $0x38] sm:$0xff]
          %v4073 = vld [vmem:[#allocation19 + $0x40] sm:$0xff]
          %v4074 = vld [vmem:[#allocation19 + $0x48] sm:$0xff]
          %v4075 = vld [vmem:[#allocation19 + $0x50] sm:$0xff]
          %v4076 = vld [vmem:[#allocation19 + $0x58] sm:$0xff]
          %v4077 = vld [vmem:[#allocation19 + $0x60] sm:$0xff]
          %v4078 = vld [vmem:[#allocation19 + $0x68] sm:$0xff]
          %v4079 = vld [vmem:[#allocation19 + $0x70] sm:$0xff]
          %v4080 = vld [vmem:[#allocation19 + $0x78] sm:$0xff]
          %v4081 = vld [vmem:[%s14] sm:$0x1]
          %v4082 = vld [vmem:[#allocation20] sm:$0xff]
          %v4083 = vld [vmem:[#allocation20 + $0x8] sm:$0xff]
          %v4084 = vld [vmem:[#allocation20 + $0x10] sm:$0xff]
          %v4085 = vld [vmem:[#allocation20 + $0x18] sm:$0xff]
          %v4086 = vld [vmem:[#allocation20 + $0x20] sm:$0xff]
          %v4087 = vld [vmem:[#allocation20 + $0x28] sm:$0xff]
          %v4088 = vld [vmem:[#allocation20 + $0x30] sm:$0xff]
          %v4089 = vld [vmem:[#allocation20 + $0x38] sm:$0xff]
          %v4090 = vld [vmem:[#allocation20 + $0x40] sm:$0xff]
          %v4091 = vld [vmem:[#allocation20 + $0x48] sm:$0xff]
          %v4092 = vld [vmem:[#allocation20 + $0x50] sm:$0xff]
          %v4093 = vld [vmem:[#allocation20 + $0x58] sm:$0xff]
          %v4094 = vld [vmem:[#allocation20 + $0x60] sm:$0xff]
          %v4095 = vld [vmem:[#allocation20 + $0x68] sm:$0xff]
          %v4096 = vld [vmem:[#allocation20 + $0x70] sm:$0xff]
          %v4097 = vld [vmem:[#allocation20 + $0x78] sm:$0xff]
          %v4098 = vld [vmem:[%s16] sm:$0x1]
          %v4100 = vlaneseq
          %v4101 = vshrl.u32 %v4100, 7
          %v4102 = vsub.s32 0, %v4101
          %v4103 = vrot.slane %v4064, %v4102
          %4105 = vmatprep.subr.mxu0 0.0
          %4106 = vmatpush1.msra.mxu0 %v4048
          %4107 = vmatprep.subr.mxu0 0.0
          %4108 = vmatpush1.msra.mxu0 %v4049
          %4109 = vmatprep.subr.mxu0 0.0
          %4110 = vmatpush1.msra.mxu0 %v4050
          %4111 = vmatprep.subr.mxu0 0.0
          %4112 = vmatpush1.msra.mxu0 %v4051
          %4113 = vmatprep.subr.mxu0 0.0
          %4114 = vmatpush1.msra.mxu0 %v4052
          %4115 = vmatprep.subr.mxu0 0.0
          %4116 = vmatpush1.msra.mxu0 %v4053
          %4117 = vmatprep.subr.mxu0 0.0
          %4118 = vmatpush1.msra.mxu0 %v4054
          %4119 = vmatprep.subr.mxu0 0.0
          %4120 = vmatpush1.msra.mxu0 %v4055
          %4121 = vmatprep.subr.mxu0 0.0
          %4122 = vmatpush1.msra.mxu0 %v4056
          %4123 = vmatprep.subr.mxu0 0.0
          %4124 = vmatpush1.msra.mxu0 %v4057
          %4125 = vmatprep.subr.mxu0 0.0
          %4126 = vmatpush1.msra.mxu0 %v4058
          %4127 = vmatprep.subr.mxu0 0.0
          %4128 = vmatpush1.msra.mxu0 %v4059
          %4129 = vmatprep.subr.mxu0 0.0
          %4130 = vmatpush1.msra.mxu0 %v4060
          %4131 = vmatprep.subr.mxu0 0.0
          %4132 = vmatpush1.msra.mxu0 %v4061
          %4133 = vmatprep.subr.mxu0 0.0
          %4134 = vmatpush1.msra.mxu0 %v4062
          %4135 = vmatprep.subr.mxu0 0.0
          %4136 = vmatpush1.msra.mxu0 %v4063
          %4137 = vmatprep.subr.mxu0 0.0
          %4138 = vmatpush1.msra.mxu0 0.0
          %4139 = vmatprep.subr.mxu0 0.0
          %4140 = vmatpush1.msra.mxu0 0.0
          %4141 = vmatprep.subr.mxu0 0.0
          %4142 = vmatpush1.msra.mxu0 0.0
          %4143 = vmatprep.subr.mxu0 0.0
          %4144 = vmatpush1.msra.mxu0 0.0
          %4145 = vmatprep.subr.mxu0 0.0
          %4146 = vmatpush1.msra.mxu0 0.0
          %4147 = vmatprep.subr.mxu0 0.0
          %4148 = vmatpush1.msra.mxu0 0.0
          %4149 = vmatprep.subr.mxu0 0.0
          %4150 = vmatpush1.msra.mxu0 0.0
          %4151 = vmatprep.subr.mxu0 0.0
          %4152 = vmatpush1.msra.mxu0 0.0
          %4153 = vmatprep.subr.mxu0 0.0
          %4154 = vmatpush1.msra.mxu0 0.0
          %4155 = vmatprep.subr.mxu0 0.0
          %4156 = vmatpush1.msra.mxu0 0.0
          %4157 = vmatprep.subr.mxu0 0.0
          %4158 = vmatpush1.msra.mxu0 0.0
          %4159 = vmatprep.subr.mxu0 0.0
          %4160 = vmatpush1.msra.mxu0 0.0
          %4161 = vmatprep.subr.mxu0 0.0
          %4162 = vmatpush1.msra.mxu0 0.0
          %4163 = vmatprep.subr.mxu0 0.0
          %4164 = vmatpush1.msra.mxu0 0.0
          %4165 = vmatprep.subr.mxu0 0.0
          %4166 = vmatpush1.msra.mxu0 0.0
          %4167 = vmatprep.subr.mxu0 0.0
          %4168 = vmatpush1.msra.mxu0 0.0
          %4169 = vmatprep.mubr.f32.mxu0 0.0
          %4170 = vmatmul.mubr.f32.gmra.mrb[0].mxu0 %v3208
          %v4171 = vpop.f32.mrb[0].mxu0
          %v4172 = vadd.f32 %v4103, %v4171
          %v4173 = vpop.f32.mrb[0].mxu0
          %4174 = vmatprep.mubr.f32.mxu0 0.0
          %4175 = vmatmul.mubr.f32.gmra.mrb[0].mxu0 %v3209
          %v4176 = vpop.f32.mrb[0].mxu0
          %v4177 = vadd.f32 %v4103, %v4176
          %v4178 = vpop.f32.mrb[0].mxu0
          %4179 = vmatprep.mubr.f32.mxu0 0.0
          %4180 = vmatmul.mubr.f32.gmra.mrb[0].mxu0 %v3210
          %v4181 = vpop.f32.mrb[0].mxu0
          %v4182 = vadd.f32 %v4103, %v4181
          %v4183 = vpop.f32.mrb[0].mxu0
          %4184 = vmatprep.mubr.f32.mxu0 0.0
          %4185 = vmatmul.mubr.f32.gmra.mrb[0].mxu0 %v3211
          %v4186 = vpop.f32.mrb[0].mxu0
          %v4187 = vadd.f32 %v4103, %v4186
          %v4188 = vpop.f32.mrb[0].mxu0
          %4189 = vmatprep.mubr.f32.mxu0 0.0
          %4190 = vmatmul.mubr.f32.gmra.mrb[0].mxu0 %v3212
          %v4191 = vpop.f32.mrb[0].mxu0
          %v4192 = vadd.f32 %v4103, %v4191
          %v4193 = vpop.f32.mrb[0].mxu0
          %4194 = vmatprep.mubr.f32.mxu0 0.0
          %4195 = vmatmul.mubr.f32.gmra.mrb[0].mxu0 %v3213
          %v4196 = vpop.f32.mrb[0].mxu0
          %v4197 = vadd.f32 %v4103, %v4196
          %v4198 = vpop.f32.mrb[0].mxu0
          %4199 = vmatprep.mubr.f32.mxu0 0.0
          %4200 = vmatmul.mubr.f32.gmra.mrb[0].mxu0 %v3214
          %v4201 = vpop.f32.mrb[0].mxu0
          %v4202 = vadd.f32 %v4103, %v4201
          %v4203 = vpop.f32.mrb[0].mxu0
          %4204 = vmatprep.mubr.f32.mxu0 0.0
          %4205 = vmatmul.mubr.f32.gmra.mrb[0].mxu0 %v3215
          %v4206 = vpop.f32.mrb[0].mxu0
          %v4207 = vadd.f32 %v4103, %v4206
          %v4208 = vpop.f32.mrb[0].mxu0
          %4209 = vmatprep.mubr.f32.mxu0 0.0
          %4210 = vmatmul.mubr.f32.gmra.mrb[0].mxu0 %v3216
          %v4211 = vpop.f32.mrb[0].mxu0
          %v4212 = vadd.f32 %v4103, %v4211
          %v4213 = vpop.f32.mrb[0].mxu0
          %4214 = vmatprep.mubr.f32.mxu0 0.0
          %4215 = vmatmul.mubr.f32.gmra.mrb[0].mxu0 %v3217
          %v4216 = vpop.f32.mrb[0].mxu0
          %v4217 = vadd.f32 %v4103, %v4216
          %v4218 = vpop.f32.mrb[0].mxu0
          %4219 = vmatprep.mubr.f32.mxu0 0.0
          %4220 = vmatmul.mubr.f32.gmra.mrb[0].mxu0 %v3218
          %v4221 = vpop.f32.mrb[0].mxu0
          %v4222 = vadd.f32 %v4103, %v4221
          %v4223 = vpop.f32.mrb[0].mxu0
          %4224 = vmatprep.mubr.f32.mxu0 0.0
          %4225 = vmatmul.mubr.f32.gmra.mrb[0].mxu0 %v3219
          %v4226 = vpop.f32.mrb[0].mxu0
          %v4227 = vadd.f32 %v4103, %v4226
          %v4228 = vpop.f32.mrb[0].mxu0
          %4229 = vmatprep.mubr.f32.mxu0 0.0
          %4230 = vmatmul.mubr.f32.gmra.mrb[0].mxu0 %v3220
          %v4231 = vpop.f32.mrb[0].mxu0
          %v4232 = vadd.f32 %v4103, %v4231
          %v4233 = vpop.f32.mrb[0].mxu0
          %4234 = vmatprep.mubr.f32.mxu0 0.0
          %4235 = vmatmul.mubr.f32.gmra.mrb[0].mxu0 %v3221
          %v4236 = vpop.f32.mrb[0].mxu0
          %v4237 = vadd.f32 %v4103, %v4236
          %v4238 = vpop.f32.mrb[0].mxu0
          %4239 = vmatprep.mubr.f32.mxu0 0.0
          %4240 = vmatmul.mubr.f32.gmra.mrb[0].mxu0 %v3222
          %v4241 = vpop.f32.mrb[0].mxu0
          %v4242 = vadd.f32 %v4103, %v4241
          %v4243 = vpop.f32.mrb[0].mxu0
          %4244 = vmatprep.mubr.f32.mxu0 0.0
          %4245 = vmatmul.mubr.f32.gmra.mrb[0].mxu0 %v3223
          %v4246 = vpop.f32.mrb[0].mxu0
          %v4247 = vadd.f32 %v4103, %v4246
          %v4248 = vpop.f32.mrb[0].mxu0
          %4249 = vmatprep.mubr.f32.mxu0 0.0
          %4250 = vmatmul.mubr.f32.gmra.mrb[0].mxu0 %v3224
          %v4251 = vpop.f32.mrb[0].mxu0
          %v4252 = vadd.f32 %v4103, %v4251
          %v4253 = vpop.f32.mrb[0].mxu0
          %4254 = vmatprep.mubr.f32.mxu0 0.0
          %4255 = vmatmul.mubr.f32.gmra.mrb[0].mxu0 %v3225
          %v4256 = vpop.f32.mrb[0].mxu0
          %v4257 = vadd.f32 %v4103, %v4256
          %v4258 = vpop.f32.mrb[0].mxu0
          %4259 = vmatprep.mubr.f32.mxu0 0.0
          %4260 = vmatmul.mubr.f32.gmra.mrb[0].mxu0 %v3226
          %v4261 = vpop.f32.mrb[0].mxu0
          %v4262 = vadd.f32 %v4103, %v4261
          %v4263 = vpop.f32.mrb[0].mxu0
          %4264 = vmatprep.mubr.f32.mxu0 0.0
          %4265 = vmatmul.mubr.f32.gmra.mrb[0].mxu0 %v3227
          %v4266 = vpop.f32.mrb[0].mxu0
          %v4267 = vadd.f32 %v4103, %v4266
          %v4268 = vpop.f32.mrb[0].mxu0
          %4269 = vmatprep.mubr.f32.mxu0 0.0
          %4270 = vmatmul.mubr.f32.gmra.mrb[0].mxu0 %v3228
          %v4271 = vpop.f32.mrb[0].mxu0
          %v4272 = vadd.f32 %v4103, %v4271
          %v4273 = vpop.f32.mrb[0].mxu0
          %4274 = vmatprep.mubr.f32.mxu0 0.0
          %4275 = vmatmul.mubr.f32.gmra.mrb[0].mxu0 %v3229
          %v4276 = vpop.f32.mrb[0].mxu0
          %v4277 = vadd.f32 %v4103, %v4276
          %v4278 = vpop.f32.mrb[0].mxu0
          %4279 = vmatprep.mubr.f32.mxu0 0.0
          %4280 = vmatmul.mubr.f32.gmra.mrb[0].mxu0 %v3230
          %v4281 = vpop.f32.mrb[0].mxu0
          %v4282 = vadd.f32 %v4103, %v4281
          %v4283 = vpop.f32.mrb[0].mxu0
          %4284 = vmatprep.mubr.f32.mxu0 0.0
          %4285 = vmatmul.mubr.f32.gmra.mrb[0].mxu0 %v3231
          %v4286 = vpop.f32.mrb[0].mxu0
          %v4287 = vadd.f32 %v4103, %v4286
          %v4288 = vpop.f32.mrb[0].mxu0
          %4289 = vmatprep.mubr.f32.mxu0 0.0
          %4290 = vmatmul.mubr.f32.gmra.mrb[0].mxu0 %v3232
          %v4291 = vpop.f32.mrb[0].mxu0
          %v4292 = vadd.f32 %v4103, %v4291
          %v4293 = vpop.f32.mrb[0].mxu0
          %4294 = vmatprep.mubr.f32.mxu0 0.0
          %4295 = vmatmul.mubr.f32.gmra.mrb[0].mxu0 %v3233
          %v4296 = vpop.f32.mrb[0].mxu0
          %v4297 = vadd.f32 %v4103, %v4296
          %v4298 = vpop.f32.mrb[0].mxu0
          %4299 = vmatprep.mubr.f32.mxu0 0.0
          %4300 = vmatmul.mubr.f32.gmra.mrb[0].mxu0 %v3234
          %v4301 = vpop.f32.mrb[0].mxu0
          %v4302 = vadd.f32 %v4103, %v4301
          %v4303 = vpop.f32.mrb[0].mxu0
          %4304 = vmatprep.mubr.f32.mxu0 0.0
          %4305 = vmatmul.mubr.f32.gmra.mrb[0].mxu0 %v3235
          %v4306 = vpop.f32.mrb[0].mxu0
          %v4307 = vadd.f32 %v4103, %v4306
          %v4308 = vpop.f32.mrb[0].mxu0
          %4309 = vmatprep.mubr.f32.mxu0 0.0
          %4310 = vmatmul.mubr.f32.gmra.mrb[0].mxu0 %v3236
          %v4311 = vpop.f32.mrb[0].mxu0
          %v4312 = vadd.f32 %v4103, %v4311
          %v4313 = vpop.f32.mrb[0].mxu0
          %4314 = vmatprep.mubr.f32.mxu0 0.0
          %4315 = vmatmul.mubr.f32.gmra.mrb[0].mxu0 %v3237
          %v4316 = vpop.f32.mrb[0].mxu0
          %v4317 = vadd.f32 %v4103, %v4316
          %v4318 = vpop.f32.mrb[0].mxu0
          %4319 = vmatprep.mubr.f32.mxu0 0.0
          %4320 = vmatmul.mubr.f32.gmra.mrb[0].mxu0 %v3238
          %v4321 = vpop.f32.mrb[0].mxu0
          %v4322 = vadd.f32 %v4103, %v4321
          %v4323 = vpop.f32.mrb[0].mxu0
          %4324 = vmatprep.mubr.f32.mxu0 0.0
          %4325 = vmatmul.mubr.f32.gmra.mrb[0].mxu0 %v3239
          %v4326 = vpop.f32.mrb[0].mxu0
          %v4327 = vadd.f32 %v4103, %v4326
          %v4328 = vpop.f32.mrb[0].mxu0
          %4329 = vdwg.mxu0
          %v4330 = vmax.f32 %v4172, 0.0
          %v4331 = vmax.f32 %v4177, 0.0
          %v4332 = vmax.f32 %v4182, 0.0
          %v4333 = vmax.f32 %v4187, 0.0
          %v4334 = vmax.f32 %v4192, 0.0
          %v4335 = vmax.f32 %v4197, 0.0
          %v4336 = vmax.f32 %v4202, 0.0
          %v4337 = vmax.f32 %v4207, 0.0
          %v4338 = vmax.f32 %v4212, 0.0
          %v4339 = vmax.f32 %v4217, 0.0
          %v4340 = vmax.f32 %v4222, 0.0
          %v4341 = vmax.f32 %v4227, 0.0
          %v4342 = vmax.f32 %v4232, 0.0
          %v4343 = vmax.f32 %v4237, 0.0
          %v4344 = vmax.f32 %v4242, 0.0
          %v4345 = vmax.f32 %v4247, 0.0
          %v4346 = vmax.f32 %v4252, 0.0
          %v4347 = vmax.f32 %v4257, 0.0
          %v4348 = vmax.f32 %v4262, 0.0
          %v4349 = vmax.f32 %v4267, 0.0
          %v4350 = vmax.f32 %v4272, 0.0
          %v4351 = vmax.f32 %v4277, 0.0
          %v4352 = vmax.f32 %v4282, 0.0
          %v4353 = vmax.f32 %v4287, 0.0
          %v4354 = vmax.f32 %v4292, 0.0
          %v4355 = vmax.f32 %v4297, 0.0
          %v4356 = vmax.f32 %v4302, 0.0
          %v4357 = vmax.f32 %v4307, 0.0
          %v4358 = vmax.f32 %v4312, 0.0
          %v4359 = vmax.f32 %v4317, 0.0
          %v4360 = vmax.f32 %v4322, 0.0
          %v4361 = vmax.f32 %v4327, 0.0
          %v4363 = vlaneseq
          %v4364 = vshrl.u32 %v4363, 7
          %v4365 = vsub.s32 0, %v4364
          %v4366 = vrot.slane %v4081, %v4365
          %4368 = vmatprep.subr.mxu0 0.0
          %4369 = vmatpush1.msra.mxu0 %v4065
          %4370 = vmatprep.subr.mxu0 0.0
          %4371 = vmatpush1.msra.mxu0 %v4066
          %4372 = vmatprep.subr.mxu0 0.0
          %4373 = vmatpush1.msra.mxu0 %v4067
          %4374 = vmatprep.subr.mxu0 0.0
          %4375 = vmatpush1.msra.mxu0 %v4068
          %4376 = vmatprep.subr.mxu0 0.0
          %4377 = vmatpush1.msra.mxu0 %v4069
          %4378 = vmatprep.subr.mxu0 0.0
          %4379 = vmatpush1.msra.mxu0 %v4070
          %4380 = vmatprep.subr.mxu0 0.0
          %4381 = vmatpush1.msra.mxu0 %v4071
          %4382 = vmatprep.subr.mxu0 0.0
          %4383 = vmatpush1.msra.mxu0 %v4072
          %4384 = vmatprep.subr.mxu0 0.0
          %4385 = vmatpush1.msra.mxu0 %v4073
          %4386 = vmatprep.subr.mxu0 0.0
          %4387 = vmatpush1.msra.mxu0 %v4074
          %4388 = vmatprep.subr.mxu0 0.0
          %4389 = vmatpush1.msra.mxu0 %v4075
          %4390 = vmatprep.subr.mxu0 0.0
          %4391 = vmatpush1.msra.mxu0 %v4076
          %4392 = vmatprep.subr.mxu0 0.0
          %4393 = vmatpush1.msra.mxu0 %v4077
          %4394 = vmatprep.subr.mxu0 0.0
          %4395 = vmatpush1.msra.mxu0 %v4078
          %4396 = vmatprep.subr.mxu0 0.0
          %4397 = vmatpush1.msra.mxu0 %v4079
          %4398 = vmatprep.subr.mxu0 0.0
          %4399 = vmatpush1.msra.mxu0 %v4080
          %4400 = vmatprep.subr.mxu0 0.0
          %4401 = vmatpush1.msra.mxu0 0.0
          %4402 = vmatprep.subr.mxu0 0.0
          %4403 = vmatpush1.msra.mxu0 0.0
          %4404 = vmatprep.subr.mxu0 0.0
          %4405 = vmatpush1.msra.mxu0 0.0
          %4406 = vmatprep.subr.mxu0 0.0
          %4407 = vmatpush1.msra.mxu0 0.0
          %4408 = vmatprep.subr.mxu0 0.0
          %4409 = vmatpush1.msra.mxu0 0.0
          %4410 = vmatprep.subr.mxu0 0.0
          %4411 = vmatpush1.msra.mxu0 0.0
          %4412 = vmatprep.subr.mxu0 0.0
          %4413 = vmatpush1.msra.mxu0 0.0
          %4414 = vmatprep.subr.mxu0 0.0
          %4415 = vmatpush1.msra.mxu0 0.0
          %4416 = vmatprep.subr.mxu0 0.0
          %4417 = vmatpush1.msra.mxu0 0.0
          %4418 = vmatprep.subr.mxu0 0.0
          %4419 = vmatpush1.msra.mxu0 0.0
          %4420 = vmatprep.subr.mxu0 0.0
          %4421 = vmatpush1.msra.mxu0 0.0
          %4422 = vmatprep.subr.mxu0 0.0
          %4423 = vmatpush1.msra.mxu0 0.0
          %4424 = vmatprep.subr.mxu0 0.0
          %4425 = vmatpush1.msra.mxu0 0.0
          %4426 = vmatprep.subr.mxu0 0.0
          %4427 = vmatpush1.msra.mxu0 0.0
          %4428 = vmatprep.subr.mxu0 0.0
          %4429 = vmatpush1.msra.mxu0 0.0
          %4430 = vmatprep.subr.mxu0 0.0
          %4431 = vmatpush1.msra.mxu0 0.0
          %4432 = vmatprep.mubr.f32.mxu0 0.0
          %4433 = vmatmul.mubr.f32.gmra.mrb[0].mxu0 %v4330
          %v4434 = vpop.f32.mrb[0].mxu0
          %v4435 = vadd.f32 %v4366, %v4434
          %v4436 = vpop.f32.mrb[0].mxu0
          %4437 = vmatprep.mubr.f32.mxu0 0.0
          %4438 = vmatmul.mubr.f32.gmra.mrb[0].mxu0 %v4331
          %v4439 = vpop.f32.mrb[0].mxu0
          %v4440 = vadd.f32 %v4366, %v4439
          %v4441 = vpop.f32.mrb[0].mxu0
          %4442 = vmatprep.mubr.f32.mxu0 0.0
          %4443 = vmatmul.mubr.f32.gmra.mrb[0].mxu0 %v4332
          %v4444 = vpop.f32.mrb[0].mxu0
          %v4445 = vadd.f32 %v4366, %v4444
          %v4446 = vpop.f32.mrb[0].mxu0
          %4447 = vmatprep.mubr.f32.mxu0 0.0
          %4448 = vmatmul.mubr.f32.gmra.mrb[0].mxu0 %v4333
          %v4449 = vpop.f32.mrb[0].mxu0
          %v4450 = vadd.f32 %v4366, %v4449
          %v4451 = vpop.f32.mrb[0].mxu0
          %4452 = vmatprep.mubr.f32.mxu0 0.0
          %4453 = vmatmul.mubr.f32.gmra.mrb[0].mxu0 %v4334
          %v4454 = vpop.f32.mrb[0].mxu0
          %v4455 = vadd.f32 %v4366, %v4454
          %v4456 = vpop.f32.mrb[0].mxu0
          %4457 = vmatprep.mubr.f32.mxu0 0.0
          %4458 = vmatmul.mubr.f32.gmra.mrb[0].mxu0 %v4335
          %v4459 = vpop.f32.mrb[0].mxu0
          %v4460 = vadd.f32 %v4366, %v4459
          %v4461 = vpop.f32.mrb[0].mxu0
          %4462 = vmatprep.mubr.f32.mxu0 0.0
          %4463 = vmatmul.mubr.f32.gmra.mrb[0].mxu0 %v4336
          %v4464 = vpop.f32.mrb[0].mxu0
          %v4465 = vadd.f32 %v4366, %v4464
          %v4466 = vpop.f32.mrb[0].mxu0
          %4467 = vmatprep.mubr.f32.mxu0 0.0
          %4468 = vmatmul.mubr.f32.gmra.mrb[0].mxu0 %v4337
          %v4469 = vpop.f32.mrb[0].mxu0
          %v4470 = vadd.f32 %v4366, %v4469
          %v4471 = vpop.f32.mrb[0].mxu0
          %4472 = vmatprep.mubr.f32.mxu0 0.0
          %4473 = vmatmul.mubr.f32.gmra.mrb[0].mxu0 %v4338
          %v4474 = vpop.f32.mrb[0].mxu0
          %v4475 = vadd.f32 %v4366, %v4474
          %v4476 = vpop.f32.mrb[0].mxu0
          %4477 = vmatprep.mubr.f32.mxu0 0.0
          %4478 = vmatmul.mubr.f32.gmra.mrb[0].mxu0 %v4339
          %v4479 = vpop.f32.mrb[0].mxu0
          %v4480 = vadd.f32 %v4366, %v4479
          %v4481 = vpop.f32.mrb[0].mxu0
          %4482 = vmatprep.mubr.f32.mxu0 0.0
          %4483 = vmatmul.mubr.f32.gmra.mrb[0].mxu0 %v4340
          %v4484 = vpop.f32.mrb[0].mxu0
          %v4485 = vadd.f32 %v4366, %v4484
          %v4486 = vpop.f32.mrb[0].mxu0
          %4487 = vmatprep.mubr.f32.mxu0 0.0
          %4488 = vmatmul.mubr.f32.gmra.mrb[0].mxu0 %v4341
          %v4489 = vpop.f32.mrb[0].mxu0
          %v4490 = vadd.f32 %v4366, %v4489
          %v4491 = vpop.f32.mrb[0].mxu0
          %4492 = vmatprep.mubr.f32.mxu0 0.0
          %4493 = vmatmul.mubr.f32.gmra.mrb[0].mxu0 %v4342
          %v4494 = vpop.f32.mrb[0].mxu0
          %v4495 = vadd.f32 %v4366, %v4494
          %v4496 = vpop.f32.mrb[0].mxu0
          %4497 = vmatprep.mubr.f32.mxu0 0.0
          %4498 = vmatmul.mubr.f32.gmra.mrb[0].mxu0 %v4343
          %v4499 = vpop.f32.mrb[0].mxu0
          %v4500 = vadd.f32 %v4366, %v4499
          %v4501 = vpop.f32.mrb[0].mxu0
          %4502 = vmatprep.mubr.f32.mxu0 0.0
          %4503 = vmatmul.mubr.f32.gmra.mrb[0].mxu0 %v4344
          %v4504 = vpop.f32.mrb[0].mxu0
          %v4505 = vadd.f32 %v4366, %v4504
          %v4506 = vpop.f32.mrb[0].mxu0
          %4507 = vmatprep.mubr.f32.mxu0 0.0
          %4508 = vmatmul.mubr.f32.gmra.mrb[0].mxu0 %v4345
          %v4509 = vpop.f32.mrb[0].mxu0
          %v4510 = vadd.f32 %v4366, %v4509
          %v4511 = vpop.f32.mrb[0].mxu0
          %4512 = vmatprep.mubr.f32.mxu0 0.0
          %4513 = vmatmul.mubr.f32.gmra.mrb[0].mxu0 %v4346
          %v4514 = vpop.f32.mrb[0].mxu0
          %v4515 = vadd.f32 %v4366, %v4514
          %v4516 = vpop.f32.mrb[0].mxu0
          %4517 = vmatprep.mubr.f32.mxu0 0.0
          %4518 = vmatmul.mubr.f32.gmra.mrb[0].mxu0 %v4347
          %v4519 = vpop.f32.mrb[0].mxu0
          %v4520 = vadd.f32 %v4366, %v4519
          %v4521 = vpop.f32.mrb[0].mxu0
          %4522 = vmatprep.mubr.f32.mxu0 0.0
          %4523 = vmatmul.mubr.f32.gmra.mrb[0].mxu0 %v4348
          %v4524 = vpop.f32.mrb[0].mxu0
          %v4525 = vadd.f32 %v4366, %v4524
          %v4526 = vpop.f32.mrb[0].mxu0
          %4527 = vmatprep.mubr.f32.mxu0 0.0
          %4528 = vmatmul.mubr.f32.gmra.mrb[0].mxu0 %v4349
          %v4529 = vpop.f32.mrb[0].mxu0
          %v4530 = vadd.f32 %v4366, %v4529
          %v4531 = vpop.f32.mrb[0].mxu0
          %4532 = vmatprep.mubr.f32.mxu0 0.0
          %4533 = vmatmul.mubr.f32.gmra.mrb[0].mxu0 %v4350
          %v4534 = vpop.f32.mrb[0].mxu0
          %v4535 = vadd.f32 %v4366, %v4534
          %v4536 = vpop.f32.mrb[0].mxu0
          %4537 = vmatprep.mubr.f32.mxu0 0.0
          %4538 = vmatmul.mubr.f32.gmra.mrb[0].mxu0 %v4351
          %v4539 = vpop.f32.mrb[0].mxu0
          %v4540 = vadd.f32 %v4366, %v4539
          %v4541 = vpop.f32.mrb[0].mxu0
          %4542 = vmatprep.mubr.f32.mxu0 0.0
          %4543 = vmatmul.mubr.f32.gmra.mrb[0].mxu0 %v4352
          %v4544 = vpop.f32.mrb[0].mxu0
          %v4545 = vadd.f32 %v4366, %v4544
          %v4546 = vpop.f32.mrb[0].mxu0
          %4547 = vmatprep.mubr.f32.mxu0 0.0
          %4548 = vmatmul.mubr.f32.gmra.mrb[0].mxu0 %v4353
          %v4549 = vpop.f32.mrb[0].mxu0
          %v4550 = vadd.f32 %v4366, %v4549
          %v4551 = vpop.f32.mrb[0].mxu0
          %4552 = vmatprep.mubr.f32.mxu0 0.0
          %4553 = vmatmul.mubr.f32.gmra.mrb[0].mxu0 %v4354
          %v4554 = vpop.f32.mrb[0].mxu0
          %v4555 = vadd.f32 %v4366, %v4554
          %v4556 = vpop.f32.mrb[0].mxu0
          %4557 = vmatprep.mubr.f32.mxu0 0.0
          %4558 = vmatmul.mubr.f32.gmra.mrb[0].mxu0 %v4355
          %v4559 = vpop.f32.mrb[0].mxu0
          %v4560 = vadd.f32 %v4366, %v4559
          %v4561 = vpop.f32.mrb[0].mxu0
          %4562 = vmatprep.mubr.f32.mxu0 0.0
          %4563 = vmatmul.mubr.f32.gmra.mrb[0].mxu0 %v4356
          %v4564 = vpop.f32.mrb[0].mxu0
          %v4565 = vadd.f32 %v4366, %v4564
          %v4566 = vpop.f32.mrb[0].mxu0
          %4567 = vmatprep.mubr.f32.mxu0 0.0
          %4568 = vmatmul.mubr.f32.gmra.mrb[0].mxu0 %v4357
          %v4569 = vpop.f32.mrb[0].mxu0
          %v4570 = vadd.f32 %v4366, %v4569
          %v4571 = vpop.f32.mrb[0].mxu0
          %4572 = vmatprep.mubr.f32.mxu0 0.0
          %4573 = vmatmul.mubr.f32.gmra.mrb[0].mxu0 %v4358
          %v4574 = vpop.f32.mrb[0].mxu0
          %v4575 = vadd.f32 %v4366, %v4574
          %v4576 = vpop.f32.mrb[0].mxu0
          %4577 = vmatprep.mubr.f32.mxu0 0.0
          %4578 = vmatmul.mubr.f32.gmra.mrb[0].mxu0 %v4359
          %v4579 = vpop.f32.mrb[0].mxu0
          %v4580 = vadd.f32 %v4366, %v4579
          %v4581 = vpop.f32.mrb[0].mxu0
          %4582 = vmatprep.mubr.f32.mxu0 0.0
          %4583 = vmatmul.mubr.f32.gmra.mrb[0].mxu0 %v4360
          %v4584 = vpop.f32.mrb[0].mxu0
          %v4585 = vadd.f32 %v4366, %v4584
          %v4586 = vpop.f32.mrb[0].mxu0
          %4587 = vmatprep.mubr.f32.mxu0 0.0
          %4588 = vmatmul.mubr.f32.gmra.mrb[0].mxu0 %v4361
          %v4589 = vpop.f32.mrb[0].mxu0
          %v4590 = vadd.f32 %v4366, %v4589
          %v4591 = vpop.f32.mrb[0].mxu0
          %4592 = vdwg.mxu0
          %v4593 = vmax.f32 %v4435, 0.0
          %v4594 = vmax.f32 %v4440, 0.0
          %v4595 = vmax.f32 %v4445, 0.0
          %v4596 = vmax.f32 %v4450, 0.0
          %v4597 = vmax.f32 %v4455, 0.0
          %v4598 = vmax.f32 %v4460, 0.0
          %v4599 = vmax.f32 %v4465, 0.0
          %v4600 = vmax.f32 %v4470, 0.0
          %v4601 = vmax.f32 %v4475, 0.0
          %v4602 = vmax.f32 %v4480, 0.0
          %v4603 = vmax.f32 %v4485, 0.0
          %v4604 = vmax.f32 %v4490, 0.0
          %v4605 = vmax.f32 %v4495, 0.0
          %v4606 = vmax.f32 %v4500, 0.0
          %v4607 = vmax.f32 %v4505, 0.0
          %v4608 = vmax.f32 %v4510, 0.0
          %v4609 = vmax.f32 %v4515, 0.0
          %v4610 = vmax.f32 %v4520, 0.0
          %v4611 = vmax.f32 %v4525, 0.0
          %v4612 = vmax.f32 %v4530, 0.0
          %v4613 = vmax.f32 %v4535, 0.0
          %v4614 = vmax.f32 %v4540, 0.0
          %v4615 = vmax.f32 %v4545, 0.0
          %v4616 = vmax.f32 %v4550, 0.0
          %v4617 = vmax.f32 %v4555, 0.0
          %v4618 = vmax.f32 %v4560, 0.0
          %v4619 = vmax.f32 %v4565, 0.0
          %v4620 = vmax.f32 %v4570, 0.0
          %v4621 = vmax.f32 %v4575, 0.0
          %v4622 = vmax.f32 %v4580, 0.0
          %v4623 = vmax.f32 %v4585, 0.0
          %v4624 = vmax.f32 %v4590, 0.0
          %v4626 = vlaneseq
          %v4627 = vshrl.u32 %v4626, 7
          %v4628 = vsub.s32 0, %v4627
          %v4629 = vrot.slane %v4098, %v4628
          %4631 = vmatprep.subr.mxu0 0.0
          %4632 = vmatpush1.msra.mxu0 %v4082
          %4633 = vmatprep.subr.mxu0 0.0
          %4634 = vmatpush1.msra.mxu0 %v4083
          %4635 = vmatprep.subr.mxu0 0.0
          %4636 = vmatpush1.msra.mxu0 %v4084
          %4637 = vmatprep.subr.mxu0 0.0
          %4638 = vmatpush1.msra.mxu0 %v4085
          %4639 = vmatprep.subr.mxu0 0.0
          %4640 = vmatpush1.msra.mxu0 %v4086
          %4641 = vmatprep.subr.mxu0 0.0
          %4642 = vmatpush1.msra.mxu0 %v4087
          %4643 = vmatprep.subr.mxu0 0.0
          %4644 = vmatpush1.msra.mxu0 %v4088
          %4645 = vmatprep.subr.mxu0 0.0
          %4646 = vmatpush1.msra.mxu0 %v4089
          %4647 = vmatprep.subr.mxu0 0.0
          %4648 = vmatpush1.msra.mxu0 %v4090
          %4649 = vmatprep.subr.mxu0 0.0
          %4650 = vmatpush1.msra.mxu0 %v4091
          %4651 = vmatprep.subr.mxu0 0.0
          %4652 = vmatpush1.msra.mxu0 %v4092
          %4653 = vmatprep.subr.mxu0 0.0
          %4654 = vmatpush1.msra.mxu0 %v4093
          %4655 = vmatprep.subr.mxu0 0.0
          %4656 = vmatpush1.msra.mxu0 %v4094
          %4657 = vmatprep.subr.mxu0 0.0
          %4658 = vmatpush1.msra.mxu0 %v4095
          %4659 = vmatprep.subr.mxu0 0.0
          %4660 = vmatpush1.msra.mxu0 %v4096
          %4661 = vmatprep.subr.mxu0 0.0
          %4662 = vmatpush1.msra.mxu0 %v4097
          %4663 = vmatprep.subr.mxu0 0.0
          %4664 = vmatpush1.msra.mxu0 0.0
          %4665 = vmatprep.subr.mxu0 0.0
          %4666 = vmatpush1.msra.mxu0 0.0
          %4667 = vmatprep.subr.mxu0 0.0
          %4668 = vmatpush1.msra.mxu0 0.0
          %4669 = vmatprep.subr.mxu0 0.0
          %4670 = vmatpush1.msra.mxu0 0.0
          %4671 = vmatprep.subr.mxu0 0.0
          %4672 = vmatpush1.msra.mxu0 0.0
          %4673 = vmatprep.subr.mxu0 0.0
          %4674 = vmatpush1.msra.mxu0 0.0
          %4675 = vmatprep.subr.mxu0 0.0
          %4676 = vmatpush1.msra.mxu0 0.0
          %4677 = vmatprep.subr.mxu0 0.0
          %4678 = vmatpush1.msra.mxu0 0.0
          %4679 = vmatprep.subr.mxu0 0.0
          %4680 = vmatpush1.msra.mxu0 0.0
          %4681 = vmatprep.subr.mxu0 0.0
          %4682 = vmatpush1.msra.mxu0 0.0
          %4683 = vmatprep.subr.mxu0 0.0
          %4684 = vmatpush1.msra.mxu0 0.0
          %4685 = vmatprep.subr.mxu0 0.0
          %4686 = vmatpush1.msra.mxu0 0.0
          %4687 = vmatprep.subr.mxu0 0.0
          %4688 = vmatpush1.msra.mxu0 0.0
          %4689 = vmatprep.subr.mxu0 0.0
          %4690 = vmatpush1.msra.mxu0 0.0
          %4691 = vmatprep.subr.mxu0 0.0
          %4692 = vmatpush1.msra.mxu0 0.0
          %4693 = vmatprep.subr.mxu0 0.0
          %4694 = vmatpush1.msra.mxu0 0.0
          %4695 = vmatprep.mubr.f32.mxu0 0.0
          %4696 = vmatmul.mubr.f32.gmra.mrb[0].mxu0 %v4593
          %v4697 = vpop.f32.mrb[0].mxu0
          %v4698 = vadd.f32 %v4629, %v4697
          %v4699 = vpop.f32.mrb[0].mxu0
          %4700 = vmatprep.mubr.f32.mxu0 0.0
          %4701 = vmatmul.mubr.f32.gmra.mrb[0].mxu0 %v4594
          %v4702 = vpop.f32.mrb[0].mxu0
          %v4703 = vadd.f32 %v4629, %v4702
          %v4704 = vpop.f32.mrb[0].mxu0
          %4705 = vmatprep.mubr.f32.mxu0 0.0
          %4706 = vmatmul.mubr.f32.gmra.mrb[0].mxu0 %v4595
          %v4707 = vpop.f32.mrb[0].mxu0
          %v4708 = vadd.f32 %v4629, %v4707
          %v4709 = vpop.f32.mrb[0].mxu0
          %4710 = vmatprep.mubr.f32.mxu0 0.0
          %4711 = vmatmul.mubr.f32.gmra.mrb[0].mxu0 %v4596
          %v4712 = vpop.f32.mrb[0].mxu0
          %v4713 = vadd.f32 %v4629, %v4712
          %v4714 = vpop.f32.mrb[0].mxu0
          %4715 = vmatprep.mubr.f32.mxu0 0.0
          %4716 = vmatmul.mubr.f32.gmra.mrb[0].mxu0 %v4597
          %v4717 = vpop.f32.mrb[0].mxu0
          %v4718 = vadd.f32 %v4629, %v4717
          %v4719 = vpop.f32.mrb[0].mxu0
          %4720 = vmatprep.mubr.f32.mxu0 0.0
          %4721 = vmatmul.mubr.f32.gmra.mrb[0].mxu0 %v4598
          %v4722 = vpop.f32.mrb[0].mxu0
          %v4723 = vadd.f32 %v4629, %v4722
          %v4724 = vpop.f32.mrb[0].mxu0
          %4725 = vmatprep.mubr.f32.mxu0 0.0
          %4726 = vmatmul.mubr.f32.gmra.mrb[0].mxu0 %v4599
          %v4727 = vpop.f32.mrb[0].mxu0
          %v4728 = vadd.f32 %v4629, %v4727
          %v4729 = vpop.f32.mrb[0].mxu0
          %4730 = vmatprep.mubr.f32.mxu0 0.0
          %4731 = vmatmul.mubr.f32.gmra.mrb[0].mxu0 %v4600
          %v4732 = vpop.f32.mrb[0].mxu0
          %v4733 = vadd.f32 %v4629, %v4732
          %v4734 = vpop.f32.mrb[0].mxu0
          %4735 = vmatprep.mubr.f32.mxu0 0.0
          %4736 = vmatmul.mubr.f32.gmra.mrb[0].mxu0 %v4601
          %v4737 = vpop.f32.mrb[0].mxu0
          %v4738 = vadd.f32 %v4629, %v4737
          %v4739 = vpop.f32.mrb[0].mxu0
          %4740 = vmatprep.mubr.f32.mxu0 0.0
          %4741 = vmatmul.mubr.f32.gmra.mrb[0].mxu0 %v4602
          %v4742 = vpop.f32.mrb[0].mxu0
          %v4743 = vadd.f32 %v4629, %v4742
          %v4744 = vpop.f32.mrb[0].mxu0
          %4745 = vmatprep.mubr.f32.mxu0 0.0
          %4746 = vmatmul.mubr.f32.gmra.mrb[0].mxu0 %v4603
          %v4747 = vpop.f32.mrb[0].mxu0
          %v4748 = vadd.f32 %v4629, %v4747
          %v4749 = vpop.f32.mrb[0].mxu0
          %4750 = vmatprep.mubr.f32.mxu0 0.0
          %4751 = vmatmul.mubr.f32.gmra.mrb[0].mxu0 %v4604
          %v4752 = vpop.f32.mrb[0].mxu0
          %v4753 = vadd.f32 %v4629, %v4752
          %v4754 = vpop.f32.mrb[0].mxu0
          %4755 = vmatprep.mubr.f32.mxu0 0.0
          %4756 = vmatmul.mubr.f32.gmra.mrb[0].mxu0 %v4605
          %v4757 = vpop.f32.mrb[0].mxu0
          %v4758 = vadd.f32 %v4629, %v4757
          %v4759 = vpop.f32.mrb[0].mxu0
          %4760 = vmatprep.mubr.f32.mxu0 0.0
          %4761 = vmatmul.mubr.f32.gmra.mrb[0].mxu0 %v4606
          %v4762 = vpop.f32.mrb[0].mxu0
          %v4763 = vadd.f32 %v4629, %v4762
          %v4764 = vpop.f32.mrb[0].mxu0
          %4765 = vmatprep.mubr.f32.mxu0 0.0
          %4766 = vmatmul.mubr.f32.gmra.mrb[0].mxu0 %v4607
          %v4767 = vpop.f32.mrb[0].mxu0
          %v4768 = vadd.f32 %v4629, %v4767
          %v4769 = vpop.f32.mrb[0].mxu0
          %4770 = vmatprep.mubr.f32.mxu0 0.0
          %4771 = vmatmul.mubr.f32.gmra.mrb[0].mxu0 %v4608
          %v4772 = vpop.f32.mrb[0].mxu0
          %v4773 = vadd.f32 %v4629, %v4772
          %v4774 = vpop.f32.mrb[0].mxu0
          %4775 = vmatprep.mubr.f32.mxu0 0.0
          %4776 = vmatmul.mubr.f32.gmra.mrb[0].mxu0 %v4609
          %v4777 = vpop.f32.mrb[0].mxu0
          %v4778 = vadd.f32 %v4629, %v4777
          %v4779 = vpop.f32.mrb[0].mxu0
          %4780 = vmatprep.mubr.f32.mxu0 0.0
          %4781 = vmatmul.mubr.f32.gmra.mrb[0].mxu0 %v4610
          %v4782 = vpop.f32.mrb[0].mxu0
          %v4783 = vadd.f32 %v4629, %v4782
          %v4784 = vpop.f32.mrb[0].mxu0
          %4785 = vmatprep.mubr.f32.mxu0 0.0
          %4786 = vmatmul.mubr.f32.gmra.mrb[0].mxu0 %v4611
          %v4787 = vpop.f32.mrb[0].mxu0
          %v4788 = vadd.f32 %v4629, %v4787
          %v4789 = vpop.f32.mrb[0].mxu0
          %4790 = vmatprep.mubr.f32.mxu0 0.0
          %4791 = vmatmul.mubr.f32.gmra.mrb[0].mxu0 %v4612
          %v4792 = vpop.f32.mrb[0].mxu0
          %v4793 = vadd.f32 %v4629, %v4792
          %v4794 = vpop.f32.mrb[0].mxu0
          %4795 = vmatprep.mubr.f32.mxu0 0.0
          %4796 = vmatmul.mubr.f32.gmra.mrb[0].mxu0 %v4613
          %v4797 = vpop.f32.mrb[0].mxu0
          %v4798 = vadd.f32 %v4629, %v4797
          %v4799 = vpop.f32.mrb[0].mxu0
          %4800 = vmatprep.mubr.f32.mxu0 0.0
          %4801 = vmatmul.mubr.f32.gmra.mrb[0].mxu0 %v4614
          %v4802 = vpop.f32.mrb[0].mxu0
          %v4803 = vadd.f32 %v4629, %v4802
          %v4804 = vpop.f32.mrb[0].mxu0
          %4805 = vmatprep.mubr.f32.mxu0 0.0
          %4806 = vmatmul.mubr.f32.gmra.mrb[0].mxu0 %v4615
          %v4807 = vpop.f32.mrb[0].mxu0
          %v4808 = vadd.f32 %v4629, %v4807
          %v4809 = vpop.f32.mrb[0].mxu0
          %4810 = vmatprep.mubr.f32.mxu0 0.0
          %4811 = vmatmul.mubr.f32.gmra.mrb[0].mxu0 %v4616
          %v4812 = vpop.f32.mrb[0].mxu0
          %v4813 = vadd.f32 %v4629, %v4812
          %v4814 = vpop.f32.mrb[0].mxu0
          %4815 = vmatprep.mubr.f32.mxu0 0.0
          %4816 = vmatmul.mubr.f32.gmra.mrb[0].mxu0 %v4617
          %v4817 = vpop.f32.mrb[0].mxu0
          %v4818 = vadd.f32 %v4629, %v4817
          %v4819 = vpop.f32.mrb[0].mxu0
          %4820 = vmatprep.mubr.f32.mxu0 0.0
          %4821 = vmatmul.mubr.f32.gmra.mrb[0].mxu0 %v4618
          %v4822 = vpop.f32.mrb[0].mxu0
          %v4823 = vadd.f32 %v4629, %v4822
          %v4824 = vpop.f32.mrb[0].mxu0
          %4825 = vmatprep.mubr.f32.mxu0 0.0
          %4826 = vmatmul.mubr.f32.gmra.mrb[0].mxu0 %v4619
          %v4827 = vpop.f32.mrb[0].mxu0
          %v4828 = vadd.f32 %v4629, %v4827
          %v4829 = vpop.f32.mrb[0].mxu0
          %4830 = vmatprep.mubr.f32.mxu0 0.0
          %4831 = vmatmul.mubr.f32.gmra.mrb[0].mxu0 %v4620
          %v4832 = vpop.f32.mrb[0].mxu0
          %v4833 = vadd.f32 %v4629, %v4832
          %v4834 = vpop.f32.mrb[0].mxu0
          %4835 = vmatprep.mubr.f32.mxu0 0.0
          %4836 = vmatmul.mubr.f32.gmra.mrb[0].mxu0 %v4621
          %v4837 = vpop.f32.mrb[0].mxu0
          %v4838 = vadd.f32 %v4629, %v4837
          %v4839 = vpop.f32.mrb[0].mxu0
          %4840 = vmatprep.mubr.f32.mxu0 0.0
          %4841 = vmatmul.mubr.f32.gmra.mrb[0].mxu0 %v4622
          %v4842 = vpop.f32.mrb[0].mxu0
          %v4843 = vadd.f32 %v4629, %v4842
          %v4844 = vpop.f32.mrb[0].mxu0
          %4845 = vmatprep.mubr.f32.mxu0 0.0
          %4846 = vmatmul.mubr.f32.gmra.mrb[0].mxu0 %v4623
          %v4847 = vpop.f32.mrb[0].mxu0
          %v4848 = vadd.f32 %v4629, %v4847
          %v4849 = vpop.f32.mrb[0].mxu0
          %4850 = vmatprep.mubr.f32.mxu0 0.0
          %4851 = vmatmul.mubr.f32.gmra.mrb[0].mxu0 %v4624
          %v4852 = vpop.f32.mrb[0].mxu0
          %v4853 = vadd.f32 %v4629, %v4852
          %v4854 = vpop.f32.mrb[0].mxu0
          %4855 = vdwg.mxu0
          %v4856 = vld [vmem:[%s928] sm:$0xff]
          %v4857 = vld [vmem:[%s928 + $0x8] sm:$0xff]
          %v4858 = vld [vmem:[%s928 + $0x10] sm:$0xff]
          %v4859 = vld [vmem:[%s928 + $0x18] sm:$0xff]
          %v4860 = vld [vmem:[%s928 + $0x20] sm:$0xff]
          %v4861 = vld [vmem:[%s928 + $0x28] sm:$0xff]
          %v4862 = vld [vmem:[%s928 + $0x30] sm:$0xff]
          %v4863 = vld [vmem:[%s928 + $0x38] sm:$0xff]
          %v4864 = vld [vmem:[%s928 + $0x40] sm:$0xff]
          %v4865 = vld [vmem:[%s928 + $0x48] sm:$0xff]
          %v4866 = vld [vmem:[%s928 + $0x50] sm:$0xff]
          %v4867 = vld [vmem:[%s928 + $0x58] sm:$0xff]
          %v4868 = vld [vmem:[%s928 + $0x60] sm:$0xff]
          %v4869 = vld [vmem:[%s928 + $0x68] sm:$0xff]
          %v4870 = vld [vmem:[%s928 + $0x70] sm:$0xff]
          %v4871 = vld [vmem:[%s928 + $0x78] sm:$0xff]
          %v4872 = vld [vmem:[%s928 + $0x80] sm:$0xff]
          %v4873 = vld [vmem:[%s928 + $0x88] sm:$0xff]
          %v4874 = vld [vmem:[%s928 + $0x90] sm:$0xff]
          %v4875 = vld [vmem:[%s928 + $0x98] sm:$0xff]
          %v4876 = vld [vmem:[%s928 + $0xa0] sm:$0xff]
          %v4877 = vld [vmem:[%s928 + $0xa8] sm:$0xff]
          %v4878 = vld [vmem:[%s928 + $0xb0] sm:$0xff]
          %v4879 = vld [vmem:[%s928 + $0xb8] sm:$0xff]
          %v4880 = vld [vmem:[%s928 + $0xc0] sm:$0xff]
          %v4881 = vld [vmem:[%s928 + $0xc8] sm:$0xff]
          %v4882 = vld [vmem:[%s928 + $0xd0] sm:$0xff]
          %v4883 = vld [vmem:[%s928 + $0xd8] sm:$0xff]
          %v4884 = vld [vmem:[%s928 + $0xe0] sm:$0xff]
          %v4885 = vld [vmem:[%s928 + $0xe8] sm:$0xff]
          %v4886 = vld [vmem:[%s928 + $0xf0] sm:$0xff]
          %v4887 = vld [vmem:[%s928 + $0xf8] sm:$0xff]
          %v4888 = vld [vmem:[#allocation22] sm:$0xff]
          %v4889 = vld [vmem:[#allocation22 + $0x8] sm:$0xff]
          %v4890 = vld [vmem:[#allocation22 + $0x10] sm:$0xff]
          %v4891 = vld [vmem:[#allocation22 + $0x18] sm:$0xff]
          %v4892 = vld [vmem:[#allocation22 + $0x20] sm:$0xff]
          %v4893 = vld [vmem:[#allocation22 + $0x28] sm:$0xff]
          %v4894 = vld [vmem:[#allocation22 + $0x30] sm:$0xff]
          %v4895 = vld [vmem:[#allocation22 + $0x38] sm:$0xff]
          %v4896 = vld [vmem:[#allocation22 + $0x40] sm:$0xff]
          %v4897 = vld [vmem:[#allocation22 + $0x48] sm:$0xff]
          %v4898 = vld [vmem:[#allocation22 + $0x50] sm:$0xff]
          %v4899 = vld [vmem:[#allocation22 + $0x58] sm:$0xff]
          %v4900 = vld [vmem:[#allocation22 + $0x60] sm:$0xff]
          %v4901 = vld [vmem:[#allocation22 + $0x68] sm:$0xff]
          %v4902 = vld [vmem:[#allocation22 + $0x70] sm:$0xff]
          %v4903 = vld [vmem:[#allocation22 + $0x78] sm:$0xff]
          %v4904 = vld [vmem:[%s18] sm:$0x1]
          %v4906 = vlaneseq
          %v4907 = vshrl.u32 %v4906, 7
          %v4908 = vsub.s32 0, %v4907
          %v4909 = vrot.slane %v4904, %v4908
          %4911 = vmatprep.subr.mxu0 0.0
          %4912 = vmatpush1.msra.mxu0 %v4888
          %4913 = vmatprep.subr.mxu0 0.0
          %4914 = vmatpush1.msra.mxu0 %v4889
          %4915 = vmatprep.subr.mxu0 0.0
          %4916 = vmatpush1.msra.mxu0 %v4890
          %4917 = vmatprep.subr.mxu0 0.0
          %4918 = vmatpush1.msra.mxu0 %v4891
          %4919 = vmatprep.subr.mxu0 0.0
          %4920 = vmatpush1.msra.mxu0 %v4892
          %4921 = vmatprep.subr.mxu0 0.0
          %4922 = vmatpush1.msra.mxu0 %v4893
          %4923 = vmatprep.subr.mxu0 0.0
          %4924 = vmatpush1.msra.mxu0 %v4894
          %4925 = vmatprep.subr.mxu0 0.0
          %4926 = vmatpush1.msra.mxu0 %v4895
          %4927 = vmatprep.subr.mxu0 0.0
          %4928 = vmatpush1.msra.mxu0 %v4896
          %4929 = vmatprep.subr.mxu0 0.0
          %4930 = vmatpush1.msra.mxu0 %v4897
          %4931 = vmatprep.subr.mxu0 0.0
          %4932 = vmatpush1.msra.mxu0 %v4898
          %4933 = vmatprep.subr.mxu0 0.0
          %4934 = vmatpush1.msra.mxu0 %v4899
          %4935 = vmatprep.subr.mxu0 0.0
          %4936 = vmatpush1.msra.mxu0 %v4900
          %4937 = vmatprep.subr.mxu0 0.0
          %4938 = vmatpush1.msra.mxu0 %v4901
          %4939 = vmatprep.subr.mxu0 0.0
          %4940 = vmatpush1.msra.mxu0 %v4902
          %4941 = vmatprep.subr.mxu0 0.0
          %4942 = vmatpush1.msra.mxu0 %v4903
          %4943 = vmatprep.subr.mxu0 0.0
          %4944 = vmatpush1.msra.mxu0 0.0
          %4945 = vmatprep.subr.mxu0 0.0
          %4946 = vmatpush1.msra.mxu0 0.0
          %4947 = vmatprep.subr.mxu0 0.0
          %4948 = vmatpush1.msra.mxu0 0.0
          %4949 = vmatprep.subr.mxu0 0.0
          %4950 = vmatpush1.msra.mxu0 0.0
          %4951 = vmatprep.subr.mxu0 0.0
          %4952 = vmatpush1.msra.mxu0 0.0
          %4953 = vmatprep.subr.mxu0 0.0
          %4954 = vmatpush1.msra.mxu0 0.0
          %4955 = vmatprep.subr.mxu0 0.0
          %4956 = vmatpush1.msra.mxu0 0.0
          %4957 = vmatprep.subr.mxu0 0.0
          %4958 = vmatpush1.msra.mxu0 0.0
          %4959 = vmatprep.subr.mxu0 0.0
          %4960 = vmatpush1.msra.mxu0 0.0
          %4961 = vmatprep.subr.mxu0 0.0
          %4962 = vmatpush1.msra.mxu0 0.0
          %4963 = vmatprep.subr.mxu0 0.0
          %4964 = vmatpush1.msra.mxu0 0.0
          %4965 = vmatprep.subr.mxu0 0.0
          %4966 = vmatpush1.msra.mxu0 0.0
          %4967 = vmatprep.subr.mxu0 0.0
          %4968 = vmatpush1.msra.mxu0 0.0
          %4969 = vmatprep.subr.mxu0 0.0
          %4970 = vmatpush1.msra.mxu0 0.0
          %4971 = vmatprep.subr.mxu0 0.0
          %4972 = vmatpush1.msra.mxu0 0.0
          %4973 = vmatprep.subr.mxu0 0.0
          %4974 = vmatpush1.msra.mxu0 0.0
          %4975 = vmatprep.mubr.f32.mxu0 0.0
          %4976 = vmatmul.mubr.f32.gmra.mrb[0].mxu0 %v4856
          %v4977 = vpop.f32.mrb[0].mxu0
          %v4978 = vadd.f32 %v4909, %v4977
          %v4979 = vpop.f32.mrb[0].mxu0
          %4980 = vmatprep.mubr.f32.mxu0 0.0
          %4981 = vmatmul.mubr.f32.gmra.mrb[0].mxu0 %v4857
          %v4982 = vpop.f32.mrb[0].mxu0
          %v4983 = vadd.f32 %v4909, %v4982
          %v4984 = vpop.f32.mrb[0].mxu0
          %4985 = vmatprep.mubr.f32.mxu0 0.0
          %4986 = vmatmul.mubr.f32.gmra.mrb[0].mxu0 %v4858
          %v4987 = vpop.f32.mrb[0].mxu0
          %v4988 = vadd.f32 %v4909, %v4987
          %v4989 = vpop.f32.mrb[0].mxu0
          %4990 = vmatprep.mubr.f32.mxu0 0.0
          %4991 = vmatmul.mubr.f32.gmra.mrb[0].mxu0 %v4859
          %v4992 = vpop.f32.mrb[0].mxu0
          %v4993 = vadd.f32 %v4909, %v4992
          %v4994 = vpop.f32.mrb[0].mxu0
          %4995 = vmatprep.mubr.f32.mxu0 0.0
          %4996 = vmatmul.mubr.f32.gmra.mrb[0].mxu0 %v4860
          %v4997 = vpop.f32.mrb[0].mxu0
          %v4998 = vadd.f32 %v4909, %v4997
          %v4999 = vpop.f32.mrb[0].mxu0
          %5000 = vmatprep.mubr.f32.mxu0 0.0
          %5001 = vmatmul.mubr.f32.gmra.mrb[0].mxu0 %v4861
          %v5002 = vpop.f32.mrb[0].mxu0
          %v5003 = vadd.f32 %v4909, %v5002
          %v5004 = vpop.f32.mrb[0].mxu0
          %5005 = vmatprep.mubr.f32.mxu0 0.0
          %5006 = vmatmul.mubr.f32.gmra.mrb[0].mxu0 %v4862
          %v5007 = vpop.f32.mrb[0].mxu0
          %v5008 = vadd.f32 %v4909, %v5007
          %v5009 = vpop.f32.mrb[0].mxu0
          %5010 = vmatprep.mubr.f32.mxu0 0.0
          %5011 = vmatmul.mubr.f32.gmra.mrb[0].mxu0 %v4863
          %v5012 = vpop.f32.mrb[0].mxu0
          %v5013 = vadd.f32 %v4909, %v5012
          %v5014 = vpop.f32.mrb[0].mxu0
          %5015 = vmatprep.mubr.f32.mxu0 0.0
          %5016 = vmatmul.mubr.f32.gmra.mrb[0].mxu0 %v4864
          %v5017 = vpop.f32.mrb[0].mxu0
          %v5018 = vadd.f32 %v4909, %v5017
          %v5019 = vpop.f32.mrb[0].mxu0
          %5020 = vmatprep.mubr.f32.mxu0 0.0
          %5021 = vmatmul.mubr.f32.gmra.mrb[0].mxu0 %v4865
          %v5022 = vpop.f32.mrb[0].mxu0
          %v5023 = vadd.f32 %v4909, %v5022
          %v5024 = vpop.f32.mrb[0].mxu0
          %5025 = vmatprep.mubr.f32.mxu0 0.0
          %5026 = vmatmul.mubr.f32.gmra.mrb[0].mxu0 %v4866
          %v5027 = vpop.f32.mrb[0].mxu0
          %v5028 = vadd.f32 %v4909, %v5027
          %v5029 = vpop.f32.mrb[0].mxu0
          %5030 = vmatprep.mubr.f32.mxu0 0.0
          %5031 = vmatmul.mubr.f32.gmra.mrb[0].mxu0 %v4867
          %v5032 = vpop.f32.mrb[0].mxu0
          %v5033 = vadd.f32 %v4909, %v5032
          %v5034 = vpop.f32.mrb[0].mxu0
          %5035 = vmatprep.mubr.f32.mxu0 0.0
          %5036 = vmatmul.mubr.f32.gmra.mrb[0].mxu0 %v4868
          %v5037 = vpop.f32.mrb[0].mxu0
          %v5038 = vadd.f32 %v4909, %v5037
          %v5039 = vpop.f32.mrb[0].mxu0
          %5040 = vmatprep.mubr.f32.mxu0 0.0
          %5041 = vmatmul.mubr.f32.gmra.mrb[0].mxu0 %v4869
          %v5042 = vpop.f32.mrb[0].mxu0
          %v5043 = vadd.f32 %v4909, %v5042
          %v5044 = vpop.f32.mrb[0].mxu0
          %5045 = vmatprep.mubr.f32.mxu0 0.0
          %5046 = vmatmul.mubr.f32.gmra.mrb[0].mxu0 %v4870
          %v5047 = vpop.f32.mrb[0].mxu0
          %v5048 = vadd.f32 %v4909, %v5047
          %v5049 = vpop.f32.mrb[0].mxu0
          %5050 = vmatprep.mubr.f32.mxu0 0.0
          %5051 = vmatmul.mubr.f32.gmra.mrb[0].mxu0 %v4871
          %v5052 = vpop.f32.mrb[0].mxu0
          %v5053 = vadd.f32 %v4909, %v5052
          %v5054 = vpop.f32.mrb[0].mxu0
          %5055 = vmatprep.mubr.f32.mxu0 0.0
          %5056 = vmatmul.mubr.f32.gmra.mrb[0].mxu0 %v4872
          %v5057 = vpop.f32.mrb[0].mxu0
          %v5058 = vadd.f32 %v4909, %v5057
          %v5059 = vpop.f32.mrb[0].mxu0
          %5060 = vmatprep.mubr.f32.mxu0 0.0
          %5061 = vmatmul.mubr.f32.gmra.mrb[0].mxu0 %v4873
          %v5062 = vpop.f32.mrb[0].mxu0
          %v5063 = vadd.f32 %v4909, %v5062
          %v5064 = vpop.f32.mrb[0].mxu0
          %5065 = vmatprep.mubr.f32.mxu0 0.0
          %5066 = vmatmul.mubr.f32.gmra.mrb[0].mxu0 %v4874
          %v5067 = vpop.f32.mrb[0].mxu0
          %v5068 = vadd.f32 %v4909, %v5067
          %v5069 = vpop.f32.mrb[0].mxu0
          %5070 = vmatprep.mubr.f32.mxu0 0.0
          %5071 = vmatmul.mubr.f32.gmra.mrb[0].mxu0 %v4875
          %v5072 = vpop.f32.mrb[0].mxu0
          %v5073 = vadd.f32 %v4909, %v5072
          %v5074 = vpop.f32.mrb[0].mxu0
          %5075 = vmatprep.mubr.f32.mxu0 0.0
          %5076 = vmatmul.mubr.f32.gmra.mrb[0].mxu0 %v4876
          %v5077 = vpop.f32.mrb[0].mxu0
          %v5078 = vadd.f32 %v4909, %v5077
          %v5079 = vpop.f32.mrb[0].mxu0
          %5080 = vmatprep.mubr.f32.mxu0 0.0
          %5081 = vmatmul.mubr.f32.gmra.mrb[0].mxu0 %v4877
          %v5082 = vpop.f32.mrb[0].mxu0
          %v5083 = vadd.f32 %v4909, %v5082
          %v5084 = vpop.f32.mrb[0].mxu0
          %5085 = vmatprep.mubr.f32.mxu0 0.0
          %5086 = vmatmul.mubr.f32.gmra.mrb[0].mxu0 %v4878
          %v5087 = vpop.f32.mrb[0].mxu0
          %v5088 = vadd.f32 %v4909, %v5087
          %v5089 = vpop.f32.mrb[0].mxu0
          %5090 = vmatprep.mubr.f32.mxu0 0.0
          %5091 = vmatmul.mubr.f32.gmra.mrb[0].mxu0 %v4879
          %v5092 = vpop.f32.mrb[0].mxu0
          %v5093 = vadd.f32 %v4909, %v5092
          %v5094 = vpop.f32.mrb[0].mxu0
          %5095 = vmatprep.mubr.f32.mxu0 0.0
          %5096 = vmatmul.mubr.f32.gmra.mrb[0].mxu0 %v4880
          %v5097 = vpop.f32.mrb[0].mxu0
          %v5098 = vadd.f32 %v4909, %v5097
          %v5099 = vpop.f32.mrb[0].mxu0
          %5100 = vmatprep.mubr.f32.mxu0 0.0
          %5101 = vmatmul.mubr.f32.gmra.mrb[0].mxu0 %v4881
          %v5102 = vpop.f32.mrb[0].mxu0
          %v5103 = vadd.f32 %v4909, %v5102
          %v5104 = vpop.f32.mrb[0].mxu0
          %5105 = vmatprep.mubr.f32.mxu0 0.0
          %5106 = vmatmul.mubr.f32.gmra.mrb[0].mxu0 %v4882
          %v5107 = vpop.f32.mrb[0].mxu0
          %v5108 = vadd.f32 %v4909, %v5107
          %v5109 = vpop.f32.mrb[0].mxu0
          %5110 = vmatprep.mubr.f32.mxu0 0.0
          %5111 = vmatmul.mubr.f32.gmra.mrb[0].mxu0 %v4883
          %v5112 = vpop.f32.mrb[0].mxu0
          %v5113 = vadd.f32 %v4909, %v5112
          %v5114 = vpop.f32.mrb[0].mxu0
          %5115 = vmatprep.mubr.f32.mxu0 0.0
          %5116 = vmatmul.mubr.f32.gmra.mrb[0].mxu0 %v4884
          %v5117 = vpop.f32.mrb[0].mxu0
          %v5118 = vadd.f32 %v4909, %v5117
          %v5119 = vpop.f32.mrb[0].mxu0
          %5120 = vmatprep.mubr.f32.mxu0 0.0
          %5121 = vmatmul.mubr.f32.gmra.mrb[0].mxu0 %v4885
          %v5122 = vpop.f32.mrb[0].mxu0
          %v5123 = vadd.f32 %v4909, %v5122
          %v5124 = vpop.f32.mrb[0].mxu0
          %5125 = vmatprep.mubr.f32.mxu0 0.0
          %5126 = vmatmul.mubr.f32.gmra.mrb[0].mxu0 %v4886
          %v5127 = vpop.f32.mrb[0].mxu0
          %v5128 = vadd.f32 %v4909, %v5127
          %v5129 = vpop.f32.mrb[0].mxu0
          %5130 = vmatprep.mubr.f32.mxu0 0.0
          %5131 = vmatmul.mubr.f32.gmra.mrb[0].mxu0 %v4887
          %v5132 = vpop.f32.mrb[0].mxu0
          %v5133 = vadd.f32 %v4909, %v5132
          %v5134 = vpop.f32.mrb[0].mxu0
          %5135 = vdwg.mxu0
          %v5136 = vmax.f32 %v4978, 0.0
          %v5137 = vmax.f32 %v4983, 0.0
          %v5138 = vmax.f32 %v4988, 0.0
          %v5139 = vmax.f32 %v4993, 0.0
          %v5140 = vmax.f32 %v4998, 0.0
          %v5141 = vmax.f32 %v5003, 0.0
          %v5142 = vmax.f32 %v5008, 0.0
          %v5143 = vmax.f32 %v5013, 0.0
          %v5144 = vmax.f32 %v5018, 0.0
          %v5145 = vmax.f32 %v5023, 0.0
          %v5146 = vmax.f32 %v5028, 0.0
          %v5147 = vmax.f32 %v5033, 0.0
          %v5148 = vmax.f32 %v5038, 0.0
          %v5149 = vmax.f32 %v5043, 0.0
          %v5150 = vmax.f32 %v5048, 0.0
          %v5151 = vmax.f32 %v5053, 0.0
          %v5152 = vmax.f32 %v5058, 0.0
          %v5153 = vmax.f32 %v5063, 0.0
          %v5154 = vmax.f32 %v5068, 0.0
          %v5155 = vmax.f32 %v5073, 0.0
          %v5156 = vmax.f32 %v5078, 0.0
          %v5157 = vmax.f32 %v5083, 0.0
          %v5158 = vmax.f32 %v5088, 0.0
          %v5159 = vmax.f32 %v5093, 0.0
          %v5160 = vmax.f32 %v5098, 0.0
          %v5161 = vmax.f32 %v5103, 0.0
          %v5162 = vmax.f32 %v5108, 0.0
          %v5163 = vmax.f32 %v5113, 0.0
          %v5164 = vmax.f32 %v5118, 0.0
          %v5165 = vmax.f32 %v5123, 0.0
          %v5166 = vmax.f32 %v5128, 0.0
          %v5167 = vmax.f32 %v5133, 0.0
          %v5168 = vld [vmem:[#allocation23] sm:$0xff]
          %v5169 = vld [vmem:[#allocation23 + $0x8] sm:$0xff]
          %v5170 = vld [vmem:[#allocation23 + $0x10] sm:$0xff]
          %v5171 = vld [vmem:[#allocation23 + $0x18] sm:$0xff]
          %v5172 = vld [vmem:[#allocation23 + $0x20] sm:$0xff]
          %v5173 = vld [vmem:[#allocation23 + $0x28] sm:$0xff]
          %v5174 = vld [vmem:[#allocation23 + $0x30] sm:$0xff]
          %v5175 = vld [vmem:[#allocation23 + $0x38] sm:$0xff]
          %v5176 = vld [vmem:[#allocation23 + $0x40] sm:$0xff]
          %v5177 = vld [vmem:[#allocation23 + $0x48] sm:$0xff]
          %v5178 = vld [vmem:[#allocation23 + $0x50] sm:$0xff]
          %v5179 = vld [vmem:[#allocation23 + $0x58] sm:$0xff]
          %v5180 = vld [vmem:[#allocation23 + $0x60] sm:$0xff]
          %v5181 = vld [vmem:[#allocation23 + $0x68] sm:$0xff]
          %v5182 = vld [vmem:[#allocation23 + $0x70] sm:$0xff]
          %v5183 = vld [vmem:[#allocation23 + $0x78] sm:$0xff]
          %v5184 = vld [vmem:[%s20] sm:$0x1]
          %v5186 = vlaneseq
          %v5187 = vshrl.u32 %v5186, 7
          %v5188 = vsub.s32 0, %v5187
          %v5189 = vrot.slane %v5184, %v5188
          %5191 = vmatprep.subr.mxu0 0.0
          %5192 = vmatpush1.msra.mxu0 %v5168
          %5193 = vmatprep.subr.mxu0 0.0
          %5194 = vmatpush1.msra.mxu0 %v5169
          %5195 = vmatprep.subr.mxu0 0.0
          %5196 = vmatpush1.msra.mxu0 %v5170
          %5197 = vmatprep.subr.mxu0 0.0
          %5198 = vmatpush1.msra.mxu0 %v5171
          %5199 = vmatprep.subr.mxu0 0.0
          %5200 = vmatpush1.msra.mxu0 %v5172
          %5201 = vmatprep.subr.mxu0 0.0
          %5202 = vmatpush1.msra.mxu0 %v5173
          %5203 = vmatprep.subr.mxu0 0.0
          %5204 = vmatpush1.msra.mxu0 %v5174
          %5205 = vmatprep.subr.mxu0 0.0
          %5206 = vmatpush1.msra.mxu0 %v5175
          %5207 = vmatprep.subr.mxu0 0.0
          %5208 = vmatpush1.msra.mxu0 %v5176
          %5209 = vmatprep.subr.mxu0 0.0
          %5210 = vmatpush1.msra.mxu0 %v5177
          %5211 = vmatprep.subr.mxu0 0.0
          %5212 = vmatpush1.msra.mxu0 %v5178
          %5213 = vmatprep.subr.mxu0 0.0
          %5214 = vmatpush1.msra.mxu0 %v5179
          %5215 = vmatprep.subr.mxu0 0.0
          %5216 = vmatpush1.msra.mxu0 %v5180
          %5217 = vmatprep.subr.mxu0 0.0
          %5218 = vmatpush1.msra.mxu0 %v5181
          %5219 = vmatprep.subr.mxu0 0.0
          %5220 = vmatpush1.msra.mxu0 %v5182
          %5221 = vmatprep.subr.mxu0 0.0
          %5222 = vmatpush1.msra.mxu0 %v5183
          %5223 = vmatprep.subr.mxu0 0.0
          %5224 = vmatpush1.msra.mxu0 0.0
          %5225 = vmatprep.subr.mxu0 0.0
          %5226 = vmatpush1.msra.mxu0 0.0
          %5227 = vmatprep.subr.mxu0 0.0
          %5228 = vmatpush1.msra.mxu0 0.0
          %5229 = vmatprep.subr.mxu0 0.0
          %5230 = vmatpush1.msra.mxu0 0.0
          %5231 = vmatprep.subr.mxu0 0.0
          %5232 = vmatpush1.msra.mxu0 0.0
          %5233 = vmatprep.subr.mxu0 0.0
          %5234 = vmatpush1.msra.mxu0 0.0
          %5235 = vmatprep.subr.mxu0 0.0
          %5236 = vmatpush1.msra.mxu0 0.0
          %5237 = vmatprep.subr.mxu0 0.0
          %5238 = vmatpush1.msra.mxu0 0.0
          %5239 = vmatprep.subr.mxu0 0.0
          %5240 = vmatpush1.msra.mxu0 0.0
          %5241 = vmatprep.subr.mxu0 0.0
          %5242 = vmatpush1.msra.mxu0 0.0
          %5243 = vmatprep.subr.mxu0 0.0
          %5244 = vmatpush1.msra.mxu0 0.0
          %5245 = vmatprep.subr.mxu0 0.0
          %5246 = vmatpush1.msra.mxu0 0.0
          %5247 = vmatprep.subr.mxu0 0.0
          %5248 = vmatpush1.msra.mxu0 0.0
          %5249 = vmatprep.subr.mxu0 0.0
          %5250 = vmatpush1.msra.mxu0 0.0
          %5251 = vmatprep.subr.mxu0 0.0
          %5252 = vmatpush1.msra.mxu0 0.0
          %5253 = vmatprep.subr.mxu0 0.0
          %5254 = vmatpush1.msra.mxu0 0.0
          %5255 = vmatprep.mubr.f32.mxu0 0.0
          %5256 = vmatmul.mubr.f32.gmra.mrb[0].mxu0 %v5136
          %v5257 = vpop.f32.mrb[0].mxu0
          %v5258 = vadd.f32 %v5189, %v5257
          %v5259 = vpop.f32.mrb[0].mxu0
          %5260 = vmatprep.mubr.f32.mxu0 0.0
          %5261 = vmatmul.mubr.f32.gmra.mrb[0].mxu0 %v5137
          %v5262 = vpop.f32.mrb[0].mxu0
          %v5263 = vadd.f32 %v5189, %v5262
          %v5264 = vpop.f32.mrb[0].mxu0
          %5265 = vmatprep.mubr.f32.mxu0 0.0
          %5266 = vmatmul.mubr.f32.gmra.mrb[0].mxu0 %v5138
          %v5267 = vpop.f32.mrb[0].mxu0
          %v5268 = vadd.f32 %v5189, %v5267
          %v5269 = vpop.f32.mrb[0].mxu0
          %5270 = vmatprep.mubr.f32.mxu0 0.0
          %5271 = vmatmul.mubr.f32.gmra.mrb[0].mxu0 %v5139
          %v5272 = vpop.f32.mrb[0].mxu0
          %v5273 = vadd.f32 %v5189, %v5272
          %v5274 = vpop.f32.mrb[0].mxu0
          %5275 = vmatprep.mubr.f32.mxu0 0.0
          %5276 = vmatmul.mubr.f32.gmra.mrb[0].mxu0 %v5140
          %v5277 = vpop.f32.mrb[0].mxu0
          %v5278 = vadd.f32 %v5189, %v5277
          %v5279 = vpop.f32.mrb[0].mxu0
          %5280 = vmatprep.mubr.f32.mxu0 0.0
          %5281 = vmatmul.mubr.f32.gmra.mrb[0].mxu0 %v5141
          %v5282 = vpop.f32.mrb[0].mxu0
          %v5283 = vadd.f32 %v5189, %v5282
          %v5284 = vpop.f32.mrb[0].mxu0
          %5285 = vmatprep.mubr.f32.mxu0 0.0
          %5286 = vmatmul.mubr.f32.gmra.mrb[0].mxu0 %v5142
          %v5287 = vpop.f32.mrb[0].mxu0
          %v5288 = vadd.f32 %v5189, %v5287
          %v5289 = vpop.f32.mrb[0].mxu0
          %5290 = vmatprep.mubr.f32.mxu0 0.0
          %5291 = vmatmul.mubr.f32.gmra.mrb[0].mxu0 %v5143
          %v5292 = vpop.f32.mrb[0].mxu0
          %v5293 = vadd.f32 %v5189, %v5292
          %v5294 = vpop.f32.mrb[0].mxu0
          %5295 = vmatprep.mubr.f32.mxu0 0.0
          %5296 = vmatmul.mubr.f32.gmra.mrb[0].mxu0 %v5144
          %v5297 = vpop.f32.mrb[0].mxu0
          %v5298 = vadd.f32 %v5189, %v5297
          %v5299 = vpop.f32.mrb[0].mxu0
          %5300 = vmatprep.mubr.f32.mxu0 0.0
          %5301 = vmatmul.mubr.f32.gmra.mrb[0].mxu0 %v5145
          %v5302 = vpop.f32.mrb[0].mxu0
          %v5303 = vadd.f32 %v5189, %v5302
          %v5304 = vpop.f32.mrb[0].mxu0
          %5305 = vmatprep.mubr.f32.mxu0 0.0
          %5306 = vmatmul.mubr.f32.gmra.mrb[0].mxu0 %v5146
          %v5307 = vpop.f32.mrb[0].mxu0
          %v5308 = vadd.f32 %v5189, %v5307
          %v5309 = vpop.f32.mrb[0].mxu0
          %5310 = vmatprep.mubr.f32.mxu0 0.0
          %5311 = vmatmul.mubr.f32.gmra.mrb[0].mxu0 %v5147
          %v5312 = vpop.f32.mrb[0].mxu0
          %v5313 = vadd.f32 %v5189, %v5312
          %v5314 = vpop.f32.mrb[0].mxu0
          %5315 = vmatprep.mubr.f32.mxu0 0.0
          %5316 = vmatmul.mubr.f32.gmra.mrb[0].mxu0 %v5148
          %v5317 = vpop.f32.mrb[0].mxu0
          %v5318 = vadd.f32 %v5189, %v5317
          %v5319 = vpop.f32.mrb[0].mxu0
          %5320 = vmatprep.mubr.f32.mxu0 0.0
          %5321 = vmatmul.mubr.f32.gmra.mrb[0].mxu0 %v5149
          %v5322 = vpop.f32.mrb[0].mxu0
          %v5323 = vadd.f32 %v5189, %v5322
          %v5324 = vpop.f32.mrb[0].mxu0
          %5325 = vmatprep.mubr.f32.mxu0 0.0
          %5326 = vmatmul.mubr.f32.gmra.mrb[0].mxu0 %v5150
          %v5327 = vpop.f32.mrb[0].mxu0
          %v5328 = vadd.f32 %v5189, %v5327
          %v5329 = vpop.f32.mrb[0].mxu0
          %5330 = vmatprep.mubr.f32.mxu0 0.0
          %5331 = vmatmul.mubr.f32.gmra.mrb[0].mxu0 %v5151
          %v5332 = vpop.f32.mrb[0].mxu0
          %v5333 = vadd.f32 %v5189, %v5332
          %v5334 = vpop.f32.mrb[0].mxu0
          %5335 = vmatprep.mubr.f32.mxu0 0.0
          %5336 = vmatmul.mubr.f32.gmra.mrb[0].mxu0 %v5152
          %v5337 = vpop.f32.mrb[0].mxu0
          %v5338 = vadd.f32 %v5189, %v5337
          %v5339 = vpop.f32.mrb[0].mxu0
          %5340 = vmatprep.mubr.f32.mxu0 0.0
          %5341 = vmatmul.mubr.f32.gmra.mrb[0].mxu0 %v5153
          %v5342 = vpop.f32.mrb[0].mxu0
          %v5343 = vadd.f32 %v5189, %v5342
          %v5344 = vpop.f32.mrb[0].mxu0
          %5345 = vmatprep.mubr.f32.mxu0 0.0
          %5346 = vmatmul.mubr.f32.gmra.mrb[0].mxu0 %v5154
          %v5347 = vpop.f32.mrb[0].mxu0
          %v5348 = vadd.f32 %v5189, %v5347
          %v5349 = vpop.f32.mrb[0].mxu0
          %5350 = vmatprep.mubr.f32.mxu0 0.0
          %5351 = vmatmul.mubr.f32.gmra.mrb[0].mxu0 %v5155
          %v5352 = vpop.f32.mrb[0].mxu0
          %v5353 = vadd.f32 %v5189, %v5352
          %v5354 = vpop.f32.mrb[0].mxu0
          %5355 = vmatprep.mubr.f32.mxu0 0.0
          %5356 = vmatmul.mubr.f32.gmra.mrb[0].mxu0 %v5156
          %v5357 = vpop.f32.mrb[0].mxu0
          %v5358 = vadd.f32 %v5189, %v5357
          %v5359 = vpop.f32.mrb[0].mxu0
          %5360 = vmatprep.mubr.f32.mxu0 0.0
          %5361 = vmatmul.mubr.f32.gmra.mrb[0].mxu0 %v5157
          %v5362 = vpop.f32.mrb[0].mxu0
          %v5363 = vadd.f32 %v5189, %v5362
          %v5364 = vpop.f32.mrb[0].mxu0
          %5365 = vmatprep.mubr.f32.mxu0 0.0
          %5366 = vmatmul.mubr.f32.gmra.mrb[0].mxu0 %v5158
          %v5367 = vpop.f32.mrb[0].mxu0
          %v5368 = vadd.f32 %v5189, %v5367
          %v5369 = vpop.f32.mrb[0].mxu0
          %5370 = vmatprep.mubr.f32.mxu0 0.0
          %5371 = vmatmul.mubr.f32.gmra.mrb[0].mxu0 %v5159
          %v5372 = vpop.f32.mrb[0].mxu0
          %v5373 = vadd.f32 %v5189, %v5372
          %v5374 = vpop.f32.mrb[0].mxu0
          %5375 = vmatprep.mubr.f32.mxu0 0.0
          %5376 = vmatmul.mubr.f32.gmra.mrb[0].mxu0 %v5160
          %v5377 = vpop.f32.mrb[0].mxu0
          %v5378 = vadd.f32 %v5189, %v5377
          %v5379 = vpop.f32.mrb[0].mxu0
          %5380 = vmatprep.mubr.f32.mxu0 0.0
          %5381 = vmatmul.mubr.f32.gmra.mrb[0].mxu0 %v5161
          %v5382 = vpop.f32.mrb[0].mxu0
          %v5383 = vadd.f32 %v5189, %v5382
          %v5384 = vpop.f32.mrb[0].mxu0
          %5385 = vmatprep.mubr.f32.mxu0 0.0
          %5386 = vmatmul.mubr.f32.gmra.mrb[0].mxu0 %v5162
          %v5387 = vpop.f32.mrb[0].mxu0
          %v5388 = vadd.f32 %v5189, %v5387
          %v5389 = vpop.f32.mrb[0].mxu0
          %5390 = vmatprep.mubr.f32.mxu0 0.0
          %5391 = vmatmul.mubr.f32.gmra.mrb[0].mxu0 %v5163
          %v5392 = vpop.f32.mrb[0].mxu0
          %v5393 = vadd.f32 %v5189, %v5392
          %v5394 = vpop.f32.mrb[0].mxu0
          %5395 = vmatprep.mubr.f32.mxu0 0.0
          %5396 = vmatmul.mubr.f32.gmra.mrb[0].mxu0 %v5164
          %v5397 = vpop.f32.mrb[0].mxu0
          %v5398 = vadd.f32 %v5189, %v5397
          %v5399 = vpop.f32.mrb[0].mxu0
          %5400 = vmatprep.mubr.f32.mxu0 0.0
          %5401 = vmatmul.mubr.f32.gmra.mrb[0].mxu0 %v5165
          %v5402 = vpop.f32.mrb[0].mxu0
          %v5403 = vadd.f32 %v5189, %v5402
          %v5404 = vpop.f32.mrb[0].mxu0
          %5405 = vmatprep.mubr.f32.mxu0 0.0
          %5406 = vmatmul.mubr.f32.gmra.mrb[0].mxu0 %v5166
          %v5407 = vpop.f32.mrb[0].mxu0
          %v5408 = vadd.f32 %v5189, %v5407
          %v5409 = vpop.f32.mrb[0].mxu0
          %5410 = vmatprep.mubr.f32.mxu0 0.0
          %5411 = vmatmul.mubr.f32.gmra.mrb[0].mxu0 %v5167
          %v5412 = vpop.f32.mrb[0].mxu0
          %v5413 = vadd.f32 %v5189, %v5412
          %v5414 = vpop.f32.mrb[0].mxu0
          %5415 = vdwg.mxu0
          %s5416 = sld [smem:[#allocation4]]
          %v5417 = vstv %s5416
          %v5418 = vmul.f32 %v3890, %v5417
          %v5419 = vmul.f32 %v3895, %v5417
          %v5420 = vmul.f32 %v3900, %v5417
          %v5421 = vmul.f32 %v3905, %v5417
          %v5422 = vmul.f32 %v3910, %v5417
          %v5423 = vmul.f32 %v3915, %v5417
          %v5424 = vmul.f32 %v3920, %v5417
          %v5425 = vmul.f32 %v3925, %v5417
          %v5426 = vmul.f32 %v3930, %v5417
          %v5427 = vmul.f32 %v3935, %v5417
          %v5428 = vmul.f32 %v3940, %v5417
          %v5429 = vmul.f32 %v3945, %v5417
          %v5430 = vmul.f32 %v3950, %v5417
          %v5431 = vmul.f32 %v3955, %v5417
          %v5432 = vmul.f32 %v3960, %v5417
          %v5433 = vmul.f32 %v3965, %v5417
          %v5434 = vmul.f32 %v3970, %v5417
          %v5435 = vmul.f32 %v3975, %v5417
          %v5436 = vmul.f32 %v3980, %v5417
          %v5437 = vmul.f32 %v3985, %v5417
          %v5438 = vmul.f32 %v3990, %v5417
          %v5439 = vmul.f32 %v3995, %v5417
          %v5440 = vmul.f32 %v4000, %v5417
          %v5441 = vmul.f32 %v4005, %v5417
          %v5442 = vmul.f32 %v4010, %v5417
          %v5443 = vmul.f32 %v4015, %v5417
          %v5444 = vmul.f32 %v4020, %v5417
          %v5445 = vmul.f32 %v4025, %v5417
          %v5446 = vmul.f32 %v4030, %v5417
          %v5447 = vmul.f32 %v4035, %v5417
          %v5448 = vmul.f32 %v4040, %v5417
          %v5449 = vmul.f32 %v4045, %v5417
          %v5450 = vadd.f32 %v5418, %v4698
          %v5451 = vadd.f32 %v5419, %v4703
          %v5452 = vadd.f32 %v5420, %v4708
          %v5453 = vadd.f32 %v5421, %v4713
          %v5454 = vadd.f32 %v5422, %v4718
          %v5455 = vadd.f32 %v5423, %v4723
          %v5456 = vadd.f32 %v5424, %v4728
          %v5457 = vadd.f32 %v5425, %v4733
          %v5458 = vadd.f32 %v5426, %v4738
          %v5459 = vadd.f32 %v5427, %v4743
          %v5460 = vadd.f32 %v5428, %v4748
          %v5461 = vadd.f32 %v5429, %v4753
          %v5462 = vadd.f32 %v5430, %v4758
          %v5463 = vadd.f32 %v5431, %v4763
          %v5464 = vadd.f32 %v5432, %v4768
          %v5465 = vadd.f32 %v5433, %v4773
          %v5466 = vadd.f32 %v5434, %v4778
          %v5467 = vadd.f32 %v5435, %v4783
          %v5468 = vadd.f32 %v5436, %v4788
          %v5469 = vadd.f32 %v5437, %v4793
          %v5470 = vadd.f32 %v5438, %v4798
          %v5471 = vadd.f32 %v5439, %v4803
          %v5472 = vadd.f32 %v5440, %v4808
          %v5473 = vadd.f32 %v5441, %v4813
          %v5474 = vadd.f32 %v5442, %v4818
          %v5475 = vadd.f32 %v5443, %v4823
          %v5476 = vadd.f32 %v5444, %v4828
          %v5477 = vadd.f32 %v5445, %v4833
          %v5478 = vadd.f32 %v5446, %v4838
          %v5479 = vadd.f32 %v5447, %v4843
          %v5480 = vadd.f32 %v5448, %v4848
          %v5481 = vadd.f32 %v5449, %v4853
          %v5482 = vadd.f32 %v5450, %v5258
          %v5483 = vadd.f32 %v5451, %v5263
          %v5484 = vadd.f32 %v5452, %v5268
          %v5485 = vadd.f32 %v5453, %v5273
          %v5486 = vadd.f32 %v5454, %v5278
          %v5487 = vadd.f32 %v5455, %v5283
          %v5488 = vadd.f32 %v5456, %v5288
          %v5489 = vadd.f32 %v5457, %v5293
          %v5490 = vadd.f32 %v5458, %v5298
          %v5491 = vadd.f32 %v5459, %v5303
          %v5492 = vadd.f32 %v5460, %v5308
          %v5493 = vadd.f32 %v5461, %v5313
          %v5494 = vadd.f32 %v5462, %v5318
          %v5495 = vadd.f32 %v5463, %v5323
          %v5496 = vadd.f32 %v5464, %v5328
          %v5497 = vadd.f32 %v5465, %v5333
          %v5498 = vadd.f32 %v5466, %v5338
          %v5499 = vadd.f32 %v5467, %v5343
          %v5500 = vadd.f32 %v5468, %v5348
          %v5501 = vadd.f32 %v5469, %v5353
          %v5502 = vadd.f32 %v5470, %v5358
          %v5503 = vadd.f32 %v5471, %v5363
          %v5504 = vadd.f32 %v5472, %v5368
          %v5505 = vadd.f32 %v5473, %v5373
          %v5506 = vadd.f32 %v5474, %v5378
          %v5507 = vadd.f32 %v5475, %v5383
          %v5508 = vadd.f32 %v5476, %v5388
          %v5509 = vadd.f32 %v5477, %v5393
          %v5510 = vadd.f32 %v5478, %v5398
          %v5511 = vadd.f32 %v5479, %v5403
          %v5512 = vadd.f32 %v5480, %v5408
          %v5513 = vadd.f32 %v5481, %v5413
          %v5514 = vld [vmem:[#allocation25] sm:$0xff]
          %v5515 = vld [vmem:[#allocation25 + $0x8] sm:$0xff]
          %v5516 = vld [vmem:[#allocation25 + $0x10] sm:$0xff]
          %v5517 = vld [vmem:[#allocation25 + $0x18] sm:$0xff]
          %v5518 = vld [vmem:[#allocation25 + $0x20] sm:$0xff]
          %v5519 = vld [vmem:[#allocation25 + $0x28] sm:$0xff]
          %v5520 = vld [vmem:[#allocation25 + $0x30] sm:$0xff]
          %v5521 = vld [vmem:[#allocation25 + $0x38] sm:$0xff]
          %v5522 = vld [vmem:[#allocation25 + $0x40] sm:$0xff]
          %v5523 = vld [vmem:[#allocation25 + $0x48] sm:$0xff]
          %v5524 = vld [vmem:[#allocation25 + $0x50] sm:$0xff]
          %v5525 = vld [vmem:[#allocation25 + $0x58] sm:$0xff]
          %v5526 = vld [vmem:[#allocation25 + $0x60] sm:$0xff]
          %v5527 = vld [vmem:[#allocation25 + $0x68] sm:$0xff]
          %v5528 = vld [vmem:[#allocation25 + $0x70] sm:$0xff]
          %v5529 = vld [vmem:[#allocation25 + $0x78] sm:$0xff]
          %v5530 = vld [vmem:[%s22] sm:$0x1]
          %v5532 = vlaneseq
          %v5533 = vshrl.u32 %v5532, 7
          %v5534 = vsub.s32 0, %v5533
          %v5535 = vrot.slane %v5530, %v5534
          %5537 = vmatprep.subr.mxu0 0.0
          %5538 = vmatpush1.msra.mxu0 %v5514
          %5539 = vmatprep.subr.mxu0 0.0
          %5540 = vmatpush1.msra.mxu0 %v5515
          %5541 = vmatprep.subr.mxu0 0.0
          %5542 = vmatpush1.msra.mxu0 %v5516
          %5543 = vmatprep.subr.mxu0 0.0
          %5544 = vmatpush1.msra.mxu0 %v5517
          %5545 = vmatprep.subr.mxu0 0.0
          %5546 = vmatpush1.msra.mxu0 %v5518
          %5547 = vmatprep.subr.mxu0 0.0
          %5548 = vmatpush1.msra.mxu0 %v5519
          %5549 = vmatprep.subr.mxu0 0.0
          %5550 = vmatpush1.msra.mxu0 %v5520
          %5551 = vmatprep.subr.mxu0 0.0
          %5552 = vmatpush1.msra.mxu0 %v5521
          %5553 = vmatprep.subr.mxu0 0.0
          %5554 = vmatpush1.msra.mxu0 %v5522
          %5555 = vmatprep.subr.mxu0 0.0
          %5556 = vmatpush1.msra.mxu0 %v5523
          %5557 = vmatprep.subr.mxu0 0.0
          %5558 = vmatpush1.msra.mxu0 %v5524
          %5559 = vmatprep.subr.mxu0 0.0
          %5560 = vmatpush1.msra.mxu0 %v5525
          %5561 = vmatprep.subr.mxu0 0.0
          %5562 = vmatpush1.msra.mxu0 %v5526
          %5563 = vmatprep.subr.mxu0 0.0
          %5564 = vmatpush1.msra.mxu0 %v5527
          %5565 = vmatprep.subr.mxu0 0.0
          %5566 = vmatpush1.msra.mxu0 %v5528
          %5567 = vmatprep.subr.mxu0 0.0
          %5568 = vmatpush1.msra.mxu0 %v5529
          %5569 = vmatprep.subr.mxu0 0.0
          %5570 = vmatpush1.msra.mxu0 0.0
          %5571 = vmatprep.subr.mxu0 0.0
          %5572 = vmatpush1.msra.mxu0 0.0
          %5573 = vmatprep.subr.mxu0 0.0
          %5574 = vmatpush1.msra.mxu0 0.0
          %5575 = vmatprep.subr.mxu0 0.0
          %5576 = vmatpush1.msra.mxu0 0.0
          %5577 = vmatprep.subr.mxu0 0.0
          %5578 = vmatpush1.msra.mxu0 0.0
          %5579 = vmatprep.subr.mxu0 0.0
          %5580 = vmatpush1.msra.mxu0 0.0
          %5581 = vmatprep.subr.mxu0 0.0
          %5582 = vmatpush1.msra.mxu0 0.0
          %5583 = vmatprep.subr.mxu0 0.0
          %5584 = vmatpush1.msra.mxu0 0.0
          %5585 = vmatprep.subr.mxu0 0.0
          %5586 = vmatpush1.msra.mxu0 0.0
          %5587 = vmatprep.subr.mxu0 0.0
          %5588 = vmatpush1.msra.mxu0 0.0
          %5589 = vmatprep.subr.mxu0 0.0
          %5590 = vmatpush1.msra.mxu0 0.0
          %5591 = vmatprep.subr.mxu0 0.0
          %5592 = vmatpush1.msra.mxu0 0.0
          %5593 = vmatprep.subr.mxu0 0.0
          %5594 = vmatpush1.msra.mxu0 0.0
          %5595 = vmatprep.subr.mxu0 0.0
          %5596 = vmatpush1.msra.mxu0 0.0
          %5597 = vmatprep.subr.mxu0 0.0
          %5598 = vmatpush1.msra.mxu0 0.0
          %5599 = vmatprep.subr.mxu0 0.0
          %5600 = vmatpush1.msra.mxu0 0.0
          %5601 = vmatprep.mubr.f32.mxu0 0.0
          %5602 = vmatmul.mubr.f32.gmra.mrb[0].mxu0 %v5482
          %v5603 = vpop.f32.mrb[0].mxu0
          %v5604 = vadd.f32 %v5535, %v5603
          %v5605 = vpop.f32.mrb[0].mxu0
          %5606 = vmatprep.mubr.f32.mxu0 0.0
          %5607 = vmatmul.mubr.f32.gmra.mrb[0].mxu0 %v5483
          %v5608 = vpop.f32.mrb[0].mxu0
          %v5609 = vadd.f32 %v5535, %v5608
          %v5610 = vpop.f32.mrb[0].mxu0
          %5611 = vmatprep.mubr.f32.mxu0 0.0
          %5612 = vmatmul.mubr.f32.gmra.mrb[0].mxu0 %v5484
          %v5613 = vpop.f32.mrb[0].mxu0
          %v5614 = vadd.f32 %v5535, %v5613
          %v5615 = vpop.f32.mrb[0].mxu0
          %5616 = vmatprep.mubr.f32.mxu0 0.0
          %5617 = vmatmul.mubr.f32.gmra.mrb[0].mxu0 %v5485
          %v5618 = vpop.f32.mrb[0].mxu0
          %v5619 = vadd.f32 %v5535, %v5618
          %v5620 = vpop.f32.mrb[0].mxu0
          %5621 = vmatprep.mubr.f32.mxu0 0.0
          %5622 = vmatmul.mubr.f32.gmra.mrb[0].mxu0 %v5486
          %v5623 = vpop.f32.mrb[0].mxu0
          %v5624 = vadd.f32 %v5535, %v5623
          %v5625 = vpop.f32.mrb[0].mxu0
          %5626 = vmatprep.mubr.f32.mxu0 0.0
          %5627 = vmatmul.mubr.f32.gmra.mrb[0].mxu0 %v5487
          %v5628 = vpop.f32.mrb[0].mxu0
          %v5629 = vadd.f32 %v5535, %v5628
          %v5630 = vpop.f32.mrb[0].mxu0
          %5631 = vmatprep.mubr.f32.mxu0 0.0
          %5632 = vmatmul.mubr.f32.gmra.mrb[0].mxu0 %v5488
          %v5633 = vpop.f32.mrb[0].mxu0
          %v5634 = vadd.f32 %v5535, %v5633
          %v5635 = vpop.f32.mrb[0].mxu0
          %5636 = vmatprep.mubr.f32.mxu0 0.0
          %5637 = vmatmul.mubr.f32.gmra.mrb[0].mxu0 %v5489
          %v5638 = vpop.f32.mrb[0].mxu0
          %v5639 = vadd.f32 %v5535, %v5638
          %v5640 = vpop.f32.mrb[0].mxu0
          %5641 = vmatprep.mubr.f32.mxu0 0.0
          %5642 = vmatmul.mubr.f32.gmra.mrb[0].mxu0 %v5490
          %v5643 = vpop.f32.mrb[0].mxu0
          %v5644 = vadd.f32 %v5535, %v5643
          %v5645 = vpop.f32.mrb[0].mxu0
          %5646 = vmatprep.mubr.f32.mxu0 0.0
          %5647 = vmatmul.mubr.f32.gmra.mrb[0].mxu0 %v5491
          %v5648 = vpop.f32.mrb[0].mxu0
          %v5649 = vadd.f32 %v5535, %v5648
          %v5650 = vpop.f32.mrb[0].mxu0
          %5651 = vmatprep.mubr.f32.mxu0 0.0
          %5652 = vmatmul.mubr.f32.gmra.mrb[0].mxu0 %v5492
          %v5653 = vpop.f32.mrb[0].mxu0
          %v5654 = vadd.f32 %v5535, %v5653
          %v5655 = vpop.f32.mrb[0].mxu0
          %5656 = vmatprep.mubr.f32.mxu0 0.0
          %5657 = vmatmul.mubr.f32.gmra.mrb[0].mxu0 %v5493
          %v5658 = vpop.f32.mrb[0].mxu0
          %v5659 = vadd.f32 %v5535, %v5658
          %v5660 = vpop.f32.mrb[0].mxu0
          %5661 = vmatprep.mubr.f32.mxu0 0.0
          %5662 = vmatmul.mubr.f32.gmra.mrb[0].mxu0 %v5494
          %v5663 = vpop.f32.mrb[0].mxu0
          %v5664 = vadd.f32 %v5535, %v5663
          %v5665 = vpop.f32.mrb[0].mxu0
          %5666 = vmatprep.mubr.f32.mxu0 0.0
          %5667 = vmatmul.mubr.f32.gmra.mrb[0].mxu0 %v5495
          %v5668 = vpop.f32.mrb[0].mxu0
          %v5669 = vadd.f32 %v5535, %v5668
          %v5670 = vpop.f32.mrb[0].mxu0
          %5671 = vmatprep.mubr.f32.mxu0 0.0
          %5672 = vmatmul.mubr.f32.gmra.mrb[0].mxu0 %v5496
          %v5673 = vpop.f32.mrb[0].mxu0
          %v5674 = vadd.f32 %v5535, %v5673
          %v5675 = vpop.f32.mrb[0].mxu0
          %5676 = vmatprep.mubr.f32.mxu0 0.0
          %5677 = vmatmul.mubr.f32.gmra.mrb[0].mxu0 %v5497
          %v5678 = vpop.f32.mrb[0].mxu0
          %v5679 = vadd.f32 %v5535, %v5678
          %v5680 = vpop.f32.mrb[0].mxu0
          %5681 = vmatprep.mubr.f32.mxu0 0.0
          %5682 = vmatmul.mubr.f32.gmra.mrb[0].mxu0 %v5498
          %v5683 = vpop.f32.mrb[0].mxu0
          %v5684 = vadd.f32 %v5535, %v5683
          %v5685 = vpop.f32.mrb[0].mxu0
          %5686 = vmatprep.mubr.f32.mxu0 0.0
          %5687 = vmatmul.mubr.f32.gmra.mrb[0].mxu0 %v5499
          %v5688 = vpop.f32.mrb[0].mxu0
          %v5689 = vadd.f32 %v5535, %v5688
          %v5690 = vpop.f32.mrb[0].mxu0
          %5691 = vmatprep.mubr.f32.mxu0 0.0
          %5692 = vmatmul.mubr.f32.gmra.mrb[0].mxu0 %v5500
          %v5693 = vpop.f32.mrb[0].mxu0
          %v5694 = vadd.f32 %v5535, %v5693
          %v5695 = vpop.f32.mrb[0].mxu0
          %5696 = vmatprep.mubr.f32.mxu0 0.0
          %5697 = vmatmul.mubr.f32.gmra.mrb[0].mxu0 %v5501
          %v5698 = vpop.f32.mrb[0].mxu0
          %v5699 = vadd.f32 %v5535, %v5698
          %v5700 = vpop.f32.mrb[0].mxu0
          %5701 = vmatprep.mubr.f32.mxu0 0.0
          %5702 = vmatmul.mubr.f32.gmra.mrb[0].mxu0 %v5502
          %v5703 = vpop.f32.mrb[0].mxu0
          %v5704 = vadd.f32 %v5535, %v5703
          %v5705 = vpop.f32.mrb[0].mxu0
          %5706 = vmatprep.mubr.f32.mxu0 0.0
          %5707 = vmatmul.mubr.f32.gmra.mrb[0].mxu0 %v5503
          %v5708 = vpop.f32.mrb[0].mxu0
          %v5709 = vadd.f32 %v5535, %v5708
          %v5710 = vpop.f32.mrb[0].mxu0
          %5711 = vmatprep.mubr.f32.mxu0 0.0
          %5712 = vmatmul.mubr.f32.gmra.mrb[0].mxu0 %v5504
          %v5713 = vpop.f32.mrb[0].mxu0
          %v5714 = vadd.f32 %v5535, %v5713
          %v5715 = vpop.f32.mrb[0].mxu0
          %5716 = vmatprep.mubr.f32.mxu0 0.0
          %5717 = vmatmul.mubr.f32.gmra.mrb[0].mxu0 %v5505
          %v5718 = vpop.f32.mrb[0].mxu0
          %v5719 = vadd.f32 %v5535, %v5718
          %v5720 = vpop.f32.mrb[0].mxu0
          %5721 = vmatprep.mubr.f32.mxu0 0.0
          %5722 = vmatmul.mubr.f32.gmra.mrb[0].mxu0 %v5506
          %v5723 = vpop.f32.mrb[0].mxu0
          %v5724 = vadd.f32 %v5535, %v5723
          %v5725 = vpop.f32.mrb[0].mxu0
          %5726 = vmatprep.mubr.f32.mxu0 0.0
          %5727 = vmatmul.mubr.f32.gmra.mrb[0].mxu0 %v5507
          %v5728 = vpop.f32.mrb[0].mxu0
          %v5729 = vadd.f32 %v5535, %v5728
          %v5730 = vpop.f32.mrb[0].mxu0
          %5731 = vmatprep.mubr.f32.mxu0 0.0
          %5732 = vmatmul.mubr.f32.gmra.mrb[0].mxu0 %v5508
          %v5733 = vpop.f32.mrb[0].mxu0
          %v5734 = vadd.f32 %v5535, %v5733
          %v5735 = vpop.f32.mrb[0].mxu0
          %5736 = vmatprep.mubr.f32.mxu0 0.0
          %5737 = vmatmul.mubr.f32.gmra.mrb[0].mxu0 %v5509
          %v5738 = vpop.f32.mrb[0].mxu0
          %v5739 = vadd.f32 %v5535, %v5738
          %v5740 = vpop.f32.mrb[0].mxu0
          %5741 = vmatprep.mubr.f32.mxu0 0.0
          %5742 = vmatmul.mubr.f32.gmra.mrb[0].mxu0 %v5510
          %v5743 = vpop.f32.mrb[0].mxu0
          %v5744 = vadd.f32 %v5535, %v5743
          %v5745 = vpop.f32.mrb[0].mxu0
          %5746 = vmatprep.mubr.f32.mxu0 0.0
          %5747 = vmatmul.mubr.f32.gmra.mrb[0].mxu0 %v5511
          %v5748 = vpop.f32.mrb[0].mxu0
          %v5749 = vadd.f32 %v5535, %v5748
          %v5750 = vpop.f32.mrb[0].mxu0
          %5751 = vmatprep.mubr.f32.mxu0 0.0
          %5752 = vmatmul.mubr.f32.gmra.mrb[0].mxu0 %v5512
          %v5753 = vpop.f32.mrb[0].mxu0
          %v5754 = vadd.f32 %v5535, %v5753
          %v5755 = vpop.f32.mrb[0].mxu0
          %5756 = vmatprep.mubr.f32.mxu0 0.0
          %5757 = vmatmul.mubr.f32.gmra.mrb[0].mxu0 %v5513
          %v5758 = vpop.f32.mrb[0].mxu0
          %v5759 = vadd.f32 %v5535, %v5758
          %v5760 = vpop.f32.mrb[0].mxu0
          %5761 = vdwg.mxu0
          %v5762 = vmax.f32 %v5604, 0.0
          %v5763 = vmax.f32 %v5609, 0.0
          %v5764 = vmax.f32 %v5614, 0.0
          %v5765 = vmax.f32 %v5619, 0.0
          %v5766 = vmax.f32 %v5624, 0.0
          %v5767 = vmax.f32 %v5629, 0.0
          %v5768 = vmax.f32 %v5634, 0.0
          %v5769 = vmax.f32 %v5639, 0.0
          %v5770 = vmax.f32 %v5644, 0.0
          %v5771 = vmax.f32 %v5649, 0.0
          %v5772 = vmax.f32 %v5654, 0.0
          %v5773 = vmax.f32 %v5659, 0.0
          %v5774 = vmax.f32 %v5664, 0.0
          %v5775 = vmax.f32 %v5669, 0.0
          %v5776 = vmax.f32 %v5674, 0.0
          %v5777 = vmax.f32 %v5679, 0.0
          %v5778 = vmax.f32 %v5684, 0.0
          %v5779 = vmax.f32 %v5689, 0.0
          %v5780 = vmax.f32 %v5694, 0.0
          %v5781 = vmax.f32 %v5699, 0.0
          %v5782 = vmax.f32 %v5704, 0.0
          %v5783 = vmax.f32 %v5709, 0.0
          %v5784 = vmax.f32 %v5714, 0.0
          %v5785 = vmax.f32 %v5719, 0.0
          %v5786 = vmax.f32 %v5724, 0.0
          %v5787 = vmax.f32 %v5729, 0.0
          %v5788 = vmax.f32 %v5734, 0.0
          %v5789 = vmax.f32 %v5739, 0.0
          %v5790 = vmax.f32 %v5744, 0.0
          %v5791 = vmax.f32 %v5749, 0.0
          %v5792 = vmax.f32 %v5754, 0.0
          %v5793 = vmax.f32 %v5759, 0.0
          %v5794 = vld [vmem:[#allocation26] sm:$0xff]
          %v5795 = vld [vmem:[#allocation26 + $0x8] sm:$0xff]
          %v5796 = vld [vmem:[#allocation26 + $0x10] sm:$0xff]
          %v5797 = vld [vmem:[#allocation26 + $0x18] sm:$0xff]
          %v5798 = vld [vmem:[#allocation26 + $0x20] sm:$0xff]
          %v5799 = vld [vmem:[#allocation26 + $0x28] sm:$0xff]
          %v5800 = vld [vmem:[#allocation26 + $0x30] sm:$0xff]
          %v5801 = vld [vmem:[#allocation26 + $0x38] sm:$0xff]
          %v5802 = vld [vmem:[#allocation26 + $0x40] sm:$0xff]
          %v5803 = vld [vmem:[#allocation26 + $0x48] sm:$0xff]
          %v5804 = vld [vmem:[#allocation26 + $0x50] sm:$0xff]
          %v5805 = vld [vmem:[#allocation26 + $0x58] sm:$0xff]
          %v5806 = vld [vmem:[#allocation26 + $0x60] sm:$0xff]
          %v5807 = vld [vmem:[#allocation26 + $0x68] sm:$0xff]
          %v5808 = vld [vmem:[#allocation26 + $0x70] sm:$0xff]
          %v5809 = vld [vmem:[#allocation26 + $0x78] sm:$0xff]
          %v5810 = vld [vmem:[%s24] sm:$0x1]
          %v5812 = vlaneseq
          %v5813 = vshrl.u32 %v5812, 7
          %v5814 = vsub.s32 0, %v5813
          %v5815 = vrot.slane %v5810, %v5814
          %5817 = vmatprep.subr.mxu0 0.0
          %5818 = vmatpush1.msra.mxu0 %v5794
          %5819 = vmatprep.subr.mxu0 0.0
          %5820 = vmatpush1.msra.mxu0 %v5795
          %5821 = vmatprep.subr.mxu0 0.0
          %5822 = vmatpush1.msra.mxu0 %v5796
          %5823 = vmatprep.subr.mxu0 0.0
          %5824 = vmatpush1.msra.mxu0 %v5797
          %5825 = vmatprep.subr.mxu0 0.0
          %5826 = vmatpush1.msra.mxu0 %v5798
          %5827 = vmatprep.subr.mxu0 0.0
          %5828 = vmatpush1.msra.mxu0 %v5799
          %5829 = vmatprep.subr.mxu0 0.0
          %5830 = vmatpush1.msra.mxu0 %v5800
          %5831 = vmatprep.subr.mxu0 0.0
          %5832 = vmatpush1.msra.mxu0 %v5801
          %5833 = vmatprep.subr.mxu0 0.0
          %5834 = vmatpush1.msra.mxu0 %v5802
          %5835 = vmatprep.subr.mxu0 0.0
          %5836 = vmatpush1.msra.mxu0 %v5803
          %5837 = vmatprep.subr.mxu0 0.0
          %5838 = vmatpush1.msra.mxu0 %v5804
          %5839 = vmatprep.subr.mxu0 0.0
          %5840 = vmatpush1.msra.mxu0 %v5805
          %5841 = vmatprep.subr.mxu0 0.0
          %5842 = vmatpush1.msra.mxu0 %v5806
          %5843 = vmatprep.subr.mxu0 0.0
          %5844 = vmatpush1.msra.mxu0 %v5807
          %5845 = vmatprep.subr.mxu0 0.0
          %5846 = vmatpush1.msra.mxu0 %v5808
          %5847 = vmatprep.subr.mxu0 0.0
          %5848 = vmatpush1.msra.mxu0 %v5809
          %5849 = vmatprep.subr.mxu0 0.0
          %5850 = vmatpush1.msra.mxu0 0.0
          %5851 = vmatprep.subr.mxu0 0.0
          %5852 = vmatpush1.msra.mxu0 0.0
          %5853 = vmatprep.subr.mxu0 0.0
          %5854 = vmatpush1.msra.mxu0 0.0
          %5855 = vmatprep.subr.mxu0 0.0
          %5856 = vmatpush1.msra.mxu0 0.0
          %5857 = vmatprep.subr.mxu0 0.0
          %5858 = vmatpush1.msra.mxu0 0.0
          %5859 = vmatprep.subr.mxu0 0.0
          %5860 = vmatpush1.msra.mxu0 0.0
          %5861 = vmatprep.subr.mxu0 0.0
          %5862 = vmatpush1.msra.mxu0 0.0
          %5863 = vmatprep.subr.mxu0 0.0
          %5864 = vmatpush1.msra.mxu0 0.0
          %5865 = vmatprep.subr.mxu0 0.0
          %5866 = vmatpush1.msra.mxu0 0.0
          %5867 = vmatprep.subr.mxu0 0.0
          %5868 = vmatpush1.msra.mxu0 0.0
          %5869 = vmatprep.subr.mxu0 0.0
          %5870 = vmatpush1.msra.mxu0 0.0
          %5871 = vmatprep.subr.mxu0 0.0
          %5872 = vmatpush1.msra.mxu0 0.0
          %5873 = vmatprep.subr.mxu0 0.0
          %5874 = vmatpush1.msra.mxu0 0.0
          %5875 = vmatprep.subr.mxu0 0.0
          %5876 = vmatpush1.msra.mxu0 0.0
          %5877 = vmatprep.subr.mxu0 0.0
          %5878 = vmatpush1.msra.mxu0 0.0
          %5879 = vmatprep.subr.mxu0 0.0
          %5880 = vmatpush1.msra.mxu0 0.0
          %5881 = vmatprep.mubr.f32.mxu0 0.0
          %5882 = vmatmul.mubr.f32.gmra.mrb[0].mxu0 %v5762
          %v5883 = vpop.f32.mrb[0].mxu0
          %v5884 = vadd.f32 %v5815, %v5883
          %v5885 = vpop.f32.mrb[0].mxu0
          %5886 = vmatprep.mubr.f32.mxu0 0.0
          %5887 = vmatmul.mubr.f32.gmra.mrb[0].mxu0 %v5763
          %v5888 = vpop.f32.mrb[0].mxu0
          %v5889 = vadd.f32 %v5815, %v5888
          %v5890 = vpop.f32.mrb[0].mxu0
          %5891 = vmatprep.mubr.f32.mxu0 0.0
          %5892 = vmatmul.mubr.f32.gmra.mrb[0].mxu0 %v5764
          %v5893 = vpop.f32.mrb[0].mxu0
          %v5894 = vadd.f32 %v5815, %v5893
          %v5895 = vpop.f32.mrb[0].mxu0
          %5896 = vmatprep.mubr.f32.mxu0 0.0
          %5897 = vmatmul.mubr.f32.gmra.mrb[0].mxu0 %v5765
          %v5898 = vpop.f32.mrb[0].mxu0
          %v5899 = vadd.f32 %v5815, %v5898
          %v5900 = vpop.f32.mrb[0].mxu0
          %5901 = vmatprep.mubr.f32.mxu0 0.0
          %5902 = vmatmul.mubr.f32.gmra.mrb[0].mxu0 %v5766
          %v5903 = vpop.f32.mrb[0].mxu0
          %v5904 = vadd.f32 %v5815, %v5903
          %v5905 = vpop.f32.mrb[0].mxu0
          %5906 = vmatprep.mubr.f32.mxu0 0.0
          %5907 = vmatmul.mubr.f32.gmra.mrb[0].mxu0 %v5767
          %v5908 = vpop.f32.mrb[0].mxu0
          %v5909 = vadd.f32 %v5815, %v5908
          %v5910 = vpop.f32.mrb[0].mxu0
          %5911 = vmatprep.mubr.f32.mxu0 0.0
          %5912 = vmatmul.mubr.f32.gmra.mrb[0].mxu0 %v5768
          %v5913 = vpop.f32.mrb[0].mxu0
          %v5914 = vadd.f32 %v5815, %v5913
          %v5915 = vpop.f32.mrb[0].mxu0
          %5916 = vmatprep.mubr.f32.mxu0 0.0
          %5917 = vmatmul.mubr.f32.gmra.mrb[0].mxu0 %v5769
          %v5918 = vpop.f32.mrb[0].mxu0
          %v5919 = vadd.f32 %v5815, %v5918
          %v5920 = vpop.f32.mrb[0].mxu0
          %5921 = vmatprep.mubr.f32.mxu0 0.0
          %5922 = vmatmul.mubr.f32.gmra.mrb[0].mxu0 %v5770
          %v5923 = vpop.f32.mrb[0].mxu0
          %v5924 = vadd.f32 %v5815, %v5923
          %v5925 = vpop.f32.mrb[0].mxu0
          %5926 = vmatprep.mubr.f32.mxu0 0.0
          %5927 = vmatmul.mubr.f32.gmra.mrb[0].mxu0 %v5771
          %v5928 = vpop.f32.mrb[0].mxu0
          %v5929 = vadd.f32 %v5815, %v5928
          %v5930 = vpop.f32.mrb[0].mxu0
          %5931 = vmatprep.mubr.f32.mxu0 0.0
          %5932 = vmatmul.mubr.f32.gmra.mrb[0].mxu0 %v5772
          %v5933 = vpop.f32.mrb[0].mxu0
          %v5934 = vadd.f32 %v5815, %v5933
          %v5935 = vpop.f32.mrb[0].mxu0
          %5936 = vmatprep.mubr.f32.mxu0 0.0
          %5937 = vmatmul.mubr.f32.gmra.mrb[0].mxu0 %v5773
          %v5938 = vpop.f32.mrb[0].mxu0
          %v5939 = vadd.f32 %v5815, %v5938
          %v5940 = vpop.f32.mrb[0].mxu0
          %5941 = vmatprep.mubr.f32.mxu0 0.0
          %5942 = vmatmul.mubr.f32.gmra.mrb[0].mxu0 %v5774
          %v5943 = vpop.f32.mrb[0].mxu0
          %v5944 = vadd.f32 %v5815, %v5943
          %v5945 = vpop.f32.mrb[0].mxu0
          %5946 = vmatprep.mubr.f32.mxu0 0.0
          %5947 = vmatmul.mubr.f32.gmra.mrb[0].mxu0 %v5775
          %v5948 = vpop.f32.mrb[0].mxu0
          %v5949 = vadd.f32 %v5815, %v5948
          %v5950 = vpop.f32.mrb[0].mxu0
          %5951 = vmatprep.mubr.f32.mxu0 0.0
          %5952 = vmatmul.mubr.f32.gmra.mrb[0].mxu0 %v5776
          %v5953 = vpop.f32.mrb[0].mxu0
          %v5954 = vadd.f32 %v5815, %v5953
          %v5955 = vpop.f32.mrb[0].mxu0
          %5956 = vmatprep.mubr.f32.mxu0 0.0
          %5957 = vmatmul.mubr.f32.gmra.mrb[0].mxu0 %v5777
          %v5958 = vpop.f32.mrb[0].mxu0
          %v5959 = vadd.f32 %v5815, %v5958
          %v5960 = vpop.f32.mrb[0].mxu0
          %5961 = vmatprep.mubr.f32.mxu0 0.0
          %5962 = vmatmul.mubr.f32.gmra.mrb[0].mxu0 %v5778
          %v5963 = vpop.f32.mrb[0].mxu0
          %v5964 = vadd.f32 %v5815, %v5963
          %v5965 = vpop.f32.mrb[0].mxu0
          %5966 = vmatprep.mubr.f32.mxu0 0.0
          %5967 = vmatmul.mubr.f32.gmra.mrb[0].mxu0 %v5779
          %v5968 = vpop.f32.mrb[0].mxu0
          %v5969 = vadd.f32 %v5815, %v5968
          %v5970 = vpop.f32.mrb[0].mxu0
          %5971 = vmatprep.mubr.f32.mxu0 0.0
          %5972 = vmatmul.mubr.f32.gmra.mrb[0].mxu0 %v5780
          %v5973 = vpop.f32.mrb[0].mxu0
          %v5974 = vadd.f32 %v5815, %v5973
          %v5975 = vpop.f32.mrb[0].mxu0
          %5976 = vmatprep.mubr.f32.mxu0 0.0
          %5977 = vmatmul.mubr.f32.gmra.mrb[0].mxu0 %v5781
          %v5978 = vpop.f32.mrb[0].mxu0
          %v5979 = vadd.f32 %v5815, %v5978
          %v5980 = vpop.f32.mrb[0].mxu0
          %5981 = vmatprep.mubr.f32.mxu0 0.0
          %5982 = vmatmul.mubr.f32.gmra.mrb[0].mxu0 %v5782
          %v5983 = vpop.f32.mrb[0].mxu0
          %v5984 = vadd.f32 %v5815, %v5983
          %v5985 = vpop.f32.mrb[0].mxu0
          %5986 = vmatprep.mubr.f32.mxu0 0.0
          %5987 = vmatmul.mubr.f32.gmra.mrb[0].mxu0 %v5783
          %v5988 = vpop.f32.mrb[0].mxu0
          %v5989 = vadd.f32 %v5815, %v5988
          %v5990 = vpop.f32.mrb[0].mxu0
          %5991 = vmatprep.mubr.f32.mxu0 0.0
          %5992 = vmatmul.mubr.f32.gmra.mrb[0].mxu0 %v5784
          %v5993 = vpop.f32.mrb[0].mxu0
          %v5994 = vadd.f32 %v5815, %v5993
          %v5995 = vpop.f32.mrb[0].mxu0
          %5996 = vmatprep.mubr.f32.mxu0 0.0
          %5997 = vmatmul.mubr.f32.gmra.mrb[0].mxu0 %v5785
          %v5998 = vpop.f32.mrb[0].mxu0
          %v5999 = vadd.f32 %v5815, %v5998
          %v6000 = vpop.f32.mrb[0].mxu0
          %6001 = vmatprep.mubr.f32.mxu0 0.0
          %6002 = vmatmul.mubr.f32.gmra.mrb[0].mxu0 %v5786
          %v6003 = vpop.f32.mrb[0].mxu0
          %v6004 = vadd.f32 %v5815, %v6003
          %v6005 = vpop.f32.mrb[0].mxu0
          %6006 = vmatprep.mubr.f32.mxu0 0.0
          %6007 = vmatmul.mubr.f32.gmra.mrb[0].mxu0 %v5787
          %v6008 = vpop.f32.mrb[0].mxu0
          %v6009 = vadd.f32 %v5815, %v6008
          %v6010 = vpop.f32.mrb[0].mxu0
          %6011 = vmatprep.mubr.f32.mxu0 0.0
          %6012 = vmatmul.mubr.f32.gmra.mrb[0].mxu0 %v5788
          %v6013 = vpop.f32.mrb[0].mxu0
          %v6014 = vadd.f32 %v5815, %v6013
          %v6015 = vpop.f32.mrb[0].mxu0
          %6016 = vmatprep.mubr.f32.mxu0 0.0
          %6017 = vmatmul.mubr.f32.gmra.mrb[0].mxu0 %v5789
          %v6018 = vpop.f32.mrb[0].mxu0
          %v6019 = vadd.f32 %v5815, %v6018
          %v6020 = vpop.f32.mrb[0].mxu0
          %6021 = vmatprep.mubr.f32.mxu0 0.0
          %6022 = vmatmul.mubr.f32.gmra.mrb[0].mxu0 %v5790
          %v6023 = vpop.f32.mrb[0].mxu0
          %v6024 = vadd.f32 %v5815, %v6023
          %v6025 = vpop.f32.mrb[0].mxu0
          %6026 = vmatprep.mubr.f32.mxu0 0.0
          %6027 = vmatmul.mubr.f32.gmra.mrb[0].mxu0 %v5791
          %v6028 = vpop.f32.mrb[0].mxu0
          %v6029 = vadd.f32 %v5815, %v6028
          %v6030 = vpop.f32.mrb[0].mxu0
          %6031 = vmatprep.mubr.f32.mxu0 0.0
          %6032 = vmatmul.mubr.f32.gmra.mrb[0].mxu0 %v5792
          %v6033 = vpop.f32.mrb[0].mxu0
          %v6034 = vadd.f32 %v5815, %v6033
          %v6035 = vpop.f32.mrb[0].mxu0
          %6036 = vmatprep.mubr.f32.mxu0 0.0
          %6037 = vmatmul.mubr.f32.gmra.mrb[0].mxu0 %v5793
          %v6038 = vpop.f32.mrb[0].mxu0
          %v6039 = vadd.f32 %v5815, %v6038
          %v6040 = vpop.f32.mrb[0].mxu0
          %6041 = vdwg.mxu0
          %6042 = vst [vmem:[%s1044] sm:$0xff] %v5884
          %6043 = vst [vmem:[%s1044 + $0x8] sm:$0xff] %v5889
          %6044 = vst [vmem:[%s1044 + $0x10] sm:$0xff] %v5894
          %6045 = vst [vmem:[%s1044 + $0x18] sm:$0xff] %v5899
          %6046 = vst [vmem:[%s1044 + $0x20] sm:$0xff] %v5904
          %6047 = vst [vmem:[%s1044 + $0x28] sm:$0xff] %v5909
          %6048 = vst [vmem:[%s1044 + $0x30] sm:$0xff] %v5914
          %6049 = vst [vmem:[%s1044 + $0x38] sm:$0xff] %v5919
          %6050 = vst [vmem:[%s1044 + $0x40] sm:$0xff] %v5924
          %6051 = vst [vmem:[%s1044 + $0x48] sm:$0xff] %v5929
          %6052 = vst [vmem:[%s1044 + $0x50] sm:$0xff] %v5934
          %6053 = vst [vmem:[%s1044 + $0x58] sm:$0xff] %v5939
          %6054 = vst [vmem:[%s1044 + $0x60] sm:$0xff] %v5944
          %6055 = vst [vmem:[%s1044 + $0x68] sm:$0xff] %v5949
          %6056 = vst [vmem:[%s1044 + $0x70] sm:$0xff] %v5954
          %6057 = vst [vmem:[%s1044 + $0x78] sm:$0xff] %v5959
          %6058 = vst [vmem:[%s1044 + $0x80] sm:$0xff] %v5964
          %6059 = vst [vmem:[%s1044 + $0x88] sm:$0xff] %v5969
          %6060 = vst [vmem:[%s1044 + $0x90] sm:$0xff] %v5974
          %6061 = vst [vmem:[%s1044 + $0x98] sm:$0xff] %v5979
          %6062 = vst [vmem:[%s1044 + $0xa0] sm:$0xff] %v5984
          %6063 = vst [vmem:[%s1044 + $0xa8] sm:$0xff] %v5989
          %6064 = vst [vmem:[%s1044 + $0xb0] sm:$0xff] %v5994
          %6065 = vst [vmem:[%s1044 + $0xb8] sm:$0xff] %v5999
          %6066 = vst [vmem:[%s1044 + $0xc0] sm:$0xff] %v6004
          %6067 = vst [vmem:[%s1044 + $0xc8] sm:$0xff] %v6009
          %6068 = vst [vmem:[%s1044 + $0xd0] sm:$0xff] %v6014
          %6069 = vst [vmem:[%s1044 + $0xd8] sm:$0xff] %v6019
          %6070 = vst [vmem:[%s1044 + $0xe0] sm:$0xff] %v6024
          %6071 = vst [vmem:[%s1044 + $0xe8] sm:$0xff] %v6029
          %6072 = vst [vmem:[%s1044 + $0xf0] sm:$0xff] %v6034
          %6073 = vst [vmem:[%s1044 + $0xf8] sm:$0xff] %v6039
        $region184: #{tpu_custom_call.1} parent=119 // pred_fallthru
          _
        %s6074 = sand.u32 %s618, 1
        %s6075 = scalar_lea.sflag [#allocation7], %s6074
        %s6076 = sand.u32 %s618, 1
        %s6077 = smul.addr %s6076, 256
        %s6078 = scalar_lea.vmem [#allocation28], %s6077
        // Predicated region
        $region185: #{tpu_custom_call.1} parent=119 // pred_check
          %p6079 = pneg %p628
        $region186: #{tpu_custom_call.1} parent=119 // pred_check_branch
          %6081 = sbr.rel (%p6079) target = $region188
        $region187: #{tpu_custom_call.1} parent=119 // pred_region
          %s6082 = smul.u32 32, %s58
          %s6084 = ssub.s32 4096, 4096
          %6085 = vsyncadd %s6075, %s6084
          %s6086 = smul.addr %s6082, 128
          %s6087 = scalar_lea.hbm %s25, %s6086
          %s6088 = sshll.u32 %s6078, 4
          %s6089 = int_to_ptr.vmem [resolvable:$true] %s6088
          %6094 = dma.vmem_to_hbm [thread:$0]  %s6089, 4096, %s6087, %s6075, 128, 128, 8
        $region188: #{tpu_custom_call.1} parent=119 // pred_fallthru
          _
      $region120: #{tpu_custom_call.1} parent=5 // pred_fallthru
        _
      %p6095 = scmp.le.s32.totalorder 2, %s49
      // Predicated region
      $region189: #{tpu_custom_call.1} parent=5 // pred_check
        %p6096 = pneg %p6095
      $region190: #{tpu_custom_call.1} parent=5 // pred_check_branch
        %6098 = sbr.rel (%p6096) target = $region192
      $region191: #{tpu_custom_call.1} parent=5 // pred_region
        %s6099 = ssub.s32 %s49, 2
        // Predicated region
        $region193: #{tpu_custom_call.1} parent=191 // pred_check
          %p6100 = pneg %p634
        $region194: #{tpu_custom_call.1} parent=191 // pred_check_branch
          %6102 = sbr.rel (%p6100) target = $region196
        $region195: #{tpu_custom_call.1} parent=191 // pred_region
          %s6103 = sand.u32 %s619, 1
          %s6104 = scalar_lea.sflag [#allocation7], %s6103
          %s6105 = sand.u32 %s619, 1
          %s6106 = smul.addr %s6105, 256
          %s6107 = scalar_lea.vmem [#allocation28], %s6106
          %6108 = dma.done %s6104, 4096
        $region196: #{tpu_custom_call.1} parent=191 // pred_fallthru
          _
      $region192: #{tpu_custom_call.1} parent=5 // pred_fallthru
        _
    $region6: #{tpu_custom_call.1} parent=1 // loop_footer
      %s53 = sadd.s32 1, %s49
    $region7: #{tpu_custom_call.1} parent=1 // loop_footer_branch
      %48 = sbr.rel target = $region3
    $region8: #{tpu_custom_call.1} parent=1 // loop_exit
      _
    %6109 = vsyncpa [#allocation6], 1
    %s6110 = scalar_lea.sflag [#allocation6], 1
    %6111 = vsyncpa %s6110, 1
    %6112 = vsyncpa [#allocation9], 1
    %s6113 = scalar_lea.sflag [#allocation9], 1
    %6114 = vsyncpa %s6113, 1
    %6115 = vsyncpa [#allocation12], 1
    %s6116 = scalar_lea.sflag [#allocation12], 1
    %6117 = vsyncpa %s6116, 1
    %6118 = vsyncpa [#allocation15], 1
    %6119 = vsyncpa [#allocation18], 1
    %6120 = vsyncpa [#allocation21], 1
    %6121 = vsyncpa [#allocation24], 1
    %6122 = vsyncpa [#allocation27], 1
    %6123 = vsyncpa [#allocation7], 1
    %s6124 = scalar_lea.sflag [#allocation7], 1
    %6125 = vsyncpa %s6124, 1

</llo_original>
